<compile_context>
chip_gen: v7x
topology: tpu7x:2x2x1
jax: 0.10.0
libtpu: 0.0.40
codegen_flags: <defaults>
</compile_context>

<pallas_src>
import numpy as np

import jax
import jax.numpy as jnp
from jax import lax
from jax.experimental import pallas as pl
from jax.experimental.pallas import tpu as pltpu

MAX_LOGVAR = 5.0


def _ceil8(n):
    return ((n + 7) // 8) * 8


# ----------------------------------------------------------------------------
# Host-side construction of the per-layer operator matrices (pure numpy).
#
# Every layer is computed in-kernel as
#     out = Gcat @ vstack_k( A @ Hz[k] ) + bias
# where A is the input activation in (C*H, B*W) layout (rows = channel *
# image-row, lanes = batch-major columns), Hz[k] is a tiny 0/1 column selector
# (horizontal padding / stride / transposed-conv dilation, block-diag over the
# lane-resident batch) and Gcat carries the conv / FC weights + vertical
# gather, tap-concatenated along its contraction dimension and SHARED across
# batch.
# ----------------------------------------------------------------------------
def _conv_layer_ops(w, b, B, Hi, Wi, stride, pad, transposed=False, out_pad=0, ri=None):
    """Conv2d / ConvTranspose2d operators for the (C*H, B*W) layout."""
    w = np.asarray(w, np.float32)
    b = np.asarray(b, np.float32)
    k = w.shape[-1]
    if transposed:
        Ci, Co = w.shape[0], w.shape[1]
        wmat = np.transpose(w, (1, 0, 2, 3))              # (Co, Ci, kh, kw)
        Ho = (Hi - 1) * stride - 2 * pad + k + out_pad
        Wo = (Wi - 1) * stride - 2 * pad + k + out_pad

        def src(o, t, n):                                  # output coord -> input coord
            s = o + pad - t
            if s % stride:
                return None
            s //= stride
            return s if 0 <= s < n else None
    else:
        Co, Ci = w.shape[0], w.shape[1]
        wmat = w
        Ho = (Hi + 2 * pad - k) // stride + 1
        Wo = (Wi + 2 * pad - k) // stride + 1

        def src(o, t, n):
            s = stride * o + t - pad
            return s if 0 <= s < n else None

    Ri = ri if ri is not None else Ci * Hi                 # laid-out input rows (>= Ci*Hi)
    hz = np.zeros((k, B * Wi, B * Wo), np.float32)
    gcat = np.zeros((Co * Ho, k * Ri), np.float32)
    for kw in range(k):
        for j in range(Wo):
            s = src(j, kw, Wi)
            if s is not None:
                for bb in range(B):
                    hz[kw, bb * Wi + s, bb * Wo + j] = 1.0
        g = np.zeros((Co, Ho, Ci, Hi), np.float32)
        for kh in range(k):
            for i in range(Ho):
                hs = src(i, kh, Hi)
                if hs is not None:
                    g[:, i, :, hs] += wmat[:, :, kh, kw]
        gcat[:, kw * Ri:kw * Ri + Ci * Hi] = g.reshape(Co * Ho, Ci * Hi)
    bias = np.repeat(b, Ho).reshape(Co * Ho, 1).astype(np.float32)
    return gcat, hz, bias


def _enc_fc_ops(Wf, bf, B, C, Hi, Wi, h, hp):
    """Flatten + Linear(C*Hi*Wi -> 2h), mean/logvar heads MERGED.

    Consumes the (C*Hi, B*Wi) activation; produces (2*hp, B):
    rows [0, h) = mean, rows [hp, hp+h) = logvar, remaining rows zero (padding
    so downstream sublane blocks stay 8-aligned)."""
    Wf = np.asarray(Wf, np.float32).reshape(2 * h, C, Hi, Wi)
    bf = np.asarray(bf, np.float32)
    Ri = C * Hi
    hz = np.zeros((Wi, B * Wi, B), np.float32)
    gcat = np.zeros((2 * hp, Wi * Ri), np.float32)
    bias = np.zeros((2 * hp, 1), np.float32)
    for wcol in range(Wi):
        for bb in range(B):
            hz[wcol, bb * Wi + wcol, bb] = 1.0
        blk = Wf[:, :, :, wcol].reshape(2 * h, Ri)
        gcat[0:h, wcol * Ri:(wcol + 1) * Ri] = blk[0:h]
        gcat[hp:hp + h, wcol * Ri:(wcol + 1) * Ri] = blk[h:2 * h]
    bias[0:h, 0] = bf[0:h]
    bias[hp:hp + h, 0] = bf[h:2 * h]
    return gcat, hz, bias


def _dec_fc_ops(Wd, bd, B, hp, h, C, Ho, Wo):
    """Linear(h -> C*Ho*Wo) + Unflatten.  Consumes z in (hp, B) layout
    (rows = latent feature, zero-padded to hp rows); produces (C*Ho, B*Wo)."""
    Wd = np.asarray(Wd, np.float32).reshape(C, Ho, Wo, h)
    bd = np.asarray(bd, np.float32).reshape(C, Ho, Wo)
    hz = np.zeros((Wo, B, B * Wo), np.float32)
    gcat = np.zeros((C * Ho, Wo * hp), np.float32)
    for j in range(Wo):
        for bb in range(B):
            hz[j, bb, bb * Wo + j] = 1.0
        gcat[:, j * hp:j * hp + h] = Wd[:, :, j, :].reshape(C * Ho, h)
    bias = np.tile(bd.reshape(C * Ho, Wo), (1, B)).astype(np.float32)   # (C*Ho, B*Wo)
    return gcat, hz, bias


def build_operators(pt, B, L, h):
    """Build the 7 per-layer operator triples (Gcat, Hz, bias).

    Gcat / Hz are cast to bfloat16 (halves DMA bytes, native MXU rate; the 0/1
    Hz selectors are exact in bf16); biases stay f32."""
    Hp = _ceil8(h)
    layers = [
        _conv_layer_ops(pt["enc_conv1_w"], pt["enc_conv1_b"], B, 28, 28, 2, 1, ri=_ceil8(28)),
        _conv_layer_ops(pt["enc_conv2_w"], pt["enc_conv2_b"], B, 14, 14, 2, 1),
        _enc_fc_ops(pt["enc_fc_w"], pt["enc_fc_b"], B, 2 * L, 7, 7, h, Hp),
        _dec_fc_ops(pt["dec_fc_w"], pt["dec_fc_b"], B, Hp, h, L, 7, 7),
        _conv_layer_ops(pt["dec_ct1_w"], pt["dec_ct1_b"], B, 7, 7, 2, 1, transposed=True, out_pad=1),
        _conv_layer_ops(pt["dec_ct2_w"], pt["dec_ct2_b"], B, 14, 14, 2, 1, transposed=True, out_pad=1),
        _conv_layer_ops(pt["dec_ct3_w"], pt["dec_ct3_b"], B, 28, 28, 1, 1, transposed=True, out_pad=0),
    ]
    return tuple(
        (jnp.asarray(g, jnp.bfloat16), jnp.asarray(hz, jnp.bfloat16), jnp.asarray(bias, jnp.float32))
        for g, hz, bias in layers)


# ----------------------------------------------------------------------------
# The fused Pallas kernel: whole VAE forward, everything VMEM-resident.
# ----------------------------------------------------------------------------
def _vae_fused_kernel(
        x_ref, eps_ref,
        g1, hz1, b1,                 # encoder conv1
        g2, hz2, b2,                 # encoder conv2
        gf, hzf, bfc,                # encoder FC (mean || logvar, merged heads)
        gd, hzd, bd,                 # decoder FC (+ unflatten)
        g3, hz3, b3,                 # decoder convT1
        g4, hz4, b4,                 # decoder convT2
        g5, hz5, b5,                 # decoder convT3
        recon_ref, mean_ref, logvar_ref,
        t_ref):                      # shared VMEM scratch for tap-stacked gathers

    def layer(a, g_ref, hz_ref, b_ref):
        k = hz_ref.shape[0]          # number of horizontal taps (3 or 7), static
        ri = a.shape[0]              # input rows (multiple of 8 by construction)
        wo = hz_ref.shape[2]         # output lanes = B * W_out
        a16 = a.astype(jnp.bfloat16)
        # k tiny column-gather matmuls, stacked along sublanes into the scratch
        for kk in range(k):          # static unroll
            t_ref[kk * ri:(kk + 1) * ri, 0:wo] = jnp.dot(
                a16, hz_ref[kk], preferred_element_type=jnp.float32)
        # ONE big matmul: taps folded into the contraction dimension
        t16 = t_ref[0:k * ri, 0:wo].astype(jnp.bfloat16)
        out = jnp.dot(g_ref[...], t16, preferred_element_type=jnp.float32)
        return out + b_ref[...]

    def relu(v):
        return jnp.maximum(v, 0.0)

    # ---- encoder ----
    a = relu(layer(x_ref[...], g1, hz1, b1))          # (L*14,  B*14)
    a = relu(layer(a, g2, hz2, b2))                   # (2L*7,  B*7)
    enc = layer(a, gf, hzf, bfc)                      # (2*Hp,  B)  [mean_pad ; logvar_pad]
    hp = enc.shape[0] // 2
    mean = enc[0:hp, :]
    logvar = jnp.clip(enc[hp:, :], -MAX_LOGVAR, MAX_LOGVAR)

    # ---- reparameterization (training path; eps supplied by caller) ----
    z = mean + eps_ref[...] * jnp.exp(0.5 * logvar)   # (Hp, B); pad rows stay 0

    # ---- decoder ----
    d = relu(layer(z, gd, hzd, bd))                   # (L*7,   B*7)
    d = relu(layer(d, g3, hz3, b3))                   # (2L*14, B*14)
    d = relu(layer(d, g4, hz4, b4))                   # (L*28,  B*28)
    pre = layer(d, g5, hz5, b5)                       # (28,    B*28)

    # sigmoid: exp + reciprocal both live in the EUP slot
    recon_ref[...] = pl.reciprocal(1.0 + jnp.exp(-pre), approx=True)
    mean_ref[...] = mean
    logvar_ref[...] = logvar


def vae_forward(operators, x, eps):
    """Forward pass matching VariationalAutoEncoder.forward (training=True,
    use_relative_space=False).  Returns (recon, mean, logvar)."""
    B, _, H, W = x.shape
    h = eps.shape[1]
    Hp = _ceil8(h)
    Hx = _ceil8(H)

    # (B,1,H,W) -> (H_pad, B*W): rows = image row (zero-padded to mult. of 8),
    # lanes = (batch, column) batch-major.
    x2d = jnp.transpose(x[:, 0, :, :], (1, 0, 2)).reshape(H, B * W)
    x2d = jnp.pad(x2d, ((0, Hx - H), (0, 0)))
    # eps: (B, h) -> (Hp, B) with zero pad rows (so padded z rows stay zero).
    eps2d = jnp.pad(eps, ((0, 0), (0, Hp - h))).T

    flat_ops = tuple(a for layer_ops in operators for a in layer_ops)
    # Shared tap-stacking scratch sized for the largest layer.
    t_rows = max(int(l[0].shape[1]) for l in operators)     # max k * Ri
    t_cols = max(int(l[1].shape[2]) for l in operators)     # max B * W_out

    out_shape = (
        jax.ShapeDtypeStruct((H, B * W), jnp.float32),       # recon, lane-dense (28, B*28)
        jax.ShapeDtypeStruct((Hp, B), jnp.float32),          # mean  (padded rows)
        jax.ShapeDtypeStruct((Hp, B), jnp.float32),          # logvar (clipped, padded rows)
    )
    n_in = 2 + len(flat_ops)
    recon2d, mean2d, logvar2d = pl.pallas_call(
        _vae_fused_kernel,
        out_shape=out_shape,
        in_specs=[pl.BlockSpec(memory_space=pltpu.MemorySpace.VMEM)] * n_in,
        out_specs=tuple(pl.BlockSpec(memory_space=pltpu.MemorySpace.VMEM) for _ in range(3)),
        scratch_shapes=[pltpu.VMEM((t_rows, t_cols), jnp.float32)],
    )(x2d, eps2d, *flat_ops)

    recon = recon2d.reshape(H, B, W).transpose(1, 0, 2).reshape(B, 1, H, W)
    mean = mean2d[:h, :].T
    logvar = logvar2d[:h, :].T
    return recon, mean, logvar


# ----------------------------------------------------------------------------
# Independent pure-JAX reference (true conv semantics) for validation.
# ----------------------------------------------------------------------------
def _ref_conv(x, w, b, stride, pad):
    y = lax.conv_general_dilated(
        x, w, (stride, stride), ((pad, pad), (pad, pad)),
        dimension_numbers=("NCHW", "OIHW", "NCHW"))
    return y + b.reshape(1, -1, 1, 1)


def _ref_convt(x, w, b, stride, pad, out_pad):
    wf = jnp.flip(w, axis=(2, 3)).transpose(1, 0, 2, 3)
    lo, hi = 2 - pad, 2 - pad + out_pad
    y = lax.conv_general_dilated(
        x, wf, (1, 1), ((lo, hi), (lo, hi)),
        lhs_dilation=(stride, stride),
        dimension_numbers=("NCHW", "OIHW", "NCHW"))
    return y + b.reshape(1, -1, 1, 1)


def reference_forward(pt, x, eps, L, h):
    B = x.shape[0]
    a = jax.nn.relu(_ref_conv(x, pt["enc_conv1_w"], pt["enc_conv1_b"], 2, 1))
    a = jax.nn.relu(_ref_conv(a, pt["enc_conv2_w"], pt["enc_conv2_b"], 2, 1))
    flat = a.reshape(B, -1)
    enc = flat @ pt["enc_fc_w"].T + pt["enc_fc_b"]
    mean = enc[:, :h]
    logvar = jnp.clip(enc[:, h:], -MAX_LOGVAR, MAX_LOGVAR)
    z = mean + eps * jnp.exp(0.5 * logvar)
    d = jax.nn.relu(z @ pt["dec_fc_w"].T + pt["dec_fc_b"]).reshape(B, L, 7, 7)
    d = jax.nn.relu(_ref_convt(d, pt["dec_ct1_w"], pt["dec_ct1_b"], 2, 1, 1))
    d = jax.nn.relu(_ref_convt(d, pt["dec_ct2_w"], pt["dec_ct2_b"], 2, 1, 1))
    recon = jax.nn.sigmoid(_ref_convt(d, pt["dec_ct3_w"], pt["dec_ct3_b"], 1, 1, 0))
    return recon, mean, logvar


# ----------------------------------------------------------------------------
# Deterministic synthetic parameters (PyTorch-shaped).
# ----------------------------------------------------------------------------
def init_torch_shaped_params(key, layer_size, hidden):
    L, h = layer_size, hidden
    ks = jax.random.split(key, 14)

    def nrm(k, shape, scale=0.05):
        return (scale * jax.random.normal(k, shape)).astype(jnp.float32)

    return dict(
        enc_conv1_w=nrm(ks[0], (L, 1, 3, 3)),        enc_conv1_b=nrm(ks[1], (L,)),
        enc_conv2_w=nrm(ks[2], (2 * L, L, 3, 3)),    enc_conv2_b=nrm(ks[3], (2 * L,)),
        enc_fc_w=nrm(ks[4], (2 * h, 7 * 7 * 2 * L)), enc_fc_b=nrm(ks[5], (2 * h,)),
        dec_fc_w=nrm(ks[6], (7 * 7 * L, h)),         dec_fc_b=nrm(ks[7], (7 * 7 * L,)),
        dec_ct1_w=nrm(ks[8], (L, 2 * L, 3, 3)),      dec_ct1_b=nrm(ks[9], (2 * L,)),
        dec_ct2_w=nrm(ks[10], (2 * L, L, 3, 3)),     dec_ct2_b=nrm(ks[11], (L,)),
        dec_ct3_w=nrm(ks[12], (L, 1, 3, 3)),         dec_ct3_b=nrm(ks[13], (1,)),
    )


# ----------------------------------------------------------------------------
if __name__ == "__main__":
    LAYER_SIZE, HIDDEN, BATCH = 8, 10, 2   # spatial 28x28 is forced by the 7*7 FC sizes

    key = jax.random.PRNGKey(0)
    kp, kx, ke = jax.random.split(key, 3)

    pt = init_torch_shaped_params(kp, LAYER_SIZE, HIDDEN)
    operators = build_operators(pt, BATCH, LAYER_SIZE, HIDDEN)

    x = jax.random.uniform(kx, (BATCH, 1, 28, 28), dtype=jnp.float32)
    eps = jax.random.normal(ke, (BATCH, HIDDEN), dtype=jnp.float32)   # reparam noise

    fwd = jax.jit(vae_forward)
    recon, mean, logvar = fwd(operators, x, eps)
    jax.block_until_ready((recon, mean, logvar))

    # Validate against true conv / conv-transpose semantics in f32.
    # Tolerance is loosened vs the f32-operator version because the weight
    # operators (and the activations fed to the MXU) are bf16.
    r_recon, r_mean, r_logvar = reference_forward(pt, x, eps, LAYER_SIZE, HIDDEN)

    assert recon.shape == (BATCH, 1, 28, 28)
    assert mean.shape == (BATCH, HIDDEN) and logvar.shape == (BATCH, HIDDEN)
    np.testing.assert_allclose(np.asarray(recon), np.asarray(r_recon), rtol=2e-2, atol=2e-3)
    np.testing.assert_allclose(np.asarray(mean), np.asarray(r_mean), rtol=2e-2, atol=2e-3)
    np.testing.assert_allclose(np.asarray(logvar), np.asarray(r_logvar), rtol=2e-2, atol=2e-3)

    print("KERNEL_OK")
</pallas_src>

<mosaic_0001>
module attributes {stable_mosaic.version = 11 : i64} {
  func.func @_vae_fused_kernel(%arg0: memref<32x56xf32, #tpu.memory_space<vmem>>, %arg1: memref<16x2xf32, #tpu.memory_space<vmem>>, %arg2: memref<112x96xbf16, #tpu.memory_space<vmem>>, %arg3: memref<3x56x28xbf16, #tpu.memory_space<vmem>>, %arg4: memref<112x1xf32, #tpu.memory_space<vmem>>, %arg5: memref<112x336xbf16, #tpu.memory_space<vmem>>, %arg6: memref<3x28x14xbf16, #tpu.memory_space<vmem>>, %arg7: memref<112x1xf32, #tpu.memory_space<vmem>>, %arg8: memref<32x784xbf16, #tpu.memory_space<vmem>>, %arg9: memref<7x14x2xbf16, #tpu.memory_space<vmem>>, %arg10: memref<32x1xf32, #tpu.memory_space<vmem>>, %arg11: memref<56x112xbf16, #tpu.memory_space<vmem>>, %arg12: memref<7x2x14xbf16, #tpu.memory_space<vmem>>, %arg13: memref<56x14xf32, #tpu.memory_space<vmem>>, %arg14: memref<224x168xbf16, #tpu.memory_space<vmem>>, %arg15: memref<3x14x28xbf16, #tpu.memory_space<vmem>>, %arg16: memref<224x1xf32, #tpu.memory_space<vmem>>, %arg17: memref<224x672xbf16, #tpu.memory_space<vmem>>, %arg18: memref<3x28x56xbf16, #tpu.memory_space<vmem>>, %arg19: memref<224x1xf32, #tpu.memory_space<vmem>>, %arg20: memref<28x672xbf16, #tpu.memory_space<vmem>>, %arg21: memref<3x56x56xbf16, #tpu.memory_space<vmem>>, %arg22: memref<28x1xf32, #tpu.memory_space<vmem>>, %arg23: memref<28x56xf32, #tpu.memory_space<vmem>>, %arg24: memref<16x2xf32, #tpu.memory_space<vmem>>, %arg25: memref<16x2xf32, #tpu.memory_space<vmem>>, %arg26: memref<784x56xf32, #tpu.memory_space<vmem>>) attributes {dimension_semantics = [], scalar_prefetch = 0 : i64, scratch_operands = 1 : i64, tpu.core_type = #tpu.core_type<tc>} {
    %c0 = arith.constant 0 : index
    %c0_0 = arith.constant 0 : index
    %0 = vector.load %arg0[%c0, %c0_0] : memref<32x56xf32, #tpu.memory_space<vmem>>, vector<32x56xf32>
    %1 = arith.truncf %0 : vector<32x56xf32> to vector<32x56xbf16>
    %c0_1 = arith.constant 0 : index
    %c0_2 = arith.constant 0 : index
    %c0_3 = arith.constant 0 : index
    %2 = vector.load %arg3[%c0_1, %c0_2, %c0_3] : memref<3x56x28xbf16, #tpu.memory_space<vmem>>, vector<1x56x28xbf16>
    %3 = vector.shape_cast %2 : vector<1x56x28xbf16> to vector<56x28xbf16>
    %cst = arith.constant dense<0.000000e+00> : vector<32x28xf32>
    %4 = tpu.matmul %1, %3, %cst {dimension_numbers = #tpu.dot_dimension_numbers<[1], [0], [0], [1], [0, 0, 1, 1], [], []>} : vector<32x56xbf16>, vector<56x28xbf16>, vector<32x28xf32> -> vector<32x28xf32>
    %c0_4 = arith.constant 0 : index
    %c0_5 = arith.constant 0 : index
    %5 = vector.load %arg26[%c0_4, %c0_5] : memref<784x56xf32, #tpu.memory_space<vmem>>, vector<32x28xf32>
    tpu.vector_store %arg26[%c0_4, %c0_5], %4 {strides = array<i32>} : memref<784x56xf32, #tpu.memory_space<vmem>>, vector<32x28xf32>,
    %c1 = arith.constant 1 : index
    %c0_6 = arith.constant 0 : index
    %c0_7 = arith.constant 0 : index
    %6 = vector.load %arg3[%c1, %c0_6, %c0_7] : memref<3x56x28xbf16, #tpu.memory_space<vmem>>, vector<1x56x28xbf16>
    %7 = vector.shape_cast %6 : vector<1x56x28xbf16> to vector<56x28xbf16>
    %cst_8 = arith.constant dense<0.000000e+00> : vector<32x28xf32>
    %8 = tpu.matmul %1, %7, %cst_8 {dimension_numbers = #tpu.dot_dimension_numbers<[1], [0], [0], [1], [0, 0, 1, 1], [], []>} : vector<32x56xbf16>, vector<56x28xbf16>, vector<32x28xf32> -> vector<32x28xf32>
    %c32 = arith.constant 32 : index
    %c0_9 = arith.constant 0 : index
    %9 = vector.load %arg26[%c32, %c0_9] : memref<784x56xf32, #tpu.memory_space<vmem>>, vector<32x28xf32>
    tpu.vector_store %arg26[%c32, %c0_9], %8 {strides = array<i32>} : memref<784x56xf32, #tpu.memory_space<vmem>>, vector<32x28xf32>,
    %c2 = arith.constant 2 : index
    %c0_10 = arith.constant 0 : index
    %c0_11 = arith.constant 0 : index
    %10 = vector.load %arg3[%c2, %c0_10, %c0_11] : memref<3x56x28xbf16, #tpu.memory_space<vmem>>, vector<1x56x28xbf16>
    %11 = vector.shape_cast %10 : vector<1x56x28xbf16> to vector<56x28xbf16>
    %cst_12 = arith.constant dense<0.000000e+00> : vector<32x28xf32>
    %12 = tpu.matmul %1, %11, %cst_12 {dimension_numbers = #tpu.dot_dimension_numbers<[1], [0], [0], [1], [0, 0, 1, 1], [], []>} : vector<32x56xbf16>, vector<56x28xbf16>, vector<32x28xf32> -> vector<32x28xf32>
    %c64 = arith.constant 64 : index
    %c0_13 = arith.constant 0 : index
    %13 = vector.load %arg26[%c64, %c0_13] : memref<784x56xf32, #tpu.memory_space<vmem>>, vector<32x28xf32>
    tpu.vector_store %arg26[%c64, %c0_13], %12 {strides = array<i32>} : memref<784x56xf32, #tpu.memory_space<vmem>>, vector<32x28xf32>,
    %c0_14 = arith.constant 0 : index
    %c0_15 = arith.constant 0 : index
    %14 = vector.load %arg26[%c0_14, %c0_15] : memref<784x56xf32, #tpu.memory_space<vmem>>, vector<96x28xf32>
    %15 = arith.truncf %14 : vector<96x28xf32> to vector<96x28xbf16>
    %c0_16 = arith.constant 0 : index
    %c0_17 = arith.constant 0 : index
    %16 = vector.load %arg2[%c0_16, %c0_17] : memref<112x96xbf16, #tpu.memory_space<vmem>>, vector<112x96xbf16>
    %cst_18 = arith.constant dense<0.000000e+00> : vector<112x28xf32>
    %17 = tpu.matmul %16, %15, %cst_18 {dimension_numbers = #tpu.dot_dimension_numbers<[1], [0], [0], [1], [0, 0, 1, 1], [], []>} : vector<112x96xbf16>, vector<96x28xbf16>, vector<112x28xf32> -> vector<112x28xf32>
    %c0_19 = arith.constant 0 : index
    %c0_20 = arith.constant 0 : index
    %18 = vector.load %arg4[%c0_19, %c0_20] : memref<112x1xf32, #tpu.memory_space<vmem>>, vector<112x1xf32>
    %19 = vector.broadcast %18 : vector<112x1xf32> to vector<112x28xf32>
    %20 = arith.addf %17, %19 : vector<112x28xf32>
    %cst_21 = arith.constant 0.000000e+00 : f32
    %21 = vector.broadcast %cst_21 : f32 to vector<112x28xf32>
    %22 = arith.maximumf %20, %21 : vector<112x28xf32>
    %23 = arith.truncf %22 : vector<112x28xf32> to vector<112x28xbf16>
    %c0_22 = arith.constant 0 : index
    %c0_23 = arith.constant 0 : index
    %c0_24 = arith.constant 0 : index
    %24 = vector.load %arg6[%c0_22, %c0_23, %c0_24] : memref<3x28x14xbf16, #tpu.memory_space<vmem>>, vector<1x28x14xbf16>
    %25 = vector.shape_cast %24 : vector<1x28x14xbf16> to vector<28x14xbf16>
    %cst_25 = arith.constant dense<0.000000e+00> : vector<112x14xf32>
    %26 = tpu.matmul %23, %25, %cst_25 {dimension_numbers = #tpu.dot_dimension_numbers<[1], [0], [0], [1], [0, 0, 1, 1], [], []>} : vector<112x28xbf16>, vector<28x14xbf16>, vector<112x14xf32> -> vector<112x14xf32>
    %c0_26 = arith.constant 0 : index
    %c0_27 = arith.constant 0 : index
    %27 = vector.load %arg26[%c0_26, %c0_27] : memref<784x56xf32, #tpu.memory_space<vmem>>, vector<112x14xf32>
    tpu.vector_store %arg26[%c0_26, %c0_27], %26 {strides = array<i32>} : memref<784x56xf32, #tpu.memory_space<vmem>>, vector<112x14xf32>,
    %c1_28 = arith.constant 1 : index
    %c0_29 = arith.constant 0 : index
    %c0_30 = arith.constant 0 : index
    %28 = vector.load %arg6[%c1_28, %c0_29, %c0_30] : memref<3x28x14xbf16, #tpu.memory_space<vmem>>, vector<1x28x14xbf16>
    %29 = vector.shape_cast %28 : vector<1x28x14xbf16> to vector<28x14xbf16>
    %cst_31 = arith.constant dense<0.000000e+00> : vector<112x14xf32>
    %30 = tpu.matmul %23, %29, %cst_31 {dimension_numbers = #tpu.dot_dimension_numbers<[1], [0], [0], [1], [0, 0, 1, 1], [], []>} : vector<112x28xbf16>, vector<28x14xbf16>, vector<112x14xf32> -> vector<112x14xf32>
    %c112 = arith.constant 112 : index
    %c0_32 = arith.constant 0 : index
    %31 = vector.load %arg26[%c112, %c0_32] : memref<784x56xf32, #tpu.memory_space<vmem>>, vector<112x14xf32>
    tpu.vector_store %arg26[%c112, %c0_32], %30 {strides = array<i32>} : memref<784x56xf32, #tpu.memory_space<vmem>>, vector<112x14xf32>,
    %c2_33 = arith.constant 2 : index
    %c0_34 = arith.constant 0 : index
    %c0_35 = arith.constant 0 : index
    %32 = vector.load %arg6[%c2_33, %c0_34, %c0_35] : memref<3x28x14xbf16, #tpu.memory_space<vmem>>, vector<1x28x14xbf16>
    %33 = vector.shape_cast %32 : vector<1x28x14xbf16> to vector<28x14xbf16>
    %cst_36 = arith.constant dense<0.000000e+00> : vector<112x14xf32>
    %34 = tpu.matmul %23, %33, %cst_36 {dimension_numbers = #tpu.dot_dimension_numbers<[1], [0], [0], [1], [0, 0, 1, 1], [], []>} : vector<112x28xbf16>, vector<28x14xbf16>, vector<112x14xf32> -> vector<112x14xf32>
    %c224 = arith.constant 224 : index
    %c0_37 = arith.constant 0 : index
    %35 = vector.load %arg26[%c224, %c0_37] : memref<784x56xf32, #tpu.memory_space<vmem>>, vector<112x14xf32>
    tpu.vector_store %arg26[%c224, %c0_37], %34 {strides = array<i32>} : memref<784x56xf32, #tpu.memory_space<vmem>>, vector<112x14xf32>,
    %c0_38 = arith.constant 0 : index
    %c0_39 = arith.constant 0 : index
    %36 = vector.load %arg26[%c0_38, %c0_39] : memref<784x56xf32, #tpu.memory_space<vmem>>, vector<336x14xf32>
    %37 = arith.truncf %36 : vector<336x14xf32> to vector<336x14xbf16>
    %c0_40 = arith.constant 0 : index
    %c0_41 = arith.constant 0 : index
    %38 = vector.load %arg5[%c0_40, %c0_41] : memref<112x336xbf16, #tpu.memory_space<vmem>>, vector<112x336xbf16>
    %cst_42 = arith.constant dense<0.000000e+00> : vector<112x14xf32>
    %39 = tpu.matmul %38, %37, %cst_42 {dimension_numbers = #tpu.dot_dimension_numbers<[1], [0], [0], [1], [0, 0, 1, 1], [], []>} : vector<112x336xbf16>, vector<336x14xbf16>, vector<112x14xf32> -> vector<112x14xf32>
    %c0_43 = arith.constant 0 : index
    %c0_44 = arith.constant 0 : index
    %40 = vector.load %arg7[%c0_43, %c0_44] : memref<112x1xf32, #tpu.memory_space<vmem>>, vector<112x1xf32>
    %41 = vector.broadcast %40 : vector<112x1xf32> to vector<112x14xf32>
    %42 = arith.addf %39, %41 : vector<112x14xf32>
    %cst_45 = arith.constant 0.000000e+00 : f32
    %43 = vector.broadcast %cst_45 : f32 to vector<112x14xf32>
    %44 = arith.maximumf %42, %43 : vector<112x14xf32>
    %45 = arith.truncf %44 : vector<112x14xf32> to vector<112x14xbf16>
    %c0_46 = arith.constant 0 : index
    %c0_47 = arith.constant 0 : index
    %c0_48 = arith.constant 0 : index
    %46 = vector.load %arg9[%c0_46, %c0_47, %c0_48] : memref<7x14x2xbf16, #tpu.memory_space<vmem>>, vector<1x14x2xbf16>
    %47 = vector.shape_cast %46 : vector<1x14x2xbf16> to vector<14x2xbf16>
    %cst_49 = arith.constant dense<0.000000e+00> : vector<112x2xf32>
    %48 = tpu.matmul %45, %47, %cst_49 {dimension_numbers = #tpu.dot_dimension_numbers<[1], [0], [0], [1], [0, 0, 1, 1], [], []>} : vector<112x14xbf16>, vector<14x2xbf16>, vector<112x2xf32> -> vector<112x2xf32>
    %c0_50 = arith.constant 0 : index
    %c0_51 = arith.constant 0 : index
    %49 = vector.load %arg26[%c0_50, %c0_51] : memref<784x56xf32, #tpu.memory_space<vmem>>, vector<112x2xf32>
    tpu.vector_store %arg26[%c0_50, %c0_51], %48 {strides = array<i32>} : memref<784x56xf32, #tpu.memory_space<vmem>>, vector<112x2xf32>,
    %c1_52 = arith.constant 1 : index
    %c0_53 = arith.constant 0 : index
    %c0_54 = arith.constant 0 : index
    %50 = vector.load %arg9[%c1_52, %c0_53, %c0_54] : memref<7x14x2xbf16, #tpu.memory_space<vmem>>, vector<1x14x2xbf16>
    %51 = vector.shape_cast %50 : vector<1x14x2xbf16> to vector<14x2xbf16>
    %cst_55 = arith.constant dense<0.000000e+00> : vector<112x2xf32>
    %52 = tpu.matmul %45, %51, %cst_55 {dimension_numbers = #tpu.dot_dimension_numbers<[1], [0], [0], [1], [0, 0, 1, 1], [], []>} : vector<112x14xbf16>, vector<14x2xbf16>, vector<112x2xf32> -> vector<112x2xf32>
    %c112_56 = arith.constant 112 : index
    %c0_57 = arith.constant 0 : index
    %53 = vector.load %arg26[%c112_56, %c0_57] : memref<784x56xf32, #tpu.memory_space<vmem>>, vector<112x2xf32>
    tpu.vector_store %arg26[%c112_56, %c0_57], %52 {strides = array<i32>} : memref<784x56xf32, #tpu.memory_space<vmem>>, vector<112x2xf32>,
    %c2_58 = arith.constant 2 : index
    %c0_59 = arith.constant 0 : index
    %c0_60 = arith.constant 0 : index
    %54 = vector.load %arg9[%c2_58, %c0_59, %c0_60] : memref<7x14x2xbf16, #tpu.memory_space<vmem>>, vector<1x14x2xbf16>
    %55 = vector.shape_cast %54 : vector<1x14x2xbf16> to vector<14x2xbf16>
    %cst_61 = arith.constant dense<0.000000e+00> : vector<112x2xf32>
    %56 = tpu.matmul %45, %55, %cst_61 {dimension_numbers = #tpu.dot_dimension_numbers<[1], [0], [0], [1], [0, 0, 1, 1], [], []>} : vector<112x14xbf16>, vector<14x2xbf16>, vector<112x2xf32> -> vector<112x2xf32>
    %c224_62 = arith.constant 224 : index
    %c0_63 = arith.constant 0 : index
    %57 = vector.load %arg26[%c224_62, %c0_63] : memref<784x56xf32, #tpu.memory_space<vmem>>, vector<112x2xf32>
    tpu.vector_store %arg26[%c224_62, %c0_63], %56 {strides = array<i32>} : memref<784x56xf32, #tpu.memory_space<vmem>>, vector<112x2xf32>,
    %c3 = arith.constant 3 : index
    %c0_64 = arith.constant 0 : index
    %c0_65 = arith.constant 0 : index
    %58 = vector.load %arg9[%c3, %c0_64, %c0_65] : memref<7x14x2xbf16, #tpu.memory_space<vmem>>, vector<1x14x2xbf16>
    %59 = vector.shape_cast %58 : vector<1x14x2xbf16> to vector<14x2xbf16>
    %cst_66 = arith.constant dense<0.000000e+00> : vector<112x2xf32>
    %60 = tpu.matmul %45, %59, %cst_66 {dimension_numbers = #tpu.dot_dimension_numbers<[1], [0], [0], [1], [0, 0, 1, 1], [], []>} : vector<112x14xbf16>, vector<14x2xbf16>, vector<112x2xf32> -> vector<112x2xf32>
    %c336 = arith.constant 336 : index
    %c0_67 = arith.constant 0 : index
    %61 = vector.load %arg26[%c336, %c0_67] : memref<784x56xf32, #tpu.memory_space<vmem>>, vector<112x2xf32>
    tpu.vector_store %arg26[%c336, %c0_67], %60 {strides = array<i32>} : memref<784x56xf32, #tpu.memory_space<vmem>>, vector<112x2xf32>,
    %c4 = arith.constant 4 : index
    %c0_68 = arith.constant 0 : index
    %c0_69 = arith.constant 0 : index
    %62 = vector.load %arg9[%c4, %c0_68, %c0_69] : memref<7x14x2xbf16, #tpu.memory_space<vmem>>, vector<1x14x2xbf16>
    %63 = vector.shape_cast %62 : vector<1x14x2xbf16> to vector<14x2xbf16>
    %cst_70 = arith.constant dense<0.000000e+00> : vector<112x2xf32>
    %64 = tpu.matmul %45, %63, %cst_70 {dimension_numbers = #tpu.dot_dimension_numbers<[1], [0], [0], [1], [0, 0, 1, 1], [], []>} : vector<112x14xbf16>, vector<14x2xbf16>, vector<112x2xf32> -> vector<112x2xf32>
    %c448 = arith.constant 448 : index
    %c0_71 = arith.constant 0 : index
    %65 = vector.load %arg26[%c448, %c0_71] : memref<784x56xf32, #tpu.memory_space<vmem>>, vector<112x2xf32>
    tpu.vector_store %arg26[%c448, %c0_71], %64 {strides = array<i32>} : memref<784x56xf32, #tpu.memory_space<vmem>>, vector<112x2xf32>,
    %c5 = arith.constant 5 : index
    %c0_72 = arith.constant 0 : index
    %c0_73 = arith.constant 0 : index
    %66 = vector.load %arg9[%c5, %c0_72, %c0_73] : memref<7x14x2xbf16, #tpu.memory_space<vmem>>, vector<1x14x2xbf16>
    %67 = vector.shape_cast %66 : vector<1x14x2xbf16> to vector<14x2xbf16>
    %cst_74 = arith.constant dense<0.000000e+00> : vector<112x2xf32>
    %68 = tpu.matmul %45, %67, %cst_74 {dimension_numbers = #tpu.dot_dimension_numbers<[1], [0], [0], [1], [0, 0, 1, 1], [], []>} : vector<112x14xbf16>, vector<14x2xbf16>, vector<112x2xf32> -> vector<112x2xf32>
    %c560 = arith.constant 560 : index
    %c0_75 = arith.constant 0 : index
    %69 = vector.load %arg26[%c560, %c0_75] : memref<784x56xf32, #tpu.memory_space<vmem>>, vector<112x2xf32>
    tpu.vector_store %arg26[%c560, %c0_75], %68 {strides = array<i32>} : memref<784x56xf32, #tpu.memory_space<vmem>>, vector<112x2xf32>,
    %c6 = arith.constant 6 : index
    %c0_76 = arith.constant 0 : index
    %c0_77 = arith.constant 0 : index
    %70 = vector.load %arg9[%c6, %c0_76, %c0_77] : memref<7x14x2xbf16, #tpu.memory_space<vmem>>, vector<1x14x2xbf16>
    %71 = vector.shape_cast %70 : vector<1x14x2xbf16> to vector<14x2xbf16>
    %cst_78 = arith.constant dense<0.000000e+00> : vector<112x2xf32>
    %72 = tpu.matmul %45, %71, %cst_78 {dimension_numbers = #tpu.dot_dimension_numbers<[1], [0], [0], [1], [0, 0, 1, 1], [], []>} : vector<112x14xbf16>, vector<14x2xbf16>, vector<112x2xf32> -> vector<112x2xf32>
    %c672 = arith.constant 672 : index
    %c0_79 = arith.constant 0 : index
    %73 = vector.load %arg26[%c672, %c0_79] : memref<784x56xf32, #tpu.memory_space<vmem>>, vector<112x2xf32>
    tpu.vector_store %arg26[%c672, %c0_79], %72 {strides = array<i32>} : memref<784x56xf32, #tpu.memory_space<vmem>>, vector<112x2xf32>,
    %c0_80 = arith.constant 0 : index
    %c0_81 = arith.constant 0 : index
    %74 = vector.load %arg26[%c0_80, %c0_81] : memref<784x56xf32, #tpu.memory_space<vmem>>, vector<784x2xf32>
    %75 = arith.truncf %74 : vector<784x2xf32> to vector<784x2xbf16>
    %c0_82 = arith.constant 0 : index
    %c0_83 = arith.constant 0 : index
    %76 = vector.load %arg8[%c0_82, %c0_83] : memref<32x784xbf16, #tpu.memory_space<vmem>>, vector<32x784xbf16>
    %cst_84 = arith.constant dense<0.000000e+00> : vector<32x2xf32>
    %77 = tpu.matmul %76, %75, %cst_84 {dimension_numbers = #tpu.dot_dimension_numbers<[1], [0], [0], [1], [0, 0, 1, 1], [], []>} : vector<32x784xbf16>, vector<784x2xbf16>, vector<32x2xf32> -> vector<32x2xf32>
    %c0_85 = arith.constant 0 : index
    %c0_86 = arith.constant 0 : index
    %78 = vector.load %arg10[%c0_85, %c0_86] : memref<32x1xf32, #tpu.memory_space<vmem>>, vector<32x1xf32>
    %79 = vector.broadcast %78 : vector<32x1xf32> to vector<32x2xf32>
    %80 = arith.addf %77, %79 : vector<32x2xf32>
    %81 = vector.extract_strided_slice %80 {offsets = [0, 0], sizes = [16, 2], strides = [1, 1]} : vector<32x2xf32> to vector<16x2xf32>
    %82 = vector.extract_strided_slice %80 {offsets = [16, 0], sizes = [16, 2], strides = [1, 1]} : vector<32x2xf32> to vector<16x2xf32>
    %cst_87 = arith.constant -5.000000e+00 : f32
    %cst_88 = arith.constant 5.000000e+00 : f32
    %83 = vector.broadcast %cst_87 : f32 to vector<16x2xf32>
    %84 = arith.maximumf %83, %82 : vector<16x2xf32>
    %85 = vector.broadcast %cst_88 : f32 to vector<16x2xf32>
    %86 = arith.minimumf %85, %84 : vector<16x2xf32>
    %c0_89 = arith.constant 0 : index
    %c0_90 = arith.constant 0 : index
    %87 = vector.load %arg1[%c0_89, %c0_90] : memref<16x2xf32, #tpu.memory_space<vmem>>, vector<16x2xf32>
    %cst_91 = arith.constant 5.000000e-01 : f32
    %88 = vector.broadcast %cst_91 : f32 to vector<16x2xf32>
    %89 = arith.mulf %88, %86 : vector<16x2xf32>
    %90 = math.exp %89 : vector<16x2xf32>
    %91 = arith.mulf %87, %90 : vector<16x2xf32>
    %92 = arith.addf %81, %91 : vector<16x2xf32>
    %93 = arith.truncf %92 : vector<16x2xf32> to vector<16x2xbf16>
    %c0_92 = arith.constant 0 : index
    %c0_93 = arith.constant 0 : index
    %c0_94 = arith.constant 0 : index
    %94 = vector.load %arg12[%c0_92, %c0_93, %c0_94] : memref<7x2x14xbf16, #tpu.memory_space<vmem>>, vector<1x2x14xbf16>
    %95 = vector.shape_cast %94 : vector<1x2x14xbf16> to vector<2x14xbf16>
    %cst_95 = arith.constant dense<0.000000e+00> : vector<16x14xf32>
    %96 = tpu.matmul %93, %95, %cst_95 {dimension_numbers = #tpu.dot_dimension_numbers<[1], [0], [0], [1], [0, 0, 1, 1], [], []>} : vector<16x2xbf16>, vector<2x14xbf16>, vector<16x14xf32> -> vector<16x14xf32>
    %c0_96 = arith.constant 0 : index
    %c0_97 = arith.constant 0 : index
    %97 = vector.load %arg26[%c0_96, %c0_97] : memref<784x56xf32, #tpu.memory_space<vmem>>, vector<16x14xf32>
    tpu.vector_store %arg26[%c0_96, %c0_97], %96 {strides = array<i32>} : memref<784x56xf32, #tpu.memory_space<vmem>>, vector<16x14xf32>,
    %c1_98 = arith.constant 1 : index
    %c0_99 = arith.constant 0 : index
    %c0_100 = arith.constant 0 : index
    %98 = vector.load %arg12[%c1_98, %c0_99, %c0_100] : memref<7x2x14xbf16, #tpu.memory_space<vmem>>, vector<1x2x14xbf16>
    %99 = vector.shape_cast %98 : vector<1x2x14xbf16> to vector<2x14xbf16>
    %cst_101 = arith.constant dense<0.000000e+00> : vector<16x14xf32>
    %100 = tpu.matmul %93, %99, %cst_101 {dimension_numbers = #tpu.dot_dimension_numbers<[1], [0], [0], [1], [0, 0, 1, 1], [], []>} : vector<16x2xbf16>, vector<2x14xbf16>, vector<16x14xf32> -> vector<16x14xf32>
    %c16 = arith.constant 16 : index
    %c0_102 = arith.constant 0 : index
    %101 = vector.load %arg26[%c16, %c0_102] : memref<784x56xf32, #tpu.memory_space<vmem>>, vector<16x14xf32>
    tpu.vector_store %arg26[%c16, %c0_102], %100 {strides = array<i32>} : memref<784x56xf32, #tpu.memory_space<vmem>>, vector<16x14xf32>,
    %c2_103 = arith.constant 2 : index
    %c0_104 = arith.constant 0 : index
    %c0_105 = arith.constant 0 : index
    %102 = vector.load %arg12[%c2_103, %c0_104, %c0_105] : memref<7x2x14xbf16, #tpu.memory_space<vmem>>, vector<1x2x14xbf16>
    %103 = vector.shape_cast %102 : vector<1x2x14xbf16> to vector<2x14xbf16>
    %cst_106 = arith.constant dense<0.000000e+00> : vector<16x14xf32>
    %104 = tpu.matmul %93, %103, %cst_106 {dimension_numbers = #tpu.dot_dimension_numbers<[1], [0], [0], [1], [0, 0, 1, 1], [], []>} : vector<16x2xbf16>, vector<2x14xbf16>, vector<16x14xf32> -> vector<16x14xf32>
    %c32_107 = arith.constant 32 : index
    %c0_108 = arith.constant 0 : index
    %105 = vector.load %arg26[%c32_107, %c0_108] : memref<784x56xf32, #tpu.memory_space<vmem>>, vector<16x14xf32>
    tpu.vector_store %arg26[%c32_107, %c0_108], %104 {strides = array<i32>} : memref<784x56xf32, #tpu.memory_space<vmem>>, vector<16x14xf32>,
    %c3_109 = arith.constant 3 : index
    %c0_110 = arith.constant 0 : index
    %c0_111 = arith.constant 0 : index
    %106 = vector.load %arg12[%c3_109, %c0_110, %c0_111] : memref<7x2x14xbf16, #tpu.memory_space<vmem>>, vector<1x2x14xbf16>
    %107 = vector.shape_cast %106 : vector<1x2x14xbf16> to vector<2x14xbf16>
    %cst_112 = arith.constant dense<0.000000e+00> : vector<16x14xf32>
    %108 = tpu.matmul %93, %107, %cst_112 {dimension_numbers = #tpu.dot_dimension_numbers<[1], [0], [0], [1], [0, 0, 1, 1], [], []>} : vector<16x2xbf16>, vector<2x14xbf16>, vector<16x14xf32> -> vector<16x14xf32>
    %c48 = arith.constant 48 : index
    %c0_113 = arith.constant 0 : index
    %109 = vector.load %arg26[%c48, %c0_113] : memref<784x56xf32, #tpu.memory_space<vmem>>, vector<16x14xf32>
    tpu.vector_store %arg26[%c48, %c0_113], %108 {strides = array<i32>} : memref<784x56xf32, #tpu.memory_space<vmem>>, vector<16x14xf32>,
    %c4_114 = arith.constant 4 : index
    %c0_115 = arith.constant 0 : index
    %c0_116 = arith.constant 0 : index
    %110 = vector.load %arg12[%c4_114, %c0_115, %c0_116] : memref<7x2x14xbf16, #tpu.memory_space<vmem>>, vector<1x2x14xbf16>
    %111 = vector.shape_cast %110 : vector<1x2x14xbf16> to vector<2x14xbf16>
    %cst_117 = arith.constant dense<0.000000e+00> : vector<16x14xf32>
    %112 = tpu.matmul %93, %111, %cst_117 {dimension_numbers = #tpu.dot_dimension_numbers<[1], [0], [0], [1], [0, 0, 1, 1], [], []>} : vector<16x2xbf16>, vector<2x14xbf16>, vector<16x14xf32> -> vector<16x14xf32>
    %c64_118 = arith.constant 64 : index
    %c0_119 = arith.constant 0 : index
    %113 = vector.load %arg26[%c64_118, %c0_119] : memref<784x56xf32, #tpu.memory_space<vmem>>, vector<16x14xf32>
    tpu.vector_store %arg26[%c64_118, %c0_119], %112 {strides = array<i32>} : memref<784x56xf32, #tpu.memory_space<vmem>>, vector<16x14xf32>,
    %c5_120 = arith.constant 5 : index
    %c0_121 = arith.constant 0 : index
    %c0_122 = arith.constant 0 : index
    %114 = vector.load %arg12[%c5_120, %c0_121, %c0_122] : memref<7x2x14xbf16, #tpu.memory_space<vmem>>, vector<1x2x14xbf16>
    %115 = vector.shape_cast %114 : vector<1x2x14xbf16> to vector<2x14xbf16>
    %cst_123 = arith.constant dense<0.000000e+00> : vector<16x14xf32>
    %116 = tpu.matmul %93, %115, %cst_123 {dimension_numbers = #tpu.dot_dimension_numbers<[1], [0], [0], [1], [0, 0, 1, 1], [], []>} : vector<16x2xbf16>, vector<2x14xbf16>, vector<16x14xf32> -> vector<16x14xf32>
    %c80 = arith.constant 80 : index
    %c0_124 = arith.constant 0 : index
    %117 = vector.load %arg26[%c80, %c0_124] : memref<784x56xf32, #tpu.memory_space<vmem>>, vector<16x14xf32>
    tpu.vector_store %arg26[%c80, %c0_124], %116 {strides = array<i32>} : memref<784x56xf32, #tpu.memory_space<vmem>>, vector<16x14xf32>,
    %c6_125 = arith.constant 6 : index
    %c0_126 = arith.constant 0 : index
    %c0_127 = arith.constant 0 : index
    %118 = vector.load %arg12[%c6_125, %c0_126, %c0_127] : memref<7x2x14xbf16, #tpu.memory_space<vmem>>, vector<1x2x14xbf16>
    %119 = vector.shape_cast %118 : vector<1x2x14xbf16> to vector<2x14xbf16>
    %cst_128 = arith.constant dense<0.000000e+00> : vector<16x14xf32>
    %120 = tpu.matmul %93, %119, %cst_128 {dimension_numbers = #tpu.dot_dimension_numbers<[1], [0], [0], [1], [0, 0, 1, 1], [], []>} : vector<16x2xbf16>, vector<2x14xbf16>, vector<16x14xf32> -> vector<16x14xf32>
    %c96 = arith.constant 96 : index
    %c0_129 = arith.constant 0 : index
    %121 = vector.load %arg26[%c96, %c0_129] : memref<784x56xf32, #tpu.memory_space<vmem>>, vector<16x14xf32>
    tpu.vector_store %arg26[%c96, %c0_129], %120 {strides = array<i32>} : memref<784x56xf32, #tpu.memory_space<vmem>>, vector<16x14xf32>,
    %c0_130 = arith.constant 0 : index
    %c0_131 = arith.constant 0 : index
    %122 = vector.load %arg26[%c0_130, %c0_131] : memref<784x56xf32, #tpu.memory_space<vmem>>, vector<112x14xf32>
    %123 = arith.truncf %122 : vector<112x14xf32> to vector<112x14xbf16>
    %c0_132 = arith.constant 0 : index
    %c0_133 = arith.constant 0 : index
    %124 = vector.load %arg11[%c0_132, %c0_133] : memref<56x112xbf16, #tpu.memory_space<vmem>>, vector<56x112xbf16>
    %cst_134 = arith.constant dense<0.000000e+00> : vector<56x14xf32>
    %125 = tpu.matmul %124, %123, %cst_134 {dimension_numbers = #tpu.dot_dimension_numbers<[1], [0], [0], [1], [0, 0, 1, 1], [], []>} : vector<56x112xbf16>, vector<112x14xbf16>, vector<56x14xf32> -> vector<56x14xf32>
    %c0_135 = arith.constant 0 : index
    %c0_136 = arith.constant 0 : index
    %126 = vector.load %arg13[%c0_135, %c0_136] : memref<56x14xf32, #tpu.memory_space<vmem>>, vector<56x14xf32>
    %127 = arith.addf %125, %126 : vector<56x14xf32>
    %cst_137 = arith.constant 0.000000e+00 : f32
    %128 = vector.broadcast %cst_137 : f32 to vector<56x14xf32>
    %129 = arith.maximumf %127, %128 : vector<56x14xf32>
    %130 = arith.truncf %129 : vector<56x14xf32> to vector<56x14xbf16>
    %c0_138 = arith.constant 0 : index
    %c0_139 = arith.constant 0 : index
    %c0_140 = arith.constant 0 : index
    %131 = vector.load %arg15[%c0_138, %c0_139, %c0_140] : memref<3x14x28xbf16, #tpu.memory_space<vmem>>, vector<1x14x28xbf16>
    %132 = vector.shape_cast %131 : vector<1x14x28xbf16> to vector<14x28xbf16>
    %cst_141 = arith.constant dense<0.000000e+00> : vector<56x28xf32>
    %133 = tpu.matmul %130, %132, %cst_141 {dimension_numbers = #tpu.dot_dimension_numbers<[1], [0], [0], [1], [0, 0, 1, 1], [], []>} : vector<56x14xbf16>, vector<14x28xbf16>, vector<56x28xf32> -> vector<56x28xf32>
    %c0_142 = arith.constant 0 : index
    %c0_143 = arith.constant 0 : index
    %134 = vector.load %arg26[%c0_142, %c0_143] : memref<784x56xf32, #tpu.memory_space<vmem>>, vector<56x28xf32>
    tpu.vector_store %arg26[%c0_142, %c0_143], %133 {strides = array<i32>} : memref<784x56xf32, #tpu.memory_space<vmem>>, vector<56x28xf32>,
    %c1_144 = arith.constant 1 : index
    %c0_145 = arith.constant 0 : index
    %c0_146 = arith.constant 0 : index
    %135 = vector.load %arg15[%c1_144, %c0_145, %c0_146] : memref<3x14x28xbf16, #tpu.memory_space<vmem>>, vector<1x14x28xbf16>
    %136 = vector.shape_cast %135 : vector<1x14x28xbf16> to vector<14x28xbf16>
    %cst_147 = arith.constant dense<0.000000e+00> : vector<56x28xf32>
    %137 = tpu.matmul %130, %136, %cst_147 {dimension_numbers = #tpu.dot_dimension_numbers<[1], [0], [0], [1], [0, 0, 1, 1], [], []>} : vector<56x14xbf16>, vector<14x28xbf16>, vector<56x28xf32> -> vector<56x28xf32>
    %c56 = arith.constant 56 : index
    %c0_148 = arith.constant 0 : index
    %138 = vector.load %arg26[%c56, %c0_148] : memref<784x56xf32, #tpu.memory_space<vmem>>, vector<56x28xf32>
    tpu.vector_store %arg26[%c56, %c0_148], %137 {strides = array<i32>} : memref<784x56xf32, #tpu.memory_space<vmem>>, vector<56x28xf32>,
    %c2_149 = arith.constant 2 : index
    %c0_150 = arith.constant 0 : index
    %c0_151 = arith.constant 0 : index
    %139 = vector.load %arg15[%c2_149, %c0_150, %c0_151] : memref<3x14x28xbf16, #tpu.memory_space<vmem>>, vector<1x14x28xbf16>
    %140 = vector.shape_cast %139 : vector<1x14x28xbf16> to vector<14x28xbf16>
    %cst_152 = arith.constant dense<0.000000e+00> : vector<56x28xf32>
    %141 = tpu.matmul %130, %140, %cst_152 {dimension_numbers = #tpu.dot_dimension_numbers<[1], [0], [0], [1], [0, 0, 1, 1], [], []>} : vector<56x14xbf16>, vector<14x28xbf16>, vector<56x28xf32> -> vector<56x28xf32>
    %c112_153 = arith.constant 112 : index
    %c0_154 = arith.constant 0 : index
    %142 = vector.load %arg26[%c112_153, %c0_154] : memref<784x56xf32, #tpu.memory_space<vmem>>, vector<56x28xf32>
    tpu.vector_store %arg26[%c112_153, %c0_154], %141 {strides = array<i32>} : memref<784x56xf32, #tpu.memory_space<vmem>>, vector<56x28xf32>,
    %c0_155 = arith.constant 0 : index
    %c0_156 = arith.constant 0 : index
    %143 = vector.load %arg26[%c0_155, %c0_156] : memref<784x56xf32, #tpu.memory_space<vmem>>, vector<168x28xf32>
    %144 = arith.truncf %143 : vector<168x28xf32> to vector<168x28xbf16>
    %c0_157 = arith.constant 0 : index
    %c0_158 = arith.constant 0 : index
    %145 = vector.load %arg14[%c0_157, %c0_158] : memref<224x168xbf16, #tpu.memory_space<vmem>>, vector<224x168xbf16>
    %cst_159 = arith.constant dense<0.000000e+00> : vector<224x28xf32>
    %146 = tpu.matmul %145, %144, %cst_159 {dimension_numbers = #tpu.dot_dimension_numbers<[1], [0], [0], [1], [0, 0, 1, 1], [], []>} : vector<224x168xbf16>, vector<168x28xbf16>, vector<224x28xf32> -> vector<224x28xf32>
    %c0_160 = arith.constant 0 : index
    %c0_161 = arith.constant 0 : index
    %147 = vector.load %arg16[%c0_160, %c0_161] : memref<224x1xf32, #tpu.memory_space<vmem>>, vector<224x1xf32>
    %148 = vector.broadcast %147 : vector<224x1xf32> to vector<224x28xf32>
    %149 = arith.addf %146, %148 : vector<224x28xf32>
    %cst_162 = arith.constant 0.000000e+00 : f32
    %150 = vector.broadcast %cst_162 : f32 to vector<224x28xf32>
    %151 = arith.maximumf %149, %150 : vector<224x28xf32>
    %152 = arith.truncf %151 : vector<224x28xf32> to vector<224x28xbf16>
    %c0_163 = arith.constant 0 : index
    %c0_164 = arith.constant 0 : index
    %c0_165 = arith.constant 0 : index
    %153 = vector.load %arg18[%c0_163, %c0_164, %c0_165] : memref<3x28x56xbf16, #tpu.memory_space<vmem>>, vector<1x28x56xbf16>
    %154 = vector.shape_cast %153 : vector<1x28x56xbf16> to vector<28x56xbf16>
    %cst_166 = arith.constant dense<0.000000e+00> : vector<224x56xf32>
    %155 = tpu.matmul %152, %154, %cst_166 {dimension_numbers = #tpu.dot_dimension_numbers<[1], [0], [0], [1], [0, 0, 1, 1], [], []>} : vector<224x28xbf16>, vector<28x56xbf16>, vector<224x56xf32> -> vector<224x56xf32>
    %c0_167 = arith.constant 0 : index
    %c0_168 = arith.constant 0 : index
    %156 = vector.load %arg26[%c0_167, %c0_168] : memref<784x56xf32, #tpu.memory_space<vmem>>, vector<224x56xf32>
    tpu.vector_store %arg26[%c0_167, %c0_168], %155 {strides = array<i32>} : memref<784x56xf32, #tpu.memory_space<vmem>>, vector<224x56xf32>,
    %c1_169 = arith.constant 1 : index
    %c0_170 = arith.constant 0 : index
    %c0_171 = arith.constant 0 : index
    %157 = vector.load %arg18[%c1_169, %c0_170, %c0_171] : memref<3x28x56xbf16, #tpu.memory_space<vmem>>, vector<1x28x56xbf16>
    %158 = vector.shape_cast %157 : vector<1x28x56xbf16> to vector<28x56xbf16>
    %cst_172 = arith.constant dense<0.000000e+00> : vector<224x56xf32>
    %159 = tpu.matmul %152, %158, %cst_172 {dimension_numbers = #tpu.dot_dimension_numbers<[1], [0], [0], [1], [0, 0, 1, 1], [], []>} : vector<224x28xbf16>, vector<28x56xbf16>, vector<224x56xf32> -> vector<224x56xf32>
    %c224_173 = arith.constant 224 : index
    %c0_174 = arith.constant 0 : index
    %160 = vector.load %arg26[%c224_173, %c0_174] : memref<784x56xf32, #tpu.memory_space<vmem>>, vector<224x56xf32>
    tpu.vector_store %arg26[%c224_173, %c0_174], %159 {strides = array<i32>} : memref<784x56xf32, #tpu.memory_space<vmem>>, vector<224x56xf32>,
    %c2_175 = arith.constant 2 : index
    %c0_176 = arith.constant 0 : index
    %c0_177 = arith.constant 0 : index
    %161 = vector.load %arg18[%c2_175, %c0_176, %c0_177] : memref<3x28x56xbf16, #tpu.memory_space<vmem>>, vector<1x28x56xbf16>
    %162 = vector.shape_cast %161 : vector<1x28x56xbf16> to vector<28x56xbf16>
    %cst_178 = arith.constant dense<0.000000e+00> : vector<224x56xf32>
    %163 = tpu.matmul %152, %162, %cst_178 {dimension_numbers = #tpu.dot_dimension_numbers<[1], [0], [0], [1], [0, 0, 1, 1], [], []>} : vector<224x28xbf16>, vector<28x56xbf16>, vector<224x56xf32> -> vector<224x56xf32>
    %c448_179 = arith.constant 448 : index
    %c0_180 = arith.constant 0 : index
    %164 = vector.load %arg26[%c448_179, %c0_180] : memref<784x56xf32, #tpu.memory_space<vmem>>, vector<224x56xf32>
    tpu.vector_store %arg26[%c448_179, %c0_180], %163 {strides = array<i32>} : memref<784x56xf32, #tpu.memory_space<vmem>>, vector<224x56xf32>,
    %c0_181 = arith.constant 0 : index
    %c0_182 = arith.constant 0 : index
    %165 = vector.load %arg26[%c0_181, %c0_182] : memref<784x56xf32, #tpu.memory_space<vmem>>, vector<672x56xf32>
    %166 = arith.truncf %165 : vector<672x56xf32> to vector<672x56xbf16>
    %c0_183 = arith.constant 0 : index
    %c0_184 = arith.constant 0 : index
    %167 = vector.load %arg17[%c0_183, %c0_184] : memref<224x672xbf16, #tpu.memory_space<vmem>>, vector<224x672xbf16>
    %cst_185 = arith.constant dense<0.000000e+00> : vector<224x56xf32>
    %168 = tpu.matmul %167, %166, %cst_185 {dimension_numbers = #tpu.dot_dimension_numbers<[1], [0], [0], [1], [0, 0, 1, 1], [], []>} : vector<224x672xbf16>, vector<672x56xbf16>, vector<224x56xf32> -> vector<224x56xf32>
    %c0_186 = arith.constant 0 : index
    %c0_187 = arith.constant 0 : index
    %169 = vector.load %arg19[%c0_186, %c0_187] : memref<224x1xf32, #tpu.memory_space<vmem>>, vector<224x1xf32>
    %170 = vector.broadcast %169 : vector<224x1xf32> to vector<224x56xf32>
    %171 = arith.addf %168, %170 : vector<224x56xf32>
    %cst_188 = arith.constant 0.000000e+00 : f32
    %172 = vector.broadcast %cst_188 : f32 to vector<224x56xf32>
    %173 = arith.maximumf %171, %172 : vector<224x56xf32>
    %174 = arith.truncf %173 : vector<224x56xf32> to vector<224x56xbf16>
    %c0_189 = arith.constant 0 : index
    %c0_190 = arith.constant 0 : index
    %c0_191 = arith.constant 0 : index
    %175 = vector.load %arg21[%c0_189, %c0_190, %c0_191] : memref<3x56x56xbf16, #tpu.memory_space<vmem>>, vector<1x56x56xbf16>
    %176 = vector.shape_cast %175 : vector<1x56x56xbf16> to vector<56x56xbf16>
    %cst_192 = arith.constant dense<0.000000e+00> : vector<224x56xf32>
    %177 = tpu.matmul %174, %176, %cst_192 {dimension_numbers = #tpu.dot_dimension_numbers<[1], [0], [0], [1], [0, 0, 1, 1], [], []>} : vector<224x56xbf16>, vector<56x56xbf16>, vector<224x56xf32> -> vector<224x56xf32>
    %c0_193 = arith.constant 0 : index
    %c0_194 = arith.constant 0 : index
    %178 = vector.load %arg26[%c0_193, %c0_194] : memref<784x56xf32, #tpu.memory_space<vmem>>, vector<224x56xf32>
    tpu.vector_store %arg26[%c0_193, %c0_194], %177 {strides = array<i32>} : memref<784x56xf32, #tpu.memory_space<vmem>>, vector<224x56xf32>,
    %c1_195 = arith.constant 1 : index
    %c0_196 = arith.constant 0 : index
    %c0_197 = arith.constant 0 : index
    %179 = vector.load %arg21[%c1_195, %c0_196, %c0_197] : memref<3x56x56xbf16, #tpu.memory_space<vmem>>, vector<1x56x56xbf16>
    %180 = vector.shape_cast %179 : vector<1x56x56xbf16> to vector<56x56xbf16>
    %cst_198 = arith.constant dense<0.000000e+00> : vector<224x56xf32>
    %181 = tpu.matmul %174, %180, %cst_198 {dimension_numbers = #tpu.dot_dimension_numbers<[1], [0], [0], [1], [0, 0, 1, 1], [], []>} : vector<224x56xbf16>, vector<56x56xbf16>, vector<224x56xf32> -> vector<224x56xf32>
    %c224_199 = arith.constant 224 : index
    %c0_200 = arith.constant 0 : index
    %182 = vector.load %arg26[%c224_199, %c0_200] : memref<784x56xf32, #tpu.memory_space<vmem>>, vector<224x56xf32>
    tpu.vector_store %arg26[%c224_199, %c0_200], %181 {strides = array<i32>} : memref<784x56xf32, #tpu.memory_space<vmem>>, vector<224x56xf32>,
    %c2_201 = arith.constant 2 : index
    %c0_202 = arith.constant 0 : index
    %c0_203 = arith.constant 0 : index
    %183 = vector.load %arg21[%c2_201, %c0_202, %c0_203] : memref<3x56x56xbf16, #tpu.memory_space<vmem>>, vector<1x56x56xbf16>
    %184 = vector.shape_cast %183 : vector<1x56x56xbf16> to vector<56x56xbf16>
    %cst_204 = arith.constant dense<0.000000e+00> : vector<224x56xf32>
    %185 = tpu.matmul %174, %184, %cst_204 {dimension_numbers = #tpu.dot_dimension_numbers<[1], [0], [0], [1], [0, 0, 1, 1], [], []>} : vector<224x56xbf16>, vector<56x56xbf16>, vector<224x56xf32> -> vector<224x56xf32>
    %c448_205 = arith.constant 448 : index
    %c0_206 = arith.constant 0 : index
    %186 = vector.load %arg26[%c448_205, %c0_206] : memref<784x56xf32, #tpu.memory_space<vmem>>, vector<224x56xf32>
    tpu.vector_store %arg26[%c448_205, %c0_206], %185 {strides = array<i32>} : memref<784x56xf32, #tpu.memory_space<vmem>>, vector<224x56xf32>,
    %c0_207 = arith.constant 0 : index
    %c0_208 = arith.constant 0 : index
    %187 = vector.load %arg26[%c0_207, %c0_208] : memref<784x56xf32, #tpu.memory_space<vmem>>, vector<672x56xf32>
    %188 = arith.truncf %187 : vector<672x56xf32> to vector<672x56xbf16>
    %c0_209 = arith.constant 0 : index
    %c0_210 = arith.constant 0 : index
    %189 = vector.load %arg20[%c0_209, %c0_210] : memref<28x672xbf16, #tpu.memory_space<vmem>>, vector<28x672xbf16>
    %cst_211 = arith.constant dense<0.000000e+00> : vector<28x56xf32>
    %190 = tpu.matmul %189, %188, %cst_211 {dimension_numbers = #tpu.dot_dimension_numbers<[1], [0], [0], [1], [0, 0, 1, 1], [], []>} : vector<28x672xbf16>, vector<672x56xbf16>, vector<28x56xf32> -> vector<28x56xf32>
    %c0_212 = arith.constant 0 : index
    %c0_213 = arith.constant 0 : index
    %191 = vector.load %arg22[%c0_212, %c0_213] : memref<28x1xf32, #tpu.memory_space<vmem>>, vector<28x1xf32>
    %192 = vector.broadcast %191 : vector<28x1xf32> to vector<28x56xf32>
    %193 = arith.addf %190, %192 : vector<28x56xf32>
    %cst_214 = arith.constant 0.000000e+00 : f32
    %194 = vector.broadcast %cst_214 : f32 to vector<28x56xf32>
    %195 = arith.subf %194, %193 : vector<28x56xf32>
    %196 = math.exp %195 : vector<28x56xf32>
    %cst_215 = arith.constant 1.000000e+00 : f32
    %197 = vector.broadcast %cst_215 : f32 to vector<28x56xf32>
    %198 = arith.addf %197, %196 : vector<28x56xf32>
    %199 = tpu.reciprocal %198 {approx = true} : vector<28x56xf32> -> vector<28x56xf32>
    %c0_216 = arith.constant 0 : index
    %c0_217 = arith.constant 0 : index
    %200 = vector.load %arg23[%c0_216, %c0_217] : memref<28x56xf32, #tpu.memory_space<vmem>>, vector<28x56xf32>
    tpu.vector_store %arg23[%c0_216, %c0_217], %199 {strides = array<i32>} : memref<28x56xf32, #tpu.memory_space<vmem>>, vector<28x56xf32>,
    %c0_218 = arith.constant 0 : index
    %c0_219 = arith.constant 0 : index
    %201 = vector.load %arg24[%c0_218, %c0_219] : memref<16x2xf32, #tpu.memory_space<vmem>>, vector<16x2xf32>
    tpu.vector_store %arg24[%c0_218, %c0_219], %81 {strides = array<i32>} : memref<16x2xf32, #tpu.memory_space<vmem>>, vector<16x2xf32>,
    %c0_220 = arith.constant 0 : index
    %c0_221 = arith.constant 0 : index
    %202 = vector.load %arg25[%c0_220, %c0_221] : memref<16x2xf32, #tpu.memory_space<vmem>>, vector<16x2xf32>
    tpu.vector_store %arg25[%c0_220, %c0_221], %86 {strides = array<i32>} : memref<16x2xf32, #tpu.memory_space<vmem>>, vector<16x2xf32>,
    return
  }
}

</mosaic_0001>

<llo_original>
// kernel: vae_forward.1
$region0: #{vae_forward.1}
  #allocation0 [shape = 'u32[]', space=smem, size = 0x4, offset = 0x4, fixed_abs, tag = 'smem constant byte address 0x4 - core index']
  #allocation1 [shape = 'u32[144,128]{1,0:T(1,128)}', space=vmem, size = 0x12000, scoped, tag = 'internal scratch']
  #allocation2 [shape = 'f32[784,56]{1,0:T(8,128)}', space=vmem, size = 0x62000, scoped, tag = 'scratch operand']
  %s0 = inlined_call_operand.vmem [shape: f32[32,56], index: 0, kind: input, shape index: {}]
  %s1 = inlined_call_operand.vmem [shape: f32[16,2], index: 1, kind: input, shape index: {}]
  %s2 = inlined_call_operand.vmem [shape: bf16[112,96], index: 2, kind: input, shape index: {}]
  %s3 = inlined_call_operand.vmem [shape: bf16[3,56,28], index: 3, kind: input, shape index: {}]
  %s4 = inlined_call_operand.vmem [shape: f32[112,1], index: 4, kind: input, shape index: {}]
  %s5 = inlined_call_operand.vmem [shape: bf16[112,336], index: 5, kind: input, shape index: {}]
  %s6 = inlined_call_operand.vmem [shape: bf16[3,28,14], index: 6, kind: input, shape index: {}]
  %s7 = inlined_call_operand.vmem [shape: f32[112,1], index: 7, kind: input, shape index: {}]
  %s8 = inlined_call_operand.vmem [shape: bf16[32,784], index: 8, kind: input, shape index: {}]
  %s9 = inlined_call_operand.vmem [shape: bf16[7,14,2], index: 9, kind: input, shape index: {}]
  %s10 = inlined_call_operand.vmem [shape: f32[32,1], index: 10, kind: input, shape index: {}]
  %s11 = inlined_call_operand.vmem [shape: bf16[56,112], index: 11, kind: input, shape index: {}]
  %s12 = inlined_call_operand.vmem [shape: bf16[7,2,14], index: 12, kind: input, shape index: {}]
  %s13 = inlined_call_operand.vmem [shape: f32[56,14], index: 13, kind: input, shape index: {}]
  %s14 = inlined_call_operand.vmem [shape: bf16[224,168], index: 14, kind: input, shape index: {}]
  %s15 = inlined_call_operand.vmem [shape: bf16[3,14,28], index: 15, kind: input, shape index: {}]
  %s16 = inlined_call_operand.vmem [shape: f32[224,1], index: 16, kind: input, shape index: {}]
  %s17 = inlined_call_operand.vmem [shape: bf16[224,672], index: 17, kind: input, shape index: {}]
  %s18 = inlined_call_operand.vmem [shape: bf16[3,28,56], index: 18, kind: input, shape index: {}]
  %s19 = inlined_call_operand.vmem [shape: f32[224,1], index: 19, kind: input, shape index: {}]
  %s20 = inlined_call_operand.vmem [shape: bf16[28,672], index: 20, kind: input, shape index: {}]
  %s21 = inlined_call_operand.vmem [shape: bf16[3,56,56], index: 21, kind: input, shape index: {}]
  %s22 = inlined_call_operand.vmem [shape: f32[28,1], index: 22, kind: input, shape index: {}]
  %s23 = inlined_call_operand.vmem [shape: f32[28,56], index: 23, kind: output, shape index: {0}]
  %s24 = inlined_call_operand.vmem [shape: f32[16,2], index: 24, kind: output, shape index: {1}]
  %s25 = inlined_call_operand.vmem [shape: f32[16,2], index: 25, kind: output, shape index: {2}]
  %26 = xla_tuple %s23, %s24, %s25
  %s27 = sld [smem:[#allocation0]]
  $region118: #{vae_forward.1} parent=0
    _
  %s29 = ssub.s32 1, %s27
  %s30 = scalar_select 0, %s29, %s27
  // Predicated region
  $region2: #{vae_forward.1} parent=0 // pred_check
    _
  $region3: #{vae_forward.1} parent=0 // pred_check_branch
    %32 = sbr.rel (0) target = $region5
  $region4: #{vae_forward.1} parent=0 // pred_region
    _
  $region5: #{vae_forward.1} parent=0 // pred_fallthru
    _
  // Predicated region
  $region6: #{vae_forward.1} parent=0 // pred_check
    _
  $region7: #{vae_forward.1} parent=0 // pred_check_branch
    %34 = sbr.rel (0) target = $region9
  $region8: #{vae_forward.1} parent=0 // pred_region
    _
  $region9: #{vae_forward.1} parent=0 // pred_fallthru
    _
  // Predicated region
  $region10: #{vae_forward.1} parent=0 // pred_check
    _
  $region11: #{vae_forward.1} parent=0 // pred_check_branch
    %36 = sbr.rel (0) target = $region13
  $region12: #{vae_forward.1} parent=0 // pred_region
    _
  $region13: #{vae_forward.1} parent=0 // pred_fallthru
    _
  // Predicated region
  $region14: #{vae_forward.1} parent=0 // pred_check
    _
  $region15: #{vae_forward.1} parent=0 // pred_check_branch
    %38 = sbr.rel (0) target = $region17
  $region16: #{vae_forward.1} parent=0 // pred_region
    _
  $region17: #{vae_forward.1} parent=0 // pred_fallthru
    _
  // Predicated region
  $region18: #{vae_forward.1} parent=0 // pred_check
    _
  $region19: #{vae_forward.1} parent=0 // pred_check_branch
    %40 = sbr.rel (0) target = $region21
  $region20: #{vae_forward.1} parent=0 // pred_region
    _
  $region21: #{vae_forward.1} parent=0 // pred_fallthru
    _
  // Predicated region
  $region22: #{vae_forward.1} parent=0 // pred_check
    _
  $region23: #{vae_forward.1} parent=0 // pred_check_branch
    %42 = sbr.rel (0) target = $region25
  $region24: #{vae_forward.1} parent=0 // pred_region
    _
  $region25: #{vae_forward.1} parent=0 // pred_fallthru
    _
  // Predicated region
  $region26: #{vae_forward.1} parent=0 // pred_check
    _
  $region27: #{vae_forward.1} parent=0 // pred_check_branch
    %44 = sbr.rel (0) target = $region29
  $region28: #{vae_forward.1} parent=0 // pred_region
    _
  $region29: #{vae_forward.1} parent=0 // pred_fallthru
    _
  // Predicated region
  $region30: #{vae_forward.1} parent=0 // pred_check
    _
  $region31: #{vae_forward.1} parent=0 // pred_check_branch
    %46 = sbr.rel (0) target = $region33
  $region32: #{vae_forward.1} parent=0 // pred_region
    _
  $region33: #{vae_forward.1} parent=0 // pred_fallthru
    _
  // Predicated region
  $region34: #{vae_forward.1} parent=0 // pred_check
    _
  $region35: #{vae_forward.1} parent=0 // pred_check_branch
    %48 = sbr.rel (0) target = $region37
  $region36: #{vae_forward.1} parent=0 // pred_region
    _
  $region37: #{vae_forward.1} parent=0 // pred_fallthru
    _
  // Predicated region
  $region38: #{vae_forward.1} parent=0 // pred_check
    _
  $region39: #{vae_forward.1} parent=0 // pred_check_branch
    %50 = sbr.rel (0) target = $region41
  $region40: #{vae_forward.1} parent=0 // pred_region
    _
  $region41: #{vae_forward.1} parent=0 // pred_fallthru
    _
  // Predicated region
  $region42: #{vae_forward.1} parent=0 // pred_check
    _
  $region43: #{vae_forward.1} parent=0 // pred_check_branch
    %52 = sbr.rel (0) target = $region45
  $region44: #{vae_forward.1} parent=0 // pred_region
    _
  $region45: #{vae_forward.1} parent=0 // pred_fallthru
    _
  // Predicated region
  $region46: #{vae_forward.1} parent=0 // pred_check
    _
  $region47: #{vae_forward.1} parent=0 // pred_check_branch
    %54 = sbr.rel (0) target = $region49
  $region48: #{vae_forward.1} parent=0 // pred_region
    _
  $region49: #{vae_forward.1} parent=0 // pred_fallthru
    _
  // Predicated region
  $region50: #{vae_forward.1} parent=0 // pred_check
    _
  $region51: #{vae_forward.1} parent=0 // pred_check_branch
    %56 = sbr.rel (0) target = $region53
  $region52: #{vae_forward.1} parent=0 // pred_region
    _
  $region53: #{vae_forward.1} parent=0 // pred_fallthru
    _
  // Predicated region
  $region54: #{vae_forward.1} parent=0 // pred_check
    _
  $region55: #{vae_forward.1} parent=0 // pred_check_branch
    %58 = sbr.rel (0) target = $region57
  $region56: #{vae_forward.1} parent=0 // pred_region
    _
  $region57: #{vae_forward.1} parent=0 // pred_fallthru
    _
  // Predicated region
  $region58: #{vae_forward.1} parent=0 // pred_check
    _
  $region59: #{vae_forward.1} parent=0 // pred_check_branch
    %60 = sbr.rel (0) target = $region61
  $region60: #{vae_forward.1} parent=0 // pred_region
    _
  $region61: #{vae_forward.1} parent=0 // pred_fallthru
    _
  // Predicated region
  $region62: #{vae_forward.1} parent=0 // pred_check
    _
  $region63: #{vae_forward.1} parent=0 // pred_check_branch
    %62 = sbr.rel (0) target = $region65
  $region64: #{vae_forward.1} parent=0 // pred_region
    _
  $region65: #{vae_forward.1} parent=0 // pred_fallthru
    _
  // Predicated region
  $region66: #{vae_forward.1} parent=0 // pred_check
    _
  $region67: #{vae_forward.1} parent=0 // pred_check_branch
    %64 = sbr.rel (0) target = $region69
  $region68: #{vae_forward.1} parent=0 // pred_region
    _
  $region69: #{vae_forward.1} parent=0 // pred_fallthru
    _
  // Predicated region
  $region70: #{vae_forward.1} parent=0 // pred_check
    _
  $region71: #{vae_forward.1} parent=0 // pred_check_branch
    %66 = sbr.rel (0) target = $region73
  $region72: #{vae_forward.1} parent=0 // pred_region
    _
  $region73: #{vae_forward.1} parent=0 // pred_fallthru
    _
  // Predicated region
  $region74: #{vae_forward.1} parent=0 // pred_check
    _
  $region75: #{vae_forward.1} parent=0 // pred_check_branch
    %68 = sbr.rel (0) target = $region77
  $region76: #{vae_forward.1} parent=0 // pred_region
    _
  $region77: #{vae_forward.1} parent=0 // pred_fallthru
    _
  // Predicated region
  $region78: #{vae_forward.1} parent=0 // pred_check
    _
  $region79: #{vae_forward.1} parent=0 // pred_check_branch
    %70 = sbr.rel (0) target = $region81
  $region80: #{vae_forward.1} parent=0 // pred_region
    _
  $region81: #{vae_forward.1} parent=0 // pred_fallthru
    _
  // Predicated region
  $region82: #{vae_forward.1} parent=0 // pred_check
    _
  $region83: #{vae_forward.1} parent=0 // pred_check_branch
    %72 = sbr.rel (0) target = $region85
  $region84: #{vae_forward.1} parent=0 // pred_region
    _
  $region85: #{vae_forward.1} parent=0 // pred_fallthru
    _
  // Predicated region
  $region86: #{vae_forward.1} parent=0 // pred_check
    _
  $region87: #{vae_forward.1} parent=0 // pred_check_branch
    %74 = sbr.rel (0) target = $region89
  $region88: #{vae_forward.1} parent=0 // pred_region
    _
  $region89: #{vae_forward.1} parent=0 // pred_fallthru
    _
  // Predicated region
  $region90: #{vae_forward.1} parent=0 // pred_check
    _
  $region91: #{vae_forward.1} parent=0 // pred_check_branch
    %76 = sbr.rel (0) target = $region93
  $region92: #{vae_forward.1} parent=0 // pred_region
    _
  $region93: #{vae_forward.1} parent=0 // pred_fallthru
    _
  %v78 = vld [vmem:[%s0] sm:$0xff]
  %v79 = vld [vmem:[%s0 + $0x8] sm:$0xff]
  %v80 = vld [vmem:[%s0 + $0x10] sm:$0xff]
  %v81 = vld [vmem:[%s0 + $0x18] sm:$0xff]
  %v82 = vpack.c.bf16 %v79, %v78
  %v83 = vpack.c.bf16 %v81, %v80
  %v84 = vld [vmem:[%s3] sm:$0xf]
  %v85 = vld [vmem:[%s3 + $0x4] sm:$0xf]
  %v86 = vld [vmem:[%s3 + $0x8] sm:$0xf]
  %v87 = vld [vmem:[%s3 + $0xc] sm:$0xf]
  %v88 = vld [vmem:[%s3 + $0x10] sm:$0xf]
  %v89 = vld [vmem:[%s3 + $0x14] sm:$0xf]
  %v90 = vld [vmem:[%s3 + $0x18] sm:$0xf]
  %v98 = vunpack.c.l.b16 %v84
  %v99 = vunpack.c.l.b16 %v85
  %v100 = vunpack.c.l.b16 %v86
  %v101 = vunpack.c.l.b16 %v87
  %v102 = vunpack.c.l.b16 %v88
  %v103 = vunpack.c.l.b16 %v89
  %v104 = vunpack.c.l.b16 %v90
  %v105 = vpack.c.b16 %v99, %v98
  %v106 = vpack.c.b16 %v101, %v100
  %v107 = vpack.c.b16 %v103, %v102
  %v108 = vpack.c.b16 %v104, %v104
  %vm112 = vcmask 457728
  %v114 = vsel %vm112, %v82, 0
  %v117 = vsel %vm112, %v83, 0
  %vm119 = vcmask 1043456
  %v121 = vsel %vm119, %v108, 0
  %123 = vmatprep.subr.bf16.mxu0 0
  %124 = vmatpush1.bf16.msra.mxu0 %v105
  %125 = vmatprep.subr.bf16.mxu0 0
  %126 = vmatpush1.bf16.msra.mxu0 %v106
  %127 = vmatprep.subr.bf16.mxu0 0
  %128 = vmatpush1.bf16.msra.mxu0 %v107
  %129 = vmatprep.subr.bf16.mxu0 0
  %130 = vmatpush1.bf16.msra.mxu0 %v121
  %131 = vmatprep.subr.bf16.mxu0 0
  %132 = vmatpush1.bf16.msra.mxu0 0
  %133 = vmatprep.subr.bf16.mxu0 0
  %134 = vmatpush1.bf16.msra.mxu0 0
  %135 = vmatprep.subr.bf16.mxu0 0
  %136 = vmatpush1.bf16.msra.mxu0 0
  %137 = vmatprep.subr.bf16.mxu0 0
  %138 = vmatpush1.bf16.msra.mxu0 0
  %139 = vmatprep.subr.bf16.mxu0 0
  %140 = vmatpush1.bf16.msra.mxu0 0
  %141 = vmatprep.subr.bf16.mxu0 0
  %142 = vmatpush1.bf16.msra.mxu0 0
  %143 = vmatprep.subr.bf16.mxu0 0
  %144 = vmatpush1.bf16.msra.mxu0 0
  %145 = vmatprep.subr.bf16.mxu0 0
  %146 = vmatpush1.bf16.msra.mxu0 0
  %147 = vmatprep.subr.bf16.mxu0 0
  %148 = vmatpush1.bf16.msra.mxu0 0
  %149 = vmatprep.subr.bf16.mxu0 0
  %150 = vmatpush1.bf16.msra.mxu0 0
  %151 = vmatprep.subr.bf16.mxu0 0
  %152 = vmatpush1.bf16.msra.mxu0 0
  %153 = vmatprep.subr.bf16.mxu0 0
  %154 = vmatpush1.bf16.msra.mxu0 0
  %155 = vmatprep.mubr.bf16.mxu0 0
  %156 = vmatmul.mubr.bf16.gmra.mrb[0].mxu0 %v114
  %v157 = vpop.f32.mrb[0].mxu0
  %v158 = vadd.f32 0.0, %v157
  %v159 = vpop.f32.mrb[0].mxu0
  %v160 = vpop.f32.mrb[0].mxu0
  %v161 = vadd.f32 0.0, %v160
  %v162 = vpop.f32.mrb[0].mxu0
  %163 = vmatprep.mubr.bf16.mxu0 0
  %164 = vmatmul.mubr.bf16.gmra.mrb[0].mxu0 %v117
  %v165 = vpop.f32.mrb[0].mxu0
  %v166 = vadd.f32 0.0, %v165
  %v167 = vpop.f32.mrb[0].mxu0
  %v168 = vpop.f32.mrb[0].mxu0
  %v169 = vadd.f32 0.0, %v168
  %v170 = vpop.f32.mrb[0].mxu0
  %171 = vdwg.mxu0
  %vm172 = vcmask 228352
  %173 = vst.msk [vmem:[#allocation2] sm:$0xff] %vm172, %v158
  %174 = vst.msk [vmem:[#allocation2 + $0x8] sm:$0xff] %vm172, %v161
  %175 = vst.msk [vmem:[#allocation2 + $0x10] sm:$0xff] %vm172, %v166
  %176 = vst.msk [vmem:[#allocation2 + $0x18] sm:$0xff] %vm172, %v169
  %s177 = scalar_lea.vmem %s3, 28
  %v178 = vld [vmem:[%s177] sm:$0xf]
  %v179 = vld [vmem:[%s177 + $0x4] sm:$0xf]
  %v180 = vld [vmem:[%s177 + $0x8] sm:$0xf]
  %v181 = vld [vmem:[%s177 + $0xc] sm:$0xf]
  %v182 = vld [vmem:[%s177 + $0x10] sm:$0xf]
  %v183 = vld [vmem:[%s177 + $0x14] sm:$0xf]
  %v184 = vld [vmem:[%s177 + $0x18] sm:$0xf]
  %v192 = vunpack.c.l.b16 %v178
  %v193 = vunpack.c.l.b16 %v179
  %v194 = vunpack.c.l.b16 %v180
  %v195 = vunpack.c.l.b16 %v181
  %v196 = vunpack.c.l.b16 %v182
  %v197 = vunpack.c.l.b16 %v183
  %v198 = vunpack.c.l.b16 %v184
  %v199 = vpack.c.b16 %v193, %v192
  %v200 = vpack.c.b16 %v195, %v194
  %v201 = vpack.c.b16 %v197, %v196
  %v202 = vpack.c.b16 %v198, %v198
  %v207 = vsel %vm119, %v202, 0
  %209 = vmatprep.subr.bf16.mxu0 0
  %210 = vmatpush1.bf16.msra.mxu0 %v199
  %211 = vmatprep.subr.bf16.mxu0 0
  %212 = vmatpush1.bf16.msra.mxu0 %v200
  %213 = vmatprep.subr.bf16.mxu0 0
  %214 = vmatpush1.bf16.msra.mxu0 %v201
  %215 = vmatprep.subr.bf16.mxu0 0
  %216 = vmatpush1.bf16.msra.mxu0 %v207
  %217 = vmatprep.subr.bf16.mxu0 0
  %218 = vmatpush1.bf16.msra.mxu0 0
  %219 = vmatprep.subr.bf16.mxu0 0
  %220 = vmatpush1.bf16.msra.mxu0 0
  %221 = vmatprep.subr.bf16.mxu0 0
  %222 = vmatpush1.bf16.msra.mxu0 0
  %223 = vmatprep.subr.bf16.mxu0 0
  %224 = vmatpush1.bf16.msra.mxu0 0
  %225 = vmatprep.subr.bf16.mxu0 0
  %226 = vmatpush1.bf16.msra.mxu0 0
  %227 = vmatprep.subr.bf16.mxu0 0
  %228 = vmatpush1.bf16.msra.mxu0 0
  %229 = vmatprep.subr.bf16.mxu0 0
  %230 = vmatpush1.bf16.msra.mxu0 0
  %231 = vmatprep.subr.bf16.mxu0 0
  %232 = vmatpush1.bf16.msra.mxu0 0
  %233 = vmatprep.subr.bf16.mxu0 0
  %234 = vmatpush1.bf16.msra.mxu0 0
  %235 = vmatprep.subr.bf16.mxu0 0
  %236 = vmatpush1.bf16.msra.mxu0 0
  %237 = vmatprep.subr.bf16.mxu0 0
  %238 = vmatpush1.bf16.msra.mxu0 0
  %239 = vmatprep.subr.bf16.mxu0 0
  %240 = vmatpush1.bf16.msra.mxu0 0
  %241 = vmatprep.mubr.bf16.mxu0 0
  %242 = vmatmul.mubr.bf16.gmra.mrb[0].mxu0 %v114
  %v243 = vpop.f32.mrb[0].mxu0
  %v244 = vadd.f32 0.0, %v243
  %v245 = vpop.f32.mrb[0].mxu0
  %v246 = vpop.f32.mrb[0].mxu0
  %v247 = vadd.f32 0.0, %v246
  %v248 = vpop.f32.mrb[0].mxu0
  %249 = vmatprep.mubr.bf16.mxu0 0
  %250 = vmatmul.mubr.bf16.gmra.mrb[0].mxu0 %v117
  %v251 = vpop.f32.mrb[0].mxu0
  %v252 = vadd.f32 0.0, %v251
  %v253 = vpop.f32.mrb[0].mxu0
  %v254 = vpop.f32.mrb[0].mxu0
  %v255 = vadd.f32 0.0, %v254
  %v256 = vpop.f32.mrb[0].mxu0
  %257 = vdwg.mxu0
  %258 = vst.msk [vmem:[#allocation2 + $0x20] sm:$0xff] %vm172, %v244
  %259 = vst.msk [vmem:[#allocation2 + $0x28] sm:$0xff] %vm172, %v247
  %260 = vst.msk [vmem:[#allocation2 + $0x30] sm:$0xff] %vm172, %v252
  %261 = vst.msk [vmem:[#allocation2 + $0x38] sm:$0xff] %vm172, %v255
  %s262 = scalar_lea.vmem %s3, 56
  %v263 = vld [vmem:[%s262] sm:$0xf]
  %v264 = vld [vmem:[%s262 + $0x4] sm:$0xf]
  %v265 = vld [vmem:[%s262 + $0x8] sm:$0xf]
  %v266 = vld [vmem:[%s262 + $0xc] sm:$0xf]
  %v267 = vld [vmem:[%s262 + $0x10] sm:$0xf]
  %v268 = vld [vmem:[%s262 + $0x14] sm:$0xf]
  %v269 = vld [vmem:[%s262 + $0x18] sm:$0xf]
  %v277 = vunpack.c.l.b16 %v263
  %v278 = vunpack.c.l.b16 %v264
  %v279 = vunpack.c.l.b16 %v265
  %v280 = vunpack.c.l.b16 %v266
  %v281 = vunpack.c.l.b16 %v267
  %v282 = vunpack.c.l.b16 %v268
  %v283 = vunpack.c.l.b16 %v269
  %v284 = vpack.c.b16 %v278, %v277
  %v285 = vpack.c.b16 %v280, %v279
  %v286 = vpack.c.b16 %v282, %v281
  %v287 = vpack.c.b16 %v283, %v283
  %v292 = vsel %vm119, %v287, 0
  %294 = vmatprep.subr.bf16.mxu0 0
  %295 = vmatpush1.bf16.msra.mxu0 %v284
  %296 = vmatprep.subr.bf16.mxu0 0
  %297 = vmatpush1.bf16.msra.mxu0 %v285
  %298 = vmatprep.subr.bf16.mxu0 0
  %299 = vmatpush1.bf16.msra.mxu0 %v286
  %300 = vmatprep.subr.bf16.mxu0 0
  %301 = vmatpush1.bf16.msra.mxu0 %v292
  %302 = vmatprep.subr.bf16.mxu0 0
  %303 = vmatpush1.bf16.msra.mxu0 0
  %304 = vmatprep.subr.bf16.mxu0 0
  %305 = vmatpush1.bf16.msra.mxu0 0
  %306 = vmatprep.subr.bf16.mxu0 0
  %307 = vmatpush1.bf16.msra.mxu0 0
  %308 = vmatprep.subr.bf16.mxu0 0
  %309 = vmatpush1.bf16.msra.mxu0 0
  %310 = vmatprep.subr.bf16.mxu0 0
  %311 = vmatpush1.bf16.msra.mxu0 0
  %312 = vmatprep.subr.bf16.mxu0 0
  %313 = vmatpush1.bf16.msra.mxu0 0
  %314 = vmatprep.subr.bf16.mxu0 0
  %315 = vmatpush1.bf16.msra.mxu0 0
  %316 = vmatprep.subr.bf16.mxu0 0
  %317 = vmatpush1.bf16.msra.mxu0 0
  %318 = vmatprep.subr.bf16.mxu0 0
  %319 = vmatpush1.bf16.msra.mxu0 0
  %320 = vmatprep.subr.bf16.mxu0 0
  %321 = vmatpush1.bf16.msra.mxu0 0
  %322 = vmatprep.subr.bf16.mxu0 0
  %323 = vmatpush1.bf16.msra.mxu0 0
  %324 = vmatprep.subr.bf16.mxu0 0
  %325 = vmatpush1.bf16.msra.mxu0 0
  %326 = vmatprep.mubr.bf16.mxu0 0
  %327 = vmatmul.mubr.bf16.gmra.mrb[0].mxu0 %v114
  %v328 = vpop.f32.mrb[0].mxu0
  %v329 = vadd.f32 0.0, %v328
  %v330 = vpop.f32.mrb[0].mxu0
  %v331 = vpop.f32.mrb[0].mxu0
  %v332 = vadd.f32 0.0, %v331
  %v333 = vpop.f32.mrb[0].mxu0
  %334 = vmatprep.mubr.bf16.mxu0 0
  %335 = vmatmul.mubr.bf16.gmra.mrb[0].mxu0 %v117
  %v336 = vpop.f32.mrb[0].mxu0
  %v337 = vadd.f32 0.0, %v336
  %v338 = vpop.f32.mrb[0].mxu0
  %v339 = vpop.f32.mrb[0].mxu0
  %v340 = vadd.f32 0.0, %v339
  %v341 = vpop.f32.mrb[0].mxu0
  %342 = vdwg.mxu0
  %343 = vst.msk [vmem:[#allocation2 + $0x40] sm:$0xff] %vm172, %v329
  %344 = vst.msk [vmem:[#allocation2 + $0x48] sm:$0xff] %vm172, %v332
  %345 = vst.msk [vmem:[#allocation2 + $0x50] sm:$0xff] %vm172, %v337
  %346 = vst.msk [vmem:[#allocation2 + $0x58] sm:$0xff] %vm172, %v340
  %v347 = vld [vmem:[#allocation2] sm:$0xff]
  %v348 = vld [vmem:[#allocation2 + $0x8] sm:$0xff]
  %v349 = vld [vmem:[#allocation2 + $0x10] sm:$0xff]
  %v350 = vld [vmem:[#allocation2 + $0x18] sm:$0xff]
  %v351 = vld [vmem:[#allocation2 + $0x20] sm:$0xff]
  %v352 = vld [vmem:[#allocation2 + $0x28] sm:$0xff]
  %v353 = vld [vmem:[#allocation2 + $0x30] sm:$0xff]
  %v354 = vld [vmem:[#allocation2 + $0x38] sm:$0xff]
  %v355 = vld [vmem:[#allocation2 + $0x40] sm:$0xff]
  %v356 = vld [vmem:[#allocation2 + $0x48] sm:$0xff]
  %v357 = vld [vmem:[#allocation2 + $0x50] sm:$0xff]
  %v358 = vld [vmem:[#allocation2 + $0x58] sm:$0xff]
  %v359 = vpack.c.bf16 %v348, %v347
  %v360 = vpack.c.bf16 %v350, %v349
  %v361 = vpack.c.bf16 %v352, %v351
  %v362 = vpack.c.bf16 %v354, %v353
  %v363 = vpack.c.bf16 %v356, %v355
  %v364 = vpack.c.bf16 %v358, %v357
  %v365 = vld [vmem:[%s2] sm:$0xf]
  %v366 = vld [vmem:[%s2 + $0x4] sm:$0xf]
  %v367 = vld [vmem:[%s2 + $0x8] sm:$0xf]
  %v368 = vld [vmem:[%s2 + $0xc] sm:$0xf]
  %v369 = vld [vmem:[%s2 + $0x10] sm:$0xf]
  %v370 = vld [vmem:[%s2 + $0x14] sm:$0xf]
  %v371 = vld [vmem:[%s2 + $0x18] sm:$0xf]
  %v372 = vld [vmem:[%s2 + $0x1c] sm:$0xf]
  %v373 = vld [vmem:[%s2 + $0x20] sm:$0xf]
  %v374 = vld [vmem:[%s2 + $0x24] sm:$0xf]
  %v375 = vld [vmem:[%s2 + $0x28] sm:$0xf]
  %v376 = vld [vmem:[%s2 + $0x2c] sm:$0xf]
  %v377 = vld [vmem:[%s2 + $0x30] sm:$0xf]
  %v378 = vld [vmem:[%s2 + $0x34] sm:$0xf]
  %v379 = vld [vmem:[%s4] sm:$0xff]
  %v380 = vld [vmem:[%s4 + $0x8] sm:$0xff]
  %v381 = vld [vmem:[%s4 + $0x10] sm:$0xff]
  %v382 = vld [vmem:[%s4 + $0x18] sm:$0xff]
  %v383 = vld [vmem:[%s4 + $0x20] sm:$0xff]
  %v384 = vld [vmem:[%s4 + $0x28] sm:$0xff]
  %v385 = vld [vmem:[%s4 + $0x30] sm:$0xff]
  %v386 = vld [vmem:[%s4 + $0x38] sm:$0xff]
  %v387 = vld [vmem:[%s4 + $0x40] sm:$0xff]
  %v388 = vld [vmem:[%s4 + $0x48] sm:$0xff]
  %v389 = vld [vmem:[%s4 + $0x50] sm:$0xff]
  %v390 = vld [vmem:[%s4 + $0x58] sm:$0xff]
  %v391 = vld [vmem:[%s4 + $0x60] sm:$0xff]
  %v392 = vld [vmem:[%s4 + $0x68] sm:$0xff]
  %394 = vset.pattern.permute.xlu0 0
  %395 = vperm.xlu0 %394, %v379
  %v396 = vpop.permute.xlu0 %395
  %399 = vset.pattern.permute.xlu0 0
  %400 = vperm.xlu0 %399, %v380
  %v401 = vpop.permute.xlu0 %400
  %404 = vset.pattern.permute.xlu0 0
  %405 = vperm.xlu0 %404, %v381
  %v406 = vpop.permute.xlu0 %405
  %409 = vset.pattern.permute.xlu0 0
  %410 = vperm.xlu0 %409, %v382
  %v411 = vpop.permute.xlu0 %410
  %414 = vset.pattern.permute.xlu0 0
  %415 = vperm.xlu0 %414, %v383
  %v416 = vpop.permute.xlu0 %415
  %419 = vset.pattern.permute.xlu0 0
  %420 = vperm.xlu0 %419, %v384
  %v421 = vpop.permute.xlu0 %420
  %424 = vset.pattern.permute.xlu0 0
  %425 = vperm.xlu0 %424, %v385
  %v426 = vpop.permute.xlu0 %425
  %429 = vset.pattern.permute.xlu0 0
  %430 = vperm.xlu0 %429, %v386
  %v431 = vpop.permute.xlu0 %430
  %434 = vset.pattern.permute.xlu0 0
  %435 = vperm.xlu0 %434, %v387
  %v436 = vpop.permute.xlu0 %435
  %439 = vset.pattern.permute.xlu0 0
  %440 = vperm.xlu0 %439, %v388
  %v441 = vpop.permute.xlu0 %440
  %444 = vset.pattern.permute.xlu0 0
  %445 = vperm.xlu0 %444, %v389
  %v446 = vpop.permute.xlu0 %445
  %449 = vset.pattern.permute.xlu0 0
  %450 = vperm.xlu0 %449, %v390
  %v451 = vpop.permute.xlu0 %450
  %454 = vset.pattern.permute.xlu0 0
  %455 = vperm.xlu0 %454, %v391
  %v456 = vpop.permute.xlu0 %455
  %459 = vset.pattern.permute.xlu0 0
  %460 = vperm.xlu0 %459, %v392
  %v461 = vpop.permute.xlu0 %460
  %v477 = vunpack.c.l.b16 %v365
  %v478 = vunpack.c.l.b16 %v366
  %v479 = vunpack.c.l.b16 %v367
  %v480 = vunpack.c.l.b16 %v368
  %v481 = vunpack.c.l.b16 %v369
  %v482 = vunpack.c.l.b16 %v370
  %v483 = vunpack.c.l.b16 %v371
  %v484 = vunpack.c.l.b16 %v372
  %v485 = vunpack.c.l.b16 %v373
  %v486 = vunpack.c.l.b16 %v374
  %v487 = vunpack.c.l.b16 %v375
  %v488 = vunpack.c.l.b16 %v376
  %v489 = vunpack.c.l.b16 %v377
  %v490 = vunpack.c.l.b16 %v378
  %v491 = vpack.c.b16 %v478, %v477
  %v492 = vpack.c.b16 %v480, %v479
  %v493 = vpack.c.b16 %v482, %v481
  %v494 = vpack.c.b16 %v484, %v483
  %v495 = vpack.c.b16 %v486, %v485
  %v496 = vpack.c.b16 %v488, %v487
  %v497 = vpack.c.b16 %v490, %v489
  %vm498 = vcmask 785408
  %v500 = vsel %vm498, %v491, 0
  %v503 = vsel %vm498, %v492, 0
  %v506 = vsel %vm498, %v493, 0
  %v509 = vsel %vm498, %v494, 0
  %v512 = vsel %vm498, %v495, 0
  %v515 = vsel %vm498, %v496, 0
  %v518 = vsel %vm498, %v497, 0
  %520 = vmatprep.subr.bf16.mxu0 0
  %521 = vmatpush1.bf16.msra.mxu0 %v359
  %522 = vmatprep.subr.bf16.mxu0 0
  %523 = vmatpush1.bf16.msra.mxu0 %v360
  %524 = vmatprep.subr.bf16.mxu0 0
  %525 = vmatpush1.bf16.msra.mxu0 %v361
  %526 = vmatprep.subr.bf16.mxu0 0
  %527 = vmatpush1.bf16.msra.mxu0 %v362
  %528 = vmatprep.subr.bf16.mxu0 0
  %529 = vmatpush1.bf16.msra.mxu0 %v363
  %530 = vmatprep.subr.bf16.mxu0 0
  %531 = vmatpush1.bf16.msra.mxu0 %v364
  %532 = vmatprep.subr.bf16.mxu0 0
  %533 = vmatpush1.bf16.msra.mxu0 0
  %534 = vmatprep.subr.bf16.mxu0 0
  %535 = vmatpush1.bf16.msra.mxu0 0
  %536 = vmatprep.subr.bf16.mxu0 0
  %537 = vmatpush1.bf16.msra.mxu0 0
  %538 = vmatprep.subr.bf16.mxu0 0
  %539 = vmatpush1.bf16.msra.mxu0 0
  %540 = vmatprep.subr.bf16.mxu0 0
  %541 = vmatpush1.bf16.msra.mxu0 0
  %542 = vmatprep.subr.bf16.mxu0 0
  %543 = vmatpush1.bf16.msra.mxu0 0
  %544 = vmatprep.subr.bf16.mxu0 0
  %545 = vmatpush1.bf16.msra.mxu0 0
  %546 = vmatprep.subr.bf16.mxu0 0
  %547 = vmatpush1.bf16.msra.mxu0 0
  %548 = vmatprep.subr.bf16.mxu0 0
  %549 = vmatpush1.bf16.msra.mxu0 0
  %550 = vmatprep.subr.bf16.mxu0 0
  %551 = vmatpush1.bf16.msra.mxu0 0
  %552 = vmatprep.mubr.bf16.mxu0 0
  %553 = vmatmul.mubr.bf16.gmra.mrb[0].mxu0 %v500
  %v554 = vpop.f32.mrb[0].mxu0
  %v555 = vadd.f32 %v396, %v554
  %v556 = vpop.f32.mrb[0].mxu0
  %v557 = vpop.f32.mrb[0].mxu0
  %v558 = vadd.f32 %v401, %v557
  %v559 = vpop.f32.mrb[0].mxu0
  %560 = vmatprep.mubr.bf16.mxu0 0
  %561 = vmatmul.mubr.bf16.gmra.mrb[0].mxu0 %v503
  %v562 = vpop.f32.mrb[0].mxu0
  %v563 = vadd.f32 %v406, %v562
  %v564 = vpop.f32.mrb[0].mxu0
  %v565 = vpop.f32.mrb[0].mxu0
  %v566 = vadd.f32 %v411, %v565
  %v567 = vpop.f32.mrb[0].mxu0
  %568 = vmatprep.mubr.bf16.mxu0 0
  %569 = vmatmul.mubr.bf16.gmra.mrb[0].mxu0 %v506
  %v570 = vpop.f32.mrb[0].mxu0
  %v571 = vadd.f32 %v416, %v570
  %v572 = vpop.f32.mrb[0].mxu0
  %v573 = vpop.f32.mrb[0].mxu0
  %v574 = vadd.f32 %v421, %v573
  %v575 = vpop.f32.mrb[0].mxu0
  %576 = vmatprep.mubr.bf16.mxu0 0
  %577 = vmatmul.mubr.bf16.gmra.mrb[0].mxu0 %v509
  %v578 = vpop.f32.mrb[0].mxu0
  %v579 = vadd.f32 %v426, %v578
  %v580 = vpop.f32.mrb[0].mxu0
  %v581 = vpop.f32.mrb[0].mxu0
  %v582 = vadd.f32 %v431, %v581
  %v583 = vpop.f32.mrb[0].mxu0
  %584 = vmatprep.mubr.bf16.mxu0 0
  %585 = vmatmul.mubr.bf16.gmra.mrb[0].mxu0 %v512
  %v586 = vpop.f32.mrb[0].mxu0
  %v587 = vadd.f32 %v436, %v586
  %v588 = vpop.f32.mrb[0].mxu0
  %v589 = vpop.f32.mrb[0].mxu0
  %v590 = vadd.f32 %v441, %v589
  %v591 = vpop.f32.mrb[0].mxu0
  %592 = vmatprep.mubr.bf16.mxu0 0
  %593 = vmatmul.mubr.bf16.gmra.mrb[0].mxu0 %v515
  %v594 = vpop.f32.mrb[0].mxu0
  %v595 = vadd.f32 %v446, %v594
  %v596 = vpop.f32.mrb[0].mxu0
  %v597 = vpop.f32.mrb[0].mxu0
  %v598 = vadd.f32 %v451, %v597
  %v599 = vpop.f32.mrb[0].mxu0
  %600 = vmatprep.mubr.bf16.mxu0 0
  %601 = vmatmul.mubr.bf16.gmra.mrb[0].mxu0 %v518
  %v602 = vpop.f32.mrb[0].mxu0
  %v603 = vadd.f32 %v456, %v602
  %v604 = vpop.f32.mrb[0].mxu0
  %v605 = vpop.f32.mrb[0].mxu0
  %v606 = vadd.f32 %v461, %v605
  %v607 = vpop.f32.mrb[0].mxu0
  %608 = vdwg.mxu0
  %v609 = vmax.f32 %v555, 0.0
  %v610 = vmax.f32 %v558, 0.0
  %v611 = vmax.f32 %v563, 0.0
  %v612 = vmax.f32 %v566, 0.0
  %v613 = vmax.f32 %v571, 0.0
  %v614 = vmax.f32 %v574, 0.0
  %v615 = vmax.f32 %v579, 0.0
  %v616 = vmax.f32 %v582, 0.0
  %v617 = vmax.f32 %v587, 0.0
  %v618 = vmax.f32 %v590, 0.0
  %v619 = vmax.f32 %v595, 0.0
  %v620 = vmax.f32 %v598, 0.0
  %v621 = vmax.f32 %v603, 0.0
  %v622 = vmax.f32 %v606, 0.0
  %v623 = vpack.c.bf16 %v610, %v609
  %v624 = vpack.c.bf16 %v612, %v611
  %v625 = vpack.c.bf16 %v614, %v613
  %v626 = vpack.c.bf16 %v616, %v615
  %v627 = vpack.c.bf16 %v618, %v617
  %v628 = vpack.c.bf16 %v620, %v619
  %v629 = vpack.c.bf16 %v622, %v621
  %v630 = vld [vmem:[%s6] sm:$0xf]
  %v631 = vld [vmem:[%s6 + $0x4] sm:$0xf]
  %v632 = vld [vmem:[%s6 + $0x8] sm:$0xf]
  %v633 = vld [vmem:[%s6 + $0xc] sm:$0x3]
  %v638 = vunpack.c.l.b16 %v630
  %v639 = vunpack.c.l.b16 %v631
  %v640 = vunpack.c.l.b16 %v632
  %v641 = vunpack.c.l.b16 %v633
  %v642 = vpack.c.b16 %v639, %v638
  %v643 = vpack.c.b16 %v641, %v640
  %v646 = vsel %vm172, %v623, 0
  %v649 = vsel %vm172, %v624, 0
  %v652 = vsel %vm172, %v625, 0
  %v655 = vsel %vm172, %v626, 0
  %v658 = vsel %vm172, %v627, 0
  %v661 = vsel %vm172, %v628, 0
  %v664 = vsel %vm172, %v629, 0
  %vm666 = vcmask 1045504
  %v668 = vsel %vm666, %v643, 0
  %670 = vmatprep.subr.bf16.mxu0 0
  %671 = vmatpush1.bf16.msra.mxu0 %v642
  %672 = vmatprep.subr.bf16.mxu0 0
  %673 = vmatpush1.bf16.msra.mxu0 %v668
  %674 = vmatprep.subr.bf16.mxu0 0
  %675 = vmatpush1.bf16.msra.mxu0 0
  %676 = vmatprep.subr.bf16.mxu0 0
  %677 = vmatpush1.bf16.msra.mxu0 0
  %678 = vmatprep.subr.bf16.mxu0 0
  %679 = vmatpush1.bf16.msra.mxu0 0
  %680 = vmatprep.subr.bf16.mxu0 0
  %681 = vmatpush1.bf16.msra.mxu0 0
  %682 = vmatprep.subr.bf16.mxu0 0
  %683 = vmatpush1.bf16.msra.mxu0 0
  %684 = vmatprep.subr.bf16.mxu0 0
  %685 = vmatpush1.bf16.msra.mxu0 0
  %686 = vmatprep.subr.bf16.mxu0 0
  %687 = vmatpush1.bf16.msra.mxu0 0
  %688 = vmatprep.subr.bf16.mxu0 0
  %689 = vmatpush1.bf16.msra.mxu0 0
  %690 = vmatprep.subr.bf16.mxu0 0
  %691 = vmatpush1.bf16.msra.mxu0 0
  %692 = vmatprep.subr.bf16.mxu0 0
  %693 = vmatpush1.bf16.msra.mxu0 0
  %694 = vmatprep.subr.bf16.mxu0 0
  %695 = vmatpush1.bf16.msra.mxu0 0
  %696 = vmatprep.subr.bf16.mxu0 0
  %697 = vmatpush1.bf16.msra.mxu0 0
  %698 = vmatprep.subr.bf16.mxu0 0
  %699 = vmatpush1.bf16.msra.mxu0 0
  %700 = vmatprep.subr.bf16.mxu0 0
  %701 = vmatpush1.bf16.msra.mxu0 0
  %702 = vmatprep.mubr.bf16.mxu0 0
  %703 = vmatmul.mubr.bf16.gmra.mrb[0].mxu0 %v646
  %v704 = vpop.f32.mrb[0].mxu0
  %v705 = vadd.f32 0.0, %v704
  %v706 = vpop.f32.mrb[0].mxu0
  %v707 = vpop.f32.mrb[0].mxu0
  %v708 = vadd.f32 0.0, %v707
  %v709 = vpop.f32.mrb[0].mxu0
  %710 = vmatprep.mubr.bf16.mxu0 0
  %711 = vmatmul.mubr.bf16.gmra.mrb[0].mxu0 %v649
  %v712 = vpop.f32.mrb[0].mxu0
  %v713 = vadd.f32 0.0, %v712
  %v714 = vpop.f32.mrb[0].mxu0
  %v715 = vpop.f32.mrb[0].mxu0
  %v716 = vadd.f32 0.0, %v715
  %v717 = vpop.f32.mrb[0].mxu0
  %718 = vmatprep.mubr.bf16.mxu0 0
  %719 = vmatmul.mubr.bf16.gmra.mrb[0].mxu0 %v652
  %v720 = vpop.f32.mrb[0].mxu0
  %v721 = vadd.f32 0.0, %v720
  %v722 = vpop.f32.mrb[0].mxu0
  %v723 = vpop.f32.mrb[0].mxu0
  %v724 = vadd.f32 0.0, %v723
  %v725 = vpop.f32.mrb[0].mxu0
  %726 = vmatprep.mubr.bf16.mxu0 0
  %727 = vmatmul.mubr.bf16.gmra.mrb[0].mxu0 %v655
  %v728 = vpop.f32.mrb[0].mxu0
  %v729 = vadd.f32 0.0, %v728
  %v730 = vpop.f32.mrb[0].mxu0
  %v731 = vpop.f32.mrb[0].mxu0
  %v732 = vadd.f32 0.0, %v731
  %v733 = vpop.f32.mrb[0].mxu0
  %734 = vmatprep.mubr.bf16.mxu0 0
  %735 = vmatmul.mubr.bf16.gmra.mrb[0].mxu0 %v658
  %v736 = vpop.f32.mrb[0].mxu0
  %v737 = vadd.f32 0.0, %v736
  %v738 = vpop.f32.mrb[0].mxu0
  %v739 = vpop.f32.mrb[0].mxu0
  %v740 = vadd.f32 0.0, %v739
  %v741 = vpop.f32.mrb[0].mxu0
  %742 = vmatprep.mubr.bf16.mxu0 0
  %743 = vmatmul.mubr.bf16.gmra.mrb[0].mxu0 %v661
  %v744 = vpop.f32.mrb[0].mxu0
  %v745 = vadd.f32 0.0, %v744
  %v746 = vpop.f32.mrb[0].mxu0
  %v747 = vpop.f32.mrb[0].mxu0
  %v748 = vadd.f32 0.0, %v747
  %v749 = vpop.f32.mrb[0].mxu0
  %750 = vmatprep.mubr.bf16.mxu0 0
  %751 = vmatmul.mubr.bf16.gmra.mrb[0].mxu0 %v664
  %v752 = vpop.f32.mrb[0].mxu0
  %v753 = vadd.f32 0.0, %v752
  %v754 = vpop.f32.mrb[0].mxu0
  %v755 = vpop.f32.mrb[0].mxu0
  %v756 = vadd.f32 0.0, %v755
  %v757 = vpop.f32.mrb[0].mxu0
  %758 = vdwg.mxu0
  %vm759 = vcmask 113664
  %760 = vst.msk [vmem:[#allocation2] sm:$0xff] %vm759, %v705
  %761 = vst.msk [vmem:[#allocation2 + $0x8] sm:$0xff] %vm759, %v708
  %762 = vst.msk [vmem:[#allocation2 + $0x10] sm:$0xff] %vm759, %v713
  %763 = vst.msk [vmem:[#allocation2 + $0x18] sm:$0xff] %vm759, %v716
  %764 = vst.msk [vmem:[#allocation2 + $0x20] sm:$0xff] %vm759, %v721
  %765 = vst.msk [vmem:[#allocation2 + $0x28] sm:$0xff] %vm759, %v724
  %766 = vst.msk [vmem:[#allocation2 + $0x30] sm:$0xff] %vm759, %v729
  %767 = vst.msk [vmem:[#allocation2 + $0x38] sm:$0xff] %vm759, %v732
  %768 = vst.msk [vmem:[#allocation2 + $0x40] sm:$0xff] %vm759, %v737
  %769 = vst.msk [vmem:[#allocation2 + $0x48] sm:$0xff] %vm759, %v740
  %770 = vst.msk [vmem:[#allocation2 + $0x50] sm:$0xff] %vm759, %v745
  %771 = vst.msk [vmem:[#allocation2 + $0x58] sm:$0xff] %vm759, %v748
  %772 = vst.msk [vmem:[#allocation2 + $0x60] sm:$0xff] %vm759, %v753
  %773 = vst.msk [vmem:[#allocation2 + $0x68] sm:$0xff] %vm759, %v756
  %s774 = scalar_lea.vmem %s6, 16
  %v775 = vld [vmem:[%s774] sm:$0xf]
  %v776 = vld [vmem:[%s774 + $0x4] sm:$0xf]
  %v777 = vld [vmem:[%s774 + $0x8] sm:$0xf]
  %v778 = vld [vmem:[%s774 + $0xc] sm:$0x3]
  %v783 = vunpack.c.l.b16 %v775
  %v784 = vunpack.c.l.b16 %v776
  %v785 = vunpack.c.l.b16 %v777
  %v786 = vunpack.c.l.b16 %v778
  %v787 = vpack.c.b16 %v784, %v783
  %v788 = vpack.c.b16 %v786, %v785
  %v791 = vsel %vm666, %v788, 0
  %793 = vmatprep.subr.bf16.mxu0 0
  %794 = vmatpush1.bf16.msra.mxu0 %v787
  %795 = vmatprep.subr.bf16.mxu0 0
  %796 = vmatpush1.bf16.msra.mxu0 %v791
  %797 = vmatprep.subr.bf16.mxu0 0
  %798 = vmatpush1.bf16.msra.mxu0 0
  %799 = vmatprep.subr.bf16.mxu0 0
  %800 = vmatpush1.bf16.msra.mxu0 0
  %801 = vmatprep.subr.bf16.mxu0 0
  %802 = vmatpush1.bf16.msra.mxu0 0
  %803 = vmatprep.subr.bf16.mxu0 0
  %804 = vmatpush1.bf16.msra.mxu0 0
  %805 = vmatprep.subr.bf16.mxu0 0
  %806 = vmatpush1.bf16.msra.mxu0 0
  %807 = vmatprep.subr.bf16.mxu0 0
  %808 = vmatpush1.bf16.msra.mxu0 0
  %809 = vmatprep.subr.bf16.mxu0 0
  %810 = vmatpush1.bf16.msra.mxu0 0
  %811 = vmatprep.subr.bf16.mxu0 0
  %812 = vmatpush1.bf16.msra.mxu0 0
  %813 = vmatprep.subr.bf16.mxu0 0
  %814 = vmatpush1.bf16.msra.mxu0 0
  %815 = vmatprep.subr.bf16.mxu0 0
  %816 = vmatpush1.bf16.msra.mxu0 0
  %817 = vmatprep.subr.bf16.mxu0 0
  %818 = vmatpush1.bf16.msra.mxu0 0
  %819 = vmatprep.subr.bf16.mxu0 0
  %820 = vmatpush1.bf16.msra.mxu0 0
  %821 = vmatprep.subr.bf16.mxu0 0
  %822 = vmatpush1.bf16.msra.mxu0 0
  %823 = vmatprep.subr.bf16.mxu0 0
  %824 = vmatpush1.bf16.msra.mxu0 0
  %825 = vmatprep.mubr.bf16.mxu0 0
  %826 = vmatmul.mubr.bf16.gmra.mrb[0].mxu0 %v646
  %v827 = vpop.f32.mrb[0].mxu0
  %v828 = vadd.f32 0.0, %v827
  %v829 = vpop.f32.mrb[0].mxu0
  %v830 = vpop.f32.mrb[0].mxu0
  %v831 = vadd.f32 0.0, %v830
  %v832 = vpop.f32.mrb[0].mxu0
  %833 = vmatprep.mubr.bf16.mxu0 0
  %834 = vmatmul.mubr.bf16.gmra.mrb[0].mxu0 %v649
  %v835 = vpop.f32.mrb[0].mxu0
  %v836 = vadd.f32 0.0, %v835
  %v837 = vpop.f32.mrb[0].mxu0
  %v838 = vpop.f32.mrb[0].mxu0
  %v839 = vadd.f32 0.0, %v838
  %v840 = vpop.f32.mrb[0].mxu0
  %841 = vmatprep.mubr.bf16.mxu0 0
  %842 = vmatmul.mubr.bf16.gmra.mrb[0].mxu0 %v652
  %v843 = vpop.f32.mrb[0].mxu0
  %v844 = vadd.f32 0.0, %v843
  %v845 = vpop.f32.mrb[0].mxu0
  %v846 = vpop.f32.mrb[0].mxu0
  %v847 = vadd.f32 0.0, %v846
  %v848 = vpop.f32.mrb[0].mxu0
  %849 = vmatprep.mubr.bf16.mxu0 0
  %850 = vmatmul.mubr.bf16.gmra.mrb[0].mxu0 %v655
  %v851 = vpop.f32.mrb[0].mxu0
  %v852 = vadd.f32 0.0, %v851
  %v853 = vpop.f32.mrb[0].mxu0
  %v854 = vpop.f32.mrb[0].mxu0
  %v855 = vadd.f32 0.0, %v854
  %v856 = vpop.f32.mrb[0].mxu0
  %857 = vmatprep.mubr.bf16.mxu0 0
  %858 = vmatmul.mubr.bf16.gmra.mrb[0].mxu0 %v658
  %v859 = vpop.f32.mrb[0].mxu0
  %v860 = vadd.f32 0.0, %v859
  %v861 = vpop.f32.mrb[0].mxu0
  %v862 = vpop.f32.mrb[0].mxu0
  %v863 = vadd.f32 0.0, %v862
  %v864 = vpop.f32.mrb[0].mxu0
  %865 = vmatprep.mubr.bf16.mxu0 0
  %866 = vmatmul.mubr.bf16.gmra.mrb[0].mxu0 %v661
  %v867 = vpop.f32.mrb[0].mxu0
  %v868 = vadd.f32 0.0, %v867
  %v869 = vpop.f32.mrb[0].mxu0
  %v870 = vpop.f32.mrb[0].mxu0
  %v871 = vadd.f32 0.0, %v870
  %v872 = vpop.f32.mrb[0].mxu0
  %873 = vmatprep.mubr.bf16.mxu0 0
  %874 = vmatmul.mubr.bf16.gmra.mrb[0].mxu0 %v664
  %v875 = vpop.f32.mrb[0].mxu0
  %v876 = vadd.f32 0.0, %v875
  %v877 = vpop.f32.mrb[0].mxu0
  %v878 = vpop.f32.mrb[0].mxu0
  %v879 = vadd.f32 0.0, %v878
  %v880 = vpop.f32.mrb[0].mxu0
  %881 = vdwg.mxu0
  %882 = vst.msk [vmem:[#allocation2 + $0x70] sm:$0xff] %vm759, %v828
  %883 = vst.msk [vmem:[#allocation2 + $0x78] sm:$0xff] %vm759, %v831
  %884 = vst.msk [vmem:[#allocation2 + $0x80] sm:$0xff] %vm759, %v836
  %885 = vst.msk [vmem:[#allocation2 + $0x88] sm:$0xff] %vm759, %v839
  %886 = vst.msk [vmem:[#allocation2 + $0x90] sm:$0xff] %vm759, %v844
  %887 = vst.msk [vmem:[#allocation2 + $0x98] sm:$0xff] %vm759, %v847
  %888 = vst.msk [vmem:[#allocation2 + $0xa0] sm:$0xff] %vm759, %v852
  %889 = vst.msk [vmem:[#allocation2 + $0xa8] sm:$0xff] %vm759, %v855
  %890 = vst.msk [vmem:[#allocation2 + $0xb0] sm:$0xff] %vm759, %v860
  %891 = vst.msk [vmem:[#allocation2 + $0xb8] sm:$0xff] %vm759, %v863
  %892 = vst.msk [vmem:[#allocation2 + $0xc0] sm:$0xff] %vm759, %v868
  %893 = vst.msk [vmem:[#allocation2 + $0xc8] sm:$0xff] %vm759, %v871
  %894 = vst.msk [vmem:[#allocation2 + $0xd0] sm:$0xff] %vm759, %v876
  %895 = vst.msk [vmem:[#allocation2 + $0xd8] sm:$0xff] %vm759, %v879
  %s896 = scalar_lea.vmem %s6, 32
  %v897 = vld [vmem:[%s896] sm:$0xf]
  %v898 = vld [vmem:[%s896 + $0x4] sm:$0xf]
  %v899 = vld [vmem:[%s896 + $0x8] sm:$0xf]
  %v900 = vld [vmem:[%s896 + $0xc] sm:$0x3]
  %v905 = vunpack.c.l.b16 %v897
  %v906 = vunpack.c.l.b16 %v898
  %v907 = vunpack.c.l.b16 %v899
  %v908 = vunpack.c.l.b16 %v900
  %v909 = vpack.c.b16 %v906, %v905
  %v910 = vpack.c.b16 %v908, %v907
  %v913 = vsel %vm666, %v910, 0
  %915 = vmatprep.subr.bf16.mxu0 0
  %916 = vmatpush1.bf16.msra.mxu0 %v909
  %917 = vmatprep.subr.bf16.mxu0 0
  %918 = vmatpush1.bf16.msra.mxu0 %v913
  %919 = vmatprep.subr.bf16.mxu0 0
  %920 = vmatpush1.bf16.msra.mxu0 0
  %921 = vmatprep.subr.bf16.mxu0 0
  %922 = vmatpush1.bf16.msra.mxu0 0
  %923 = vmatprep.subr.bf16.mxu0 0
  %924 = vmatpush1.bf16.msra.mxu0 0
  %925 = vmatprep.subr.bf16.mxu0 0
  %926 = vmatpush1.bf16.msra.mxu0 0
  %927 = vmatprep.subr.bf16.mxu0 0
  %928 = vmatpush1.bf16.msra.mxu0 0
  %929 = vmatprep.subr.bf16.mxu0 0
  %930 = vmatpush1.bf16.msra.mxu0 0
  %931 = vmatprep.subr.bf16.mxu0 0
  %932 = vmatpush1.bf16.msra.mxu0 0
  %933 = vmatprep.subr.bf16.mxu0 0
  %934 = vmatpush1.bf16.msra.mxu0 0
  %935 = vmatprep.subr.bf16.mxu0 0
  %936 = vmatpush1.bf16.msra.mxu0 0
  %937 = vmatprep.subr.bf16.mxu0 0
  %938 = vmatpush1.bf16.msra.mxu0 0
  %939 = vmatprep.subr.bf16.mxu0 0
  %940 = vmatpush1.bf16.msra.mxu0 0
  %941 = vmatprep.subr.bf16.mxu0 0
  %942 = vmatpush1.bf16.msra.mxu0 0
  %943 = vmatprep.subr.bf16.mxu0 0
  %944 = vmatpush1.bf16.msra.mxu0 0
  %945 = vmatprep.subr.bf16.mxu0 0
  %946 = vmatpush1.bf16.msra.mxu0 0
  %947 = vmatprep.mubr.bf16.mxu0 0
  %948 = vmatmul.mubr.bf16.gmra.mrb[0].mxu0 %v646
  %v949 = vpop.f32.mrb[0].mxu0
  %v950 = vadd.f32 0.0, %v949
  %v951 = vpop.f32.mrb[0].mxu0
  %v952 = vpop.f32.mrb[0].mxu0
  %v953 = vadd.f32 0.0, %v952
  %v954 = vpop.f32.mrb[0].mxu0
  %955 = vmatprep.mubr.bf16.mxu0 0
  %956 = vmatmul.mubr.bf16.gmra.mrb[0].mxu0 %v649
  %v957 = vpop.f32.mrb[0].mxu0
  %v958 = vadd.f32 0.0, %v957
  %v959 = vpop.f32.mrb[0].mxu0
  %v960 = vpop.f32.mrb[0].mxu0
  %v961 = vadd.f32 0.0, %v960
  %v962 = vpop.f32.mrb[0].mxu0
  %963 = vmatprep.mubr.bf16.mxu0 0
  %964 = vmatmul.mubr.bf16.gmra.mrb[0].mxu0 %v652
  %v965 = vpop.f32.mrb[0].mxu0
  %v966 = vadd.f32 0.0, %v965
  %v967 = vpop.f32.mrb[0].mxu0
  %v968 = vpop.f32.mrb[0].mxu0
  %v969 = vadd.f32 0.0, %v968
  %v970 = vpop.f32.mrb[0].mxu0
  %971 = vmatprep.mubr.bf16.mxu0 0
  %972 = vmatmul.mubr.bf16.gmra.mrb[0].mxu0 %v655
  %v973 = vpop.f32.mrb[0].mxu0
  %v974 = vadd.f32 0.0, %v973
  %v975 = vpop.f32.mrb[0].mxu0
  %v976 = vpop.f32.mrb[0].mxu0
  %v977 = vadd.f32 0.0, %v976
  %v978 = vpop.f32.mrb[0].mxu0
  %979 = vmatprep.mubr.bf16.mxu0 0
  %980 = vmatmul.mubr.bf16.gmra.mrb[0].mxu0 %v658
  %v981 = vpop.f32.mrb[0].mxu0
  %v982 = vadd.f32 0.0, %v981
  %v983 = vpop.f32.mrb[0].mxu0
  %v984 = vpop.f32.mrb[0].mxu0
  %v985 = vadd.f32 0.0, %v984
  %v986 = vpop.f32.mrb[0].mxu0
  %987 = vmatprep.mubr.bf16.mxu0 0
  %988 = vmatmul.mubr.bf16.gmra.mrb[0].mxu0 %v661
  %v989 = vpop.f32.mrb[0].mxu0
  %v990 = vadd.f32 0.0, %v989
  %v991 = vpop.f32.mrb[0].mxu0
  %v992 = vpop.f32.mrb[0].mxu0
  %v993 = vadd.f32 0.0, %v992
  %v994 = vpop.f32.mrb[0].mxu0
  %995 = vmatprep.mubr.bf16.mxu0 0
  %996 = vmatmul.mubr.bf16.gmra.mrb[0].mxu0 %v664
  %v997 = vpop.f32.mrb[0].mxu0
  %v998 = vadd.f32 0.0, %v997
  %v999 = vpop.f32.mrb[0].mxu0
  %v1000 = vpop.f32.mrb[0].mxu0
  %v1001 = vadd.f32 0.0, %v1000
  %v1002 = vpop.f32.mrb[0].mxu0
  %1003 = vdwg.mxu0
  %1004 = vst.msk [vmem:[#allocation2 + $0xe0] sm:$0xff] %vm759, %v950
  %1005 = vst.msk [vmem:[#allocation2 + $0xe8] sm:$0xff] %vm759, %v953
  %1006 = vst.msk [vmem:[#allocation2 + $0xf0] sm:$0xff] %vm759, %v958
  %1007 = vst.msk [vmem:[#allocation2 + $0xf8] sm:$0xff] %vm759, %v961
  %1008 = vst.msk [vmem:[#allocation2 + $0x100] sm:$0xff] %vm759, %v966
  %1009 = vst.msk [vmem:[#allocation2 + $0x108] sm:$0xff] %vm759, %v969
  %1010 = vst.msk [vmem:[#allocation2 + $0x110] sm:$0xff] %vm759, %v974
  %1011 = vst.msk [vmem:[#allocation2 + $0x118] sm:$0xff] %vm759, %v977
  %1012 = vst.msk [vmem:[#allocation2 + $0x120] sm:$0xff] %vm759, %v982
  %1013 = vst.msk [vmem:[#allocation2 + $0x128] sm:$0xff] %vm759, %v985
  %1014 = vst.msk [vmem:[#allocation2 + $0x130] sm:$0xff] %vm759, %v990
  %1015 = vst.msk [vmem:[#allocation2 + $0x138] sm:$0xff] %vm759, %v993
  %1016 = vst.msk [vmem:[#allocation2 + $0x140] sm:$0xff] %vm759, %v998
  %1017 = vst.msk [vmem:[#allocation2 + $0x148] sm:$0xff] %vm759, %v1001
  %v1018 = vld [vmem:[#allocation2] sm:$0xff]
  %v1019 = vld [vmem:[#allocation2 + $0x8] sm:$0xff]
  %v1020 = vld [vmem:[#allocation2 + $0x10] sm:$0xff]
  %v1021 = vld [vmem:[#allocation2 + $0x18] sm:$0xff]
  %v1022 = vld [vmem:[#allocation2 + $0x20] sm:$0xff]
  %v1023 = vld [vmem:[#allocation2 + $0x28] sm:$0xff]
  %v1024 = vld [vmem:[#allocation2 + $0x30] sm:$0xff]
  %v1025 = vld [vmem:[#allocation2 + $0x38] sm:$0xff]
  %v1026 = vld [vmem:[#allocation2 + $0x40] sm:$0xff]
  %v1027 = vld [vmem:[#allocation2 + $0x48] sm:$0xff]
  %v1028 = vld [vmem:[#allocation2 + $0x50] sm:$0xff]
  %v1029 = vld [vmem:[#allocation2 + $0x58] sm:$0xff]
  %v1030 = vld [vmem:[#allocation2 + $0x60] sm:$0xff]
  %v1031 = vld [vmem:[#allocation2 + $0x68] sm:$0xff]
  %v1032 = vld [vmem:[#allocation2 + $0x70] sm:$0xff]
  %v1033 = vld [vmem:[#allocation2 + $0x78] sm:$0xff]
  %v1034 = vld [vmem:[#allocation2 + $0x80] sm:$0xff]
  %v1035 = vld [vmem:[#allocation2 + $0x88] sm:$0xff]
  %v1036 = vld [vmem:[#allocation2 + $0x90] sm:$0xff]
  %v1037 = vld [vmem:[#allocation2 + $0x98] sm:$0xff]
  %v1038 = vld [vmem:[#allocation2 + $0xa0] sm:$0xff]
  %v1039 = vld [vmem:[#allocation2 + $0xa8] sm:$0xff]
  %v1040 = vld [vmem:[#allocation2 + $0xb0] sm:$0xff]
  %v1041 = vld [vmem:[#allocation2 + $0xb8] sm:$0xff]
  %v1042 = vld [vmem:[#allocation2 + $0xc0] sm:$0xff]
  %v1043 = vld [vmem:[#allocation2 + $0xc8] sm:$0xff]
  %v1044 = vld [vmem:[#allocation2 + $0xd0] sm:$0xff]
  %v1045 = vld [vmem:[#allocation2 + $0xd8] sm:$0xff]
  %v1046 = vld [vmem:[#allocation2 + $0xe0] sm:$0xff]
  %v1047 = vld [vmem:[#allocation2 + $0xe8] sm:$0xff]
  %v1048 = vld [vmem:[#allocation2 + $0xf0] sm:$0xff]
  %v1049 = vld [vmem:[#allocation2 + $0xf8] sm:$0xff]
  %v1050 = vld [vmem:[#allocation2 + $0x100] sm:$0xff]
  %v1051 = vld [vmem:[#allocation2 + $0x108] sm:$0xff]
  %v1052 = vld [vmem:[#allocation2 + $0x110] sm:$0xff]
  %v1053 = vld [vmem:[#allocation2 + $0x118] sm:$0xff]
  %v1054 = vld [vmem:[#allocation2 + $0x120] sm:$0xff]
  %v1055 = vld [vmem:[#allocation2 + $0x128] sm:$0xff]
  %v1056 = vld [vmem:[#allocation2 + $0x130] sm:$0xff]
  %v1057 = vld [vmem:[#allocation2 + $0x138] sm:$0xff]
  %v1058 = vld [vmem:[#allocation2 + $0x140] sm:$0xff]
  %v1059 = vld [vmem:[#allocation2 + $0x148] sm:$0xff]
  %v1060 = vpack.c.bf16 %v1019, %v1018
  %v1061 = vpack.c.bf16 %v1021, %v1020
  %v1062 = vpack.c.bf16 %v1023, %v1022
  %v1063 = vpack.c.bf16 %v1025, %v1024
  %v1064 = vpack.c.bf16 %v1027, %v1026
  %v1065 = vpack.c.bf16 %v1029, %v1028
  %v1066 = vpack.c.bf16 %v1031, %v1030
  %v1067 = vpack.c.bf16 %v1033, %v1032
  %v1068 = vpack.c.bf16 %v1035, %v1034
  %v1069 = vpack.c.bf16 %v1037, %v1036
  %v1070 = vpack.c.bf16 %v1039, %v1038
  %v1071 = vpack.c.bf16 %v1041, %v1040
  %v1072 = vpack.c.bf16 %v1043, %v1042
  %v1073 = vpack.c.bf16 %v1045, %v1044
  %v1074 = vpack.c.bf16 %v1047, %v1046
  %v1075 = vpack.c.bf16 %v1049, %v1048
  %v1076 = vpack.c.bf16 %v1051, %v1050
  %v1077 = vpack.c.bf16 %v1053, %v1052
  %v1078 = vpack.c.bf16 %v1055, %v1054
  %v1079 = vpack.c.bf16 %v1057, %v1056
  %v1080 = vpack.c.bf16 %v1059, %v1058
  %v1081 = vld [vmem:[%s5] sm:$0xff]
  %v1082 = vld [vmem:[%s5 + $0x8] sm:$0xf]
  %v1083 = vld [vmem:[%s5 + $0xc] sm:$0xff]
  %v1084 = vld [vmem:[%s5 + $0x14] sm:$0xf]
  %v1085 = vld [vmem:[%s5 + $0x18] sm:$0xff]
  %v1086 = vld [vmem:[%s5 + $0x20] sm:$0xf]
  %v1087 = vld [vmem:[%s5 + $0x24] sm:$0xff]
  %v1088 = vld [vmem:[%s5 + $0x2c] sm:$0xf]
  %v1089 = vld [vmem:[%s5 + $0x30] sm:$0xff]
  %v1090 = vld [vmem:[%s5 + $0x38] sm:$0xf]
  %v1091 = vld [vmem:[%s5 + $0x3c] sm:$0xff]
  %v1092 = vld [vmem:[%s5 + $0x44] sm:$0xf]
  %v1093 = vld [vmem:[%s5 + $0x48] sm:$0xff]
  %v1094 = vld [vmem:[%s5 + $0x50] sm:$0xf]
  %v1095 = vld [vmem:[%s5 + $0x54] sm:$0xff]
  %v1096 = vld [vmem:[%s5 + $0x5c] sm:$0xf]
  %v1097 = vld [vmem:[%s5 + $0x60] sm:$0xff]
  %v1098 = vld [vmem:[%s5 + $0x68] sm:$0xf]
  %v1099 = vld [vmem:[%s5 + $0x6c] sm:$0xff]
  %v1100 = vld [vmem:[%s5 + $0x74] sm:$0xf]
  %v1101 = vld [vmem:[%s5 + $0x78] sm:$0xff]
  %v1102 = vld [vmem:[%s5 + $0x80] sm:$0xf]
  %v1103 = vld [vmem:[%s5 + $0x84] sm:$0xff]
  %v1104 = vld [vmem:[%s5 + $0x8c] sm:$0xf]
  %v1105 = vld [vmem:[%s5 + $0x90] sm:$0xff]
  %v1106 = vld [vmem:[%s5 + $0x98] sm:$0xf]
  %v1107 = vld [vmem:[%s5 + $0x9c] sm:$0xff]
  %v1108 = vld [vmem:[%s5 + $0xa4] sm:$0xf]
  %v1109 = vld [vmem:[%s7] sm:$0xff]
  %v1110 = vld [vmem:[%s7 + $0x8] sm:$0xff]
  %v1111 = vld [vmem:[%s7 + $0x10] sm:$0xff]
  %v1112 = vld [vmem:[%s7 + $0x18] sm:$0xff]
  %v1113 = vld [vmem:[%s7 + $0x20] sm:$0xff]
  %v1114 = vld [vmem:[%s7 + $0x28] sm:$0xff]
  %v1115 = vld [vmem:[%s7 + $0x30] sm:$0xff]
  %v1116 = vld [vmem:[%s7 + $0x38] sm:$0xff]
  %v1117 = vld [vmem:[%s7 + $0x40] sm:$0xff]
  %v1118 = vld [vmem:[%s7 + $0x48] sm:$0xff]
  %v1119 = vld [vmem:[%s7 + $0x50] sm:$0xff]
  %v1120 = vld [vmem:[%s7 + $0x58] sm:$0xff]
  %v1121 = vld [vmem:[%s7 + $0x60] sm:$0xff]
  %v1122 = vld [vmem:[%s7 + $0x68] sm:$0xff]
  %1124 = vset.pattern.permute.xlu0 0
  %1125 = vperm.xlu0 %1124, %v1109
  %v1126 = vpop.permute.xlu0 %1125
  %1129 = vset.pattern.permute.xlu0 0
  %1130 = vperm.xlu0 %1129, %v1110
  %v1131 = vpop.permute.xlu0 %1130
  %1134 = vset.pattern.permute.xlu0 0
  %1135 = vperm.xlu0 %1134, %v1111
  %v1136 = vpop.permute.xlu0 %1135
  %1139 = vset.pattern.permute.xlu0 0
  %1140 = vperm.xlu0 %1139, %v1112
  %v1141 = vpop.permute.xlu0 %1140
  %1144 = vset.pattern.permute.xlu0 0
  %1145 = vperm.xlu0 %1144, %v1113
  %v1146 = vpop.permute.xlu0 %1145
  %1149 = vset.pattern.permute.xlu0 0
  %1150 = vperm.xlu0 %1149, %v1114
  %v1151 = vpop.permute.xlu0 %1150
  %1154 = vset.pattern.permute.xlu0 0
  %1155 = vperm.xlu0 %1154, %v1115
  %v1156 = vpop.permute.xlu0 %1155
  %1159 = vset.pattern.permute.xlu0 0
  %1160 = vperm.xlu0 %1159, %v1116
  %v1161 = vpop.permute.xlu0 %1160
  %1164 = vset.pattern.permute.xlu0 0
  %1165 = vperm.xlu0 %1164, %v1117
  %v1166 = vpop.permute.xlu0 %1165
  %1169 = vset.pattern.permute.xlu0 0
  %1170 = vperm.xlu0 %1169, %v1118
  %v1171 = vpop.permute.xlu0 %1170
  %1174 = vset.pattern.permute.xlu0 0
  %1175 = vperm.xlu0 %1174, %v1119
  %v1176 = vpop.permute.xlu0 %1175
  %1179 = vset.pattern.permute.xlu0 0
  %1180 = vperm.xlu0 %1179, %v1120
  %v1181 = vpop.permute.xlu0 %1180
  %1184 = vset.pattern.permute.xlu0 0
  %1185 = vperm.xlu0 %1184, %v1121
  %v1186 = vpop.permute.xlu0 %1185
  %1189 = vset.pattern.permute.xlu0 0
  %1190 = vperm.xlu0 %1189, %v1122
  %v1191 = vpop.permute.xlu0 %1190
  %v1221 = vunpack.c.l.b16 %v1081
  %v1222 = vunpack.c.h.b16 %v1081
  %v1223 = vunpack.c.l.b16 %v1082
  %v1224 = vunpack.c.l.b16 %v1083
  %v1225 = vunpack.c.h.b16 %v1083
  %v1226 = vunpack.c.l.b16 %v1084
  %v1227 = vunpack.c.l.b16 %v1085
  %v1228 = vunpack.c.h.b16 %v1085
  %v1229 = vunpack.c.l.b16 %v1086
  %v1230 = vunpack.c.l.b16 %v1087
  %v1231 = vunpack.c.h.b16 %v1087
  %v1232 = vunpack.c.l.b16 %v1088
  %v1233 = vunpack.c.l.b16 %v1089
  %v1234 = vunpack.c.h.b16 %v1089
  %v1235 = vunpack.c.l.b16 %v1090
  %v1236 = vunpack.c.l.b16 %v1091
  %v1237 = vunpack.c.h.b16 %v1091
  %v1238 = vunpack.c.l.b16 %v1092
  %v1239 = vunpack.c.l.b16 %v1093
  %v1240 = vunpack.c.h.b16 %v1093
  %v1241 = vunpack.c.l.b16 %v1094
  %v1242 = vunpack.c.l.b16 %v1095
  %v1243 = vunpack.c.h.b16 %v1095
  %v1244 = vunpack.c.l.b16 %v1096
  %v1245 = vunpack.c.l.b16 %v1097
  %v1246 = vunpack.c.h.b16 %v1097
  %v1247 = vunpack.c.l.b16 %v1098
  %v1248 = vunpack.c.l.b16 %v1099
  %v1249 = vunpack.c.h.b16 %v1099
  %v1250 = vunpack.c.l.b16 %v1100
  %v1251 = vunpack.c.l.b16 %v1101
  %v1252 = vunpack.c.h.b16 %v1101
  %v1253 = vunpack.c.l.b16 %v1102
  %v1254 = vunpack.c.l.b16 %v1103
  %v1255 = vunpack.c.h.b16 %v1103
  %v1256 = vunpack.c.l.b16 %v1104
  %v1257 = vunpack.c.l.b16 %v1105
  %v1258 = vunpack.c.h.b16 %v1105
  %v1259 = vunpack.c.l.b16 %v1106
  %v1260 = vunpack.c.l.b16 %v1107
  %v1261 = vunpack.c.h.b16 %v1107
  %v1262 = vunpack.c.l.b16 %v1108
  %v1263 = vpack.c.b16 %v1224, %v1221
  %v1264 = vpack.c.b16 %v1225, %v1222
  %v1265 = vpack.c.b16 %v1226, %v1223
  %v1266 = vpack.c.b16 %v1230, %v1227
  %v1267 = vpack.c.b16 %v1231, %v1228
  %v1268 = vpack.c.b16 %v1232, %v1229
  %v1269 = vpack.c.b16 %v1236, %v1233
  %v1270 = vpack.c.b16 %v1237, %v1234
  %v1271 = vpack.c.b16 %v1238, %v1235
  %v1272 = vpack.c.b16 %v1242, %v1239
  %v1273 = vpack.c.b16 %v1243, %v1240
  %v1274 = vpack.c.b16 %v1244, %v1241
  %v1275 = vpack.c.b16 %v1248, %v1245
  %v1276 = vpack.c.b16 %v1249, %v1246
  %v1277 = vpack.c.b16 %v1250, %v1247
  %v1278 = vpack.c.b16 %v1254, %v1251
  %v1279 = vpack.c.b16 %v1255, %v1252
  %v1280 = vpack.c.b16 %v1256, %v1253
  %v1281 = vpack.c.b16 %v1260, %v1257
  %v1282 = vpack.c.b16 %v1261, %v1258
  %v1283 = vpack.c.b16 %v1262, %v1259
  %vm1298 = vcmask 654336
  %v1300 = vsel %vm1298, %v1265, 0
  %v1303 = vsel %vm1298, %v1268, 0
  %v1306 = vsel %vm1298, %v1271, 0
  %v1309 = vsel %vm1298, %v1274, 0
  %v1312 = vsel %vm1298, %v1277, 0
  %v1315 = vsel %vm1298, %v1280, 0
  %v1318 = vsel %vm1298, %v1283, 0
  %1320 = vmatprep.subr.bf16.mxu0 0
  %1321 = vmatpush1.bf16.msra.mxu0 %v1060
  %1322 = vmatprep.subr.bf16.mxu0 0
  %1323 = vmatpush1.bf16.msra.mxu0 %v1061
  %1324 = vmatprep.subr.bf16.mxu0 0
  %1325 = vmatpush1.bf16.msra.mxu0 %v1062
  %1326 = vmatprep.subr.bf16.mxu0 0
  %1327 = vmatpush1.bf16.msra.mxu0 %v1063
  %1328 = vmatprep.subr.bf16.mxu0 0
  %1329 = vmatpush1.bf16.msra.mxu0 %v1064
  %1330 = vmatprep.subr.bf16.mxu0 0
  %1331 = vmatpush1.bf16.msra.mxu0 %v1065
  %1332 = vmatprep.subr.bf16.mxu0 0
  %1333 = vmatpush1.bf16.msra.mxu0 %v1066
  %1334 = vmatprep.subr.bf16.mxu0 0
  %1335 = vmatpush1.bf16.msra.mxu0 %v1067
  %1336 = vmatprep.subr.bf16.mxu0 0
  %1337 = vmatpush1.bf16.msra.mxu0 %v1068
  %1338 = vmatprep.subr.bf16.mxu0 0
  %1339 = vmatpush1.bf16.msra.mxu0 %v1069
  %1340 = vmatprep.subr.bf16.mxu0 0
  %1341 = vmatpush1.bf16.msra.mxu0 %v1070
  %1342 = vmatprep.subr.bf16.mxu0 0
  %1343 = vmatpush1.bf16.msra.mxu0 %v1071
  %1344 = vmatprep.subr.bf16.mxu0 0
  %1345 = vmatpush1.bf16.msra.mxu0 %v1072
  %1346 = vmatprep.subr.bf16.mxu0 0
  %1347 = vmatpush1.bf16.msra.mxu0 %v1073
  %1348 = vmatprep.subr.bf16.mxu0 0
  %1349 = vmatpush1.bf16.msra.mxu0 %v1074
  %1350 = vmatprep.subr.bf16.mxu0 0
  %1351 = vmatpush1.bf16.msra.mxu0 %v1075
  %1352 = vmatprep.mubr.bf16.mxu0 %v1264
  %1353 = vmatmul.mubr.bf16.gmra.mrb[0].mxu0 %v1263
  %v1354 = vpop.f32.mrb[0].mxu0
  %v1355 = vadd.f32 %v1126, %v1354
  %v1356 = vpop.f32.mrb[0].mxu0
  %v1357 = vpop.f32.mrb[0].mxu0
  %v1358 = vadd.f32 %v1131, %v1357
  %v1359 = vpop.f32.mrb[0].mxu0
  %1360 = vmatprep.mubr.bf16.mxu0 %v1267
  %1361 = vmatmul.mubr.bf16.gmra.mrb[0].mxu0 %v1266
  %v1362 = vpop.f32.mrb[0].mxu0
  %v1363 = vadd.f32 %v1136, %v1362
  %v1364 = vpop.f32.mrb[0].mxu0
  %v1365 = vpop.f32.mrb[0].mxu0
  %v1366 = vadd.f32 %v1141, %v1365
  %v1367 = vpop.f32.mrb[0].mxu0
  %1368 = vmatprep.mubr.bf16.mxu0 %v1270
  %1369 = vmatmul.mubr.bf16.gmra.mrb[0].mxu0 %v1269
  %v1370 = vpop.f32.mrb[0].mxu0
  %v1371 = vadd.f32 %v1146, %v1370
  %v1372 = vpop.f32.mrb[0].mxu0
  %v1373 = vpop.f32.mrb[0].mxu0
  %v1374 = vadd.f32 %v1151, %v1373
  %v1375 = vpop.f32.mrb[0].mxu0
  %1376 = vmatprep.mubr.bf16.mxu0 %v1273
  %1377 = vmatmul.mubr.bf16.gmra.mrb[0].mxu0 %v1272
  %v1378 = vpop.f32.mrb[0].mxu0
  %v1379 = vadd.f32 %v1156, %v1378
  %v1380 = vpop.f32.mrb[0].mxu0
  %v1381 = vpop.f32.mrb[0].mxu0
  %v1382 = vadd.f32 %v1161, %v1381
  %v1383 = vpop.f32.mrb[0].mxu0
  %1384 = vmatprep.mubr.bf16.mxu0 %v1276
  %1385 = vmatmul.mubr.bf16.gmra.mrb[0].mxu0 %v1275
  %v1386 = vpop.f32.mrb[0].mxu0
  %v1387 = vadd.f32 %v1166, %v1386
  %v1388 = vpop.f32.mrb[0].mxu0
  %v1389 = vpop.f32.mrb[0].mxu0
  %v1390 = vadd.f32 %v1171, %v1389
  %v1391 = vpop.f32.mrb[0].mxu0
  %1392 = vmatprep.mubr.bf16.mxu0 %v1279
  %1393 = vmatmul.mubr.bf16.gmra.mrb[0].mxu0 %v1278
  %v1394 = vpop.f32.mrb[0].mxu0
  %v1395 = vadd.f32 %v1176, %v1394
  %v1396 = vpop.f32.mrb[0].mxu0
  %v1397 = vpop.f32.mrb[0].mxu0
  %v1398 = vadd.f32 %v1181, %v1397
  %v1399 = vpop.f32.mrb[0].mxu0
  %1400 = vmatprep.mubr.bf16.mxu0 %v1282
  %1401 = vmatmul.mubr.bf16.gmra.mrb[0].mxu0 %v1281
  %v1402 = vpop.f32.mrb[0].mxu0
  %v1403 = vadd.f32 %v1186, %v1402
  %v1404 = vpop.f32.mrb[0].mxu0
  %v1405 = vpop.f32.mrb[0].mxu0
  %v1406 = vadd.f32 %v1191, %v1405
  %v1407 = vpop.f32.mrb[0].mxu0
  %1408 = vdwg.mxu0
  %1409 = vmatprep.subr.bf16.mxu0 0
  %1410 = vmatpush1.bf16.msra.mxu0 %v1076
  %1411 = vmatprep.subr.bf16.mxu0 0
  %1412 = vmatpush1.bf16.msra.mxu0 %v1077
  %1413 = vmatprep.subr.bf16.mxu0 0
  %1414 = vmatpush1.bf16.msra.mxu0 %v1078
  %1415 = vmatprep.subr.bf16.mxu0 0
  %1416 = vmatpush1.bf16.msra.mxu0 %v1079
  %1417 = vmatprep.subr.bf16.mxu0 0
  %1418 = vmatpush1.bf16.msra.mxu0 %v1080
  %1419 = vmatprep.subr.bf16.mxu0 0
  %1420 = vmatpush1.bf16.msra.mxu0 0
  %1421 = vmatprep.subr.bf16.mxu0 0
  %1422 = vmatpush1.bf16.msra.mxu0 0
  %1423 = vmatprep.subr.bf16.mxu0 0
  %1424 = vmatpush1.bf16.msra.mxu0 0
  %1425 = vmatprep.subr.bf16.mxu0 0
  %1426 = vmatpush1.bf16.msra.mxu0 0
  %1427 = vmatprep.subr.bf16.mxu0 0
  %1428 = vmatpush1.bf16.msra.mxu0 0
  %1429 = vmatprep.subr.bf16.mxu0 0
  %1430 = vmatpush1.bf16.msra.mxu0 0
  %1431 = vmatprep.subr.bf16.mxu0 0
  %1432 = vmatpush1.bf16.msra.mxu0 0
  %1433 = vmatprep.subr.bf16.mxu0 0
  %1434 = vmatpush1.bf16.msra.mxu0 0
  %1435 = vmatprep.subr.bf16.mxu0 0
  %1436 = vmatpush1.bf16.msra.mxu0 0
  %1437 = vmatprep.subr.bf16.mxu0 0
  %1438 = vmatpush1.bf16.msra.mxu0 0
  %1439 = vmatprep.subr.bf16.mxu0 0
  %1440 = vmatpush1.bf16.msra.mxu0 0
  %1441 = vmatprep.mubr.bf16.mxu0 0
  %1442 = vmatmul.mubr.bf16.gmra.mrb[0].mxu0 %v1300
  %v1443 = vpop.f32.mrb[0].mxu0
  %v1444 = vadd.f32 %v1355, %v1443
  %v1445 = vpop.f32.mrb[0].mxu0
  %v1446 = vpop.f32.mrb[0].mxu0
  %v1447 = vadd.f32 %v1358, %v1446
  %v1448 = vpop.f32.mrb[0].mxu0
  %1449 = vmatprep.mubr.bf16.mxu0 0
  %1450 = vmatmul.mubr.bf16.gmra.mrb[0].mxu0 %v1303
  %v1451 = vpop.f32.mrb[0].mxu0
  %v1452 = vadd.f32 %v1363, %v1451
  %v1453 = vpop.f32.mrb[0].mxu0
  %v1454 = vpop.f32.mrb[0].mxu0
  %v1455 = vadd.f32 %v1366, %v1454
  %v1456 = vpop.f32.mrb[0].mxu0
  %1457 = vmatprep.mubr.bf16.mxu0 0
  %1458 = vmatmul.mubr.bf16.gmra.mrb[0].mxu0 %v1306
  %v1459 = vpop.f32.mrb[0].mxu0
  %v1460 = vadd.f32 %v1371, %v1459
  %v1461 = vpop.f32.mrb[0].mxu0
  %v1462 = vpop.f32.mrb[0].mxu0
  %v1463 = vadd.f32 %v1374, %v1462
  %v1464 = vpop.f32.mrb[0].mxu0
  %1465 = vmatprep.mubr.bf16.mxu0 0
  %1466 = vmatmul.mubr.bf16.gmra.mrb[0].mxu0 %v1309
  %v1467 = vpop.f32.mrb[0].mxu0
  %v1468 = vadd.f32 %v1379, %v1467
  %v1469 = vpop.f32.mrb[0].mxu0
  %v1470 = vpop.f32.mrb[0].mxu0
  %v1471 = vadd.f32 %v1382, %v1470
  %v1472 = vpop.f32.mrb[0].mxu0
  %1473 = vmatprep.mubr.bf16.mxu0 0
  %1474 = vmatmul.mubr.bf16.gmra.mrb[0].mxu0 %v1312
  %v1475 = vpop.f32.mrb[0].mxu0
  %v1476 = vadd.f32 %v1387, %v1475
  %v1477 = vpop.f32.mrb[0].mxu0
  %v1478 = vpop.f32.mrb[0].mxu0
  %v1479 = vadd.f32 %v1390, %v1478
  %v1480 = vpop.f32.mrb[0].mxu0
  %1481 = vmatprep.mubr.bf16.mxu0 0
  %1482 = vmatmul.mubr.bf16.gmra.mrb[0].mxu0 %v1315
  %v1483 = vpop.f32.mrb[0].mxu0
  %v1484 = vadd.f32 %v1395, %v1483
  %v1485 = vpop.f32.mrb[0].mxu0
  %v1486 = vpop.f32.mrb[0].mxu0
  %v1487 = vadd.f32 %v1398, %v1486
  %v1488 = vpop.f32.mrb[0].mxu0
  %1489 = vmatprep.mubr.bf16.mxu0 0
  %1490 = vmatmul.mubr.bf16.gmra.mrb[0].mxu0 %v1318
  %v1491 = vpop.f32.mrb[0].mxu0
  %v1492 = vadd.f32 %v1403, %v1491
  %v1493 = vpop.f32.mrb[0].mxu0
  %v1494 = vpop.f32.mrb[0].mxu0
  %v1495 = vadd.f32 %v1406, %v1494
  %v1496 = vpop.f32.mrb[0].mxu0
  %1497 = vdwg.mxu0
  %v1498 = vmax.f32 %v1444, 0.0
  %v1499 = vmax.f32 %v1447, 0.0
  %v1500 = vmax.f32 %v1452, 0.0
  %v1501 = vmax.f32 %v1455, 0.0
  %v1502 = vmax.f32 %v1460, 0.0
  %v1503 = vmax.f32 %v1463, 0.0
  %v1504 = vmax.f32 %v1468, 0.0
  %v1505 = vmax.f32 %v1471, 0.0
  %v1506 = vmax.f32 %v1476, 0.0
  %v1507 = vmax.f32 %v1479, 0.0
  %v1508 = vmax.f32 %v1484, 0.0
  %v1509 = vmax.f32 %v1487, 0.0
  %v1510 = vmax.f32 %v1492, 0.0
  %v1511 = vmax.f32 %v1495, 0.0
  %v1512 = vpack.c.bf16 %v1499, %v1498
  %v1513 = vpack.c.bf16 %v1501, %v1500
  %v1514 = vpack.c.bf16 %v1503, %v1502
  %v1515 = vpack.c.bf16 %v1505, %v1504
  %v1516 = vpack.c.bf16 %v1507, %v1506
  %v1517 = vpack.c.bf16 %v1509, %v1508
  %v1518 = vpack.c.bf16 %v1511, %v1510
  %v1519 = vld [vmem:[%s9] sm:$0xf]
  %v1520 = vld [vmem:[%s9 + $0x4] sm:$0x7]
  %v1523 = vunpack.c.l.b16 %v1519
  %v1524 = vunpack.c.l.b16 %v1520
  %v1525 = vpack.c.b16 %v1524, %v1523
  %v1527 = vsel %vm759, %v1512, 0
  %v1530 = vsel %vm759, %v1513, 0
  %v1533 = vsel %vm759, %v1514, 0
  %v1536 = vsel %vm759, %v1515, 0
  %v1539 = vsel %vm759, %v1516, 0
  %v1542 = vsel %vm759, %v1517, 0
  %v1545 = vsel %vm759, %v1518, 0
  %vm1547 = vcmask 1046528
  %v1549 = vsel %vm1547, %v1525, 0
  %1551 = vmatprep.subr.bf16.mxu0 0
  %1552 = vmatpush1.bf16.msra.mxu0 %v1549
  %1553 = vmatprep.subr.bf16.mxu0 0
  %1554 = vmatpush1.bf16.msra.mxu0 0
  %1555 = vmatprep.subr.bf16.mxu0 0
  %1556 = vmatpush1.bf16.msra.mxu0 0
  %1557 = vmatprep.subr.bf16.mxu0 0
  %1558 = vmatpush1.bf16.msra.mxu0 0
  %1559 = vmatprep.subr.bf16.mxu0 0
  %1560 = vmatpush1.bf16.msra.mxu0 0
  %1561 = vmatprep.subr.bf16.mxu0 0
  %1562 = vmatpush1.bf16.msra.mxu0 0
  %1563 = vmatprep.subr.bf16.mxu0 0
  %1564 = vmatpush1.bf16.msra.mxu0 0
  %1565 = vmatprep.subr.bf16.mxu0 0
  %1566 = vmatpush1.bf16.msra.mxu0 0
  %1567 = vmatprep.subr.bf16.mxu0 0
  %1568 = vmatpush1.bf16.msra.mxu0 0
  %1569 = vmatprep.subr.bf16.mxu0 0
  %1570 = vmatpush1.bf16.msra.mxu0 0
  %1571 = vmatprep.subr.bf16.mxu0 0
  %1572 = vmatpush1.bf16.msra.mxu0 0
  %1573 = vmatprep.subr.bf16.mxu0 0
  %1574 = vmatpush1.bf16.msra.mxu0 0
  %1575 = vmatprep.subr.bf16.mxu0 0
  %1576 = vmatpush1.bf16.msra.mxu0 0
  %1577 = vmatprep.subr.bf16.mxu0 0
  %1578 = vmatpush1.bf16.msra.mxu0 0
  %1579 = vmatprep.subr.bf16.mxu0 0
  %1580 = vmatpush1.bf16.msra.mxu0 0
  %1581 = vmatprep.subr.bf16.mxu0 0
  %1582 = vmatpush1.bf16.msra.mxu0 0
  %1583 = vmatprep.mubr.bf16.mxu0 0
  %1584 = vmatmul.mubr.bf16.gmra.mrb[0].mxu0 %v1527
  %v1585 = vpop.f32.mrb[0].mxu0
  %v1586 = vadd.f32 0.0, %v1585
  %v1587 = vpop.f32.mrb[0].mxu0
  %v1588 = vpop.f32.mrb[0].mxu0
  %v1589 = vadd.f32 0.0, %v1588
  %v1590 = vpop.f32.mrb[0].mxu0
  %1591 = vmatprep.mubr.bf16.mxu0 0
  %1592 = vmatmul.mubr.bf16.gmra.mrb[0].mxu0 %v1530
  %v1593 = vpop.f32.mrb[0].mxu0
  %v1594 = vadd.f32 0.0, %v1593
  %v1595 = vpop.f32.mrb[0].mxu0
  %v1596 = vpop.f32.mrb[0].mxu0
  %v1597 = vadd.f32 0.0, %v1596
  %v1598 = vpop.f32.mrb[0].mxu0
  %1599 = vmatprep.mubr.bf16.mxu0 0
  %1600 = vmatmul.mubr.bf16.gmra.mrb[0].mxu0 %v1533
  %v1601 = vpop.f32.mrb[0].mxu0
  %v1602 = vadd.f32 0.0, %v1601
  %v1603 = vpop.f32.mrb[0].mxu0
  %v1604 = vpop.f32.mrb[0].mxu0
  %v1605 = vadd.f32 0.0, %v1604
  %v1606 = vpop.f32.mrb[0].mxu0
  %1607 = vmatprep.mubr.bf16.mxu0 0
  %1608 = vmatmul.mubr.bf16.gmra.mrb[0].mxu0 %v1536
  %v1609 = vpop.f32.mrb[0].mxu0
  %v1610 = vadd.f32 0.0, %v1609
  %v1611 = vpop.f32.mrb[0].mxu0
  %v1612 = vpop.f32.mrb[0].mxu0
  %v1613 = vadd.f32 0.0, %v1612
  %v1614 = vpop.f32.mrb[0].mxu0
  %1615 = vmatprep.mubr.bf16.mxu0 0
  %1616 = vmatmul.mubr.bf16.gmra.mrb[0].mxu0 %v1539
  %v1617 = vpop.f32.mrb[0].mxu0
  %v1618 = vadd.f32 0.0, %v1617
  %v1619 = vpop.f32.mrb[0].mxu0
  %v1620 = vpop.f32.mrb[0].mxu0
  %v1621 = vadd.f32 0.0, %v1620
  %v1622 = vpop.f32.mrb[0].mxu0
  %1623 = vmatprep.mubr.bf16.mxu0 0
  %1624 = vmatmul.mubr.bf16.gmra.mrb[0].mxu0 %v1542
  %v1625 = vpop.f32.mrb[0].mxu0
  %v1626 = vadd.f32 0.0, %v1625
  %v1627 = vpop.f32.mrb[0].mxu0
  %v1628 = vpop.f32.mrb[0].mxu0
  %v1629 = vadd.f32 0.0, %v1628
  %v1630 = vpop.f32.mrb[0].mxu0
  %1631 = vmatprep.mubr.bf16.mxu0 0
  %1632 = vmatmul.mubr.bf16.gmra.mrb[0].mxu0 %v1545
  %v1633 = vpop.f32.mrb[0].mxu0
  %v1634 = vadd.f32 0.0, %v1633
  %v1635 = vpop.f32.mrb[0].mxu0
  %v1636 = vpop.f32.mrb[0].mxu0
  %v1637 = vadd.f32 0.0, %v1636
  %v1638 = vpop.f32.mrb[0].mxu0
  %1639 = vdwg.mxu0
  %vm1640 = vcmask 15360
  %1641 = vst.msk [vmem:[#allocation2] sm:$0xff] %vm1640, %v1586
  %1642 = vst.msk [vmem:[#allocation2 + $0x8] sm:$0xff] %vm1640, %v1589
  %1643 = vst.msk [vmem:[#allocation2 + $0x10] sm:$0xff] %vm1640, %v1594
  %1644 = vst.msk [vmem:[#allocation2 + $0x18] sm:$0xff] %vm1640, %v1597
  %1645 = vst.msk [vmem:[#allocation2 + $0x20] sm:$0xff] %vm1640, %v1602
  %1646 = vst.msk [vmem:[#allocation2 + $0x28] sm:$0xff] %vm1640, %v1605
  %1647 = vst.msk [vmem:[#allocation2 + $0x30] sm:$0xff] %vm1640, %v1610
  %1648 = vst.msk [vmem:[#allocation2 + $0x38] sm:$0xff] %vm1640, %v1613
  %1649 = vst.msk [vmem:[#allocation2 + $0x40] sm:$0xff] %vm1640, %v1618
  %1650 = vst.msk [vmem:[#allocation2 + $0x48] sm:$0xff] %vm1640, %v1621
  %1651 = vst.msk [vmem:[#allocation2 + $0x50] sm:$0xff] %vm1640, %v1626
  %1652 = vst.msk [vmem:[#allocation2 + $0x58] sm:$0xff] %vm1640, %v1629
  %1653 = vst.msk [vmem:[#allocation2 + $0x60] sm:$0xff] %vm1640, %v1634
  %1654 = vst.msk [vmem:[#allocation2 + $0x68] sm:$0xff] %vm1640, %v1637
  %s1655 = scalar_lea.vmem %s9, 8
  %v1656 = vld [vmem:[%s1655] sm:$0xf]
  %v1657 = vld [vmem:[%s1655 + $0x4] sm:$0x7]
  %v1660 = vunpack.c.l.b16 %v1656
  %v1661 = vunpack.c.l.b16 %v1657
  %v1662 = vpack.c.b16 %v1661, %v1660
  %v1664 = vsel %vm1547, %v1662, 0
  %1666 = vmatprep.subr.bf16.mxu0 0
  %1667 = vmatpush1.bf16.msra.mxu0 %v1664
  %1668 = vmatprep.subr.bf16.mxu0 0
  %1669 = vmatpush1.bf16.msra.mxu0 0
  %1670 = vmatprep.subr.bf16.mxu0 0
  %1671 = vmatpush1.bf16.msra.mxu0 0
  %1672 = vmatprep.subr.bf16.mxu0 0
  %1673 = vmatpush1.bf16.msra.mxu0 0
  %1674 = vmatprep.subr.bf16.mxu0 0
  %1675 = vmatpush1.bf16.msra.mxu0 0
  %1676 = vmatprep.subr.bf16.mxu0 0
  %1677 = vmatpush1.bf16.msra.mxu0 0
  %1678 = vmatprep.subr.bf16.mxu0 0
  %1679 = vmatpush1.bf16.msra.mxu0 0
  %1680 = vmatprep.subr.bf16.mxu0 0
  %1681 = vmatpush1.bf16.msra.mxu0 0
  %1682 = vmatprep.subr.bf16.mxu0 0
  %1683 = vmatpush1.bf16.msra.mxu0 0
  %1684 = vmatprep.subr.bf16.mxu0 0
  %1685 = vmatpush1.bf16.msra.mxu0 0
  %1686 = vmatprep.subr.bf16.mxu0 0
  %1687 = vmatpush1.bf16.msra.mxu0 0
  %1688 = vmatprep.subr.bf16.mxu0 0
  %1689 = vmatpush1.bf16.msra.mxu0 0
  %1690 = vmatprep.subr.bf16.mxu0 0
  %1691 = vmatpush1.bf16.msra.mxu0 0
  %1692 = vmatprep.subr.bf16.mxu0 0
  %1693 = vmatpush1.bf16.msra.mxu0 0
  %1694 = vmatprep.subr.bf16.mxu0 0
  %1695 = vmatpush1.bf16.msra.mxu0 0
  %1696 = vmatprep.subr.bf16.mxu0 0
  %1697 = vmatpush1.bf16.msra.mxu0 0
  %1698 = vmatprep.mubr.bf16.mxu0 0
  %1699 = vmatmul.mubr.bf16.gmra.mrb[0].mxu0 %v1527
  %v1700 = vpop.f32.mrb[0].mxu0
  %v1701 = vadd.f32 0.0, %v1700
  %v1702 = vpop.f32.mrb[0].mxu0
  %v1703 = vpop.f32.mrb[0].mxu0
  %v1704 = vadd.f32 0.0, %v1703
  %v1705 = vpop.f32.mrb[0].mxu0
  %1706 = vmatprep.mubr.bf16.mxu0 0
  %1707 = vmatmul.mubr.bf16.gmra.mrb[0].mxu0 %v1530
  %v1708 = vpop.f32.mrb[0].mxu0
  %v1709 = vadd.f32 0.0, %v1708
  %v1710 = vpop.f32.mrb[0].mxu0
  %v1711 = vpop.f32.mrb[0].mxu0
  %v1712 = vadd.f32 0.0, %v1711
  %v1713 = vpop.f32.mrb[0].mxu0
  %1714 = vmatprep.mubr.bf16.mxu0 0
  %1715 = vmatmul.mubr.bf16.gmra.mrb[0].mxu0 %v1533
  %v1716 = vpop.f32.mrb[0].mxu0
  %v1717 = vadd.f32 0.0, %v1716
  %v1718 = vpop.f32.mrb[0].mxu0
  %v1719 = vpop.f32.mrb[0].mxu0
  %v1720 = vadd.f32 0.0, %v1719
  %v1721 = vpop.f32.mrb[0].mxu0
  %1722 = vmatprep.mubr.bf16.mxu0 0
  %1723 = vmatmul.mubr.bf16.gmra.mrb[0].mxu0 %v1536
  %v1724 = vpop.f32.mrb[0].mxu0
  %v1725 = vadd.f32 0.0, %v1724
  %v1726 = vpop.f32.mrb[0].mxu0
  %v1727 = vpop.f32.mrb[0].mxu0
  %v1728 = vadd.f32 0.0, %v1727
  %v1729 = vpop.f32.mrb[0].mxu0
  %1730 = vmatprep.mubr.bf16.mxu0 0
  %1731 = vmatmul.mubr.bf16.gmra.mrb[0].mxu0 %v1539
  %v1732 = vpop.f32.mrb[0].mxu0
  %v1733 = vadd.f32 0.0, %v1732
  %v1734 = vpop.f32.mrb[0].mxu0
  %v1735 = vpop.f32.mrb[0].mxu0
  %v1736 = vadd.f32 0.0, %v1735
  %v1737 = vpop.f32.mrb[0].mxu0
  %1738 = vmatprep.mubr.bf16.mxu0 0
  %1739 = vmatmul.mubr.bf16.gmra.mrb[0].mxu0 %v1542
  %v1740 = vpop.f32.mrb[0].mxu0
  %v1741 = vadd.f32 0.0, %v1740
  %v1742 = vpop.f32.mrb[0].mxu0
  %v1743 = vpop.f32.mrb[0].mxu0
  %v1744 = vadd.f32 0.0, %v1743
  %v1745 = vpop.f32.mrb[0].mxu0
  %1746 = vmatprep.mubr.bf16.mxu0 0
  %1747 = vmatmul.mubr.bf16.gmra.mrb[0].mxu0 %v1545
  %v1748 = vpop.f32.mrb[0].mxu0
  %v1749 = vadd.f32 0.0, %v1748
  %v1750 = vpop.f32.mrb[0].mxu0
  %v1751 = vpop.f32.mrb[0].mxu0
  %v1752 = vadd.f32 0.0, %v1751
  %v1753 = vpop.f32.mrb[0].mxu0
  %1754 = vdwg.mxu0
  %1755 = vst.msk [vmem:[#allocation2 + $0x70] sm:$0xff] %vm1640, %v1701
  %1756 = vst.msk [vmem:[#allocation2 + $0x78] sm:$0xff] %vm1640, %v1704
  %1757 = vst.msk [vmem:[#allocation2 + $0x80] sm:$0xff] %vm1640, %v1709
  %1758 = vst.msk [vmem:[#allocation2 + $0x88] sm:$0xff] %vm1640, %v1712
  %1759 = vst.msk [vmem:[#allocation2 + $0x90] sm:$0xff] %vm1640, %v1717
  %1760 = vst.msk [vmem:[#allocation2 + $0x98] sm:$0xff] %vm1640, %v1720
  %1761 = vst.msk [vmem:[#allocation2 + $0xa0] sm:$0xff] %vm1640, %v1725
  %1762 = vst.msk [vmem:[#allocation2 + $0xa8] sm:$0xff] %vm1640, %v1728
  %1763 = vst.msk [vmem:[#allocation2 + $0xb0] sm:$0xff] %vm1640, %v1733
  %1764 = vst.msk [vmem:[#allocation2 + $0xb8] sm:$0xff] %vm1640, %v1736
  %1765 = vst.msk [vmem:[#allocation2 + $0xc0] sm:$0xff] %vm1640, %v1741
  %1766 = vst.msk [vmem:[#allocation2 + $0xc8] sm:$0xff] %vm1640, %v1744
  %1767 = vst.msk [vmem:[#allocation2 + $0xd0] sm:$0xff] %vm1640, %v1749
  %1768 = vst.msk [vmem:[#allocation2 + $0xd8] sm:$0xff] %vm1640, %v1752
  %s1769 = scalar_lea.vmem %s9, 16
  %v1770 = vld [vmem:[%s1769] sm:$0xf]
  %v1771 = vld [vmem:[%s1769 + $0x4] sm:$0x7]
  %v1774 = vunpack.c.l.b16 %v1770
  %v1775 = vunpack.c.l.b16 %v1771
  %v1776 = vpack.c.b16 %v1775, %v1774
  %v1778 = vsel %vm1547, %v1776, 0
  %1780 = vmatprep.subr.bf16.mxu0 0
  %1781 = vmatpush1.bf16.msra.mxu0 %v1778
  %1782 = vmatprep.subr.bf16.mxu0 0
  %1783 = vmatpush1.bf16.msra.mxu0 0
  %1784 = vmatprep.subr.bf16.mxu0 0
  %1785 = vmatpush1.bf16.msra.mxu0 0
  %1786 = vmatprep.subr.bf16.mxu0 0
  %1787 = vmatpush1.bf16.msra.mxu0 0
  %1788 = vmatprep.subr.bf16.mxu0 0
  %1789 = vmatpush1.bf16.msra.mxu0 0
  %1790 = vmatprep.subr.bf16.mxu0 0
  %1791 = vmatpush1.bf16.msra.mxu0 0
  %1792 = vmatprep.subr.bf16.mxu0 0
  %1793 = vmatpush1.bf16.msra.mxu0 0
  %1794 = vmatprep.subr.bf16.mxu0 0
  %1795 = vmatpush1.bf16.msra.mxu0 0
  %1796 = vmatprep.subr.bf16.mxu0 0
  %1797 = vmatpush1.bf16.msra.mxu0 0
  %1798 = vmatprep.subr.bf16.mxu0 0
  %1799 = vmatpush1.bf16.msra.mxu0 0
  %1800 = vmatprep.subr.bf16.mxu0 0
  %1801 = vmatpush1.bf16.msra.mxu0 0
  %1802 = vmatprep.subr.bf16.mxu0 0
  %1803 = vmatpush1.bf16.msra.mxu0 0
  %1804 = vmatprep.subr.bf16.mxu0 0
  %1805 = vmatpush1.bf16.msra.mxu0 0
  %1806 = vmatprep.subr.bf16.mxu0 0
  %1807 = vmatpush1.bf16.msra.mxu0 0
  %1808 = vmatprep.subr.bf16.mxu0 0
  %1809 = vmatpush1.bf16.msra.mxu0 0
  %1810 = vmatprep.subr.bf16.mxu0 0
  %1811 = vmatpush1.bf16.msra.mxu0 0
  %1812 = vmatprep.mubr.bf16.mxu0 0
  %1813 = vmatmul.mubr.bf16.gmra.mrb[0].mxu0 %v1527
  %v1814 = vpop.f32.mrb[0].mxu0
  %v1815 = vadd.f32 0.0, %v1814
  %v1816 = vpop.f32.mrb[0].mxu0
  %v1817 = vpop.f32.mrb[0].mxu0
  %v1818 = vadd.f32 0.0, %v1817
  %v1819 = vpop.f32.mrb[0].mxu0
  %1820 = vmatprep.mubr.bf16.mxu0 0
  %1821 = vmatmul.mubr.bf16.gmra.mrb[0].mxu0 %v1530
  %v1822 = vpop.f32.mrb[0].mxu0
  %v1823 = vadd.f32 0.0, %v1822
  %v1824 = vpop.f32.mrb[0].mxu0
  %v1825 = vpop.f32.mrb[0].mxu0
  %v1826 = vadd.f32 0.0, %v1825
  %v1827 = vpop.f32.mrb[0].mxu0
  %1828 = vmatprep.mubr.bf16.mxu0 0
  %1829 = vmatmul.mubr.bf16.gmra.mrb[0].mxu0 %v1533
  %v1830 = vpop.f32.mrb[0].mxu0
  %v1831 = vadd.f32 0.0, %v1830
  %v1832 = vpop.f32.mrb[0].mxu0
  %v1833 = vpop.f32.mrb[0].mxu0
  %v1834 = vadd.f32 0.0, %v1833
  %v1835 = vpop.f32.mrb[0].mxu0
  %1836 = vmatprep.mubr.bf16.mxu0 0
  %1837 = vmatmul.mubr.bf16.gmra.mrb[0].mxu0 %v1536
  %v1838 = vpop.f32.mrb[0].mxu0
  %v1839 = vadd.f32 0.0, %v1838
  %v1840 = vpop.f32.mrb[0].mxu0
  %v1841 = vpop.f32.mrb[0].mxu0
  %v1842 = vadd.f32 0.0, %v1841
  %v1843 = vpop.f32.mrb[0].mxu0
  %1844 = vmatprep.mubr.bf16.mxu0 0
  %1845 = vmatmul.mubr.bf16.gmra.mrb[0].mxu0 %v1539
  %v1846 = vpop.f32.mrb[0].mxu0
  %v1847 = vadd.f32 0.0, %v1846
  %v1848 = vpop.f32.mrb[0].mxu0
  %v1849 = vpop.f32.mrb[0].mxu0
  %v1850 = vadd.f32 0.0, %v1849
  %v1851 = vpop.f32.mrb[0].mxu0
  %1852 = vmatprep.mubr.bf16.mxu0 0
  %1853 = vmatmul.mubr.bf16.gmra.mrb[0].mxu0 %v1542
  %v1854 = vpop.f32.mrb[0].mxu0
  %v1855 = vadd.f32 0.0, %v1854
  %v1856 = vpop.f32.mrb[0].mxu0
  %v1857 = vpop.f32.mrb[0].mxu0
  %v1858 = vadd.f32 0.0, %v1857
  %v1859 = vpop.f32.mrb[0].mxu0
  %1860 = vmatprep.mubr.bf16.mxu0 0
  %1861 = vmatmul.mubr.bf16.gmra.mrb[0].mxu0 %v1545
  %v1862 = vpop.f32.mrb[0].mxu0
  %v1863 = vadd.f32 0.0, %v1862
  %v1864 = vpop.f32.mrb[0].mxu0
  %v1865 = vpop.f32.mrb[0].mxu0
  %v1866 = vadd.f32 0.0, %v1865
  %v1867 = vpop.f32.mrb[0].mxu0
  %1868 = vdwg.mxu0
  %1869 = vst.msk [vmem:[#allocation2 + $0xe0] sm:$0xff] %vm1640, %v1815
  %1870 = vst.msk [vmem:[#allocation2 + $0xe8] sm:$0xff] %vm1640, %v1818
  %1871 = vst.msk [vmem:[#allocation2 + $0xf0] sm:$0xff] %vm1640, %v1823
  %1872 = vst.msk [vmem:[#allocation2 + $0xf8] sm:$0xff] %vm1640, %v1826
  %1873 = vst.msk [vmem:[#allocation2 + $0x100] sm:$0xff] %vm1640, %v1831
  %1874 = vst.msk [vmem:[#allocation2 + $0x108] sm:$0xff] %vm1640, %v1834
  %1875 = vst.msk [vmem:[#allocation2 + $0x110] sm:$0xff] %vm1640, %v1839
  %1876 = vst.msk [vmem:[#allocation2 + $0x118] sm:$0xff] %vm1640, %v1842
  %1877 = vst.msk [vmem:[#allocation2 + $0x120] sm:$0xff] %vm1640, %v1847
  %1878 = vst.msk [vmem:[#allocation2 + $0x128] sm:$0xff] %vm1640, %v1850
  %1879 = vst.msk [vmem:[#allocation2 + $0x130] sm:$0xff] %vm1640, %v1855
  %1880 = vst.msk [vmem:[#allocation2 + $0x138] sm:$0xff] %vm1640, %v1858
  %1881 = vst.msk [vmem:[#allocation2 + $0x140] sm:$0xff] %vm1640, %v1863
  %1882 = vst.msk [vmem:[#allocation2 + $0x148] sm:$0xff] %vm1640, %v1866
  %s1883 = scalar_lea.vmem %s9, 24
  %v1884 = vld [vmem:[%s1883] sm:$0xf]
  %v1885 = vld [vmem:[%s1883 + $0x4] sm:$0x7]
  %v1888 = vunpack.c.l.b16 %v1884
  %v1889 = vunpack.c.l.b16 %v1885
  %v1890 = vpack.c.b16 %v1889, %v1888
  %v1892 = vsel %vm1547, %v1890, 0
  %1894 = vmatprep.subr.bf16.mxu0 0
  %1895 = vmatpush1.bf16.msra.mxu0 %v1892
  %1896 = vmatprep.subr.bf16.mxu0 0
  %1897 = vmatpush1.bf16.msra.mxu0 0
  %1898 = vmatprep.subr.bf16.mxu0 0
  %1899 = vmatpush1.bf16.msra.mxu0 0
  %1900 = vmatprep.subr.bf16.mxu0 0
  %1901 = vmatpush1.bf16.msra.mxu0 0
  %1902 = vmatprep.subr.bf16.mxu0 0
  %1903 = vmatpush1.bf16.msra.mxu0 0
  %1904 = vmatprep.subr.bf16.mxu0 0
  %1905 = vmatpush1.bf16.msra.mxu0 0
  %1906 = vmatprep.subr.bf16.mxu0 0
  %1907 = vmatpush1.bf16.msra.mxu0 0
  %1908 = vmatprep.subr.bf16.mxu0 0
  %1909 = vmatpush1.bf16.msra.mxu0 0
  %1910 = vmatprep.subr.bf16.mxu0 0
  %1911 = vmatpush1.bf16.msra.mxu0 0
  %1912 = vmatprep.subr.bf16.mxu0 0
  %1913 = vmatpush1.bf16.msra.mxu0 0
  %1914 = vmatprep.subr.bf16.mxu0 0
  %1915 = vmatpush1.bf16.msra.mxu0 0
  %1916 = vmatprep.subr.bf16.mxu0 0
  %1917 = vmatpush1.bf16.msra.mxu0 0
  %1918 = vmatprep.subr.bf16.mxu0 0
  %1919 = vmatpush1.bf16.msra.mxu0 0
  %1920 = vmatprep.subr.bf16.mxu0 0
  %1921 = vmatpush1.bf16.msra.mxu0 0
  %1922 = vmatprep.subr.bf16.mxu0 0
  %1923 = vmatpush1.bf16.msra.mxu0 0
  %1924 = vmatprep.subr.bf16.mxu0 0
  %1925 = vmatpush1.bf16.msra.mxu0 0
  %1926 = vmatprep.mubr.bf16.mxu0 0
  %1927 = vmatmul.mubr.bf16.gmra.mrb[0].mxu0 %v1527
  %v1928 = vpop.f32.mrb[0].mxu0
  %v1929 = vadd.f32 0.0, %v1928
  %v1930 = vpop.f32.mrb[0].mxu0
  %v1931 = vpop.f32.mrb[0].mxu0
  %v1932 = vadd.f32 0.0, %v1931
  %v1933 = vpop.f32.mrb[0].mxu0
  %1934 = vmatprep.mubr.bf16.mxu0 0
  %1935 = vmatmul.mubr.bf16.gmra.mrb[0].mxu0 %v1530
  %v1936 = vpop.f32.mrb[0].mxu0
  %v1937 = vadd.f32 0.0, %v1936
  %v1938 = vpop.f32.mrb[0].mxu0
  %v1939 = vpop.f32.mrb[0].mxu0
  %v1940 = vadd.f32 0.0, %v1939
  %v1941 = vpop.f32.mrb[0].mxu0
  %1942 = vmatprep.mubr.bf16.mxu0 0
  %1943 = vmatmul.mubr.bf16.gmra.mrb[0].mxu0 %v1533
  %v1944 = vpop.f32.mrb[0].mxu0
  %v1945 = vadd.f32 0.0, %v1944
  %v1946 = vpop.f32.mrb[0].mxu0
  %v1947 = vpop.f32.mrb[0].mxu0
  %v1948 = vadd.f32 0.0, %v1947
  %v1949 = vpop.f32.mrb[0].mxu0
  %1950 = vmatprep.mubr.bf16.mxu0 0
  %1951 = vmatmul.mubr.bf16.gmra.mrb[0].mxu0 %v1536
  %v1952 = vpop.f32.mrb[0].mxu0
  %v1953 = vadd.f32 0.0, %v1952
  %v1954 = vpop.f32.mrb[0].mxu0
  %v1955 = vpop.f32.mrb[0].mxu0
  %v1956 = vadd.f32 0.0, %v1955
  %v1957 = vpop.f32.mrb[0].mxu0
  %1958 = vmatprep.mubr.bf16.mxu0 0
  %1959 = vmatmul.mubr.bf16.gmra.mrb[0].mxu0 %v1539
  %v1960 = vpop.f32.mrb[0].mxu0
  %v1961 = vadd.f32 0.0, %v1960
  %v1962 = vpop.f32.mrb[0].mxu0
  %v1963 = vpop.f32.mrb[0].mxu0
  %v1964 = vadd.f32 0.0, %v1963
  %v1965 = vpop.f32.mrb[0].mxu0
  %1966 = vmatprep.mubr.bf16.mxu0 0
  %1967 = vmatmul.mubr.bf16.gmra.mrb[0].mxu0 %v1542
  %v1968 = vpop.f32.mrb[0].mxu0
  %v1969 = vadd.f32 0.0, %v1968
  %v1970 = vpop.f32.mrb[0].mxu0
  %v1971 = vpop.f32.mrb[0].mxu0
  %v1972 = vadd.f32 0.0, %v1971
  %v1973 = vpop.f32.mrb[0].mxu0
  %1974 = vmatprep.mubr.bf16.mxu0 0
  %1975 = vmatmul.mubr.bf16.gmra.mrb[0].mxu0 %v1545
  %v1976 = vpop.f32.mrb[0].mxu0
  %v1977 = vadd.f32 0.0, %v1976
  %v1978 = vpop.f32.mrb[0].mxu0
  %v1979 = vpop.f32.mrb[0].mxu0
  %v1980 = vadd.f32 0.0, %v1979
  %v1981 = vpop.f32.mrb[0].mxu0
  %1982 = vdwg.mxu0
  %1983 = vst.msk [vmem:[#allocation2 + $0x150] sm:$0xff] %vm1640, %v1929
  %1984 = vst.msk [vmem:[#allocation2 + $0x158] sm:$0xff] %vm1640, %v1932
  %1985 = vst.msk [vmem:[#allocation2 + $0x160] sm:$0xff] %vm1640, %v1937
  %1986 = vst.msk [vmem:[#allocation2 + $0x168] sm:$0xff] %vm1640, %v1940
  %1987 = vst.msk [vmem:[#allocation2 + $0x170] sm:$0xff] %vm1640, %v1945
  %1988 = vst.msk [vmem:[#allocation2 + $0x178] sm:$0xff] %vm1640, %v1948
  %1989 = vst.msk [vmem:[#allocation2 + $0x180] sm:$0xff] %vm1640, %v1953
  %1990 = vst.msk [vmem:[#allocation2 + $0x188] sm:$0xff] %vm1640, %v1956
  %1991 = vst.msk [vmem:[#allocation2 + $0x190] sm:$0xff] %vm1640, %v1961
  %1992 = vst.msk [vmem:[#allocation2 + $0x198] sm:$0xff] %vm1640, %v1964
  %1993 = vst.msk [vmem:[#allocation2 + $0x1a0] sm:$0xff] %vm1640, %v1969
  %1994 = vst.msk [vmem:[#allocation2 + $0x1a8] sm:$0xff] %vm1640, %v1972
  %1995 = vst.msk [vmem:[#allocation2 + $0x1b0] sm:$0xff] %vm1640, %v1977
  %1996 = vst.msk [vmem:[#allocation2 + $0x1b8] sm:$0xff] %vm1640, %v1980
  %s1997 = scalar_lea.vmem %s9, 32
  %v1998 = vld [vmem:[%s1997] sm:$0xf]
  %v1999 = vld [vmem:[%s1997 + $0x4] sm:$0x7]
  %v2002 = vunpack.c.l.b16 %v1998
  %v2003 = vunpack.c.l.b16 %v1999
  %v2004 = vpack.c.b16 %v2003, %v2002
  %v2006 = vsel %vm1547, %v2004, 0
  %2008 = vmatprep.subr.bf16.mxu0 0
  %2009 = vmatpush1.bf16.msra.mxu0 %v2006
  %2010 = vmatprep.subr.bf16.mxu0 0
  %2011 = vmatpush1.bf16.msra.mxu0 0
  %2012 = vmatprep.subr.bf16.mxu0 0
  %2013 = vmatpush1.bf16.msra.mxu0 0
  %2014 = vmatprep.subr.bf16.mxu0 0
  %2015 = vmatpush1.bf16.msra.mxu0 0
  %2016 = vmatprep.subr.bf16.mxu0 0
  %2017 = vmatpush1.bf16.msra.mxu0 0
  %2018 = vmatprep.subr.bf16.mxu0 0
  %2019 = vmatpush1.bf16.msra.mxu0 0
  %2020 = vmatprep.subr.bf16.mxu0 0
  %2021 = vmatpush1.bf16.msra.mxu0 0
  %2022 = vmatprep.subr.bf16.mxu0 0
  %2023 = vmatpush1.bf16.msra.mxu0 0
  %2024 = vmatprep.subr.bf16.mxu0 0
  %2025 = vmatpush1.bf16.msra.mxu0 0
  %2026 = vmatprep.subr.bf16.mxu0 0
  %2027 = vmatpush1.bf16.msra.mxu0 0
  %2028 = vmatprep.subr.bf16.mxu0 0
  %2029 = vmatpush1.bf16.msra.mxu0 0
  %2030 = vmatprep.subr.bf16.mxu0 0
  %2031 = vmatpush1.bf16.msra.mxu0 0
  %2032 = vmatprep.subr.bf16.mxu0 0
  %2033 = vmatpush1.bf16.msra.mxu0 0
  %2034 = vmatprep.subr.bf16.mxu0 0
  %2035 = vmatpush1.bf16.msra.mxu0 0
  %2036 = vmatprep.subr.bf16.mxu0 0
  %2037 = vmatpush1.bf16.msra.mxu0 0
  %2038 = vmatprep.subr.bf16.mxu0 0
  %2039 = vmatpush1.bf16.msra.mxu0 0
  %2040 = vmatprep.mubr.bf16.mxu0 0
  %2041 = vmatmul.mubr.bf16.gmra.mrb[0].mxu0 %v1527
  %v2042 = vpop.f32.mrb[0].mxu0
  %v2043 = vadd.f32 0.0, %v2042
  %v2044 = vpop.f32.mrb[0].mxu0
  %v2045 = vpop.f32.mrb[0].mxu0
  %v2046 = vadd.f32 0.0, %v2045
  %v2047 = vpop.f32.mrb[0].mxu0
  %2048 = vmatprep.mubr.bf16.mxu0 0
  %2049 = vmatmul.mubr.bf16.gmra.mrb[0].mxu0 %v1530
  %v2050 = vpop.f32.mrb[0].mxu0
  %v2051 = vadd.f32 0.0, %v2050
  %v2052 = vpop.f32.mrb[0].mxu0
  %v2053 = vpop.f32.mrb[0].mxu0
  %v2054 = vadd.f32 0.0, %v2053
  %v2055 = vpop.f32.mrb[0].mxu0
  %2056 = vmatprep.mubr.bf16.mxu0 0
  %2057 = vmatmul.mubr.bf16.gmra.mrb[0].mxu0 %v1533
  %v2058 = vpop.f32.mrb[0].mxu0
  %v2059 = vadd.f32 0.0, %v2058
  %v2060 = vpop.f32.mrb[0].mxu0
  %v2061 = vpop.f32.mrb[0].mxu0
  %v2062 = vadd.f32 0.0, %v2061
  %v2063 = vpop.f32.mrb[0].mxu0
  %2064 = vmatprep.mubr.bf16.mxu0 0
  %2065 = vmatmul.mubr.bf16.gmra.mrb[0].mxu0 %v1536
  %v2066 = vpop.f32.mrb[0].mxu0
  %v2067 = vadd.f32 0.0, %v2066
  %v2068 = vpop.f32.mrb[0].mxu0
  %v2069 = vpop.f32.mrb[0].mxu0
  %v2070 = vadd.f32 0.0, %v2069
  %v2071 = vpop.f32.mrb[0].mxu0
  %2072 = vmatprep.mubr.bf16.mxu0 0
  %2073 = vmatmul.mubr.bf16.gmra.mrb[0].mxu0 %v1539
  %v2074 = vpop.f32.mrb[0].mxu0
  %v2075 = vadd.f32 0.0, %v2074
  %v2076 = vpop.f32.mrb[0].mxu0
  %v2077 = vpop.f32.mrb[0].mxu0
  %v2078 = vadd.f32 0.0, %v2077
  %v2079 = vpop.f32.mrb[0].mxu0
  %2080 = vmatprep.mubr.bf16.mxu0 0
  %2081 = vmatmul.mubr.bf16.gmra.mrb[0].mxu0 %v1542
  %v2082 = vpop.f32.mrb[0].mxu0
  %v2083 = vadd.f32 0.0, %v2082
  %v2084 = vpop.f32.mrb[0].mxu0
  %v2085 = vpop.f32.mrb[0].mxu0
  %v2086 = vadd.f32 0.0, %v2085
  %v2087 = vpop.f32.mrb[0].mxu0
  %2088 = vmatprep.mubr.bf16.mxu0 0
  %2089 = vmatmul.mubr.bf16.gmra.mrb[0].mxu0 %v1545
  %v2090 = vpop.f32.mrb[0].mxu0
  %v2091 = vadd.f32 0.0, %v2090
  %v2092 = vpop.f32.mrb[0].mxu0
  %v2093 = vpop.f32.mrb[0].mxu0
  %v2094 = vadd.f32 0.0, %v2093
  %v2095 = vpop.f32.mrb[0].mxu0
  %2096 = vdwg.mxu0
  %2097 = vst.msk [vmem:[#allocation2 + $0x1c0] sm:$0xff] %vm1640, %v2043
  %2098 = vst.msk [vmem:[#allocation2 + $0x1c8] sm:$0xff] %vm1640, %v2046
  %2099 = vst.msk [vmem:[#allocation2 + $0x1d0] sm:$0xff] %vm1640, %v2051
  %2100 = vst.msk [vmem:[#allocation2 + $0x1d8] sm:$0xff] %vm1640, %v2054
  %2101 = vst.msk [vmem:[#allocation2 + $0x1e0] sm:$0xff] %vm1640, %v2059
  %2102 = vst.msk [vmem:[#allocation2 + $0x1e8] sm:$0xff] %vm1640, %v2062
  %2103 = vst.msk [vmem:[#allocation2 + $0x1f0] sm:$0xff] %vm1640, %v2067
  %2104 = vst.msk [vmem:[#allocation2 + $0x1f8] sm:$0xff] %vm1640, %v2070
  %2105 = vst.msk [vmem:[#allocation2 + $0x200] sm:$0xff] %vm1640, %v2075
  %2106 = vst.msk [vmem:[#allocation2 + $0x208] sm:$0xff] %vm1640, %v2078
  %2107 = vst.msk [vmem:[#allocation2 + $0x210] sm:$0xff] %vm1640, %v2083
  %2108 = vst.msk [vmem:[#allocation2 + $0x218] sm:$0xff] %vm1640, %v2086
  %2109 = vst.msk [vmem:[#allocation2 + $0x220] sm:$0xff] %vm1640, %v2091
  %2110 = vst.msk [vmem:[#allocation2 + $0x228] sm:$0xff] %vm1640, %v2094
  %s2111 = scalar_lea.vmem %s9, 40
  %v2112 = vld [vmem:[%s2111] sm:$0xf]
  %v2113 = vld [vmem:[%s2111 + $0x4] sm:$0x7]
  %v2116 = vunpack.c.l.b16 %v2112
  %v2117 = vunpack.c.l.b16 %v2113
  %v2118 = vpack.c.b16 %v2117, %v2116
  %v2120 = vsel %vm1547, %v2118, 0
  %2122 = vmatprep.subr.bf16.mxu0 0
  %2123 = vmatpush1.bf16.msra.mxu0 %v2120
  %2124 = vmatprep.subr.bf16.mxu0 0
  %2125 = vmatpush1.bf16.msra.mxu0 0
  %2126 = vmatprep.subr.bf16.mxu0 0
  %2127 = vmatpush1.bf16.msra.mxu0 0
  %2128 = vmatprep.subr.bf16.mxu0 0
  %2129 = vmatpush1.bf16.msra.mxu0 0
  %2130 = vmatprep.subr.bf16.mxu0 0
  %2131 = vmatpush1.bf16.msra.mxu0 0
  %2132 = vmatprep.subr.bf16.mxu0 0
  %2133 = vmatpush1.bf16.msra.mxu0 0
  %2134 = vmatprep.subr.bf16.mxu0 0
  %2135 = vmatpush1.bf16.msra.mxu0 0
  %2136 = vmatprep.subr.bf16.mxu0 0
  %2137 = vmatpush1.bf16.msra.mxu0 0
  %2138 = vmatprep.subr.bf16.mxu0 0
  %2139 = vmatpush1.bf16.msra.mxu0 0
  %2140 = vmatprep.subr.bf16.mxu0 0
  %2141 = vmatpush1.bf16.msra.mxu0 0
  %2142 = vmatprep.subr.bf16.mxu0 0
  %2143 = vmatpush1.bf16.msra.mxu0 0
  %2144 = vmatprep.subr.bf16.mxu0 0
  %2145 = vmatpush1.bf16.msra.mxu0 0
  %2146 = vmatprep.subr.bf16.mxu0 0
  %2147 = vmatpush1.bf16.msra.mxu0 0
  %2148 = vmatprep.subr.bf16.mxu0 0
  %2149 = vmatpush1.bf16.msra.mxu0 0
  %2150 = vmatprep.subr.bf16.mxu0 0
  %2151 = vmatpush1.bf16.msra.mxu0 0
  %2152 = vmatprep.subr.bf16.mxu0 0
  %2153 = vmatpush1.bf16.msra.mxu0 0
  %2154 = vmatprep.mubr.bf16.mxu0 0
  %2155 = vmatmul.mubr.bf16.gmra.mrb[0].mxu0 %v1527
  %v2156 = vpop.f32.mrb[0].mxu0
  %v2157 = vadd.f32 0.0, %v2156
  %v2158 = vpop.f32.mrb[0].mxu0
  %v2159 = vpop.f32.mrb[0].mxu0
  %v2160 = vadd.f32 0.0, %v2159
  %v2161 = vpop.f32.mrb[0].mxu0
  %2162 = vmatprep.mubr.bf16.mxu0 0
  %2163 = vmatmul.mubr.bf16.gmra.mrb[0].mxu0 %v1530
  %v2164 = vpop.f32.mrb[0].mxu0
  %v2165 = vadd.f32 0.0, %v2164
  %v2166 = vpop.f32.mrb[0].mxu0
  %v2167 = vpop.f32.mrb[0].mxu0
  %v2168 = vadd.f32 0.0, %v2167
  %v2169 = vpop.f32.mrb[0].mxu0
  %2170 = vmatprep.mubr.bf16.mxu0 0
  %2171 = vmatmul.mubr.bf16.gmra.mrb[0].mxu0 %v1533
  %v2172 = vpop.f32.mrb[0].mxu0
  %v2173 = vadd.f32 0.0, %v2172
  %v2174 = vpop.f32.mrb[0].mxu0
  %v2175 = vpop.f32.mrb[0].mxu0
  %v2176 = vadd.f32 0.0, %v2175
  %v2177 = vpop.f32.mrb[0].mxu0
  %2178 = vmatprep.mubr.bf16.mxu0 0
  %2179 = vmatmul.mubr.bf16.gmra.mrb[0].mxu0 %v1536
  %v2180 = vpop.f32.mrb[0].mxu0
  %v2181 = vadd.f32 0.0, %v2180
  %v2182 = vpop.f32.mrb[0].mxu0
  %v2183 = vpop.f32.mrb[0].mxu0
  %v2184 = vadd.f32 0.0, %v2183
  %v2185 = vpop.f32.mrb[0].mxu0
  %2186 = vmatprep.mubr.bf16.mxu0 0
  %2187 = vmatmul.mubr.bf16.gmra.mrb[0].mxu0 %v1539
  %v2188 = vpop.f32.mrb[0].mxu0
  %v2189 = vadd.f32 0.0, %v2188
  %v2190 = vpop.f32.mrb[0].mxu0
  %v2191 = vpop.f32.mrb[0].mxu0
  %v2192 = vadd.f32 0.0, %v2191
  %v2193 = vpop.f32.mrb[0].mxu0
  %2194 = vmatprep.mubr.bf16.mxu0 0
  %2195 = vmatmul.mubr.bf16.gmra.mrb[0].mxu0 %v1542
  %v2196 = vpop.f32.mrb[0].mxu0
  %v2197 = vadd.f32 0.0, %v2196
  %v2198 = vpop.f32.mrb[0].mxu0
  %v2199 = vpop.f32.mrb[0].mxu0
  %v2200 = vadd.f32 0.0, %v2199
  %v2201 = vpop.f32.mrb[0].mxu0
  %2202 = vmatprep.mubr.bf16.mxu0 0
  %2203 = vmatmul.mubr.bf16.gmra.mrb[0].mxu0 %v1545
  %v2204 = vpop.f32.mrb[0].mxu0
  %v2205 = vadd.f32 0.0, %v2204
  %v2206 = vpop.f32.mrb[0].mxu0
  %v2207 = vpop.f32.mrb[0].mxu0
  %v2208 = vadd.f32 0.0, %v2207
  %v2209 = vpop.f32.mrb[0].mxu0
  %2210 = vdwg.mxu0
  %2211 = vst.msk [vmem:[#allocation2 + $0x230] sm:$0xff] %vm1640, %v2157
  %2212 = vst.msk [vmem:[#allocation2 + $0x238] sm:$0xff] %vm1640, %v2160
  %2213 = vst.msk [vmem:[#allocation2 + $0x240] sm:$0xff] %vm1640, %v2165
  %2214 = vst.msk [vmem:[#allocation2 + $0x248] sm:$0xff] %vm1640, %v2168
  %2215 = vst.msk [vmem:[#allocation2 + $0x250] sm:$0xff] %vm1640, %v2173
  %2216 = vst.msk [vmem:[#allocation2 + $0x258] sm:$0xff] %vm1640, %v2176
  %2217 = vst.msk [vmem:[#allocation2 + $0x260] sm:$0xff] %vm1640, %v2181
  %2218 = vst.msk [vmem:[#allocation2 + $0x268] sm:$0xff] %vm1640, %v2184
  %2219 = vst.msk [vmem:[#allocation2 + $0x270] sm:$0xff] %vm1640, %v2189
  %2220 = vst.msk [vmem:[#allocation2 + $0x278] sm:$0xff] %vm1640, %v2192
  %2221 = vst.msk [vmem:[#allocation2 + $0x280] sm:$0xff] %vm1640, %v2197
  %2222 = vst.msk [vmem:[#allocation2 + $0x288] sm:$0xff] %vm1640, %v2200
  %2223 = vst.msk [vmem:[#allocation2 + $0x290] sm:$0xff] %vm1640, %v2205
  %2224 = vst.msk [vmem:[#allocation2 + $0x298] sm:$0xff] %vm1640, %v2208
  %s2225 = scalar_lea.vmem %s9, 48
  %v2226 = vld [vmem:[%s2225] sm:$0xf]
  %v2227 = vld [vmem:[%s2225 + $0x4] sm:$0x7]
  %v2230 = vunpack.c.l.b16 %v2226
  %v2231 = vunpack.c.l.b16 %v2227
  %v2232 = vpack.c.b16 %v2231, %v2230
  %v2234 = vsel %vm1547, %v2232, 0
  %2236 = vmatprep.subr.bf16.mxu0 0
  %2237 = vmatpush1.bf16.msra.mxu0 %v2234
  %2238 = vmatprep.subr.bf16.mxu0 0
  %2239 = vmatpush1.bf16.msra.mxu0 0
  %2240 = vmatprep.subr.bf16.mxu0 0
  %2241 = vmatpush1.bf16.msra.mxu0 0
  %2242 = vmatprep.subr.bf16.mxu0 0
  %2243 = vmatpush1.bf16.msra.mxu0 0
  %2244 = vmatprep.subr.bf16.mxu0 0
  %2245 = vmatpush1.bf16.msra.mxu0 0
  %2246 = vmatprep.subr.bf16.mxu0 0
  %2247 = vmatpush1.bf16.msra.mxu0 0
  %2248 = vmatprep.subr.bf16.mxu0 0
  %2249 = vmatpush1.bf16.msra.mxu0 0
  %2250 = vmatprep.subr.bf16.mxu0 0
  %2251 = vmatpush1.bf16.msra.mxu0 0
  %2252 = vmatprep.subr.bf16.mxu0 0
  %2253 = vmatpush1.bf16.msra.mxu0 0
  %2254 = vmatprep.subr.bf16.mxu0 0
  %2255 = vmatpush1.bf16.msra.mxu0 0
  %2256 = vmatprep.subr.bf16.mxu0 0
  %2257 = vmatpush1.bf16.msra.mxu0 0
  %2258 = vmatprep.subr.bf16.mxu0 0
  %2259 = vmatpush1.bf16.msra.mxu0 0
  %2260 = vmatprep.subr.bf16.mxu0 0
  %2261 = vmatpush1.bf16.msra.mxu0 0
  %2262 = vmatprep.subr.bf16.mxu0 0
  %2263 = vmatpush1.bf16.msra.mxu0 0
  %2264 = vmatprep.subr.bf16.mxu0 0
  %2265 = vmatpush1.bf16.msra.mxu0 0
  %2266 = vmatprep.subr.bf16.mxu0 0
  %2267 = vmatpush1.bf16.msra.mxu0 0
  %2268 = vmatprep.mubr.bf16.mxu0 0
  %2269 = vmatmul.mubr.bf16.gmra.mrb[0].mxu0 %v1527
  %v2270 = vpop.f32.mrb[0].mxu0
  %v2271 = vadd.f32 0.0, %v2270
  %v2272 = vpop.f32.mrb[0].mxu0
  %v2273 = vpop.f32.mrb[0].mxu0
  %v2274 = vadd.f32 0.0, %v2273
  %v2275 = vpop.f32.mrb[0].mxu0
  %2276 = vmatprep.mubr.bf16.mxu0 0
  %2277 = vmatmul.mubr.bf16.gmra.mrb[0].mxu0 %v1530
  %v2278 = vpop.f32.mrb[0].mxu0
  %v2279 = vadd.f32 0.0, %v2278
  %v2280 = vpop.f32.mrb[0].mxu0
  %v2281 = vpop.f32.mrb[0].mxu0
  %v2282 = vadd.f32 0.0, %v2281
  %v2283 = vpop.f32.mrb[0].mxu0
  %2284 = vmatprep.mubr.bf16.mxu0 0
  %2285 = vmatmul.mubr.bf16.gmra.mrb[0].mxu0 %v1533
  %v2286 = vpop.f32.mrb[0].mxu0
  %v2287 = vadd.f32 0.0, %v2286
  %v2288 = vpop.f32.mrb[0].mxu0
  %v2289 = vpop.f32.mrb[0].mxu0
  %v2290 = vadd.f32 0.0, %v2289
  %v2291 = vpop.f32.mrb[0].mxu0
  %2292 = vmatprep.mubr.bf16.mxu0 0
  %2293 = vmatmul.mubr.bf16.gmra.mrb[0].mxu0 %v1536
  %v2294 = vpop.f32.mrb[0].mxu0
  %v2295 = vadd.f32 0.0, %v2294
  %v2296 = vpop.f32.mrb[0].mxu0
  %v2297 = vpop.f32.mrb[0].mxu0
  %v2298 = vadd.f32 0.0, %v2297
  %v2299 = vpop.f32.mrb[0].mxu0
  %2300 = vmatprep.mubr.bf16.mxu0 0
  %2301 = vmatmul.mubr.bf16.gmra.mrb[0].mxu0 %v1539
  %v2302 = vpop.f32.mrb[0].mxu0
  %v2303 = vadd.f32 0.0, %v2302
  %v2304 = vpop.f32.mrb[0].mxu0
  %v2305 = vpop.f32.mrb[0].mxu0
  %v2306 = vadd.f32 0.0, %v2305
  %v2307 = vpop.f32.mrb[0].mxu0
  %2308 = vmatprep.mubr.bf16.mxu0 0
  %2309 = vmatmul.mubr.bf16.gmra.mrb[0].mxu0 %v1542
  %v2310 = vpop.f32.mrb[0].mxu0
  %v2311 = vadd.f32 0.0, %v2310
  %v2312 = vpop.f32.mrb[0].mxu0
  %v2313 = vpop.f32.mrb[0].mxu0
  %v2314 = vadd.f32 0.0, %v2313
  %v2315 = vpop.f32.mrb[0].mxu0
  %2316 = vmatprep.mubr.bf16.mxu0 0
  %2317 = vmatmul.mubr.bf16.gmra.mrb[0].mxu0 %v1545
  %v2318 = vpop.f32.mrb[0].mxu0
  %v2319 = vadd.f32 0.0, %v2318
  %v2320 = vpop.f32.mrb[0].mxu0
  %v2321 = vpop.f32.mrb[0].mxu0
  %v2322 = vadd.f32 0.0, %v2321
  %v2323 = vpop.f32.mrb[0].mxu0
  %2324 = vdwg.mxu0
  %2325 = vst.msk [vmem:[#allocation2 + $0x2a0] sm:$0xff] %vm1640, %v2271
  %2326 = vst.msk [vmem:[#allocation2 + $0x2a8] sm:$0xff] %vm1640, %v2274
  %2327 = vst.msk [vmem:[#allocation2 + $0x2b0] sm:$0xff] %vm1640, %v2279
  %2328 = vst.msk [vmem:[#allocation2 + $0x2b8] sm:$0xff] %vm1640, %v2282
  %2329 = vst.msk [vmem:[#allocation2 + $0x2c0] sm:$0xff] %vm1640, %v2287
  %2330 = vst.msk [vmem:[#allocation2 + $0x2c8] sm:$0xff] %vm1640, %v2290
  %2331 = vst.msk [vmem:[#allocation2 + $0x2d0] sm:$0xff] %vm1640, %v2295
  %2332 = vst.msk [vmem:[#allocation2 + $0x2d8] sm:$0xff] %vm1640, %v2298
  %2333 = vst.msk [vmem:[#allocation2 + $0x2e0] sm:$0xff] %vm1640, %v2303
  %2334 = vst.msk [vmem:[#allocation2 + $0x2e8] sm:$0xff] %vm1640, %v2306
  %2335 = vst.msk [vmem:[#allocation2 + $0x2f0] sm:$0xff] %vm1640, %v2311
  %2336 = vst.msk [vmem:[#allocation2 + $0x2f8] sm:$0xff] %vm1640, %v2314
  %2337 = vst.msk [vmem:[#allocation2 + $0x300] sm:$0xff] %vm1640, %v2319
  %2338 = vst.msk [vmem:[#allocation2 + $0x308] sm:$0xff] %vm1640, %v2322
  %v2339 = vld [vmem:[#allocation2] sm:$0xff]
  %v2340 = vld [vmem:[#allocation2 + $0x8] sm:$0xff]
  %v2341 = vld [vmem:[#allocation2 + $0x10] sm:$0xff]
  %v2342 = vld [vmem:[#allocation2 + $0x18] sm:$0xff]
  %v2343 = vld [vmem:[#allocation2 + $0x20] sm:$0xff]
  %v2344 = vld [vmem:[#allocation2 + $0x28] sm:$0xff]
  %v2345 = vld [vmem:[#allocation2 + $0x30] sm:$0xff]
  %v2346 = vld [vmem:[#allocation2 + $0x38] sm:$0xff]
  %v2347 = vld [vmem:[#allocation2 + $0x40] sm:$0xff]
  %v2348 = vld [vmem:[#allocation2 + $0x48] sm:$0xff]
  %v2349 = vld [vmem:[#allocation2 + $0x50] sm:$0xff]
  %v2350 = vld [vmem:[#allocation2 + $0x58] sm:$0xff]
  %v2351 = vld [vmem:[#allocation2 + $0x60] sm:$0xff]
  %v2352 = vld [vmem:[#allocation2 + $0x68] sm:$0xff]
  %v2353 = vld [vmem:[#allocation2 + $0x70] sm:$0xff]
  %v2354 = vld [vmem:[#allocation2 + $0x78] sm:$0xff]
  %v2355 = vld [vmem:[#allocation2 + $0x80] sm:$0xff]
  %v2356 = vld [vmem:[#allocation2 + $0x88] sm:$0xff]
  %v2357 = vld [vmem:[#allocation2 + $0x90] sm:$0xff]
  %v2358 = vld [vmem:[#allocation2 + $0x98] sm:$0xff]
  %v2359 = vld [vmem:[#allocation2 + $0xa0] sm:$0xff]
  %v2360 = vld [vmem:[#allocation2 + $0xa8] sm:$0xff]
  %v2361 = vld [vmem:[#allocation2 + $0xb0] sm:$0xff]
  %v2362 = vld [vmem:[#allocation2 + $0xb8] sm:$0xff]
  %v2363 = vld [vmem:[#allocation2 + $0xc0] sm:$0xff]
  %v2364 = vld [vmem:[#allocation2 + $0xc8] sm:$0xff]
  %v2365 = vld [vmem:[#allocation2 + $0xd0] sm:$0xff]
  %v2366 = vld [vmem:[#allocation2 + $0xd8] sm:$0xff]
  %v2367 = vld [vmem:[#allocation2 + $0xe0] sm:$0xff]
  %v2368 = vld [vmem:[#allocation2 + $0xe8] sm:$0xff]
  %v2369 = vld [vmem:[#allocation2 + $0xf0] sm:$0xff]
  %v2370 = vld [vmem:[#allocation2 + $0xf8] sm:$0xff]
  %v2371 = vld [vmem:[#allocation2 + $0x100] sm:$0xff]
  %v2372 = vld [vmem:[#allocation2 + $0x108] sm:$0xff]
  %v2373 = vld [vmem:[#allocation2 + $0x110] sm:$0xff]
  %v2374 = vld [vmem:[#allocation2 + $0x118] sm:$0xff]
  %v2375 = vld [vmem:[#allocation2 + $0x120] sm:$0xff]
  %v2376 = vld [vmem:[#allocation2 + $0x128] sm:$0xff]
  %v2377 = vld [vmem:[#allocation2 + $0x130] sm:$0xff]
  %v2378 = vld [vmem:[#allocation2 + $0x138] sm:$0xff]
  %v2379 = vld [vmem:[#allocation2 + $0x140] sm:$0xff]
  %v2380 = vld [vmem:[#allocation2 + $0x148] sm:$0xff]
  %v2381 = vld [vmem:[#allocation2 + $0x150] sm:$0xff]
  %v2382 = vld [vmem:[#allocation2 + $0x158] sm:$0xff]
  %v2383 = vld [vmem:[#allocation2 + $0x160] sm:$0xff]
  %v2384 = vld [vmem:[#allocation2 + $0x168] sm:$0xff]
  %v2385 = vld [vmem:[#allocation2 + $0x170] sm:$0xff]
  %v2386 = vld [vmem:[#allocation2 + $0x178] sm:$0xff]
  %v2387 = vld [vmem:[#allocation2 + $0x180] sm:$0xff]
  %v2388 = vld [vmem:[#allocation2 + $0x188] sm:$0xff]
  %v2389 = vld [vmem:[#allocation2 + $0x190] sm:$0xff]
  %v2390 = vld [vmem:[#allocation2 + $0x198] sm:$0xff]
  %v2391 = vld [vmem:[#allocation2 + $0x1a0] sm:$0xff]
  %v2392 = vld [vmem:[#allocation2 + $0x1a8] sm:$0xff]
  %v2393 = vld [vmem:[#allocation2 + $0x1b0] sm:$0xff]
  %v2394 = vld [vmem:[#allocation2 + $0x1b8] sm:$0xff]
  %v2395 = vld [vmem:[#allocation2 + $0x1c0] sm:$0xff]
  %v2396 = vld [vmem:[#allocation2 + $0x1c8] sm:$0xff]
  %v2397 = vld [vmem:[#allocation2 + $0x1d0] sm:$0xff]
  %v2398 = vld [vmem:[#allocation2 + $0x1d8] sm:$0xff]
  %v2399 = vld [vmem:[#allocation2 + $0x1e0] sm:$0xff]
  %v2400 = vld [vmem:[#allocation2 + $0x1e8] sm:$0xff]
  %v2401 = vld [vmem:[#allocation2 + $0x1f0] sm:$0xff]
  %v2402 = vld [vmem:[#allocation2 + $0x1f8] sm:$0xff]
  %v2403 = vld [vmem:[#allocation2 + $0x200] sm:$0xff]
  %v2404 = vld [vmem:[#allocation2 + $0x208] sm:$0xff]
  %v2405 = vld [vmem:[#allocation2 + $0x210] sm:$0xff]
  %v2406 = vld [vmem:[#allocation2 + $0x218] sm:$0xff]
  %v2407 = vld [vmem:[#allocation2 + $0x220] sm:$0xff]
  %v2408 = vld [vmem:[#allocation2 + $0x228] sm:$0xff]
  %v2409 = vld [vmem:[#allocation2 + $0x230] sm:$0xff]
  %v2410 = vld [vmem:[#allocation2 + $0x238] sm:$0xff]
  %v2411 = vld [vmem:[#allocation2 + $0x240] sm:$0xff]
  %v2412 = vld [vmem:[#allocation2 + $0x248] sm:$0xff]
  %v2413 = vld [vmem:[#allocation2 + $0x250] sm:$0xff]
  %v2414 = vld [vmem:[#allocation2 + $0x258] sm:$0xff]
  %v2415 = vld [vmem:[#allocation2 + $0x260] sm:$0xff]
  %v2416 = vld [vmem:[#allocation2 + $0x268] sm:$0xff]
  %v2417 = vld [vmem:[#allocation2 + $0x270] sm:$0xff]
  %v2418 = vld [vmem:[#allocation2 + $0x278] sm:$0xff]
  %v2419 = vld [vmem:[#allocation2 + $0x280] sm:$0xff]
  %v2420 = vld [vmem:[#allocation2 + $0x288] sm:$0xff]
  %v2421 = vld [vmem:[#allocation2 + $0x290] sm:$0xff]
  %v2422 = vld [vmem:[#allocation2 + $0x298] sm:$0xff]
  %v2423 = vld [vmem:[#allocation2 + $0x2a0] sm:$0xff]
  %v2424 = vld [vmem:[#allocation2 + $0x2a8] sm:$0xff]
  %v2425 = vld [vmem:[#allocation2 + $0x2b0] sm:$0xff]
  %v2426 = vld [vmem:[#allocation2 + $0x2b8] sm:$0xff]
  %v2427 = vld [vmem:[#allocation2 + $0x2c0] sm:$0xff]
  %v2428 = vld [vmem:[#allocation2 + $0x2c8] sm:$0xff]
  %v2429 = vld [vmem:[#allocation2 + $0x2d0] sm:$0xff]
  %v2430 = vld [vmem:[#allocation2 + $0x2d8] sm:$0xff]
  %v2431 = vld [vmem:[#allocation2 + $0x2e0] sm:$0xff]
  %v2432 = vld [vmem:[#allocation2 + $0x2e8] sm:$0xff]
  %v2433 = vld [vmem:[#allocation2 + $0x2f0] sm:$0xff]
  %v2434 = vld [vmem:[#allocation2 + $0x2f8] sm:$0xff]
  %v2435 = vld [vmem:[#allocation2 + $0x300] sm:$0xff]
  %v2436 = vld [vmem:[#allocation2 + $0x308] sm:$0xff]
  %v2437 = vpack.c.bf16 %v2340, %v2339
  %v2438 = vpack.c.bf16 %v2342, %v2341
  %v2439 = vpack.c.bf16 %v2344, %v2343
  %v2440 = vpack.c.bf16 %v2346, %v2345
  %v2441 = vpack.c.bf16 %v2348, %v2347
  %v2442 = vpack.c.bf16 %v2350, %v2349
  %v2443 = vpack.c.bf16 %v2352, %v2351
  %v2444 = vpack.c.bf16 %v2354, %v2353
  %v2445 = vpack.c.bf16 %v2356, %v2355
  %v2446 = vpack.c.bf16 %v2358, %v2357
  %v2447 = vpack.c.bf16 %v2360, %v2359
  %v2448 = vpack.c.bf16 %v2362, %v2361
  %v2449 = vpack.c.bf16 %v2364, %v2363
  %v2450 = vpack.c.bf16 %v2366, %v2365
  %v2451 = vpack.c.bf16 %v2368, %v2367
  %v2452 = vpack.c.bf16 %v2370, %v2369
  %v2453 = vpack.c.bf16 %v2372, %v2371
  %v2454 = vpack.c.bf16 %v2374, %v2373
  %v2455 = vpack.c.bf16 %v2376, %v2375
  %v2456 = vpack.c.bf16 %v2378, %v2377
  %v2457 = vpack.c.bf16 %v2380, %v2379
  %v2458 = vpack.c.bf16 %v2382, %v2381
  %v2459 = vpack.c.bf16 %v2384, %v2383
  %v2460 = vpack.c.bf16 %v2386, %v2385
  %v2461 = vpack.c.bf16 %v2388, %v2387
  %v2462 = vpack.c.bf16 %v2390, %v2389
  %v2463 = vpack.c.bf16 %v2392, %v2391
  %v2464 = vpack.c.bf16 %v2394, %v2393
  %v2465 = vpack.c.bf16 %v2396, %v2395
  %v2466 = vpack.c.bf16 %v2398, %v2397
  %v2467 = vpack.c.bf16 %v2400, %v2399
  %v2468 = vpack.c.bf16 %v2402, %v2401
  %v2469 = vpack.c.bf16 %v2404, %v2403
  %v2470 = vpack.c.bf16 %v2406, %v2405
  %v2471 = vpack.c.bf16 %v2408, %v2407
  %v2472 = vpack.c.bf16 %v2410, %v2409
  %v2473 = vpack.c.bf16 %v2412, %v2411
  %v2474 = vpack.c.bf16 %v2414, %v2413
  %v2475 = vpack.c.bf16 %v2416, %v2415
  %v2476 = vpack.c.bf16 %v2418, %v2417
  %v2477 = vpack.c.bf16 %v2420, %v2419
  %v2478 = vpack.c.bf16 %v2422, %v2421
  %v2479 = vpack.c.bf16 %v2424, %v2423
  %v2480 = vpack.c.bf16 %v2426, %v2425
  %v2481 = vpack.c.bf16 %v2428, %v2427
  %v2482 = vpack.c.bf16 %v2430, %v2429
  %v2483 = vpack.c.bf16 %v2432, %v2431
  %v2484 = vpack.c.bf16 %v2434, %v2433
  %v2485 = vpack.c.bf16 %v2436, %v2435
  %v2486 = vld [vmem:[%s8] sm:$0xff]
  %v2487 = vld [vmem:[%s8 + $0x8] sm:$0xff]
  %v2488 = vld [vmem:[%s8 + $0x10] sm:$0xff]
  %v2489 = vld [vmem:[%s8 + $0x18] sm:$0xf]
  %v2490 = vld [vmem:[%s8 + $0x1c] sm:$0xff]
  %v2491 = vld [vmem:[%s8 + $0x24] sm:$0xff]
  %v2492 = vld [vmem:[%s8 + $0x2c] sm:$0xff]
  %v2493 = vld [vmem:[%s8 + $0x34] sm:$0xf]
  %v2494 = vld [vmem:[%s8 + $0x38] sm:$0xff]
  %v2495 = vld [vmem:[%s8 + $0x40] sm:$0xff]
  %v2496 = vld [vmem:[%s8 + $0x48] sm:$0xff]
  %v2497 = vld [vmem:[%s8 + $0x50] sm:$0xf]
  %v2498 = vld [vmem:[%s8 + $0x54] sm:$0xff]
  %v2499 = vld [vmem:[%s8 + $0x5c] sm:$0xff]
  %v2500 = vld [vmem:[%s8 + $0x64] sm:$0xff]
  %v2501 = vld [vmem:[%s8 + $0x6c] sm:$0xf]
  %v2502 = vld [vmem:[%s10] sm:$0xff]
  %v2503 = vld [vmem:[%s10 + $0x8] sm:$0xff]
  %v2504 = vld [vmem:[%s10 + $0x10] sm:$0xff]
  %v2505 = vld [vmem:[%s10 + $0x18] sm:$0xff]
  %2507 = vset.pattern.permute.xlu0 0
  %2508 = vperm.xlu0 %2507, %v2502
  %v2509 = vpop.permute.xlu0 %2508
  %2512 = vset.pattern.permute.xlu0 0
  %2513 = vperm.xlu0 %2512, %v2503
  %v2514 = vpop.permute.xlu0 %2513
  %2517 = vset.pattern.permute.xlu0 0
  %2518 = vperm.xlu0 %2517, %v2504
  %v2519 = vpop.permute.xlu0 %2518
  %2522 = vset.pattern.permute.xlu0 0
  %2523 = vperm.xlu0 %2522, %v2505
  %v2524 = vpop.permute.xlu0 %2523
  %v2542 = vunpack.c.l.b16 %v2486
  %v2543 = vunpack.c.h.b16 %v2486
  %v2544 = vunpack.c.l.b16 %v2487
  %v2545 = vunpack.c.h.b16 %v2487
  %v2546 = vunpack.c.l.b16 %v2488
  %v2547 = vunpack.c.h.b16 %v2488
  %v2548 = vunpack.c.l.b16 %v2489
  %v2549 = vunpack.c.l.b16 %v2490
  %v2550 = vunpack.c.h.b16 %v2490
  %v2551 = vunpack.c.l.b16 %v2491
  %v2552 = vunpack.c.h.b16 %v2491
  %v2553 = vunpack.c.l.b16 %v2492
  %v2554 = vunpack.c.h.b16 %v2492
  %v2555 = vunpack.c.l.b16 %v2493
  %v2556 = vunpack.c.l.b16 %v2494
  %v2557 = vunpack.c.h.b16 %v2494
  %v2558 = vunpack.c.l.b16 %v2495
  %v2559 = vunpack.c.h.b16 %v2495
  %v2560 = vunpack.c.l.b16 %v2496
  %v2561 = vunpack.c.h.b16 %v2496
  %v2562 = vunpack.c.l.b16 %v2497
  %v2563 = vunpack.c.l.b16 %v2498
  %v2564 = vunpack.c.h.b16 %v2498
  %v2565 = vunpack.c.l.b16 %v2499
  %v2566 = vunpack.c.h.b16 %v2499
  %v2567 = vunpack.c.l.b16 %v2500
  %v2568 = vunpack.c.h.b16 %v2500
  %v2569 = vunpack.c.l.b16 %v2501
  %v2570 = vpack.c.b16 %v2549, %v2542
  %v2571 = vpack.c.b16 %v2550, %v2543
  %v2572 = vpack.c.b16 %v2551, %v2544
  %v2573 = vpack.c.b16 %v2552, %v2545
  %v2574 = vpack.c.b16 %v2553, %v2546
  %v2575 = vpack.c.b16 %v2554, %v2547
  %v2576 = vpack.c.b16 %v2555, %v2548
  %v2577 = vpack.c.b16 %v2563, %v2556
  %v2578 = vpack.c.b16 %v2564, %v2557
  %v2579 = vpack.c.b16 %v2565, %v2558
  %v2580 = vpack.c.b16 %v2566, %v2559
  %v2581 = vpack.c.b16 %v2567, %v2560
  %v2582 = vpack.c.b16 %v2568, %v2561
  %v2583 = vpack.c.b16 %v2569, %v2562
  %vm2596 = vcmask 130048
  %v2598 = vsel %vm2596, %v2576, 0
  %v2601 = vsel %vm2596, %v2583, 0
  %2603 = vmatprep.subr.bf16.mxu0 0
  %2604 = vmatpush1.bf16.msra.mxu0 %v2437
  %2605 = vmatprep.subr.bf16.mxu0 0
  %2606 = vmatpush1.bf16.msra.mxu0 %v2438
  %2607 = vmatprep.subr.bf16.mxu0 0
  %2608 = vmatpush1.bf16.msra.mxu0 %v2439
  %2609 = vmatprep.subr.bf16.mxu0 0
  %2610 = vmatpush1.bf16.msra.mxu0 %v2440
  %2611 = vmatprep.subr.bf16.mxu0 0
  %2612 = vmatpush1.bf16.msra.mxu0 %v2441
  %2613 = vmatprep.subr.bf16.mxu0 0
  %2614 = vmatpush1.bf16.msra.mxu0 %v2442
  %2615 = vmatprep.subr.bf16.mxu0 0
  %2616 = vmatpush1.bf16.msra.mxu0 %v2443
  %2617 = vmatprep.subr.bf16.mxu0 0
  %2618 = vmatpush1.bf16.msra.mxu0 %v2444
  %2619 = vmatprep.subr.bf16.mxu0 0
  %2620 = vmatpush1.bf16.msra.mxu0 %v2445
  %2621 = vmatprep.subr.bf16.mxu0 0
  %2622 = vmatpush1.bf16.msra.mxu0 %v2446
  %2623 = vmatprep.subr.bf16.mxu0 0
  %2624 = vmatpush1.bf16.msra.mxu0 %v2447
  %2625 = vmatprep.subr.bf16.mxu0 0
  %2626 = vmatpush1.bf16.msra.mxu0 %v2448
  %2627 = vmatprep.subr.bf16.mxu0 0
  %2628 = vmatpush1.bf16.msra.mxu0 %v2449
  %2629 = vmatprep.subr.bf16.mxu0 0
  %2630 = vmatpush1.bf16.msra.mxu0 %v2450
  %2631 = vmatprep.subr.bf16.mxu0 0
  %2632 = vmatpush1.bf16.msra.mxu0 %v2451
  %2633 = vmatprep.subr.bf16.mxu0 0
  %2634 = vmatpush1.bf16.msra.mxu0 %v2452
  %2635 = vmatprep.mubr.bf16.mxu0 %v2571
  %2636 = vmatmul.mubr.bf16.gmra.mrb[0].mxu0 %v2570
  %v2637 = vpop.f32.mrb[0].mxu0
  %v2638 = vadd.f32 %v2509, %v2637
  %v2639 = vpop.f32.mrb[0].mxu0
  %v2640 = vpop.f32.mrb[0].mxu0
  %v2641 = vadd.f32 %v2514, %v2640
  %v2642 = vpop.f32.mrb[0].mxu0
  %2643 = vmatprep.mubr.bf16.mxu0 %v2578
  %2644 = vmatmul.mubr.bf16.gmra.mrb[0].mxu0 %v2577
  %v2645 = vpop.f32.mrb[0].mxu0
  %v2646 = vadd.f32 %v2519, %v2645
  %v2647 = vpop.f32.mrb[0].mxu0
  %v2648 = vpop.f32.mrb[0].mxu0
  %v2649 = vadd.f32 %v2524, %v2648
  %v2650 = vpop.f32.mrb[0].mxu0
  %2651 = vdwg.mxu0
  %2652 = vmatprep.subr.bf16.mxu0 0
  %2653 = vmatpush1.bf16.msra.mxu0 %v2453
  %2654 = vmatprep.subr.bf16.mxu0 0
  %2655 = vmatpush1.bf16.msra.mxu0 %v2454
  %2656 = vmatprep.subr.bf16.mxu0 0
  %2657 = vmatpush1.bf16.msra.mxu0 %v2455
  %2658 = vmatprep.subr.bf16.mxu0 0
  %2659 = vmatpush1.bf16.msra.mxu0 %v2456
  %2660 = vmatprep.subr.bf16.mxu0 0
  %2661 = vmatpush1.bf16.msra.mxu0 %v2457
  %2662 = vmatprep.subr.bf16.mxu0 0
  %2663 = vmatpush1.bf16.msra.mxu0 %v2458
  %2664 = vmatprep.subr.bf16.mxu0 0
  %2665 = vmatpush1.bf16.msra.mxu0 %v2459
  %2666 = vmatprep.subr.bf16.mxu0 0
  %2667 = vmatpush1.bf16.msra.mxu0 %v2460
  %2668 = vmatprep.subr.bf16.mxu0 0
  %2669 = vmatpush1.bf16.msra.mxu0 %v2461
  %2670 = vmatprep.subr.bf16.mxu0 0
  %2671 = vmatpush1.bf16.msra.mxu0 %v2462
  %2672 = vmatprep.subr.bf16.mxu0 0
  %2673 = vmatpush1.bf16.msra.mxu0 %v2463
  %2674 = vmatprep.subr.bf16.mxu0 0
  %2675 = vmatpush1.bf16.msra.mxu0 %v2464
  %2676 = vmatprep.subr.bf16.mxu0 0
  %2677 = vmatpush1.bf16.msra.mxu0 %v2465
  %2678 = vmatprep.subr.bf16.mxu0 0
  %2679 = vmatpush1.bf16.msra.mxu0 %v2466
  %2680 = vmatprep.subr.bf16.mxu0 0
  %2681 = vmatpush1.bf16.msra.mxu0 %v2467
  %2682 = vmatprep.subr.bf16.mxu0 0
  %2683 = vmatpush1.bf16.msra.mxu0 %v2468
  %2684 = vmatprep.mubr.bf16.mxu0 %v2573
  %2685 = vmatmul.mubr.bf16.gmra.mrb[0].mxu0 %v2572
  %v2686 = vpop.f32.mrb[0].mxu0
  %v2687 = vadd.f32 %v2638, %v2686
  %v2688 = vpop.f32.mrb[0].mxu0
  %v2689 = vpop.f32.mrb[0].mxu0
  %v2690 = vadd.f32 %v2641, %v2689
  %v2691 = vpop.f32.mrb[0].mxu0
  %2692 = vmatprep.mubr.bf16.mxu0 %v2580
  %2693 = vmatmul.mubr.bf16.gmra.mrb[0].mxu0 %v2579
  %v2694 = vpop.f32.mrb[0].mxu0
  %v2695 = vadd.f32 %v2646, %v2694
  %v2696 = vpop.f32.mrb[0].mxu0
  %v2697 = vpop.f32.mrb[0].mxu0
  %v2698 = vadd.f32 %v2649, %v2697
  %v2699 = vpop.f32.mrb[0].mxu0
  %2700 = vdwg.mxu0
  %2701 = vmatprep.subr.bf16.mxu0 0
  %2702 = vmatpush1.bf16.msra.mxu0 %v2469
  %2703 = vmatprep.subr.bf16.mxu0 0
  %2704 = vmatpush1.bf16.msra.mxu0 %v2470
  %2705 = vmatprep.subr.bf16.mxu0 0
  %2706 = vmatpush1.bf16.msra.mxu0 %v2471
  %2707 = vmatprep.subr.bf16.mxu0 0
  %2708 = vmatpush1.bf16.msra.mxu0 %v2472
  %2709 = vmatprep.subr.bf16.mxu0 0
  %2710 = vmatpush1.bf16.msra.mxu0 %v2473
  %2711 = vmatprep.subr.bf16.mxu0 0
  %2712 = vmatpush1.bf16.msra.mxu0 %v2474
  %2713 = vmatprep.subr.bf16.mxu0 0
  %2714 = vmatpush1.bf16.msra.mxu0 %v2475
  %2715 = vmatprep.subr.bf16.mxu0 0
  %2716 = vmatpush1.bf16.msra.mxu0 %v2476
  %2717 = vmatprep.subr.bf16.mxu0 0
  %2718 = vmatpush1.bf16.msra.mxu0 %v2477
  %2719 = vmatprep.subr.bf16.mxu0 0
  %2720 = vmatpush1.bf16.msra.mxu0 %v2478
  %2721 = vmatprep.subr.bf16.mxu0 0
  %2722 = vmatpush1.bf16.msra.mxu0 %v2479
  %2723 = vmatprep.subr.bf16.mxu0 0
  %2724 = vmatpush1.bf16.msra.mxu0 %v2480
  %2725 = vmatprep.subr.bf16.mxu0 0
  %2726 = vmatpush1.bf16.msra.mxu0 %v2481
  %2727 = vmatprep.subr.bf16.mxu0 0
  %2728 = vmatpush1.bf16.msra.mxu0 %v2482
  %2729 = vmatprep.subr.bf16.mxu0 0
  %2730 = vmatpush1.bf16.msra.mxu0 %v2483
  %2731 = vmatprep.subr.bf16.mxu0 0
  %2732 = vmatpush1.bf16.msra.mxu0 %v2484
  %2733 = vmatprep.mubr.bf16.mxu0 %v2575
  %2734 = vmatmul.mubr.bf16.gmra.mrb[0].mxu0 %v2574
  %v2735 = vpop.f32.mrb[0].mxu0
  %v2736 = vadd.f32 %v2687, %v2735
  %v2737 = vpop.f32.mrb[0].mxu0
  %v2738 = vpop.f32.mrb[0].mxu0
  %v2739 = vadd.f32 %v2690, %v2738
  %v2740 = vpop.f32.mrb[0].mxu0
  %2741 = vmatprep.mubr.bf16.mxu0 %v2582
  %2742 = vmatmul.mubr.bf16.gmra.mrb[0].mxu0 %v2581
  %v2743 = vpop.f32.mrb[0].mxu0
  %v2744 = vadd.f32 %v2695, %v2743
  %v2745 = vpop.f32.mrb[0].mxu0
  %v2746 = vpop.f32.mrb[0].mxu0
  %v2747 = vadd.f32 %v2698, %v2746
  %v2748 = vpop.f32.mrb[0].mxu0
  %2749 = vdwg.mxu0
  %2750 = vmatprep.subr.bf16.mxu0 0
  %2751 = vmatpush1.bf16.msra.mxu0 %v2485
  %2752 = vmatprep.subr.bf16.mxu0 0
  %2753 = vmatpush1.bf16.msra.mxu0 0
  %2754 = vmatprep.subr.bf16.mxu0 0
  %2755 = vmatpush1.bf16.msra.mxu0 0
  %2756 = vmatprep.subr.bf16.mxu0 0
  %2757 = vmatpush1.bf16.msra.mxu0 0
  %2758 = vmatprep.subr.bf16.mxu0 0
  %2759 = vmatpush1.bf16.msra.mxu0 0
  %2760 = vmatprep.subr.bf16.mxu0 0
  %2761 = vmatpush1.bf16.msra.mxu0 0
  %2762 = vmatprep.subr.bf16.mxu0 0
  %2763 = vmatpush1.bf16.msra.mxu0 0
  %2764 = vmatprep.subr.bf16.mxu0 0
  %2765 = vmatpush1.bf16.msra.mxu0 0
  %2766 = vmatprep.subr.bf16.mxu0 0
  %2767 = vmatpush1.bf16.msra.mxu0 0
  %2768 = vmatprep.subr.bf16.mxu0 0
  %2769 = vmatpush1.bf16.msra.mxu0 0
  %2770 = vmatprep.subr.bf16.mxu0 0
  %2771 = vmatpush1.bf16.msra.mxu0 0
  %2772 = vmatprep.subr.bf16.mxu0 0
  %2773 = vmatpush1.bf16.msra.mxu0 0
  %2774 = vmatprep.subr.bf16.mxu0 0
  %2775 = vmatpush1.bf16.msra.mxu0 0
  %2776 = vmatprep.subr.bf16.mxu0 0
  %2777 = vmatpush1.bf16.msra.mxu0 0
  %2778 = vmatprep.subr.bf16.mxu0 0
  %2779 = vmatpush1.bf16.msra.mxu0 0
  %2780 = vmatprep.subr.bf16.mxu0 0
  %2781 = vmatpush1.bf16.msra.mxu0 0
  %2782 = vmatprep.mubr.bf16.mxu0 0
  %2783 = vmatmul.mubr.bf16.gmra.mrb[0].mxu0 %v2598
  %v2784 = vpop.f32.mrb[0].mxu0
  %v2785 = vadd.f32 %v2736, %v2784
  %v2786 = vpop.f32.mrb[0].mxu0
  %v2787 = vpop.f32.mrb[0].mxu0
  %v2788 = vadd.f32 %v2739, %v2787
  %v2789 = vpop.f32.mrb[0].mxu0
  %2790 = vmatprep.mubr.bf16.mxu0 0
  %2791 = vmatmul.mubr.bf16.gmra.mrb[0].mxu0 %v2601
  %v2792 = vpop.f32.mrb[0].mxu0
  %v2793 = vadd.f32 %v2744, %v2792
  %v2794 = vpop.f32.mrb[0].mxu0
  %v2795 = vpop.f32.mrb[0].mxu0
  %v2796 = vadd.f32 %v2747, %v2795
  %v2797 = vpop.f32.mrb[0].mxu0
  %2798 = vdwg.mxu0
  %v2799 = vmax.f32 %v2793, -5.0
  %v2800 = vmax.f32 %v2796, -5.0
  %v2801 = vmin.f32 %v2799, 5.0
  %v2802 = vmin.f32 %v2800, 5.0
  %v2803 = vld [vmem:[%s1] sm:$0xff]
  %v2804 = vld [vmem:[%s1 + $0x8] sm:$0xff]
  %v2805 = vmul.f32 %v2801, 0.5
  %v2806 = vmul.f32 %v2802, 0.5
  %v2807 = vmul.f32 %v2805, 1.442695
  %v2808 = vpow.pop %v2807
  %v2809 = vmul.f32 %v2806, 1.442695
  %v2810 = vpow.pop %v2809
  %v2811 = vmul.f32 %v2803, %v2808
  %v2812 = vmul.f32 %v2804, %v2810
  %v2813 = vadd.f32 %v2785, %v2811
  %v2814 = vadd.f32 %v2788, %v2812
  %v2815 = vpack.c.bf16 %v2814, %v2813
  %v2816 = vld [vmem:[%s12] sm:$0x1]
  %v2818 = vsel %vm1640, %v2815, 0
  %vm2820 = vcmask 1040384
  %v2822 = vsel %vm2820, %v2816, 0
  %2824 = vmatprep.subr.bf16.mxu0 0
  %2825 = vmatpush1.bf16.msra.mxu0 %v2822
  %2826 = vmatprep.subr.bf16.mxu0 0
  %2827 = vmatpush1.bf16.msra.mxu0 0
  %2828 = vmatprep.subr.bf16.mxu0 0
  %2829 = vmatpush1.bf16.msra.mxu0 0
  %2830 = vmatprep.subr.bf16.mxu0 0
  %2831 = vmatpush1.bf16.msra.mxu0 0
  %2832 = vmatprep.subr.bf16.mxu0 0
  %2833 = vmatpush1.bf16.msra.mxu0 0
  %2834 = vmatprep.subr.bf16.mxu0 0
  %2835 = vmatpush1.bf16.msra.mxu0 0
  %2836 = vmatprep.subr.bf16.mxu0 0
  %2837 = vmatpush1.bf16.msra.mxu0 0
  %2838 = vmatprep.subr.bf16.mxu0 0
  %2839 = vmatpush1.bf16.msra.mxu0 0
  %2840 = vmatprep.subr.bf16.mxu0 0
  %2841 = vmatpush1.bf16.msra.mxu0 0
  %2842 = vmatprep.subr.bf16.mxu0 0
  %2843 = vmatpush1.bf16.msra.mxu0 0
  %2844 = vmatprep.subr.bf16.mxu0 0
  %2845 = vmatpush1.bf16.msra.mxu0 0
  %2846 = vmatprep.subr.bf16.mxu0 0
  %2847 = vmatpush1.bf16.msra.mxu0 0
  %2848 = vmatprep.subr.bf16.mxu0 0
  %2849 = vmatpush1.bf16.msra.mxu0 0
  %2850 = vmatprep.subr.bf16.mxu0 0
  %2851 = vmatpush1.bf16.msra.mxu0 0
  %2852 = vmatprep.subr.bf16.mxu0 0
  %2853 = vmatpush1.bf16.msra.mxu0 0
  %2854 = vmatprep.subr.bf16.mxu0 0
  %2855 = vmatpush1.bf16.msra.mxu0 0
  %2856 = vmatprep.mubr.bf16.mxu0 0
  %2857 = vmatmul.mubr.bf16.gmra.mrb[0].mxu0 %v2818
  %v2858 = vpop.f32.mrb[0].mxu0
  %v2859 = vadd.f32 0.0, %v2858
  %v2860 = vpop.f32.mrb[0].mxu0
  %v2861 = vpop.f32.mrb[0].mxu0
  %v2862 = vadd.f32 0.0, %v2861
  %v2863 = vpop.f32.mrb[0].mxu0
  %2864 = vdwg.mxu0
  %2865 = vst.msk [vmem:[#allocation2] sm:$0xff] %vm759, %v2859
  %2866 = vst.msk [vmem:[#allocation2 + $0x8] sm:$0xff] %vm759, %v2862
  %s2867 = scalar_lea.vmem %s12, 1
  %v2868 = vld [vmem:[%s2867] sm:$0x1]
  %v2870 = vsel %vm2820, %v2868, 0
  %2872 = vmatprep.subr.bf16.mxu0 0
  %2873 = vmatpush1.bf16.msra.mxu0 %v2870
  %2874 = vmatprep.subr.bf16.mxu0 0
  %2875 = vmatpush1.bf16.msra.mxu0 0
  %2876 = vmatprep.subr.bf16.mxu0 0
  %2877 = vmatpush1.bf16.msra.mxu0 0
  %2878 = vmatprep.subr.bf16.mxu0 0
  %2879 = vmatpush1.bf16.msra.mxu0 0
  %2880 = vmatprep.subr.bf16.mxu0 0
  %2881 = vmatpush1.bf16.msra.mxu0 0
  %2882 = vmatprep.subr.bf16.mxu0 0
  %2883 = vmatpush1.bf16.msra.mxu0 0
  %2884 = vmatprep.subr.bf16.mxu0 0
  %2885 = vmatpush1.bf16.msra.mxu0 0
  %2886 = vmatprep.subr.bf16.mxu0 0
  %2887 = vmatpush1.bf16.msra.mxu0 0
  %2888 = vmatprep.subr.bf16.mxu0 0
  %2889 = vmatpush1.bf16.msra.mxu0 0
  %2890 = vmatprep.subr.bf16.mxu0 0
  %2891 = vmatpush1.bf16.msra.mxu0 0
  %2892 = vmatprep.subr.bf16.mxu0 0
  %2893 = vmatpush1.bf16.msra.mxu0 0
  %2894 = vmatprep.subr.bf16.mxu0 0
  %2895 = vmatpush1.bf16.msra.mxu0 0
  %2896 = vmatprep.subr.bf16.mxu0 0
  %2897 = vmatpush1.bf16.msra.mxu0 0
  %2898 = vmatprep.subr.bf16.mxu0 0
  %2899 = vmatpush1.bf16.msra.mxu0 0
  %2900 = vmatprep.subr.bf16.mxu0 0
  %2901 = vmatpush1.bf16.msra.mxu0 0
  %2902 = vmatprep.subr.bf16.mxu0 0
  %2903 = vmatpush1.bf16.msra.mxu0 0
  %2904 = vmatprep.mubr.bf16.mxu0 0
  %2905 = vmatmul.mubr.bf16.gmra.mrb[0].mxu0 %v2818
  %v2906 = vpop.f32.mrb[0].mxu0
  %v2907 = vadd.f32 0.0, %v2906
  %v2908 = vpop.f32.mrb[0].mxu0
  %v2909 = vpop.f32.mrb[0].mxu0
  %v2910 = vadd.f32 0.0, %v2909
  %v2911 = vpop.f32.mrb[0].mxu0
  %2912 = vdwg.mxu0
  %2913 = vst.msk [vmem:[#allocation2 + $0x10] sm:$0xff] %vm759, %v2907
  %2914 = vst.msk [vmem:[#allocation2 + $0x18] sm:$0xff] %vm759, %v2910
  %s2915 = scalar_lea.vmem %s12, 2
  %v2916 = vld [vmem:[%s2915] sm:$0x1]
  %v2918 = vsel %vm2820, %v2916, 0
  %2920 = vmatprep.subr.bf16.mxu0 0
  %2921 = vmatpush1.bf16.msra.mxu0 %v2918
  %2922 = vmatprep.subr.bf16.mxu0 0
  %2923 = vmatpush1.bf16.msra.mxu0 0
  %2924 = vmatprep.subr.bf16.mxu0 0
  %2925 = vmatpush1.bf16.msra.mxu0 0
  %2926 = vmatprep.subr.bf16.mxu0 0
  %2927 = vmatpush1.bf16.msra.mxu0 0
  %2928 = vmatprep.subr.bf16.mxu0 0
  %2929 = vmatpush1.bf16.msra.mxu0 0
  %2930 = vmatprep.subr.bf16.mxu0 0
  %2931 = vmatpush1.bf16.msra.mxu0 0
  %2932 = vmatprep.subr.bf16.mxu0 0
  %2933 = vmatpush1.bf16.msra.mxu0 0
  %2934 = vmatprep.subr.bf16.mxu0 0
  %2935 = vmatpush1.bf16.msra.mxu0 0
  %2936 = vmatprep.subr.bf16.mxu0 0
  %2937 = vmatpush1.bf16.msra.mxu0 0
  %2938 = vmatprep.subr.bf16.mxu0 0
  %2939 = vmatpush1.bf16.msra.mxu0 0
  %2940 = vmatprep.subr.bf16.mxu0 0
  %2941 = vmatpush1.bf16.msra.mxu0 0
  %2942 = vmatprep.subr.bf16.mxu0 0
  %2943 = vmatpush1.bf16.msra.mxu0 0
  %2944 = vmatprep.subr.bf16.mxu0 0
  %2945 = vmatpush1.bf16.msra.mxu0 0
  %2946 = vmatprep.subr.bf16.mxu0 0
  %2947 = vmatpush1.bf16.msra.mxu0 0
  %2948 = vmatprep.subr.bf16.mxu0 0
  %2949 = vmatpush1.bf16.msra.mxu0 0
  %2950 = vmatprep.subr.bf16.mxu0 0
  %2951 = vmatpush1.bf16.msra.mxu0 0
  %2952 = vmatprep.mubr.bf16.mxu0 0
  %2953 = vmatmul.mubr.bf16.gmra.mrb[0].mxu0 %v2818
  %v2954 = vpop.f32.mrb[0].mxu0
  %v2955 = vadd.f32 0.0, %v2954
  %v2956 = vpop.f32.mrb[0].mxu0
  %v2957 = vpop.f32.mrb[0].mxu0
  %v2958 = vadd.f32 0.0, %v2957
  %v2959 = vpop.f32.mrb[0].mxu0
  %2960 = vdwg.mxu0
  %2961 = vst.msk [vmem:[#allocation2 + $0x20] sm:$0xff] %vm759, %v2955
  %2962 = vst.msk [vmem:[#allocation2 + $0x28] sm:$0xff] %vm759, %v2958
  %s2963 = scalar_lea.vmem %s12, 3
  %v2964 = vld [vmem:[%s2963] sm:$0x1]
  %v2966 = vsel %vm2820, %v2964, 0
  %2968 = vmatprep.subr.bf16.mxu0 0
  %2969 = vmatpush1.bf16.msra.mxu0 %v2966
  %2970 = vmatprep.subr.bf16.mxu0 0
  %2971 = vmatpush1.bf16.msra.mxu0 0
  %2972 = vmatprep.subr.bf16.mxu0 0
  %2973 = vmatpush1.bf16.msra.mxu0 0
  %2974 = vmatprep.subr.bf16.mxu0 0
  %2975 = vmatpush1.bf16.msra.mxu0 0
  %2976 = vmatprep.subr.bf16.mxu0 0
  %2977 = vmatpush1.bf16.msra.mxu0 0
  %2978 = vmatprep.subr.bf16.mxu0 0
  %2979 = vmatpush1.bf16.msra.mxu0 0
  %2980 = vmatprep.subr.bf16.mxu0 0
  %2981 = vmatpush1.bf16.msra.mxu0 0
  %2982 = vmatprep.subr.bf16.mxu0 0
  %2983 = vmatpush1.bf16.msra.mxu0 0
  %2984 = vmatprep.subr.bf16.mxu0 0
  %2985 = vmatpush1.bf16.msra.mxu0 0
  %2986 = vmatprep.subr.bf16.mxu0 0
  %2987 = vmatpush1.bf16.msra.mxu0 0
  %2988 = vmatprep.subr.bf16.mxu0 0
  %2989 = vmatpush1.bf16.msra.mxu0 0
  %2990 = vmatprep.subr.bf16.mxu0 0
  %2991 = vmatpush1.bf16.msra.mxu0 0
  %2992 = vmatprep.subr.bf16.mxu0 0
  %2993 = vmatpush1.bf16.msra.mxu0 0
  %2994 = vmatprep.subr.bf16.mxu0 0
  %2995 = vmatpush1.bf16.msra.mxu0 0
  %2996 = vmatprep.subr.bf16.mxu0 0
  %2997 = vmatpush1.bf16.msra.mxu0 0
  %2998 = vmatprep.subr.bf16.mxu0 0
  %2999 = vmatpush1.bf16.msra.mxu0 0
  %3000 = vmatprep.mubr.bf16.mxu0 0
  %3001 = vmatmul.mubr.bf16.gmra.mrb[0].mxu0 %v2818
  %v3002 = vpop.f32.mrb[0].mxu0
  %v3003 = vadd.f32 0.0, %v3002
  %v3004 = vpop.f32.mrb[0].mxu0
  %v3005 = vpop.f32.mrb[0].mxu0
  %v3006 = vadd.f32 0.0, %v3005
  %v3007 = vpop.f32.mrb[0].mxu0
  %3008 = vdwg.mxu0
  %3009 = vst.msk [vmem:[#allocation2 + $0x30] sm:$0xff] %vm759, %v3003
  %3010 = vst.msk [vmem:[#allocation2 + $0x38] sm:$0xff] %vm759, %v3006
  %s3011 = scalar_lea.vmem %s12, 4
  %v3012 = vld [vmem:[%s3011] sm:$0x1]
  %v3014 = vsel %vm2820, %v3012, 0
  %3016 = vmatprep.subr.bf16.mxu0 0
  %3017 = vmatpush1.bf16.msra.mxu0 %v3014
  %3018 = vmatprep.subr.bf16.mxu0 0
  %3019 = vmatpush1.bf16.msra.mxu0 0
  %3020 = vmatprep.subr.bf16.mxu0 0
  %3021 = vmatpush1.bf16.msra.mxu0 0
  %3022 = vmatprep.subr.bf16.mxu0 0
  %3023 = vmatpush1.bf16.msra.mxu0 0
  %3024 = vmatprep.subr.bf16.mxu0 0
  %3025 = vmatpush1.bf16.msra.mxu0 0
  %3026 = vmatprep.subr.bf16.mxu0 0
  %3027 = vmatpush1.bf16.msra.mxu0 0
  %3028 = vmatprep.subr.bf16.mxu0 0
  %3029 = vmatpush1.bf16.msra.mxu0 0
  %3030 = vmatprep.subr.bf16.mxu0 0
  %3031 = vmatpush1.bf16.msra.mxu0 0
  %3032 = vmatprep.subr.bf16.mxu0 0
  %3033 = vmatpush1.bf16.msra.mxu0 0
  %3034 = vmatprep.subr.bf16.mxu0 0
  %3035 = vmatpush1.bf16.msra.mxu0 0
  %3036 = vmatprep.subr.bf16.mxu0 0
  %3037 = vmatpush1.bf16.msra.mxu0 0
  %3038 = vmatprep.subr.bf16.mxu0 0
  %3039 = vmatpush1.bf16.msra.mxu0 0
  %3040 = vmatprep.subr.bf16.mxu0 0
  %3041 = vmatpush1.bf16.msra.mxu0 0
  %3042 = vmatprep.subr.bf16.mxu0 0
  %3043 = vmatpush1.bf16.msra.mxu0 0
  %3044 = vmatprep.subr.bf16.mxu0 0
  %3045 = vmatpush1.bf16.msra.mxu0 0
  %3046 = vmatprep.subr.bf16.mxu0 0
  %3047 = vmatpush1.bf16.msra.mxu0 0
  %3048 = vmatprep.mubr.bf16.mxu0 0
  %3049 = vmatmul.mubr.bf16.gmra.mrb[0].mxu0 %v2818
  %v3050 = vpop.f32.mrb[0].mxu0
  %v3051 = vadd.f32 0.0, %v3050
  %v3052 = vpop.f32.mrb[0].mxu0
  %v3053 = vpop.f32.mrb[0].mxu0
  %v3054 = vadd.f32 0.0, %v3053
  %v3055 = vpop.f32.mrb[0].mxu0
  %3056 = vdwg.mxu0
  %3057 = vst.msk [vmem:[#allocation2 + $0x40] sm:$0xff] %vm759, %v3051
  %3058 = vst.msk [vmem:[#allocation2 + $0x48] sm:$0xff] %vm759, %v3054
  %s3059 = scalar_lea.vmem %s12, 5
  %v3060 = vld [vmem:[%s3059] sm:$0x1]
  %v3062 = vsel %vm2820, %v3060, 0
  %3064 = vmatprep.subr.bf16.mxu0 0
  %3065 = vmatpush1.bf16.msra.mxu0 %v3062
  %3066 = vmatprep.subr.bf16.mxu0 0
  %3067 = vmatpush1.bf16.msra.mxu0 0
  %3068 = vmatprep.subr.bf16.mxu0 0
  %3069 = vmatpush1.bf16.msra.mxu0 0
  %3070 = vmatprep.subr.bf16.mxu0 0
  %3071 = vmatpush1.bf16.msra.mxu0 0
  %3072 = vmatprep.subr.bf16.mxu0 0
  %3073 = vmatpush1.bf16.msra.mxu0 0
  %3074 = vmatprep.subr.bf16.mxu0 0
  %3075 = vmatpush1.bf16.msra.mxu0 0
  %3076 = vmatprep.subr.bf16.mxu0 0
  %3077 = vmatpush1.bf16.msra.mxu0 0
  %3078 = vmatprep.subr.bf16.mxu0 0
  %3079 = vmatpush1.bf16.msra.mxu0 0
  %3080 = vmatprep.subr.bf16.mxu0 0
  %3081 = vmatpush1.bf16.msra.mxu0 0
  %3082 = vmatprep.subr.bf16.mxu0 0
  %3083 = vmatpush1.bf16.msra.mxu0 0
  %3084 = vmatprep.subr.bf16.mxu0 0
  %3085 = vmatpush1.bf16.msra.mxu0 0
  %3086 = vmatprep.subr.bf16.mxu0 0
  %3087 = vmatpush1.bf16.msra.mxu0 0
  %3088 = vmatprep.subr.bf16.mxu0 0
  %3089 = vmatpush1.bf16.msra.mxu0 0
  %3090 = vmatprep.subr.bf16.mxu0 0
  %3091 = vmatpush1.bf16.msra.mxu0 0
  %3092 = vmatprep.subr.bf16.mxu0 0
  %3093 = vmatpush1.bf16.msra.mxu0 0
  %3094 = vmatprep.subr.bf16.mxu0 0
  %3095 = vmatpush1.bf16.msra.mxu0 0
  %3096 = vmatprep.mubr.bf16.mxu0 0
  %3097 = vmatmul.mubr.bf16.gmra.mrb[0].mxu0 %v2818
  %v3098 = vpop.f32.mrb[0].mxu0
  %v3099 = vadd.f32 0.0, %v3098
  %v3100 = vpop.f32.mrb[0].mxu0
  %v3101 = vpop.f32.mrb[0].mxu0
  %v3102 = vadd.f32 0.0, %v3101
  %v3103 = vpop.f32.mrb[0].mxu0
  %3104 = vdwg.mxu0
  %3105 = vst.msk [vmem:[#allocation2 + $0x50] sm:$0xff] %vm759, %v3099
  %3106 = vst.msk [vmem:[#allocation2 + $0x58] sm:$0xff] %vm759, %v3102
  %s3107 = scalar_lea.vmem %s12, 6
  %v3108 = vld [vmem:[%s3107] sm:$0x1]
  %v3110 = vsel %vm2820, %v3108, 0
  %3112 = vmatprep.subr.bf16.mxu0 0
  %3113 = vmatpush1.bf16.msra.mxu0 %v3110
  %3114 = vmatprep.subr.bf16.mxu0 0
  %3115 = vmatpush1.bf16.msra.mxu0 0
  %3116 = vmatprep.subr.bf16.mxu0 0
  %3117 = vmatpush1.bf16.msra.mxu0 0
  %3118 = vmatprep.subr.bf16.mxu0 0
  %3119 = vmatpush1.bf16.msra.mxu0 0
  %3120 = vmatprep.subr.bf16.mxu0 0
  %3121 = vmatpush1.bf16.msra.mxu0 0
  %3122 = vmatprep.subr.bf16.mxu0 0
  %3123 = vmatpush1.bf16.msra.mxu0 0
  %3124 = vmatprep.subr.bf16.mxu0 0
  %3125 = vmatpush1.bf16.msra.mxu0 0
  %3126 = vmatprep.subr.bf16.mxu0 0
  %3127 = vmatpush1.bf16.msra.mxu0 0
  %3128 = vmatprep.subr.bf16.mxu0 0
  %3129 = vmatpush1.bf16.msra.mxu0 0
  %3130 = vmatprep.subr.bf16.mxu0 0
  %3131 = vmatpush1.bf16.msra.mxu0 0
  %3132 = vmatprep.subr.bf16.mxu0 0
  %3133 = vmatpush1.bf16.msra.mxu0 0
  %3134 = vmatprep.subr.bf16.mxu0 0
  %3135 = vmatpush1.bf16.msra.mxu0 0
  %3136 = vmatprep.subr.bf16.mxu0 0
  %3137 = vmatpush1.bf16.msra.mxu0 0
  %3138 = vmatprep.subr.bf16.mxu0 0
  %3139 = vmatpush1.bf16.msra.mxu0 0
  %3140 = vmatprep.subr.bf16.mxu0 0
  %3141 = vmatpush1.bf16.msra.mxu0 0
  %3142 = vmatprep.subr.bf16.mxu0 0
  %3143 = vmatpush1.bf16.msra.mxu0 0
  %3144 = vmatprep.mubr.bf16.mxu0 0
  %3145 = vmatmul.mubr.bf16.gmra.mrb[0].mxu0 %v2818
  %v3146 = vpop.f32.mrb[0].mxu0
  %v3147 = vadd.f32 0.0, %v3146
  %v3148 = vpop.f32.mrb[0].mxu0
  %v3149 = vpop.f32.mrb[0].mxu0
  %v3150 = vadd.f32 0.0, %v3149
  %v3151 = vpop.f32.mrb[0].mxu0
  %3152 = vdwg.mxu0
  %3153 = vst.msk [vmem:[#allocation2 + $0x60] sm:$0xff] %vm759, %v3147
  %3154 = vst.msk [vmem:[#allocation2 + $0x68] sm:$0xff] %vm759, %v3150
  %v3155 = vld [vmem:[#allocation2] sm:$0xff]
  %v3156 = vld [vmem:[#allocation2 + $0x8] sm:$0xff]
  %v3157 = vld [vmem:[#allocation2 + $0x10] sm:$0xff]
  %v3158 = vld [vmem:[#allocation2 + $0x18] sm:$0xff]
  %v3159 = vld [vmem:[#allocation2 + $0x20] sm:$0xff]
  %v3160 = vld [vmem:[#allocation2 + $0x28] sm:$0xff]
  %v3161 = vld [vmem:[#allocation2 + $0x30] sm:$0xff]
  %v3162 = vld [vmem:[#allocation2 + $0x38] sm:$0xff]
  %v3163 = vld [vmem:[#allocation2 + $0x40] sm:$0xff]
  %v3164 = vld [vmem:[#allocation2 + $0x48] sm:$0xff]
  %v3165 = vld [vmem:[#allocation2 + $0x50] sm:$0xff]
  %v3166 = vld [vmem:[#allocation2 + $0x58] sm:$0xff]
  %v3167 = vld [vmem:[#allocation2 + $0x60] sm:$0xff]
  %v3168 = vld [vmem:[#allocation2 + $0x68] sm:$0xff]
  %v3169 = vpack.c.bf16 %v3156, %v3155
  %v3170 = vpack.c.bf16 %v3158, %v3157
  %v3171 = vpack.c.bf16 %v3160, %v3159
  %v3172 = vpack.c.bf16 %v3162, %v3161
  %v3173 = vpack.c.bf16 %v3164, %v3163
  %v3174 = vpack.c.bf16 %v3166, %v3165
  %v3175 = vpack.c.bf16 %v3168, %v3167
  %v3176 = vld [vmem:[%s11] sm:$0xf]
  %v3177 = vld [vmem:[%s11 + $0x4] sm:$0xf]
  %v3178 = vld [vmem:[%s11 + $0x8] sm:$0xf]
  %v3179 = vld [vmem:[%s11 + $0xc] sm:$0xf]
  %v3180 = vld [vmem:[%s11 + $0x10] sm:$0xf]
  %v3181 = vld [vmem:[%s11 + $0x14] sm:$0xf]
  %v3182 = vld [vmem:[%s11 + $0x18] sm:$0xf]
  %v3183 = vld [vmem:[%s13] sm:$0xff]
  %v3184 = vld [vmem:[%s13 + $0x8] sm:$0xff]
  %v3185 = vld [vmem:[%s13 + $0x10] sm:$0xff]
  %v3186 = vld [vmem:[%s13 + $0x18] sm:$0xff]
  %v3187 = vld [vmem:[%s13 + $0x20] sm:$0xff]
  %v3188 = vld [vmem:[%s13 + $0x28] sm:$0xff]
  %v3189 = vld [vmem:[%s13 + $0x30] sm:$0xff]
  %v3197 = vunpack.c.l.b16 %v3176
  %v3198 = vunpack.c.l.b16 %v3177
  %v3199 = vunpack.c.l.b16 %v3178
  %v3200 = vunpack.c.l.b16 %v3179
  %v3201 = vunpack.c.l.b16 %v3180
  %v3202 = vunpack.c.l.b16 %v3181
  %v3203 = vunpack.c.l.b16 %v3182
  %v3204 = vpack.c.b16 %v3198, %v3197
  %v3205 = vpack.c.b16 %v3200, %v3199
  %v3206 = vpack.c.b16 %v3202, %v3201
  %v3207 = vpack.c.b16 %v3203, %v3203
  %vm3208 = vcmask 916480
  %v3210 = vsel %vm3208, %v3204, 0
  %v3213 = vsel %vm3208, %v3205, 0
  %v3216 = vsel %vm3208, %v3206, 0
  %v3219 = vsel %vm3208, %v3207, 0
  %3221 = vmatprep.subr.bf16.mxu0 0
  %3222 = vmatpush1.bf16.msra.mxu0 %v3169
  %3223 = vmatprep.subr.bf16.mxu0 0
  %3224 = vmatpush1.bf16.msra.mxu0 %v3170
  %3225 = vmatprep.subr.bf16.mxu0 0
  %3226 = vmatpush1.bf16.msra.mxu0 %v3171
  %3227 = vmatprep.subr.bf16.mxu0 0
  %3228 = vmatpush1.bf16.msra.mxu0 %v3172
  %3229 = vmatprep.subr.bf16.mxu0 0
  %3230 = vmatpush1.bf16.msra.mxu0 %v3173
  %3231 = vmatprep.subr.bf16.mxu0 0
  %3232 = vmatpush1.bf16.msra.mxu0 %v3174
  %3233 = vmatprep.subr.bf16.mxu0 0
  %3234 = vmatpush1.bf16.msra.mxu0 %v3175
  %3235 = vmatprep.subr.bf16.mxu0 0
  %3236 = vmatpush1.bf16.msra.mxu0 0
  %3237 = vmatprep.subr.bf16.mxu0 0
  %3238 = vmatpush1.bf16.msra.mxu0 0
  %3239 = vmatprep.subr.bf16.mxu0 0
  %3240 = vmatpush1.bf16.msra.mxu0 0
  %3241 = vmatprep.subr.bf16.mxu0 0
  %3242 = vmatpush1.bf16.msra.mxu0 0
  %3243 = vmatprep.subr.bf16.mxu0 0
  %3244 = vmatpush1.bf16.msra.mxu0 0
  %3245 = vmatprep.subr.bf16.mxu0 0
  %3246 = vmatpush1.bf16.msra.mxu0 0
  %3247 = vmatprep.subr.bf16.mxu0 0
  %3248 = vmatpush1.bf16.msra.mxu0 0
  %3249 = vmatprep.subr.bf16.mxu0 0
  %3250 = vmatpush1.bf16.msra.mxu0 0
  %3251 = vmatprep.subr.bf16.mxu0 0
  %3252 = vmatpush1.bf16.msra.mxu0 0
  %3253 = vmatprep.mubr.bf16.mxu0 0
  %3254 = vmatmul.mubr.bf16.gmra.mrb[0].mxu0 %v3210
  %v3255 = vpop.f32.mrb[0].mxu0
  %v3256 = vadd.f32 %v3183, %v3255
  %v3257 = vpop.f32.mrb[0].mxu0
  %v3258 = vpop.f32.mrb[0].mxu0
  %v3259 = vadd.f32 %v3184, %v3258
  %v3260 = vpop.f32.mrb[0].mxu0
  %3261 = vmatprep.mubr.bf16.mxu0 0
  %3262 = vmatmul.mubr.bf16.gmra.mrb[0].mxu0 %v3213
  %v3263 = vpop.f32.mrb[0].mxu0
  %v3264 = vadd.f32 %v3185, %v3263
  %v3265 = vpop.f32.mrb[0].mxu0
  %v3266 = vpop.f32.mrb[0].mxu0
  %v3267 = vadd.f32 %v3186, %v3266
  %v3268 = vpop.f32.mrb[0].mxu0
  %3269 = vmatprep.mubr.bf16.mxu0 0
  %3270 = vmatmul.mubr.bf16.gmra.mrb[0].mxu0 %v3216
  %v3271 = vpop.f32.mrb[0].mxu0
  %v3272 = vadd.f32 %v3187, %v3271
  %v3273 = vpop.f32.mrb[0].mxu0
  %v3274 = vpop.f32.mrb[0].mxu0
  %v3275 = vadd.f32 %v3188, %v3274
  %v3276 = vpop.f32.mrb[0].mxu0
  %3277 = vmatprep.mubr.bf16.mxu0 0
  %3278 = vmatmul.mubr.bf16.gmra.mrb[0].mxu0 %v3219
  %v3279 = vpop.f32.mrb[0].mxu0
  %v3280 = vadd.f32 %v3189, %v3279
  %v3281 = vpop.f32.mrb[0].mxu0
  %v3282 = vpop.f32.mrb[0].mxu0
  %v3283 = vpop.f32.mrb[0].mxu0
  %3284 = vdwg.mxu0
  %v3285 = vmax.f32 %v3256, 0.0
  %v3286 = vmax.f32 %v3259, 0.0
  %v3287 = vmax.f32 %v3264, 0.0
  %v3288 = vmax.f32 %v3267, 0.0
  %v3289 = vmax.f32 %v3272, 0.0
  %v3290 = vmax.f32 %v3275, 0.0
  %v3291 = vmax.f32 %v3280, 0.0
  %v3292 = vpack.c.bf16 %v3286, %v3285
  %v3293 = vpack.c.bf16 %v3288, %v3287
  %v3294 = vpack.c.bf16 %v3290, %v3289
  %v3295 = vpack.c.bf16 %v3291, %v3291
  %v3296 = vld [vmem:[%s15] sm:$0xf]
  %v3297 = vld [vmem:[%s15 + $0x4] sm:$0x7]
  %v3300 = vunpack.c.l.b16 %v3296
  %v3301 = vunpack.c.l.b16 %v3297
  %v3302 = vpack.c.b16 %v3301, %v3300
  %v3304 = vsel %vm759, %v3292, 0
  %v3307 = vsel %vm759, %v3293, 0
  %v3310 = vsel %vm759, %v3294, 0
  %v3313 = vsel %vm759, %v3295, 0
  %v3316 = vsel %vm1547, %v3302, 0
  %3318 = vmatprep.subr.bf16.mxu0 0
  %3319 = vmatpush1.bf16.msra.mxu0 %v3316
  %3320 = vmatprep.subr.bf16.mxu0 0
  %3321 = vmatpush1.bf16.msra.mxu0 0
  %3322 = vmatprep.subr.bf16.mxu0 0
  %3323 = vmatpush1.bf16.msra.mxu0 0
  %3324 = vmatprep.subr.bf16.mxu0 0
  %3325 = vmatpush1.bf16.msra.mxu0 0
  %3326 = vmatprep.subr.bf16.mxu0 0
  %3327 = vmatpush1.bf16.msra.mxu0 0
  %3328 = vmatprep.subr.bf16.mxu0 0
  %3329 = vmatpush1.bf16.msra.mxu0 0
  %3330 = vmatprep.subr.bf16.mxu0 0
  %3331 = vmatpush1.bf16.msra.mxu0 0
  %3332 = vmatprep.subr.bf16.mxu0 0
  %3333 = vmatpush1.bf16.msra.mxu0 0
  %3334 = vmatprep.subr.bf16.mxu0 0
  %3335 = vmatpush1.bf16.msra.mxu0 0
  %3336 = vmatprep.subr.bf16.mxu0 0
  %3337 = vmatpush1.bf16.msra.mxu0 0
  %3338 = vmatprep.subr.bf16.mxu0 0
  %3339 = vmatpush1.bf16.msra.mxu0 0
  %3340 = vmatprep.subr.bf16.mxu0 0
  %3341 = vmatpush1.bf16.msra.mxu0 0
  %3342 = vmatprep.subr.bf16.mxu0 0
  %3343 = vmatpush1.bf16.msra.mxu0 0
  %3344 = vmatprep.subr.bf16.mxu0 0
  %3345 = vmatpush1.bf16.msra.mxu0 0
  %3346 = vmatprep.subr.bf16.mxu0 0
  %3347 = vmatpush1.bf16.msra.mxu0 0
  %3348 = vmatprep.subr.bf16.mxu0 0
  %3349 = vmatpush1.bf16.msra.mxu0 0
  %3350 = vmatprep.mubr.bf16.mxu0 0
  %3351 = vmatmul.mubr.bf16.gmra.mrb[0].mxu0 %v3304
  %v3352 = vpop.f32.mrb[0].mxu0
  %v3353 = vadd.f32 0.0, %v3352
  %v3354 = vpop.f32.mrb[0].mxu0
  %v3355 = vpop.f32.mrb[0].mxu0
  %v3356 = vadd.f32 0.0, %v3355
  %v3357 = vpop.f32.mrb[0].mxu0
  %3358 = vmatprep.mubr.bf16.mxu0 0
  %3359 = vmatmul.mubr.bf16.gmra.mrb[0].mxu0 %v3307
  %v3360 = vpop.f32.mrb[0].mxu0
  %v3361 = vadd.f32 0.0, %v3360
  %v3362 = vpop.f32.mrb[0].mxu0
  %v3363 = vpop.f32.mrb[0].mxu0
  %v3364 = vadd.f32 0.0, %v3363
  %v3365 = vpop.f32.mrb[0].mxu0
  %3366 = vmatprep.mubr.bf16.mxu0 0
  %3367 = vmatmul.mubr.bf16.gmra.mrb[0].mxu0 %v3310
  %v3368 = vpop.f32.mrb[0].mxu0
  %v3369 = vadd.f32 0.0, %v3368
  %v3370 = vpop.f32.mrb[0].mxu0
  %v3371 = vpop.f32.mrb[0].mxu0
  %v3372 = vadd.f32 0.0, %v3371
  %v3373 = vpop.f32.mrb[0].mxu0
  %3374 = vmatprep.mubr.bf16.mxu0 0
  %3375 = vmatmul.mubr.bf16.gmra.mrb[0].mxu0 %v3313
  %v3376 = vpop.f32.mrb[0].mxu0
  %v3377 = vadd.f32 0.0, %v3376
  %v3378 = vpop.f32.mrb[0].mxu0
  %v3379 = vpop.f32.mrb[0].mxu0
  %v3380 = vpop.f32.mrb[0].mxu0
  %3381 = vdwg.mxu0
  %3382 = vst.msk [vmem:[#allocation2] sm:$0xff] %vm172, %v3353
  %3383 = vst.msk [vmem:[#allocation2 + $0x8] sm:$0xff] %vm172, %v3356
  %3384 = vst.msk [vmem:[#allocation2 + $0x10] sm:$0xff] %vm172, %v3361
  %3385 = vst.msk [vmem:[#allocation2 + $0x18] sm:$0xff] %vm172, %v3364
  %3386 = vst.msk [vmem:[#allocation2 + $0x20] sm:$0xff] %vm172, %v3369
  %3387 = vst.msk [vmem:[#allocation2 + $0x28] sm:$0xff] %vm172, %v3372
  %3388 = vst.msk [vmem:[#allocation2 + $0x30] sm:$0xff] %vm172, %v3377
  %s3389 = scalar_lea.vmem %s15, 8
  %v3390 = vld [vmem:[%s3389] sm:$0xf]
  %v3391 = vld [vmem:[%s3389 + $0x4] sm:$0x7]
  %v3394 = vunpack.c.l.b16 %v3390
  %v3395 = vunpack.c.l.b16 %v3391
  %v3396 = vpack.c.b16 %v3395, %v3394
  %v3398 = vsel %vm1547, %v3396, 0
  %3400 = vmatprep.subr.bf16.mxu0 0
  %3401 = vmatpush1.bf16.msra.mxu0 %v3398
  %3402 = vmatprep.subr.bf16.mxu0 0
  %3403 = vmatpush1.bf16.msra.mxu0 0
  %3404 = vmatprep.subr.bf16.mxu0 0
  %3405 = vmatpush1.bf16.msra.mxu0 0
  %3406 = vmatprep.subr.bf16.mxu0 0
  %3407 = vmatpush1.bf16.msra.mxu0 0
  %3408 = vmatprep.subr.bf16.mxu0 0
  %3409 = vmatpush1.bf16.msra.mxu0 0
  %3410 = vmatprep.subr.bf16.mxu0 0
  %3411 = vmatpush1.bf16.msra.mxu0 0
  %3412 = vmatprep.subr.bf16.mxu0 0
  %3413 = vmatpush1.bf16.msra.mxu0 0
  %3414 = vmatprep.subr.bf16.mxu0 0
  %3415 = vmatpush1.bf16.msra.mxu0 0
  %3416 = vmatprep.subr.bf16.mxu0 0
  %3417 = vmatpush1.bf16.msra.mxu0 0
  %3418 = vmatprep.subr.bf16.mxu0 0
  %3419 = vmatpush1.bf16.msra.mxu0 0
  %3420 = vmatprep.subr.bf16.mxu0 0
  %3421 = vmatpush1.bf16.msra.mxu0 0
  %3422 = vmatprep.subr.bf16.mxu0 0
  %3423 = vmatpush1.bf16.msra.mxu0 0
  %3424 = vmatprep.subr.bf16.mxu0 0
  %3425 = vmatpush1.bf16.msra.mxu0 0
  %3426 = vmatprep.subr.bf16.mxu0 0
  %3427 = vmatpush1.bf16.msra.mxu0 0
  %3428 = vmatprep.subr.bf16.mxu0 0
  %3429 = vmatpush1.bf16.msra.mxu0 0
  %3430 = vmatprep.subr.bf16.mxu0 0
  %3431 = vmatpush1.bf16.msra.mxu0 0
  %3432 = vmatprep.mubr.bf16.mxu0 0
  %3433 = vmatmul.mubr.bf16.gmra.mrb[0].mxu0 %v3304
  %v3434 = vpop.f32.mrb[0].mxu0
  %v3435 = vadd.f32 0.0, %v3434
  %v3436 = vpop.f32.mrb[0].mxu0
  %v3437 = vpop.f32.mrb[0].mxu0
  %v3438 = vadd.f32 0.0, %v3437
  %v3439 = vpop.f32.mrb[0].mxu0
  %3440 = vmatprep.mubr.bf16.mxu0 0
  %3441 = vmatmul.mubr.bf16.gmra.mrb[0].mxu0 %v3307
  %v3442 = vpop.f32.mrb[0].mxu0
  %v3443 = vadd.f32 0.0, %v3442
  %v3444 = vpop.f32.mrb[0].mxu0
  %v3445 = vpop.f32.mrb[0].mxu0
  %v3446 = vadd.f32 0.0, %v3445
  %v3447 = vpop.f32.mrb[0].mxu0
  %3448 = vmatprep.mubr.bf16.mxu0 0
  %3449 = vmatmul.mubr.bf16.gmra.mrb[0].mxu0 %v3310
  %v3450 = vpop.f32.mrb[0].mxu0
  %v3451 = vadd.f32 0.0, %v3450
  %v3452 = vpop.f32.mrb[0].mxu0
  %v3453 = vpop.f32.mrb[0].mxu0
  %v3454 = vadd.f32 0.0, %v3453
  %v3455 = vpop.f32.mrb[0].mxu0
  %3456 = vmatprep.mubr.bf16.mxu0 0
  %3457 = vmatmul.mubr.bf16.gmra.mrb[0].mxu0 %v3313
  %v3458 = vpop.f32.mrb[0].mxu0
  %v3459 = vadd.f32 0.0, %v3458
  %v3460 = vpop.f32.mrb[0].mxu0
  %v3461 = vpop.f32.mrb[0].mxu0
  %v3462 = vpop.f32.mrb[0].mxu0
  %3463 = vdwg.mxu0
  %3464 = vst.msk [vmem:[#allocation2 + $0x38] sm:$0xff] %vm172, %v3435
  %3465 = vst.msk [vmem:[#allocation2 + $0x40] sm:$0xff] %vm172, %v3438
  %3466 = vst.msk [vmem:[#allocation2 + $0x48] sm:$0xff] %vm172, %v3443
  %3467 = vst.msk [vmem:[#allocation2 + $0x50] sm:$0xff] %vm172, %v3446
  %3468 = vst.msk [vmem:[#allocation2 + $0x58] sm:$0xff] %vm172, %v3451
  %3469 = vst.msk [vmem:[#allocation2 + $0x60] sm:$0xff] %vm172, %v3454
  %3470 = vst.msk [vmem:[#allocation2 + $0x68] sm:$0xff] %vm172, %v3459
  %s3471 = scalar_lea.vmem %s15, 16
  %v3472 = vld [vmem:[%s3471] sm:$0xf]
  %v3473 = vld [vmem:[%s3471 + $0x4] sm:$0x7]
  %v3476 = vunpack.c.l.b16 %v3472
  %v3477 = vunpack.c.l.b16 %v3473
  %v3478 = vpack.c.b16 %v3477, %v3476
  %v3480 = vsel %vm1547, %v3478, 0
  %3482 = vmatprep.subr.bf16.mxu0 0
  %3483 = vmatpush1.bf16.msra.mxu0 %v3480
  %3484 = vmatprep.subr.bf16.mxu0 0
  %3485 = vmatpush1.bf16.msra.mxu0 0
  %3486 = vmatprep.subr.bf16.mxu0 0
  %3487 = vmatpush1.bf16.msra.mxu0 0
  %3488 = vmatprep.subr.bf16.mxu0 0
  %3489 = vmatpush1.bf16.msra.mxu0 0
  %3490 = vmatprep.subr.bf16.mxu0 0
  %3491 = vmatpush1.bf16.msra.mxu0 0
  %3492 = vmatprep.subr.bf16.mxu0 0
  %3493 = vmatpush1.bf16.msra.mxu0 0
  %3494 = vmatprep.subr.bf16.mxu0 0
  %3495 = vmatpush1.bf16.msra.mxu0 0
  %3496 = vmatprep.subr.bf16.mxu0 0
  %3497 = vmatpush1.bf16.msra.mxu0 0
  %3498 = vmatprep.subr.bf16.mxu0 0
  %3499 = vmatpush1.bf16.msra.mxu0 0
  %3500 = vmatprep.subr.bf16.mxu0 0
  %3501 = vmatpush1.bf16.msra.mxu0 0
  %3502 = vmatprep.subr.bf16.mxu0 0
  %3503 = vmatpush1.bf16.msra.mxu0 0
  %3504 = vmatprep.subr.bf16.mxu0 0
  %3505 = vmatpush1.bf16.msra.mxu0 0
  %3506 = vmatprep.subr.bf16.mxu0 0
  %3507 = vmatpush1.bf16.msra.mxu0 0
  %3508 = vmatprep.subr.bf16.mxu0 0
  %3509 = vmatpush1.bf16.msra.mxu0 0
  %3510 = vmatprep.subr.bf16.mxu0 0
  %3511 = vmatpush1.bf16.msra.mxu0 0
  %3512 = vmatprep.subr.bf16.mxu0 0
  %3513 = vmatpush1.bf16.msra.mxu0 0
  %3514 = vmatprep.mubr.bf16.mxu0 0
  %3515 = vmatmul.mubr.bf16.gmra.mrb[0].mxu0 %v3304
  %v3516 = vpop.f32.mrb[0].mxu0
  %v3517 = vadd.f32 0.0, %v3516
  %v3518 = vpop.f32.mrb[0].mxu0
  %v3519 = vpop.f32.mrb[0].mxu0
  %v3520 = vadd.f32 0.0, %v3519
  %v3521 = vpop.f32.mrb[0].mxu0
  %3522 = vmatprep.mubr.bf16.mxu0 0
  %3523 = vmatmul.mubr.bf16.gmra.mrb[0].mxu0 %v3307
  %v3524 = vpop.f32.mrb[0].mxu0
  %v3525 = vadd.f32 0.0, %v3524
  %v3526 = vpop.f32.mrb[0].mxu0
  %v3527 = vpop.f32.mrb[0].mxu0
  %v3528 = vadd.f32 0.0, %v3527
  %v3529 = vpop.f32.mrb[0].mxu0
  %3530 = vmatprep.mubr.bf16.mxu0 0
  %3531 = vmatmul.mubr.bf16.gmra.mrb[0].mxu0 %v3310
  %v3532 = vpop.f32.mrb[0].mxu0
  %v3533 = vadd.f32 0.0, %v3532
  %v3534 = vpop.f32.mrb[0].mxu0
  %v3535 = vpop.f32.mrb[0].mxu0
  %v3536 = vadd.f32 0.0, %v3535
  %v3537 = vpop.f32.mrb[0].mxu0
  %3538 = vmatprep.mubr.bf16.mxu0 0
  %3539 = vmatmul.mubr.bf16.gmra.mrb[0].mxu0 %v3313
  %v3540 = vpop.f32.mrb[0].mxu0
  %v3541 = vadd.f32 0.0, %v3540
  %v3542 = vpop.f32.mrb[0].mxu0
  %v3543 = vpop.f32.mrb[0].mxu0
  %v3544 = vpop.f32.mrb[0].mxu0
  %3545 = vdwg.mxu0
  %3546 = vst.msk [vmem:[#allocation2 + $0x70] sm:$0xff] %vm172, %v3517
  %3547 = vst.msk [vmem:[#allocation2 + $0x78] sm:$0xff] %vm172, %v3520
  %3548 = vst.msk [vmem:[#allocation2 + $0x80] sm:$0xff] %vm172, %v3525
  %3549 = vst.msk [vmem:[#allocation2 + $0x88] sm:$0xff] %vm172, %v3528
  %3550 = vst.msk [vmem:[#allocation2 + $0x90] sm:$0xff] %vm172, %v3533
  %3551 = vst.msk [vmem:[#allocation2 + $0x98] sm:$0xff] %vm172, %v3536
  %3552 = vst.msk [vmem:[#allocation2 + $0xa0] sm:$0xff] %vm172, %v3541
  %v3553 = vld [vmem:[#allocation2] sm:$0xff]
  %v3554 = vld [vmem:[#allocation2 + $0x8] sm:$0xff]
  %v3555 = vld [vmem:[#allocation2 + $0x10] sm:$0xff]
  %v3556 = vld [vmem:[#allocation2 + $0x18] sm:$0xff]
  %v3557 = vld [vmem:[#allocation2 + $0x20] sm:$0xff]
  %v3558 = vld [vmem:[#allocation2 + $0x28] sm:$0xff]
  %v3559 = vld [vmem:[#allocation2 + $0x30] sm:$0xff]
  %v3560 = vld [vmem:[#allocation2 + $0x38] sm:$0xff]
  %v3561 = vld [vmem:[#allocation2 + $0x40] sm:$0xff]
  %v3562 = vld [vmem:[#allocation2 + $0x48] sm:$0xff]
  %v3563 = vld [vmem:[#allocation2 + $0x50] sm:$0xff]
  %v3564 = vld [vmem:[#allocation2 + $0x58] sm:$0xff]
  %v3565 = vld [vmem:[#allocation2 + $0x60] sm:$0xff]
  %v3566 = vld [vmem:[#allocation2 + $0x68] sm:$0xff]
  %v3567 = vld [vmem:[#allocation2 + $0x70] sm:$0xff]
  %v3568 = vld [vmem:[#allocation2 + $0x78] sm:$0xff]
  %v3569 = vld [vmem:[#allocation2 + $0x80] sm:$0xff]
  %v3570 = vld [vmem:[#allocation2 + $0x88] sm:$0xff]
  %v3571 = vld [vmem:[#allocation2 + $0x90] sm:$0xff]
  %v3572 = vld [vmem:[#allocation2 + $0x98] sm:$0xff]
  %v3573 = vld [vmem:[#allocation2 + $0xa0] sm:$0xff]
  %v3574 = vpack.c.bf16 %v3554, %v3553
  %v3575 = vpack.c.bf16 %v3556, %v3555
  %v3576 = vpack.c.bf16 %v3558, %v3557
  %v3577 = vpack.c.bf16 %v3560, %v3559
  %v3578 = vpack.c.bf16 %v3562, %v3561
  %v3579 = vpack.c.bf16 %v3564, %v3563
  %v3580 = vpack.c.bf16 %v3566, %v3565
  %v3581 = vpack.c.bf16 %v3568, %v3567
  %v3582 = vpack.c.bf16 %v3570, %v3569
  %v3583 = vpack.c.bf16 %v3572, %v3571
  %v3584 = vpack.c.bf16 %v3573, %v3573
  %v3585 = vld [vmem:[%s14] sm:$0xff]
  %v3586 = vld [vmem:[%s14 + $0x8] sm:$0xff]
  %v3587 = vld [vmem:[%s14 + $0x10] sm:$0xff]
  %v3588 = vld [vmem:[%s14 + $0x18] sm:$0xff]
  %v3589 = vld [vmem:[%s14 + $0x20] sm:$0xff]
  %v3590 = vld [vmem:[%s14 + $0x28] sm:$0xff]
  %v3591 = vld [vmem:[%s14 + $0x30] sm:$0xff]
  %v3592 = vld [vmem:[%s14 + $0x38] sm:$0xff]
  %v3593 = vld [vmem:[%s14 + $0x40] sm:$0xff]
  %v3594 = vld [vmem:[%s14 + $0x48] sm:$0xff]
  %v3595 = vld [vmem:[%s14 + $0x50] sm:$0xff]
  %v3596 = vld [vmem:[%s14 + $0x58] sm:$0xff]
  %v3597 = vld [vmem:[%s14 + $0x60] sm:$0xff]
  %v3598 = vld [vmem:[%s14 + $0x68] sm:$0xff]
  %v3599 = vld [vmem:[%s14 + $0x70] sm:$0xff]
  %v3600 = vld [vmem:[%s14 + $0x78] sm:$0xff]
  %v3601 = vld [vmem:[%s14 + $0x80] sm:$0xff]
  %v3602 = vld [vmem:[%s14 + $0x88] sm:$0xff]
  %v3603 = vld [vmem:[%s14 + $0x90] sm:$0xff]
  %v3604 = vld [vmem:[%s14 + $0x98] sm:$0xff]
  %v3605 = vld [vmem:[%s14 + $0xa0] sm:$0xff]
  %v3606 = vld [vmem:[%s14 + $0xa8] sm:$0xff]
  %v3607 = vld [vmem:[%s14 + $0xb0] sm:$0xff]
  %v3608 = vld [vmem:[%s14 + $0xb8] sm:$0xff]
  %v3609 = vld [vmem:[%s14 + $0xc0] sm:$0xff]
  %v3610 = vld [vmem:[%s14 + $0xc8] sm:$0xff]
  %v3611 = vld [vmem:[%s14 + $0xd0] sm:$0xff]
  %v3612 = vld [vmem:[%s14 + $0xd8] sm:$0xff]
  %v3613 = vld [vmem:[%s16] sm:$0xff]
  %v3614 = vld [vmem:[%s16 + $0x8] sm:$0xff]
  %v3615 = vld [vmem:[%s16 + $0x10] sm:$0xff]
  %v3616 = vld [vmem:[%s16 + $0x18] sm:$0xff]
  %v3617 = vld [vmem:[%s16 + $0x20] sm:$0xff]
  %v3618 = vld [vmem:[%s16 + $0x28] sm:$0xff]
  %v3619 = vld [vmem:[%s16 + $0x30] sm:$0xff]
  %v3620 = vld [vmem:[%s16 + $0x38] sm:$0xff]
  %v3621 = vld [vmem:[%s16 + $0x40] sm:$0xff]
  %v3622 = vld [vmem:[%s16 + $0x48] sm:$0xff]
  %v3623 = vld [vmem:[%s16 + $0x50] sm:$0xff]
  %v3624 = vld [vmem:[%s16 + $0x58] sm:$0xff]
  %v3625 = vld [vmem:[%s16 + $0x60] sm:$0xff]
  %v3626 = vld [vmem:[%s16 + $0x68] sm:$0xff]
  %v3627 = vld [vmem:[%s16 + $0x70] sm:$0xff]
  %v3628 = vld [vmem:[%s16 + $0x78] sm:$0xff]
  %v3629 = vld [vmem:[%s16 + $0x80] sm:$0xff]
  %v3630 = vld [vmem:[%s16 + $0x88] sm:$0xff]
  %v3631 = vld [vmem:[%s16 + $0x90] sm:$0xff]
  %v3632 = vld [vmem:[%s16 + $0x98] sm:$0xff]
  %v3633 = vld [vmem:[%s16 + $0xa0] sm:$0xff]
  %v3634 = vld [vmem:[%s16 + $0xa8] sm:$0xff]
  %v3635 = vld [vmem:[%s16 + $0xb0] sm:$0xff]
  %v3636 = vld [vmem:[%s16 + $0xb8] sm:$0xff]
  %v3637 = vld [vmem:[%s16 + $0xc0] sm:$0xff]
  %v3638 = vld [vmem:[%s16 + $0xc8] sm:$0xff]
  %v3639 = vld [vmem:[%s16 + $0xd0] sm:$0xff]
  %v3640 = vld [vmem:[%s16 + $0xd8] sm:$0xff]
  %3642 = vset.pattern.permute.xlu0 0
  %3643 = vperm.xlu0 %3642, %v3613
  %v3644 = vpop.permute.xlu0 %3643
  %3647 = vset.pattern.permute.xlu0 0
  %3648 = vperm.xlu0 %3647, %v3614
  %v3649 = vpop.permute.xlu0 %3648
  %3652 = vset.pattern.permute.xlu0 0
  %3653 = vperm.xlu0 %3652, %v3615
  %v3654 = vpop.permute.xlu0 %3653
  %3657 = vset.pattern.permute.xlu0 0
  %3658 = vperm.xlu0 %3657, %v3616
  %v3659 = vpop.permute.xlu0 %3658
  %3662 = vset.pattern.permute.xlu0 0
  %3663 = vperm.xlu0 %3662, %v3617
  %v3664 = vpop.permute.xlu0 %3663
  %3667 = vset.pattern.permute.xlu0 0
  %3668 = vperm.xlu0 %3667, %v3618
  %v3669 = vpop.permute.xlu0 %3668
  %3672 = vset.pattern.permute.xlu0 0
  %3673 = vperm.xlu0 %3672, %v3619
  %v3674 = vpop.permute.xlu0 %3673
  %3677 = vset.pattern.permute.xlu0 0
  %3678 = vperm.xlu0 %3677, %v3620
  %v3679 = vpop.permute.xlu0 %3678
  %3682 = vset.pattern.permute.xlu0 0
  %3683 = vperm.xlu0 %3682, %v3621
  %v3684 = vpop.permute.xlu0 %3683
  %3687 = vset.pattern.permute.xlu0 0
  %3688 = vperm.xlu0 %3687, %v3622
  %v3689 = vpop.permute.xlu0 %3688
  %3692 = vset.pattern.permute.xlu0 0
  %3693 = vperm.xlu0 %3692, %v3623
  %v3694 = vpop.permute.xlu0 %3693
  %3697 = vset.pattern.permute.xlu0 0
  %3698 = vperm.xlu0 %3697, %v3624
  %v3699 = vpop.permute.xlu0 %3698
  %3702 = vset.pattern.permute.xlu0 0
  %3703 = vperm.xlu0 %3702, %v3625
  %v3704 = vpop.permute.xlu0 %3703
  %3707 = vset.pattern.permute.xlu0 0
  %3708 = vperm.xlu0 %3707, %v3626
  %v3709 = vpop.permute.xlu0 %3708
  %3712 = vset.pattern.permute.xlu0 0
  %3713 = vperm.xlu0 %3712, %v3627
  %v3714 = vpop.permute.xlu0 %3713
  %3717 = vset.pattern.permute.xlu0 0
  %3718 = vperm.xlu0 %3717, %v3628
  %v3719 = vpop.permute.xlu0 %3718
  %3722 = vset.pattern.permute.xlu0 0
  %3723 = vperm.xlu0 %3722, %v3629
  %v3724 = vpop.permute.xlu0 %3723
  %3727 = vset.pattern.permute.xlu0 0
  %3728 = vperm.xlu0 %3727, %v3630
  %v3729 = vpop.permute.xlu0 %3728
  %3732 = vset.pattern.permute.xlu0 0
  %3733 = vperm.xlu0 %3732, %v3631
  %v3734 = vpop.permute.xlu0 %3733
  %3737 = vset.pattern.permute.xlu0 0
  %3738 = vperm.xlu0 %3737, %v3632
  %v3739 = vpop.permute.xlu0 %3738
  %3742 = vset.pattern.permute.xlu0 0
  %3743 = vperm.xlu0 %3742, %v3633
  %v3744 = vpop.permute.xlu0 %3743
  %3747 = vset.pattern.permute.xlu0 0
  %3748 = vperm.xlu0 %3747, %v3634
  %v3749 = vpop.permute.xlu0 %3748
  %3752 = vset.pattern.permute.xlu0 0
  %3753 = vperm.xlu0 %3752, %v3635
  %v3754 = vpop.permute.xlu0 %3753
  %3757 = vset.pattern.permute.xlu0 0
  %3758 = vperm.xlu0 %3757, %v3636
  %v3759 = vpop.permute.xlu0 %3758
  %3762 = vset.pattern.permute.xlu0 0
  %3763 = vperm.xlu0 %3762, %v3637
  %v3764 = vpop.permute.xlu0 %3763
  %3767 = vset.pattern.permute.xlu0 0
  %3768 = vperm.xlu0 %3767, %v3638
  %v3769 = vpop.permute.xlu0 %3768
  %3772 = vset.pattern.permute.xlu0 0
  %3773 = vperm.xlu0 %3772, %v3639
  %v3774 = vpop.permute.xlu0 %3773
  %3777 = vset.pattern.permute.xlu0 0
  %3778 = vperm.xlu0 %3777, %v3640
  %v3779 = vpop.permute.xlu0 %3778
  %v3809 = vunpack.c.l.b16 %v3585
  %v3810 = vunpack.c.h.b16 %v3585
  %v3811 = vunpack.c.l.b16 %v3586
  %v3812 = vunpack.c.h.b16 %v3586
  %v3813 = vunpack.c.l.b16 %v3587
  %v3814 = vunpack.c.h.b16 %v3587
  %v3815 = vunpack.c.l.b16 %v3588
  %v3816 = vunpack.c.h.b16 %v3588
  %v3817 = vunpack.c.l.b16 %v3589
  %v3818 = vunpack.c.h.b16 %v3589
  %v3819 = vunpack.c.l.b16 %v3590
  %v3820 = vunpack.c.h.b16 %v3590
  %v3821 = vunpack.c.l.b16 %v3591
  %v3822 = vunpack.c.h.b16 %v3591
  %v3823 = vunpack.c.l.b16 %v3592
  %v3824 = vunpack.c.h.b16 %v3592
  %v3825 = vunpack.c.l.b16 %v3593
  %v3826 = vunpack.c.h.b16 %v3593
  %v3827 = vunpack.c.l.b16 %v3594
  %v3828 = vunpack.c.h.b16 %v3594
  %v3829 = vunpack.c.l.b16 %v3595
  %v3830 = vunpack.c.h.b16 %v3595
  %v3831 = vunpack.c.l.b16 %v3596
  %v3832 = vunpack.c.h.b16 %v3596
  %v3833 = vunpack.c.l.b16 %v3597
  %v3834 = vunpack.c.h.b16 %v3597
  %v3835 = vunpack.c.l.b16 %v3598
  %v3836 = vunpack.c.h.b16 %v3598
  %v3837 = vunpack.c.l.b16 %v3599
  %v3838 = vunpack.c.h.b16 %v3599
  %v3839 = vunpack.c.l.b16 %v3600
  %v3840 = vunpack.c.h.b16 %v3600
  %v3841 = vunpack.c.l.b16 %v3601
  %v3842 = vunpack.c.h.b16 %v3601
  %v3843 = vunpack.c.l.b16 %v3602
  %v3844 = vunpack.c.h.b16 %v3602
  %v3845 = vunpack.c.l.b16 %v3603
  %v3846 = vunpack.c.h.b16 %v3603
  %v3847 = vunpack.c.l.b16 %v3604
  %v3848 = vunpack.c.h.b16 %v3604
  %v3849 = vunpack.c.l.b16 %v3605
  %v3850 = vunpack.c.h.b16 %v3605
  %v3851 = vunpack.c.l.b16 %v3606
  %v3852 = vunpack.c.h.b16 %v3606
  %v3853 = vunpack.c.l.b16 %v3607
  %v3854 = vunpack.c.h.b16 %v3607
  %v3855 = vunpack.c.l.b16 %v3608
  %v3856 = vunpack.c.h.b16 %v3608
  %v3857 = vunpack.c.l.b16 %v3609
  %v3858 = vunpack.c.h.b16 %v3609
  %v3859 = vunpack.c.l.b16 %v3610
  %v3860 = vunpack.c.h.b16 %v3610
  %v3861 = vunpack.c.l.b16 %v3611
  %v3862 = vunpack.c.h.b16 %v3611
  %v3863 = vunpack.c.l.b16 %v3612
  %v3864 = vunpack.c.h.b16 %v3612
  %v3865 = vpack.c.b16 %v3811, %v3809
  %v3866 = vpack.c.b16 %v3812, %v3810
  %v3867 = vpack.c.b16 %v3815, %v3813
  %v3868 = vpack.c.b16 %v3816, %v3814
  %v3869 = vpack.c.b16 %v3819, %v3817
  %v3870 = vpack.c.b16 %v3820, %v3818
  %v3871 = vpack.c.b16 %v3823, %v3821
  %v3872 = vpack.c.b16 %v3824, %v3822
  %v3873 = vpack.c.b16 %v3827, %v3825
  %v3874 = vpack.c.b16 %v3828, %v3826
  %v3875 = vpack.c.b16 %v3831, %v3829
  %v3876 = vpack.c.b16 %v3832, %v3830
  %v3877 = vpack.c.b16 %v3835, %v3833
  %v3878 = vpack.c.b16 %v3836, %v3834
  %v3879 = vpack.c.b16 %v3839, %v3837
  %v3880 = vpack.c.b16 %v3840, %v3838
  %v3881 = vpack.c.b16 %v3843, %v3841
  %v3882 = vpack.c.b16 %v3844, %v3842
  %v3883 = vpack.c.b16 %v3847, %v3845
  %v3884 = vpack.c.b16 %v3848, %v3846
  %v3885 = vpack.c.b16 %v3851, %v3849
  %v3886 = vpack.c.b16 %v3852, %v3850
  %v3887 = vpack.c.b16 %v3855, %v3853
  %v3888 = vpack.c.b16 %v3856, %v3854
  %v3889 = vpack.c.b16 %v3859, %v3857
  %v3890 = vpack.c.b16 %v3860, %v3858
  %v3891 = vpack.c.b16 %v3863, %v3861
  %v3892 = vpack.c.b16 %v3864, %v3862
  %vm3907 = vcmask 326656
  %v3909 = vsel %vm3907, %v3866, 0
  %v3912 = vsel %vm3907, %v3868, 0
  %v3915 = vsel %vm3907, %v3870, 0
  %v3918 = vsel %vm3907, %v3872, 0
  %v3921 = vsel %vm3907, %v3874, 0
  %v3924 = vsel %vm3907, %v3876, 0
  %v3927 = vsel %vm3907, %v3878, 0
  %v3930 = vsel %vm3907, %v3880, 0
  %v3933 = vsel %vm3907, %v3882, 0
  %v3936 = vsel %vm3907, %v3884, 0
  %v3939 = vsel %vm3907, %v3886, 0
  %v3942 = vsel %vm3907, %v3888, 0
  %v3945 = vsel %vm3907, %v3890, 0
  %v3948 = vsel %vm3907, %v3892, 0
  %v3951 = vsel %vm119, %v3584, 0
  %3953 = vmatprep.subr.bf16.mxu0 0
  %3954 = vmatpush1.bf16.msra.mxu0 %v3574
  %3955 = vmatprep.subr.bf16.mxu0 0
  %3956 = vmatpush1.bf16.msra.mxu0 %v3575
  %3957 = vmatprep.subr.bf16.mxu0 0
  %3958 = vmatpush1.bf16.msra.mxu0 %v3576
  %3959 = vmatprep.subr.bf16.mxu0 0
  %3960 = vmatpush1.bf16.msra.mxu0 %v3577
  %3961 = vmatprep.subr.bf16.mxu0 0
  %3962 = vmatpush1.bf16.msra.mxu0 %v3578
  %3963 = vmatprep.subr.bf16.mxu0 0
  %3964 = vmatpush1.bf16.msra.mxu0 %v3579
  %3965 = vmatprep.subr.bf16.mxu0 0
  %3966 = vmatpush1.bf16.msra.mxu0 %v3580
  %3967 = vmatprep.subr.bf16.mxu0 0
  %3968 = vmatpush1.bf16.msra.mxu0 %v3581
  %3969 = vmatprep.subr.bf16.mxu0 0
  %3970 = vmatpush1.bf16.msra.mxu0 %v3582
  %3971 = vmatprep.subr.bf16.mxu0 0
  %3972 = vmatpush1.bf16.msra.mxu0 %v3583
  %3973 = vmatprep.subr.bf16.mxu0 0
  %3974 = vmatpush1.bf16.msra.mxu0 %v3951
  %3975 = vmatprep.subr.bf16.mxu0 0
  %3976 = vmatpush1.bf16.msra.mxu0 0
  %3977 = vmatprep.subr.bf16.mxu0 0
  %3978 = vmatpush1.bf16.msra.mxu0 0
  %3979 = vmatprep.subr.bf16.mxu0 0
  %3980 = vmatpush1.bf16.msra.mxu0 0
  %3981 = vmatprep.subr.bf16.mxu0 0
  %3982 = vmatpush1.bf16.msra.mxu0 0
  %3983 = vmatprep.subr.bf16.mxu0 0
  %3984 = vmatpush1.bf16.msra.mxu0 0
  %3985 = vmatprep.mubr.bf16.mxu0 %v3909
  %3986 = vmatmul.mubr.bf16.gmra.mrb[0].mxu0 %v3865
  %v3987 = vpop.f32.mrb[0].mxu0
  %v3988 = vadd.f32 %v3644, %v3987
  %v3989 = vpop.f32.mrb[0].mxu0
  %v3990 = vpop.f32.mrb[0].mxu0
  %v3991 = vadd.f32 %v3649, %v3990
  %v3992 = vpop.f32.mrb[0].mxu0
  %3993 = vmatprep.mubr.bf16.mxu0 %v3912
  %3994 = vmatmul.mubr.bf16.gmra.mrb[0].mxu0 %v3867
  %v3995 = vpop.f32.mrb[0].mxu0
  %v3996 = vadd.f32 %v3654, %v3995
  %v3997 = vpop.f32.mrb[0].mxu0
  %v3998 = vpop.f32.mrb[0].mxu0
  %v3999 = vadd.f32 %v3659, %v3998
  %v4000 = vpop.f32.mrb[0].mxu0
  %4001 = vmatprep.mubr.bf16.mxu0 %v3915
  %4002 = vmatmul.mubr.bf16.gmra.mrb[0].mxu0 %v3869
  %v4003 = vpop.f32.mrb[0].mxu0
  %v4004 = vadd.f32 %v3664, %v4003
  %v4005 = vpop.f32.mrb[0].mxu0
  %v4006 = vpop.f32.mrb[0].mxu0
  %v4007 = vadd.f32 %v3669, %v4006
  %v4008 = vpop.f32.mrb[0].mxu0
  %4009 = vmatprep.mubr.bf16.mxu0 %v3918
  %4010 = vmatmul.mubr.bf16.gmra.mrb[0].mxu0 %v3871
  %v4011 = vpop.f32.mrb[0].mxu0
  %v4012 = vadd.f32 %v3674, %v4011
  %v4013 = vpop.f32.mrb[0].mxu0
  %v4014 = vpop.f32.mrb[0].mxu0
  %v4015 = vadd.f32 %v3679, %v4014
  %v4016 = vpop.f32.mrb[0].mxu0
  %4017 = vmatprep.mubr.bf16.mxu0 %v3921
  %4018 = vmatmul.mubr.bf16.gmra.mrb[0].mxu0 %v3873
  %v4019 = vpop.f32.mrb[0].mxu0
  %v4020 = vadd.f32 %v3684, %v4019
  %v4021 = vpop.f32.mrb[0].mxu0
  %v4022 = vpop.f32.mrb[0].mxu0
  %v4023 = vadd.f32 %v3689, %v4022
  %v4024 = vpop.f32.mrb[0].mxu0
  %4025 = vmatprep.mubr.bf16.mxu0 %v3924
  %4026 = vmatmul.mubr.bf16.gmra.mrb[0].mxu0 %v3875
  %v4027 = vpop.f32.mrb[0].mxu0
  %v4028 = vadd.f32 %v3694, %v4027
  %v4029 = vpop.f32.mrb[0].mxu0
  %v4030 = vpop.f32.mrb[0].mxu0
  %v4031 = vadd.f32 %v3699, %v4030
  %v4032 = vpop.f32.mrb[0].mxu0
  %4033 = vmatprep.mubr.bf16.mxu0 %v3927
  %4034 = vmatmul.mubr.bf16.gmra.mrb[0].mxu0 %v3877
  %v4035 = vpop.f32.mrb[0].mxu0
  %v4036 = vadd.f32 %v3704, %v4035
  %v4037 = vpop.f32.mrb[0].mxu0
  %v4038 = vpop.f32.mrb[0].mxu0
  %v4039 = vadd.f32 %v3709, %v4038
  %v4040 = vpop.f32.mrb[0].mxu0
  %4041 = vmatprep.mubr.bf16.mxu0 %v3930
  %4042 = vmatmul.mubr.bf16.gmra.mrb[0].mxu0 %v3879
  %v4043 = vpop.f32.mrb[0].mxu0
  %v4044 = vadd.f32 %v3714, %v4043
  %v4045 = vpop.f32.mrb[0].mxu0
  %v4046 = vpop.f32.mrb[0].mxu0
  %v4047 = vadd.f32 %v3719, %v4046
  %v4048 = vpop.f32.mrb[0].mxu0
  %4049 = vmatprep.mubr.bf16.mxu0 %v3933
  %4050 = vmatmul.mubr.bf16.gmra.mrb[0].mxu0 %v3881
  %v4051 = vpop.f32.mrb[0].mxu0
  %v4052 = vadd.f32 %v3724, %v4051
  %v4053 = vpop.f32.mrb[0].mxu0
  %v4054 = vpop.f32.mrb[0].mxu0
  %v4055 = vadd.f32 %v3729, %v4054
  %v4056 = vpop.f32.mrb[0].mxu0
  %4057 = vmatprep.mubr.bf16.mxu0 %v3936
  %4058 = vmatmul.mubr.bf16.gmra.mrb[0].mxu0 %v3883
  %v4059 = vpop.f32.mrb[0].mxu0
  %v4060 = vadd.f32 %v3734, %v4059
  %v4061 = vpop.f32.mrb[0].mxu0
  %v4062 = vpop.f32.mrb[0].mxu0
  %v4063 = vadd.f32 %v3739, %v4062
  %v4064 = vpop.f32.mrb[0].mxu0
  %4065 = vmatprep.mubr.bf16.mxu0 %v3939
  %4066 = vmatmul.mubr.bf16.gmra.mrb[0].mxu0 %v3885
  %v4067 = vpop.f32.mrb[0].mxu0
  %v4068 = vadd.f32 %v3744, %v4067
  %v4069 = vpop.f32.mrb[0].mxu0
  %v4070 = vpop.f32.mrb[0].mxu0
  %v4071 = vadd.f32 %v3749, %v4070
  %v4072 = vpop.f32.mrb[0].mxu0
  %4073 = vmatprep.mubr.bf16.mxu0 %v3942
  %4074 = vmatmul.mubr.bf16.gmra.mrb[0].mxu0 %v3887
  %v4075 = vpop.f32.mrb[0].mxu0
  %v4076 = vadd.f32 %v3754, %v4075
  %v4077 = vpop.f32.mrb[0].mxu0
  %v4078 = vpop.f32.mrb[0].mxu0
  %v4079 = vadd.f32 %v3759, %v4078
  %v4080 = vpop.f32.mrb[0].mxu0
  %4081 = vmatprep.mubr.bf16.mxu0 %v3945
  %4082 = vmatmul.mubr.bf16.gmra.mrb[0].mxu0 %v3889
  %v4083 = vpop.f32.mrb[0].mxu0
  %v4084 = vadd.f32 %v3764, %v4083
  %v4085 = vpop.f32.mrb[0].mxu0
  %v4086 = vpop.f32.mrb[0].mxu0
  %v4087 = vadd.f32 %v3769, %v4086
  %v4088 = vpop.f32.mrb[0].mxu0
  %4089 = vmatprep.mubr.bf16.mxu0 %v3948
  %4090 = vmatmul.mubr.bf16.gmra.mrb[0].mxu0 %v3891
  %v4091 = vpop.f32.mrb[0].mxu0
  %v4092 = vadd.f32 %v3774, %v4091
  %v4093 = vpop.f32.mrb[0].mxu0
  %v4094 = vpop.f32.mrb[0].mxu0
  %v4095 = vadd.f32 %v3779, %v4094
  %v4096 = vpop.f32.mrb[0].mxu0
  %4097 = vdwg.mxu0
  %v4098 = vmax.f32 %v3988, 0.0
  %v4099 = vmax.f32 %v3991, 0.0
  %v4100 = vmax.f32 %v3996, 0.0
  %v4101 = vmax.f32 %v3999, 0.0
  %v4102 = vmax.f32 %v4004, 0.0
  %v4103 = vmax.f32 %v4007, 0.0
  %v4104 = vmax.f32 %v4012, 0.0
  %v4105 = vmax.f32 %v4015, 0.0
  %v4106 = vmax.f32 %v4020, 0.0
  %v4107 = vmax.f32 %v4023, 0.0
  %v4108 = vmax.f32 %v4028, 0.0
  %v4109 = vmax.f32 %v4031, 0.0
  %v4110 = vmax.f32 %v4036, 0.0
  %v4111 = vmax.f32 %v4039, 0.0
  %v4112 = vmax.f32 %v4044, 0.0
  %v4113 = vmax.f32 %v4047, 0.0
  %v4114 = vmax.f32 %v4052, 0.0
  %v4115 = vmax.f32 %v4055, 0.0
  %v4116 = vmax.f32 %v4060, 0.0
  %v4117 = vmax.f32 %v4063, 0.0
  %v4118 = vmax.f32 %v4068, 0.0
  %v4119 = vmax.f32 %v4071, 0.0
  %v4120 = vmax.f32 %v4076, 0.0
  %v4121 = vmax.f32 %v4079, 0.0
  %v4122 = vmax.f32 %v4084, 0.0
  %v4123 = vmax.f32 %v4087, 0.0
  %v4124 = vmax.f32 %v4092, 0.0
  %v4125 = vmax.f32 %v4095, 0.0
  %v4126 = vpack.c.bf16 %v4099, %v4098
  %v4127 = vpack.c.bf16 %v4101, %v4100
  %v4128 = vpack.c.bf16 %v4103, %v4102
  %v4129 = vpack.c.bf16 %v4105, %v4104
  %v4130 = vpack.c.bf16 %v4107, %v4106
  %v4131 = vpack.c.bf16 %v4109, %v4108
  %v4132 = vpack.c.bf16 %v4111, %v4110
  %v4133 = vpack.c.bf16 %v4113, %v4112
  %v4134 = vpack.c.bf16 %v4115, %v4114
  %v4135 = vpack.c.bf16 %v4117, %v4116
  %v4136 = vpack.c.bf16 %v4119, %v4118
  %v4137 = vpack.c.bf16 %v4121, %v4120
  %v4138 = vpack.c.bf16 %v4123, %v4122
  %v4139 = vpack.c.bf16 %v4125, %v4124
  %v4140 = vld [vmem:[%s18] sm:$0xf]
  %v4141 = vld [vmem:[%s18 + $0x4] sm:$0xf]
  %v4142 = vld [vmem:[%s18 + $0x8] sm:$0xf]
  %v4143 = vld [vmem:[%s18 + $0xc] sm:$0x3]
  %v4148 = vunpack.c.l.b16 %v4140
  %v4149 = vunpack.c.l.b16 %v4141
  %v4150 = vunpack.c.l.b16 %v4142
  %v4151 = vunpack.c.l.b16 %v4143
  %v4152 = vpack.c.b16 %v4149, %v4148
  %v4153 = vpack.c.b16 %v4151, %v4150
  %v4156 = vsel %vm172, %v4126, 0
  %v4159 = vsel %vm172, %v4127, 0
  %v4162 = vsel %vm172, %v4128, 0
  %v4165 = vsel %vm172, %v4129, 0
  %v4168 = vsel %vm172, %v4130, 0
  %v4171 = vsel %vm172, %v4131, 0
  %v4174 = vsel %vm172, %v4132, 0
  %v4177 = vsel %vm172, %v4133, 0
  %v4180 = vsel %vm172, %v4134, 0
  %v4183 = vsel %vm172, %v4135, 0
  %v4186 = vsel %vm172, %v4136, 0
  %v4189 = vsel %vm172, %v4137, 0
  %v4192 = vsel %vm172, %v4138, 0
  %v4195 = vsel %vm172, %v4139, 0
  %v4198 = vsel %vm666, %v4153, 0
  %4200 = vmatprep.subr.bf16.mxu0 0
  %4201 = vmatpush1.bf16.msra.mxu0 %v4152
  %4202 = vmatprep.subr.bf16.mxu0 0
  %4203 = vmatpush1.bf16.msra.mxu0 %v4198
  %4204 = vmatprep.subr.bf16.mxu0 0
  %4205 = vmatpush1.bf16.msra.mxu0 0
  %4206 = vmatprep.subr.bf16.mxu0 0
  %4207 = vmatpush1.bf16.msra.mxu0 0
  %4208 = vmatprep.subr.bf16.mxu0 0
  %4209 = vmatpush1.bf16.msra.mxu0 0
  %4210 = vmatprep.subr.bf16.mxu0 0
  %4211 = vmatpush1.bf16.msra.mxu0 0
  %4212 = vmatprep.subr.bf16.mxu0 0
  %4213 = vmatpush1.bf16.msra.mxu0 0
  %4214 = vmatprep.subr.bf16.mxu0 0
  %4215 = vmatpush1.bf16.msra.mxu0 0
  %4216 = vmatprep.subr.bf16.mxu0 0
  %4217 = vmatpush1.bf16.msra.mxu0 0
  %4218 = vmatprep.subr.bf16.mxu0 0
  %4219 = vmatpush1.bf16.msra.mxu0 0
  %4220 = vmatprep.subr.bf16.mxu0 0
  %4221 = vmatpush1.bf16.msra.mxu0 0
  %4222 = vmatprep.subr.bf16.mxu0 0
  %4223 = vmatpush1.bf16.msra.mxu0 0
  %4224 = vmatprep.subr.bf16.mxu0 0
  %4225 = vmatpush1.bf16.msra.mxu0 0
  %4226 = vmatprep.subr.bf16.mxu0 0
  %4227 = vmatpush1.bf16.msra.mxu0 0
  %4228 = vmatprep.subr.bf16.mxu0 0
  %4229 = vmatpush1.bf16.msra.mxu0 0
  %4230 = vmatprep.subr.bf16.mxu0 0
  %4231 = vmatpush1.bf16.msra.mxu0 0
  %4232 = vmatprep.mubr.bf16.mxu0 0
  %4233 = vmatmul.mubr.bf16.gmra.mrb[0].mxu0 %v4156
  %v4234 = vpop.f32.mrb[0].mxu0
  %v4235 = vadd.f32 0.0, %v4234
  %v4236 = vpop.f32.mrb[0].mxu0
  %v4237 = vpop.f32.mrb[0].mxu0
  %v4238 = vadd.f32 0.0, %v4237
  %v4239 = vpop.f32.mrb[0].mxu0
  %4240 = vmatprep.mubr.bf16.mxu0 0
  %4241 = vmatmul.mubr.bf16.gmra.mrb[0].mxu0 %v4159
  %v4242 = vpop.f32.mrb[0].mxu0
  %v4243 = vadd.f32 0.0, %v4242
  %v4244 = vpop.f32.mrb[0].mxu0
  %v4245 = vpop.f32.mrb[0].mxu0
  %v4246 = vadd.f32 0.0, %v4245
  %v4247 = vpop.f32.mrb[0].mxu0
  %4248 = vmatprep.mubr.bf16.mxu0 0
  %4249 = vmatmul.mubr.bf16.gmra.mrb[0].mxu0 %v4162
  %v4250 = vpop.f32.mrb[0].mxu0
  %v4251 = vadd.f32 0.0, %v4250
  %v4252 = vpop.f32.mrb[0].mxu0
  %v4253 = vpop.f32.mrb[0].mxu0
  %v4254 = vadd.f32 0.0, %v4253
  %v4255 = vpop.f32.mrb[0].mxu0
  %4256 = vmatprep.mubr.bf16.mxu0 0
  %4257 = vmatmul.mubr.bf16.gmra.mrb[0].mxu0 %v4165
  %v4258 = vpop.f32.mrb[0].mxu0
  %v4259 = vadd.f32 0.0, %v4258
  %v4260 = vpop.f32.mrb[0].mxu0
  %v4261 = vpop.f32.mrb[0].mxu0
  %v4262 = vadd.f32 0.0, %v4261
  %v4263 = vpop.f32.mrb[0].mxu0
  %4264 = vmatprep.mubr.bf16.mxu0 0
  %4265 = vmatmul.mubr.bf16.gmra.mrb[0].mxu0 %v4168
  %v4266 = vpop.f32.mrb[0].mxu0
  %v4267 = vadd.f32 0.0, %v4266
  %v4268 = vpop.f32.mrb[0].mxu0
  %v4269 = vpop.f32.mrb[0].mxu0
  %v4270 = vadd.f32 0.0, %v4269
  %v4271 = vpop.f32.mrb[0].mxu0
  %4272 = vmatprep.mubr.bf16.mxu0 0
  %4273 = vmatmul.mubr.bf16.gmra.mrb[0].mxu0 %v4171
  %v4274 = vpop.f32.mrb[0].mxu0
  %v4275 = vadd.f32 0.0, %v4274
  %v4276 = vpop.f32.mrb[0].mxu0
  %v4277 = vpop.f32.mrb[0].mxu0
  %v4278 = vadd.f32 0.0, %v4277
  %v4279 = vpop.f32.mrb[0].mxu0
  %4280 = vmatprep.mubr.bf16.mxu0 0
  %4281 = vmatmul.mubr.bf16.gmra.mrb[0].mxu0 %v4174
  %v4282 = vpop.f32.mrb[0].mxu0
  %v4283 = vadd.f32 0.0, %v4282
  %v4284 = vpop.f32.mrb[0].mxu0
  %v4285 = vpop.f32.mrb[0].mxu0
  %v4286 = vadd.f32 0.0, %v4285
  %v4287 = vpop.f32.mrb[0].mxu0
  %4288 = vmatprep.mubr.bf16.mxu0 0
  %4289 = vmatmul.mubr.bf16.gmra.mrb[0].mxu0 %v4177
  %v4290 = vpop.f32.mrb[0].mxu0
  %v4291 = vadd.f32 0.0, %v4290
  %v4292 = vpop.f32.mrb[0].mxu0
  %v4293 = vpop.f32.mrb[0].mxu0
  %v4294 = vadd.f32 0.0, %v4293
  %v4295 = vpop.f32.mrb[0].mxu0
  %4296 = vmatprep.mubr.bf16.mxu0 0
  %4297 = vmatmul.mubr.bf16.gmra.mrb[0].mxu0 %v4180
  %v4298 = vpop.f32.mrb[0].mxu0
  %v4299 = vadd.f32 0.0, %v4298
  %v4300 = vpop.f32.mrb[0].mxu0
  %v4301 = vpop.f32.mrb[0].mxu0
  %v4302 = vadd.f32 0.0, %v4301
  %v4303 = vpop.f32.mrb[0].mxu0
  %4304 = vmatprep.mubr.bf16.mxu0 0
  %4305 = vmatmul.mubr.bf16.gmra.mrb[0].mxu0 %v4183
  %v4306 = vpop.f32.mrb[0].mxu0
  %v4307 = vadd.f32 0.0, %v4306
  %v4308 = vpop.f32.mrb[0].mxu0
  %v4309 = vpop.f32.mrb[0].mxu0
  %v4310 = vadd.f32 0.0, %v4309
  %v4311 = vpop.f32.mrb[0].mxu0
  %4312 = vmatprep.mubr.bf16.mxu0 0
  %4313 = vmatmul.mubr.bf16.gmra.mrb[0].mxu0 %v4186
  %v4314 = vpop.f32.mrb[0].mxu0
  %v4315 = vadd.f32 0.0, %v4314
  %v4316 = vpop.f32.mrb[0].mxu0
  %v4317 = vpop.f32.mrb[0].mxu0
  %v4318 = vadd.f32 0.0, %v4317
  %v4319 = vpop.f32.mrb[0].mxu0
  %4320 = vmatprep.mubr.bf16.mxu0 0
  %4321 = vmatmul.mubr.bf16.gmra.mrb[0].mxu0 %v4189
  %v4322 = vpop.f32.mrb[0].mxu0
  %v4323 = vadd.f32 0.0, %v4322
  %v4324 = vpop.f32.mrb[0].mxu0
  %v4325 = vpop.f32.mrb[0].mxu0
  %v4326 = vadd.f32 0.0, %v4325
  %v4327 = vpop.f32.mrb[0].mxu0
  %4328 = vmatprep.mubr.bf16.mxu0 0
  %4329 = vmatmul.mubr.bf16.gmra.mrb[0].mxu0 %v4192
  %v4330 = vpop.f32.mrb[0].mxu0
  %v4331 = vadd.f32 0.0, %v4330
  %v4332 = vpop.f32.mrb[0].mxu0
  %v4333 = vpop.f32.mrb[0].mxu0
  %v4334 = vadd.f32 0.0, %v4333
  %v4335 = vpop.f32.mrb[0].mxu0
  %4336 = vmatprep.mubr.bf16.mxu0 0
  %4337 = vmatmul.mubr.bf16.gmra.mrb[0].mxu0 %v4195
  %v4338 = vpop.f32.mrb[0].mxu0
  %v4339 = vadd.f32 0.0, %v4338
  %v4340 = vpop.f32.mrb[0].mxu0
  %v4341 = vpop.f32.mrb[0].mxu0
  %v4342 = vadd.f32 0.0, %v4341
  %v4343 = vpop.f32.mrb[0].mxu0
  %4344 = vdwg.mxu0
  %4345 = vst.msk [vmem:[#allocation2] sm:$0xff] %vm112, %v4235
  %4346 = vst.msk [vmem:[#allocation2 + $0x8] sm:$0xff] %vm112, %v4238
  %4347 = vst.msk [vmem:[#allocation2 + $0x10] sm:$0xff] %vm112, %v4243
  %4348 = vst.msk [vmem:[#allocation2 + $0x18] sm:$0xff] %vm112, %v4246
  %4349 = vst.msk [vmem:[#allocation2 + $0x20] sm:$0xff] %vm112, %v4251
  %4350 = vst.msk [vmem:[#allocation2 + $0x28] sm:$0xff] %vm112, %v4254
  %4351 = vst.msk [vmem:[#allocation2 + $0x30] sm:$0xff] %vm112, %v4259
  %4352 = vst.msk [vmem:[#allocation2 + $0x38] sm:$0xff] %vm112, %v4262
  %4353 = vst.msk [vmem:[#allocation2 + $0x40] sm:$0xff] %vm112, %v4267
  %4354 = vst.msk [vmem:[#allocation2 + $0x48] sm:$0xff] %vm112, %v4270
  %4355 = vst.msk [vmem:[#allocation2 + $0x50] sm:$0xff] %vm112, %v4275
  %4356 = vst.msk [vmem:[#allocation2 + $0x58] sm:$0xff] %vm112, %v4278
  %4357 = vst.msk [vmem:[#allocation2 + $0x60] sm:$0xff] %vm112, %v4283
  %4358 = vst.msk [vmem:[#allocation2 + $0x68] sm:$0xff] %vm112, %v4286
  %4359 = vst.msk [vmem:[#allocation2 + $0x70] sm:$0xff] %vm112, %v4291
  %4360 = vst.msk [vmem:[#allocation2 + $0x78] sm:$0xff] %vm112, %v4294
  %4361 = vst.msk [vmem:[#allocation2 + $0x80] sm:$0xff] %vm112, %v4299
  %4362 = vst.msk [vmem:[#allocation2 + $0x88] sm:$0xff] %vm112, %v4302
  %4363 = vst.msk [vmem:[#allocation2 + $0x90] sm:$0xff] %vm112, %v4307
  %4364 = vst.msk [vmem:[#allocation2 + $0x98] sm:$0xff] %vm112, %v4310
  %4365 = vst.msk [vmem:[#allocation2 + $0xa0] sm:$0xff] %vm112, %v4315
  %4366 = vst.msk [vmem:[#allocation2 + $0xa8] sm:$0xff] %vm112, %v4318
  %4367 = vst.msk [vmem:[#allocation2 + $0xb0] sm:$0xff] %vm112, %v4323
  %4368 = vst.msk [vmem:[#allocation2 + $0xb8] sm:$0xff] %vm112, %v4326
  %4369 = vst.msk [vmem:[#allocation2 + $0xc0] sm:$0xff] %vm112, %v4331
  %4370 = vst.msk [vmem:[#allocation2 + $0xc8] sm:$0xff] %vm112, %v4334
  %4371 = vst.msk [vmem:[#allocation2 + $0xd0] sm:$0xff] %vm112, %v4339
  %4372 = vst.msk [vmem:[#allocation2 + $0xd8] sm:$0xff] %vm112, %v4342
  %s4373 = scalar_lea.vmem %s18, 16
  %v4374 = vld [vmem:[%s4373] sm:$0xf]
  %v4375 = vld [vmem:[%s4373 + $0x4] sm:$0xf]
  %v4376 = vld [vmem:[%s4373 + $0x8] sm:$0xf]
  %v4377 = vld [vmem:[%s4373 + $0xc] sm:$0x3]
  %v4382 = vunpack.c.l.b16 %v4374
  %v4383 = vunpack.c.l.b16 %v4375
  %v4384 = vunpack.c.l.b16 %v4376
  %v4385 = vunpack.c.l.b16 %v4377
  %v4386 = vpack.c.b16 %v4383, %v4382
  %v4387 = vpack.c.b16 %v4385, %v4384
  %v4390 = vsel %vm666, %v4387, 0
  %4392 = vmatprep.subr.bf16.mxu0 0
  %4393 = vmatpush1.bf16.msra.mxu0 %v4386
  %4394 = vmatprep.subr.bf16.mxu0 0
  %4395 = vmatpush1.bf16.msra.mxu0 %v4390
  %4396 = vmatprep.subr.bf16.mxu0 0
  %4397 = vmatpush1.bf16.msra.mxu0 0
  %4398 = vmatprep.subr.bf16.mxu0 0
  %4399 = vmatpush1.bf16.msra.mxu0 0
  %4400 = vmatprep.subr.bf16.mxu0 0
  %4401 = vmatpush1.bf16.msra.mxu0 0
  %4402 = vmatprep.subr.bf16.mxu0 0
  %4403 = vmatpush1.bf16.msra.mxu0 0
  %4404 = vmatprep.subr.bf16.mxu0 0
  %4405 = vmatpush1.bf16.msra.mxu0 0
  %4406 = vmatprep.subr.bf16.mxu0 0
  %4407 = vmatpush1.bf16.msra.mxu0 0
  %4408 = vmatprep.subr.bf16.mxu0 0
  %4409 = vmatpush1.bf16.msra.mxu0 0
  %4410 = vmatprep.subr.bf16.mxu0 0
  %4411 = vmatpush1.bf16.msra.mxu0 0
  %4412 = vmatprep.subr.bf16.mxu0 0
  %4413 = vmatpush1.bf16.msra.mxu0 0
  %4414 = vmatprep.subr.bf16.mxu0 0
  %4415 = vmatpush1.bf16.msra.mxu0 0
  %4416 = vmatprep.subr.bf16.mxu0 0
  %4417 = vmatpush1.bf16.msra.mxu0 0
  %4418 = vmatprep.subr.bf16.mxu0 0
  %4419 = vmatpush1.bf16.msra.mxu0 0
  %4420 = vmatprep.subr.bf16.mxu0 0
  %4421 = vmatpush1.bf16.msra.mxu0 0
  %4422 = vmatprep.subr.bf16.mxu0 0
  %4423 = vmatpush1.bf16.msra.mxu0 0
  %4424 = vmatprep.mubr.bf16.mxu0 0
  %4425 = vmatmul.mubr.bf16.gmra.mrb[0].mxu0 %v4156
  %v4426 = vpop.f32.mrb[0].mxu0
  %v4427 = vadd.f32 0.0, %v4426
  %v4428 = vpop.f32.mrb[0].mxu0
  %v4429 = vpop.f32.mrb[0].mxu0
  %v4430 = vadd.f32 0.0, %v4429
  %v4431 = vpop.f32.mrb[0].mxu0
  %4432 = vmatprep.mubr.bf16.mxu0 0
  %4433 = vmatmul.mubr.bf16.gmra.mrb[0].mxu0 %v4159
  %v4434 = vpop.f32.mrb[0].mxu0
  %v4435 = vadd.f32 0.0, %v4434
  %v4436 = vpop.f32.mrb[0].mxu0
  %v4437 = vpop.f32.mrb[0].mxu0
  %v4438 = vadd.f32 0.0, %v4437
  %v4439 = vpop.f32.mrb[0].mxu0
  %4440 = vmatprep.mubr.bf16.mxu0 0
  %4441 = vmatmul.mubr.bf16.gmra.mrb[0].mxu0 %v4162
  %v4442 = vpop.f32.mrb[0].mxu0
  %v4443 = vadd.f32 0.0, %v4442
  %v4444 = vpop.f32.mrb[0].mxu0
  %v4445 = vpop.f32.mrb[0].mxu0
  %v4446 = vadd.f32 0.0, %v4445
  %v4447 = vpop.f32.mrb[0].mxu0
  %4448 = vmatprep.mubr.bf16.mxu0 0
  %4449 = vmatmul.mubr.bf16.gmra.mrb[0].mxu0 %v4165
  %v4450 = vpop.f32.mrb[0].mxu0
  %v4451 = vadd.f32 0.0, %v4450
  %v4452 = vpop.f32.mrb[0].mxu0
  %v4453 = vpop.f32.mrb[0].mxu0
  %v4454 = vadd.f32 0.0, %v4453
  %v4455 = vpop.f32.mrb[0].mxu0
  %4456 = vmatprep.mubr.bf16.mxu0 0
  %4457 = vmatmul.mubr.bf16.gmra.mrb[0].mxu0 %v4168
  %v4458 = vpop.f32.mrb[0].mxu0
  %v4459 = vadd.f32 0.0, %v4458
  %v4460 = vpop.f32.mrb[0].mxu0
  %v4461 = vpop.f32.mrb[0].mxu0
  %v4462 = vadd.f32 0.0, %v4461
  %v4463 = vpop.f32.mrb[0].mxu0
  %4464 = vmatprep.mubr.bf16.mxu0 0
  %4465 = vmatmul.mubr.bf16.gmra.mrb[0].mxu0 %v4171
  %v4466 = vpop.f32.mrb[0].mxu0
  %v4467 = vadd.f32 0.0, %v4466
  %v4468 = vpop.f32.mrb[0].mxu0
  %v4469 = vpop.f32.mrb[0].mxu0
  %v4470 = vadd.f32 0.0, %v4469
  %v4471 = vpop.f32.mrb[0].mxu0
  %4472 = vmatprep.mubr.bf16.mxu0 0
  %4473 = vmatmul.mubr.bf16.gmra.mrb[0].mxu0 %v4174
  %v4474 = vpop.f32.mrb[0].mxu0
  %v4475 = vadd.f32 0.0, %v4474
  %v4476 = vpop.f32.mrb[0].mxu0
  %v4477 = vpop.f32.mrb[0].mxu0
  %v4478 = vadd.f32 0.0, %v4477
  %v4479 = vpop.f32.mrb[0].mxu0
  %4480 = vmatprep.mubr.bf16.mxu0 0
  %4481 = vmatmul.mubr.bf16.gmra.mrb[0].mxu0 %v4177
  %v4482 = vpop.f32.mrb[0].mxu0
  %v4483 = vadd.f32 0.0, %v4482
  %v4484 = vpop.f32.mrb[0].mxu0
  %v4485 = vpop.f32.mrb[0].mxu0
  %v4486 = vadd.f32 0.0, %v4485
  %v4487 = vpop.f32.mrb[0].mxu0
  %4488 = vmatprep.mubr.bf16.mxu0 0
  %4489 = vmatmul.mubr.bf16.gmra.mrb[0].mxu0 %v4180
  %v4490 = vpop.f32.mrb[0].mxu0
  %v4491 = vadd.f32 0.0, %v4490
  %v4492 = vpop.f32.mrb[0].mxu0
  %v4493 = vpop.f32.mrb[0].mxu0
  %v4494 = vadd.f32 0.0, %v4493
  %v4495 = vpop.f32.mrb[0].mxu0
  %4496 = vmatprep.mubr.bf16.mxu0 0
  %4497 = vmatmul.mubr.bf16.gmra.mrb[0].mxu0 %v4183
  %v4498 = vpop.f32.mrb[0].mxu0
  %v4499 = vadd.f32 0.0, %v4498
  %v4500 = vpop.f32.mrb[0].mxu0
  %v4501 = vpop.f32.mrb[0].mxu0
  %v4502 = vadd.f32 0.0, %v4501
  %v4503 = vpop.f32.mrb[0].mxu0
  %4504 = vmatprep.mubr.bf16.mxu0 0
  %4505 = vmatmul.mubr.bf16.gmra.mrb[0].mxu0 %v4186
  %v4506 = vpop.f32.mrb[0].mxu0
  %v4507 = vadd.f32 0.0, %v4506
  %v4508 = vpop.f32.mrb[0].mxu0
  %v4509 = vpop.f32.mrb[0].mxu0
  %v4510 = vadd.f32 0.0, %v4509
  %v4511 = vpop.f32.mrb[0].mxu0
  %4512 = vmatprep.mubr.bf16.mxu0 0
  %4513 = vmatmul.mubr.bf16.gmra.mrb[0].mxu0 %v4189
  %v4514 = vpop.f32.mrb[0].mxu0
  %v4515 = vadd.f32 0.0, %v4514
  %v4516 = vpop.f32.mrb[0].mxu0
  %v4517 = vpop.f32.mrb[0].mxu0
  %v4518 = vadd.f32 0.0, %v4517
  %v4519 = vpop.f32.mrb[0].mxu0
  %4520 = vmatprep.mubr.bf16.mxu0 0
  %4521 = vmatmul.mubr.bf16.gmra.mrb[0].mxu0 %v4192
  %v4522 = vpop.f32.mrb[0].mxu0
  %v4523 = vadd.f32 0.0, %v4522
  %v4524 = vpop.f32.mrb[0].mxu0
  %v4525 = vpop.f32.mrb[0].mxu0
  %v4526 = vadd.f32 0.0, %v4525
  %v4527 = vpop.f32.mrb[0].mxu0
  %4528 = vmatprep.mubr.bf16.mxu0 0
  %4529 = vmatmul.mubr.bf16.gmra.mrb[0].mxu0 %v4195
  %v4530 = vpop.f32.mrb[0].mxu0
  %v4531 = vadd.f32 0.0, %v4530
  %v4532 = vpop.f32.mrb[0].mxu0
  %v4533 = vpop.f32.mrb[0].mxu0
  %v4534 = vadd.f32 0.0, %v4533
  %v4535 = vpop.f32.mrb[0].mxu0
  %4536 = vdwg.mxu0
  %4537 = vst.msk [vmem:[#allocation2 + $0xe0] sm:$0xff] %vm112, %v4427
  %4538 = vst.msk [vmem:[#allocation2 + $0xe8] sm:$0xff] %vm112, %v4430
  %4539 = vst.msk [vmem:[#allocation2 + $0xf0] sm:$0xff] %vm112, %v4435
  %4540 = vst.msk [vmem:[#allocation2 + $0xf8] sm:$0xff] %vm112, %v4438
  %4541 = vst.msk [vmem:[#allocation2 + $0x100] sm:$0xff] %vm112, %v4443
  %4542 = vst.msk [vmem:[#allocation2 + $0x108] sm:$0xff] %vm112, %v4446
  %4543 = vst.msk [vmem:[#allocation2 + $0x110] sm:$0xff] %vm112, %v4451
  %4544 = vst.msk [vmem:[#allocation2 + $0x118] sm:$0xff] %vm112, %v4454
  %4545 = vst.msk [vmem:[#allocation2 + $0x120] sm:$0xff] %vm112, %v4459
  %4546 = vst.msk [vmem:[#allocation2 + $0x128] sm:$0xff] %vm112, %v4462
  %4547 = vst.msk [vmem:[#allocation2 + $0x130] sm:$0xff] %vm112, %v4467
  %4548 = vst.msk [vmem:[#allocation2 + $0x138] sm:$0xff] %vm112, %v4470
  %4549 = vst.msk [vmem:[#allocation2 + $0x140] sm:$0xff] %vm112, %v4475
  %4550 = vst.msk [vmem:[#allocation2 + $0x148] sm:$0xff] %vm112, %v4478
  %4551 = vst.msk [vmem:[#allocation2 + $0x150] sm:$0xff] %vm112, %v4483
  %4552 = vst.msk [vmem:[#allocation2 + $0x158] sm:$0xff] %vm112, %v4486
  %4553 = vst.msk [vmem:[#allocation2 + $0x160] sm:$0xff] %vm112, %v4491
  %4554 = vst.msk [vmem:[#allocation2 + $0x168] sm:$0xff] %vm112, %v4494
  %4555 = vst.msk [vmem:[#allocation2 + $0x170] sm:$0xff] %vm112, %v4499
  %4556 = vst.msk [vmem:[#allocation2 + $0x178] sm:$0xff] %vm112, %v4502
  %4557 = vst.msk [vmem:[#allocation2 + $0x180] sm:$0xff] %vm112, %v4507
  %4558 = vst.msk [vmem:[#allocation2 + $0x188] sm:$0xff] %vm112, %v4510
  %4559 = vst.msk [vmem:[#allocation2 + $0x190] sm:$0xff] %vm112, %v4515
  %4560 = vst.msk [vmem:[#allocation2 + $0x198] sm:$0xff] %vm112, %v4518
  %4561 = vst.msk [vmem:[#allocation2 + $0x1a0] sm:$0xff] %vm112, %v4523
  %4562 = vst.msk [vmem:[#allocation2 + $0x1a8] sm:$0xff] %vm112, %v4526
  %4563 = vst.msk [vmem:[#allocation2 + $0x1b0] sm:$0xff] %vm112, %v4531
  %4564 = vst.msk [vmem:[#allocation2 + $0x1b8] sm:$0xff] %vm112, %v4534
  %s4565 = scalar_lea.vmem %s18, 32
  %v4566 = vld [vmem:[%s4565] sm:$0xf]
  %v4567 = vld [vmem:[%s4565 + $0x4] sm:$0xf]
  %v4568 = vld [vmem:[%s4565 + $0x8] sm:$0xf]
  %v4569 = vld [vmem:[%s4565 + $0xc] sm:$0x3]
  %v4574 = vunpack.c.l.b16 %v4566
  %v4575 = vunpack.c.l.b16 %v4567
  %v4576 = vunpack.c.l.b16 %v4568
  %v4577 = vunpack.c.l.b16 %v4569
  %v4578 = vpack.c.b16 %v4575, %v4574
  %v4579 = vpack.c.b16 %v4577, %v4576
  %v4582 = vsel %vm666, %v4579, 0
  %4584 = vmatprep.subr.bf16.mxu0 0
  %4585 = vmatpush1.bf16.msra.mxu0 %v4578
  %4586 = vmatprep.subr.bf16.mxu0 0
  %4587 = vmatpush1.bf16.msra.mxu0 %v4582
  %4588 = vmatprep.subr.bf16.mxu0 0
  %4589 = vmatpush1.bf16.msra.mxu0 0
  %4590 = vmatprep.subr.bf16.mxu0 0
  %4591 = vmatpush1.bf16.msra.mxu0 0
  %4592 = vmatprep.subr.bf16.mxu0 0
  %4593 = vmatpush1.bf16.msra.mxu0 0
  %4594 = vmatprep.subr.bf16.mxu0 0
  %4595 = vmatpush1.bf16.msra.mxu0 0
  %4596 = vmatprep.subr.bf16.mxu0 0
  %4597 = vmatpush1.bf16.msra.mxu0 0
  %4598 = vmatprep.subr.bf16.mxu0 0
  %4599 = vmatpush1.bf16.msra.mxu0 0
  %4600 = vmatprep.subr.bf16.mxu0 0
  %4601 = vmatpush1.bf16.msra.mxu0 0
  %4602 = vmatprep.subr.bf16.mxu0 0
  %4603 = vmatpush1.bf16.msra.mxu0 0
  %4604 = vmatprep.subr.bf16.mxu0 0
  %4605 = vmatpush1.bf16.msra.mxu0 0
  %4606 = vmatprep.subr.bf16.mxu0 0
  %4607 = vmatpush1.bf16.msra.mxu0 0
  %4608 = vmatprep.subr.bf16.mxu0 0
  %4609 = vmatpush1.bf16.msra.mxu0 0
  %4610 = vmatprep.subr.bf16.mxu0 0
  %4611 = vmatpush1.bf16.msra.mxu0 0
  %4612 = vmatprep.subr.bf16.mxu0 0
  %4613 = vmatpush1.bf16.msra.mxu0 0
  %4614 = vmatprep.subr.bf16.mxu0 0
  %4615 = vmatpush1.bf16.msra.mxu0 0
  %4616 = vmatprep.mubr.bf16.mxu0 0
  %4617 = vmatmul.mubr.bf16.gmra.mrb[0].mxu0 %v4156
  %v4618 = vpop.f32.mrb[0].mxu0
  %v4619 = vadd.f32 0.0, %v4618
  %v4620 = vpop.f32.mrb[0].mxu0
  %v4621 = vpop.f32.mrb[0].mxu0
  %v4622 = vadd.f32 0.0, %v4621
  %v4623 = vpop.f32.mrb[0].mxu0
  %4624 = vmatprep.mubr.bf16.mxu0 0
  %4625 = vmatmul.mubr.bf16.gmra.mrb[0].mxu0 %v4159
  %v4626 = vpop.f32.mrb[0].mxu0
  %v4627 = vadd.f32 0.0, %v4626
  %v4628 = vpop.f32.mrb[0].mxu0
  %v4629 = vpop.f32.mrb[0].mxu0
  %v4630 = vadd.f32 0.0, %v4629
  %v4631 = vpop.f32.mrb[0].mxu0
  %4632 = vmatprep.mubr.bf16.mxu0 0
  %4633 = vmatmul.mubr.bf16.gmra.mrb[0].mxu0 %v4162
  %v4634 = vpop.f32.mrb[0].mxu0
  %v4635 = vadd.f32 0.0, %v4634
  %v4636 = vpop.f32.mrb[0].mxu0
  %v4637 = vpop.f32.mrb[0].mxu0
  %v4638 = vadd.f32 0.0, %v4637
  %v4639 = vpop.f32.mrb[0].mxu0
  %4640 = vmatprep.mubr.bf16.mxu0 0
  %4641 = vmatmul.mubr.bf16.gmra.mrb[0].mxu0 %v4165
  %v4642 = vpop.f32.mrb[0].mxu0
  %v4643 = vadd.f32 0.0, %v4642
  %v4644 = vpop.f32.mrb[0].mxu0
  %v4645 = vpop.f32.mrb[0].mxu0
  %v4646 = vadd.f32 0.0, %v4645
  %v4647 = vpop.f32.mrb[0].mxu0
  %4648 = vmatprep.mubr.bf16.mxu0 0
  %4649 = vmatmul.mubr.bf16.gmra.mrb[0].mxu0 %v4168
  %v4650 = vpop.f32.mrb[0].mxu0
  %v4651 = vadd.f32 0.0, %v4650
  %v4652 = vpop.f32.mrb[0].mxu0
  %v4653 = vpop.f32.mrb[0].mxu0
  %v4654 = vadd.f32 0.0, %v4653
  %v4655 = vpop.f32.mrb[0].mxu0
  %4656 = vmatprep.mubr.bf16.mxu0 0
  %4657 = vmatmul.mubr.bf16.gmra.mrb[0].mxu0 %v4171
  %v4658 = vpop.f32.mrb[0].mxu0
  %v4659 = vadd.f32 0.0, %v4658
  %v4660 = vpop.f32.mrb[0].mxu0
  %v4661 = vpop.f32.mrb[0].mxu0
  %v4662 = vadd.f32 0.0, %v4661
  %v4663 = vpop.f32.mrb[0].mxu0
  %4664 = vmatprep.mubr.bf16.mxu0 0
  %4665 = vmatmul.mubr.bf16.gmra.mrb[0].mxu0 %v4174
  %v4666 = vpop.f32.mrb[0].mxu0
  %v4667 = vadd.f32 0.0, %v4666
  %v4668 = vpop.f32.mrb[0].mxu0
  %v4669 = vpop.f32.mrb[0].mxu0
  %v4670 = vadd.f32 0.0, %v4669
  %v4671 = vpop.f32.mrb[0].mxu0
  %4672 = vmatprep.mubr.bf16.mxu0 0
  %4673 = vmatmul.mubr.bf16.gmra.mrb[0].mxu0 %v4177
  %v4674 = vpop.f32.mrb[0].mxu0
  %v4675 = vadd.f32 0.0, %v4674
  %v4676 = vpop.f32.mrb[0].mxu0
  %v4677 = vpop.f32.mrb[0].mxu0
  %v4678 = vadd.f32 0.0, %v4677
  %v4679 = vpop.f32.mrb[0].mxu0
  %4680 = vmatprep.mubr.bf16.mxu0 0
  %4681 = vmatmul.mubr.bf16.gmra.mrb[0].mxu0 %v4180
  %v4682 = vpop.f32.mrb[0].mxu0
  %v4683 = vadd.f32 0.0, %v4682
  %v4684 = vpop.f32.mrb[0].mxu0
  %v4685 = vpop.f32.mrb[0].mxu0
  %v4686 = vadd.f32 0.0, %v4685
  %v4687 = vpop.f32.mrb[0].mxu0
  %4688 = vmatprep.mubr.bf16.mxu0 0
  %4689 = vmatmul.mubr.bf16.gmra.mrb[0].mxu0 %v4183
  %v4690 = vpop.f32.mrb[0].mxu0
  %v4691 = vadd.f32 0.0, %v4690
  %v4692 = vpop.f32.mrb[0].mxu0
  %v4693 = vpop.f32.mrb[0].mxu0
  %v4694 = vadd.f32 0.0, %v4693
  %v4695 = vpop.f32.mrb[0].mxu0
  %4696 = vmatprep.mubr.bf16.mxu0 0
  %4697 = vmatmul.mubr.bf16.gmra.mrb[0].mxu0 %v4186
  %v4698 = vpop.f32.mrb[0].mxu0
  %v4699 = vadd.f32 0.0, %v4698
  %v4700 = vpop.f32.mrb[0].mxu0
  %v4701 = vpop.f32.mrb[0].mxu0
  %v4702 = vadd.f32 0.0, %v4701
  %v4703 = vpop.f32.mrb[0].mxu0
  %4704 = vmatprep.mubr.bf16.mxu0 0
  %4705 = vmatmul.mubr.bf16.gmra.mrb[0].mxu0 %v4189
  %v4706 = vpop.f32.mrb[0].mxu0
  %v4707 = vadd.f32 0.0, %v4706
  %v4708 = vpop.f32.mrb[0].mxu0
  %v4709 = vpop.f32.mrb[0].mxu0
  %v4710 = vadd.f32 0.0, %v4709
  %v4711 = vpop.f32.mrb[0].mxu0
  %4712 = vmatprep.mubr.bf16.mxu0 0
  %4713 = vmatmul.mubr.bf16.gmra.mrb[0].mxu0 %v4192
  %v4714 = vpop.f32.mrb[0].mxu0
  %v4715 = vadd.f32 0.0, %v4714
  %v4716 = vpop.f32.mrb[0].mxu0
  %v4717 = vpop.f32.mrb[0].mxu0
  %v4718 = vadd.f32 0.0, %v4717
  %v4719 = vpop.f32.mrb[0].mxu0
  %4720 = vmatprep.mubr.bf16.mxu0 0
  %4721 = vmatmul.mubr.bf16.gmra.mrb[0].mxu0 %v4195
  %v4722 = vpop.f32.mrb[0].mxu0
  %v4723 = vadd.f32 0.0, %v4722
  %v4724 = vpop.f32.mrb[0].mxu0
  %v4725 = vpop.f32.mrb[0].mxu0
  %v4726 = vadd.f32 0.0, %v4725
  %v4727 = vpop.f32.mrb[0].mxu0
  %4728 = vdwg.mxu0
  %4729 = vst.msk [vmem:[#allocation2 + $0x1c0] sm:$0xff] %vm112, %v4619
  %4730 = vst.msk [vmem:[#allocation2 + $0x1c8] sm:$0xff] %vm112, %v4622
  %4731 = vst.msk [vmem:[#allocation2 + $0x1d0] sm:$0xff] %vm112, %v4627
  %4732 = vst.msk [vmem:[#allocation2 + $0x1d8] sm:$0xff] %vm112, %v4630
  %4733 = vst.msk [vmem:[#allocation2 + $0x1e0] sm:$0xff] %vm112, %v4635
  %4734 = vst.msk [vmem:[#allocation2 + $0x1e8] sm:$0xff] %vm112, %v4638
  %4735 = vst.msk [vmem:[#allocation2 + $0x1f0] sm:$0xff] %vm112, %v4643
  %4736 = vst.msk [vmem:[#allocation2 + $0x1f8] sm:$0xff] %vm112, %v4646
  %4737 = vst.msk [vmem:[#allocation2 + $0x200] sm:$0xff] %vm112, %v4651
  %4738 = vst.msk [vmem:[#allocation2 + $0x208] sm:$0xff] %vm112, %v4654
  %4739 = vst.msk [vmem:[#allocation2 + $0x210] sm:$0xff] %vm112, %v4659
  %4740 = vst.msk [vmem:[#allocation2 + $0x218] sm:$0xff] %vm112, %v4662
  %4741 = vst.msk [vmem:[#allocation2 + $0x220] sm:$0xff] %vm112, %v4667
  %4742 = vst.msk [vmem:[#allocation2 + $0x228] sm:$0xff] %vm112, %v4670
  %4743 = vst.msk [vmem:[#allocation2 + $0x230] sm:$0xff] %vm112, %v4675
  %4744 = vst.msk [vmem:[#allocation2 + $0x238] sm:$0xff] %vm112, %v4678
  %4745 = vst.msk [vmem:[#allocation2 + $0x240] sm:$0xff] %vm112, %v4683
  %4746 = vst.msk [vmem:[#allocation2 + $0x248] sm:$0xff] %vm112, %v4686
  %4747 = vst.msk [vmem:[#allocation2 + $0x250] sm:$0xff] %vm112, %v4691
  %4748 = vst.msk [vmem:[#allocation2 + $0x258] sm:$0xff] %vm112, %v4694
  %4749 = vst.msk [vmem:[#allocation2 + $0x260] sm:$0xff] %vm112, %v4699
  %4750 = vst.msk [vmem:[#allocation2 + $0x268] sm:$0xff] %vm112, %v4702
  %4751 = vst.msk [vmem:[#allocation2 + $0x270] sm:$0xff] %vm112, %v4707
  %4752 = vst.msk [vmem:[#allocation2 + $0x278] sm:$0xff] %vm112, %v4710
  %4753 = vst.msk [vmem:[#allocation2 + $0x280] sm:$0xff] %vm112, %v4715
  %4754 = vst.msk [vmem:[#allocation2 + $0x288] sm:$0xff] %vm112, %v4718
  %4755 = vst.msk [vmem:[#allocation2 + $0x290] sm:$0xff] %vm112, %v4723
  %4756 = vst.msk [vmem:[#allocation2 + $0x298] sm:$0xff] %vm112, %v4726
  %v4757 = vld [vmem:[#allocation2] sm:$0xff]
  %v4758 = vld [vmem:[#allocation2 + $0x8] sm:$0xff]
  %v4759 = vld [vmem:[#allocation2 + $0x10] sm:$0xff]
  %v4760 = vld [vmem:[#allocation2 + $0x18] sm:$0xff]
  %v4761 = vld [vmem:[#allocation2 + $0x20] sm:$0xff]
  %v4762 = vld [vmem:[#allocation2 + $0x28] sm:$0xff]
  %v4763 = vld [vmem:[#allocation2 + $0x30] sm:$0xff]
  %v4764 = vld [vmem:[#allocation2 + $0x38] sm:$0xff]
  %v4765 = vld [vmem:[#allocation2 + $0x40] sm:$0xff]
  %v4766 = vld [vmem:[#allocation2 + $0x48] sm:$0xff]
  %v4767 = vld [vmem:[#allocation2 + $0x50] sm:$0xff]
  %v4768 = vld [vmem:[#allocation2 + $0x58] sm:$0xff]
  %v4769 = vld [vmem:[#allocation2 + $0x60] sm:$0xff]
  %v4770 = vld [vmem:[#allocation2 + $0x68] sm:$0xff]
  %v4771 = vld [vmem:[#allocation2 + $0x70] sm:$0xff]
  %v4772 = vld [vmem:[#allocation2 + $0x78] sm:$0xff]
  %v4773 = vld [vmem:[#allocation2 + $0x80] sm:$0xff]
  %v4774 = vld [vmem:[#allocation2 + $0x88] sm:$0xff]
  %v4775 = vld [vmem:[#allocation2 + $0x90] sm:$0xff]
  %v4776 = vld [vmem:[#allocation2 + $0x98] sm:$0xff]
  %v4777 = vld [vmem:[#allocation2 + $0xa0] sm:$0xff]
  %v4778 = vld [vmem:[#allocation2 + $0xa8] sm:$0xff]
  %v4779 = vld [vmem:[#allocation2 + $0xb0] sm:$0xff]
  %v4780 = vld [vmem:[#allocation2 + $0xb8] sm:$0xff]
  %v4781 = vld [vmem:[#allocation2 + $0xc0] sm:$0xff]
  %v4782 = vld [vmem:[#allocation2 + $0xc8] sm:$0xff]
  %v4783 = vld [vmem:[#allocation2 + $0xd0] sm:$0xff]
  %v4784 = vld [vmem:[#allocation2 + $0xd8] sm:$0xff]
  %v4785 = vld [vmem:[#allocation2 + $0xe0] sm:$0xff]
  %v4786 = vld [vmem:[#allocation2 + $0xe8] sm:$0xff]
  %v4787 = vld [vmem:[#allocation2 + $0xf0] sm:$0xff]
  %v4788 = vld [vmem:[#allocation2 + $0xf8] sm:$0xff]
  %v4789 = vld [vmem:[#allocation2 + $0x100] sm:$0xff]
  %v4790 = vld [vmem:[#allocation2 + $0x108] sm:$0xff]
  %v4791 = vld [vmem:[#allocation2 + $0x110] sm:$0xff]
  %v4792 = vld [vmem:[#allocation2 + $0x118] sm:$0xff]
  %v4793 = vld [vmem:[#allocation2 + $0x120] sm:$0xff]
  %v4794 = vld [vmem:[#allocation2 + $0x128] sm:$0xff]
  %v4795 = vld [vmem:[#allocation2 + $0x130] sm:$0xff]
  %v4796 = vld [vmem:[#allocation2 + $0x138] sm:$0xff]
  %v4797 = vld [vmem:[#allocation2 + $0x140] sm:$0xff]
  %v4798 = vld [vmem:[#allocation2 + $0x148] sm:$0xff]
  %v4799 = vld [vmem:[#allocation2 + $0x150] sm:$0xff]
  %v4800 = vld [vmem:[#allocation2 + $0x158] sm:$0xff]
  %v4801 = vld [vmem:[#allocation2 + $0x160] sm:$0xff]
  %v4802 = vld [vmem:[#allocation2 + $0x168] sm:$0xff]
  %v4803 = vld [vmem:[#allocation2 + $0x170] sm:$0xff]
  %v4804 = vld [vmem:[#allocation2 + $0x178] sm:$0xff]
  %v4805 = vld [vmem:[#allocation2 + $0x180] sm:$0xff]
  %v4806 = vld [vmem:[#allocation2 + $0x188] sm:$0xff]
  %v4807 = vld [vmem:[#allocation2 + $0x190] sm:$0xff]
  %v4808 = vld [vmem:[#allocation2 + $0x198] sm:$0xff]
  %v4809 = vld [vmem:[#allocation2 + $0x1a0] sm:$0xff]
  %v4810 = vld [vmem:[#allocation2 + $0x1a8] sm:$0xff]
  %v4811 = vld [vmem:[#allocation2 + $0x1b0] sm:$0xff]
  %v4812 = vld [vmem:[#allocation2 + $0x1b8] sm:$0xff]
  %v4813 = vld [vmem:[#allocation2 + $0x1c0] sm:$0xff]
  %v4814 = vld [vmem:[#allocation2 + $0x1c8] sm:$0xff]
  %v4815 = vld [vmem:[#allocation2 + $0x1d0] sm:$0xff]
  %v4816 = vld [vmem:[#allocation2 + $0x1d8] sm:$0xff]
  %v4817 = vld [vmem:[#allocation2 + $0x1e0] sm:$0xff]
  %v4818 = vld [vmem:[#allocation2 + $0x1e8] sm:$0xff]
  %v4819 = vld [vmem:[#allocation2 + $0x1f0] sm:$0xff]
  %v4820 = vld [vmem:[#allocation2 + $0x1f8] sm:$0xff]
  %v4821 = vld [vmem:[#allocation2 + $0x200] sm:$0xff]
  %v4822 = vld [vmem:[#allocation2 + $0x208] sm:$0xff]
  %v4823 = vld [vmem:[#allocation2 + $0x210] sm:$0xff]
  %v4824 = vld [vmem:[#allocation2 + $0x218] sm:$0xff]
  %v4825 = vld [vmem:[#allocation2 + $0x220] sm:$0xff]
  %v4826 = vld [vmem:[#allocation2 + $0x228] sm:$0xff]
  %v4827 = vld [vmem:[#allocation2 + $0x230] sm:$0xff]
  %v4828 = vld [vmem:[#allocation2 + $0x238] sm:$0xff]
  %v4829 = vld [vmem:[#allocation2 + $0x240] sm:$0xff]
  %v4830 = vld [vmem:[#allocation2 + $0x248] sm:$0xff]
  %v4831 = vld [vmem:[#allocation2 + $0x250] sm:$0xff]
  %v4832 = vld [vmem:[#allocation2 + $0x258] sm:$0xff]
  %v4833 = vld [vmem:[#allocation2 + $0x260] sm:$0xff]
  %v4834 = vld [vmem:[#allocation2 + $0x268] sm:$0xff]
  %v4835 = vld [vmem:[#allocation2 + $0x270] sm:$0xff]
  %v4836 = vld [vmem:[#allocation2 + $0x278] sm:$0xff]
  %v4837 = vld [vmem:[#allocation2 + $0x280] sm:$0xff]
  %v4838 = vld [vmem:[#allocation2 + $0x288] sm:$0xff]
  %v4839 = vld [vmem:[#allocation2 + $0x290] sm:$0xff]
  %v4840 = vld [vmem:[#allocation2 + $0x298] sm:$0xff]
  %v4841 = vpack.c.bf16 %v4758, %v4757
  %v4842 = vpack.c.bf16 %v4760, %v4759
  %v4843 = vpack.c.bf16 %v4762, %v4761
  %v4844 = vpack.c.bf16 %v4764, %v4763
  %v4845 = vpack.c.bf16 %v4766, %v4765
  %v4846 = vpack.c.bf16 %v4768, %v4767
  %v4847 = vpack.c.bf16 %v4770, %v4769
  %v4848 = vpack.c.bf16 %v4772, %v4771
  %v4849 = vpack.c.bf16 %v4774, %v4773
  %v4850 = vpack.c.bf16 %v4776, %v4775
  %v4851 = vpack.c.bf16 %v4778, %v4777
  %v4852 = vpack.c.bf16 %v4780, %v4779
  %v4853 = vpack.c.bf16 %v4782, %v4781
  %v4854 = vpack.c.bf16 %v4784, %v4783
  %v4855 = vpack.c.bf16 %v4786, %v4785
  %v4856 = vpack.c.bf16 %v4788, %v4787
  %v4857 = vpack.c.bf16 %v4790, %v4789
  %v4858 = vpack.c.bf16 %v4792, %v4791
  %v4859 = vpack.c.bf16 %v4794, %v4793
  %v4860 = vpack.c.bf16 %v4796, %v4795
  %v4861 = vpack.c.bf16 %v4798, %v4797
  %v4862 = vpack.c.bf16 %v4800, %v4799
  %v4863 = vpack.c.bf16 %v4802, %v4801
  %v4864 = vpack.c.bf16 %v4804, %v4803
  %v4865 = vpack.c.bf16 %v4806, %v4805
  %v4866 = vpack.c.bf16 %v4808, %v4807
  %v4867 = vpack.c.bf16 %v4810, %v4809
  %v4868 = vpack.c.bf16 %v4812, %v4811
  %v4869 = vpack.c.bf16 %v4814, %v4813
  %v4870 = vpack.c.bf16 %v4816, %v4815
  %v4871 = vpack.c.bf16 %v4818, %v4817
  %v4872 = vpack.c.bf16 %v4820, %v4819
  %v4873 = vpack.c.bf16 %v4822, %v4821
  %v4874 = vpack.c.bf16 %v4824, %v4823
  %v4875 = vpack.c.bf16 %v4826, %v4825
  %v4876 = vpack.c.bf16 %v4828, %v4827
  %v4877 = vpack.c.bf16 %v4830, %v4829
  %v4878 = vpack.c.bf16 %v4832, %v4831
  %v4879 = vpack.c.bf16 %v4834, %v4833
  %v4880 = vpack.c.bf16 %v4836, %v4835
  %v4881 = vpack.c.bf16 %v4838, %v4837
  %v4882 = vpack.c.bf16 %v4840, %v4839
  %v4883 = vld [vmem:[%s17] sm:$0xff]
  %v4884 = vld [vmem:[%s17 + $0x8] sm:$0xff]
  %v4885 = vld [vmem:[%s17 + $0x10] sm:$0xff]
  %v4886 = vld [vmem:[%s17 + $0x18] sm:$0xff]
  %v4887 = vld [vmem:[%s17 + $0x20] sm:$0xff]
  %v4888 = vld [vmem:[%s17 + $0x28] sm:$0xff]
  %v4889 = vld [vmem:[%s17 + $0x30] sm:$0xff]
  %v4890 = vld [vmem:[%s17 + $0x38] sm:$0xff]
  %v4891 = vld [vmem:[%s17 + $0x40] sm:$0xff]
  %v4892 = vld [vmem:[%s17 + $0x48] sm:$0xff]
  %v4893 = vld [vmem:[%s17 + $0x50] sm:$0xff]
  %v4894 = vld [vmem:[%s17 + $0x58] sm:$0xff]
  %v4895 = vld [vmem:[%s17 + $0x60] sm:$0xff]
  %v4896 = vld [vmem:[%s17 + $0x68] sm:$0xff]
  %v4897 = vld [vmem:[%s17 + $0x70] sm:$0xff]
  %v4898 = vld [vmem:[%s17 + $0x78] sm:$0xff]
  %v4899 = vld [vmem:[%s17 + $0x80] sm:$0xff]
  %v4900 = vld [vmem:[%s17 + $0x88] sm:$0xff]
  %v4901 = vld [vmem:[%s17 + $0x90] sm:$0xff]
  %v4902 = vld [vmem:[%s17 + $0x98] sm:$0xff]
  %v4903 = vld [vmem:[%s17 + $0xa0] sm:$0xff]
  %v4904 = vld [vmem:[%s17 + $0xa8] sm:$0xff]
  %v4905 = vld [vmem:[%s17 + $0xb0] sm:$0xff]
  %v4906 = vld [vmem:[%s17 + $0xb8] sm:$0xff]
  %v4907 = vld [vmem:[%s17 + $0xc0] sm:$0xff]
  %v4908 = vld [vmem:[%s17 + $0xc8] sm:$0xff]
  %v4909 = vld [vmem:[%s17 + $0xd0] sm:$0xff]
  %v4910 = vld [vmem:[%s17 + $0xd8] sm:$0xff]
  %v4911 = vld [vmem:[%s17 + $0xe0] sm:$0xff]
  %v4912 = vld [vmem:[%s17 + $0xe8] sm:$0xff]
  %v4913 = vld [vmem:[%s17 + $0xf0] sm:$0xff]
  %v4914 = vld [vmem:[%s17 + $0xf8] sm:$0xff]
  %v4915 = vld [vmem:[%s17 + $0x100] sm:$0xff]
  %v4916 = vld [vmem:[%s17 + $0x108] sm:$0xff]
  %v4917 = vld [vmem:[%s17 + $0x110] sm:$0xff]
  %v4918 = vld [vmem:[%s17 + $0x118] sm:$0xff]
  %v4919 = vld [vmem:[%s17 + $0x120] sm:$0xff]
  %v4920 = vld [vmem:[%s17 + $0x128] sm:$0xff]
  %v4921 = vld [vmem:[%s17 + $0x130] sm:$0xff]
  %v4922 = vld [vmem:[%s17 + $0x138] sm:$0xff]
  %v4923 = vld [vmem:[%s17 + $0x140] sm:$0xff]
  %v4924 = vld [vmem:[%s17 + $0x148] sm:$0xff]
  %v4925 = vld [vmem:[%s17 + $0x150] sm:$0xff]
  %v4926 = vld [vmem:[%s17 + $0x158] sm:$0xff]
  %v4927 = vld [vmem:[%s17 + $0x160] sm:$0xff]
  %v4928 = vld [vmem:[%s17 + $0x168] sm:$0xff]
  %v4929 = vld [vmem:[%s17 + $0x170] sm:$0xff]
  %v4930 = vld [vmem:[%s17 + $0x178] sm:$0xff]
  %v4931 = vld [vmem:[%s17 + $0x180] sm:$0xff]
  %v4932 = vld [vmem:[%s17 + $0x188] sm:$0xff]
  %v4933 = vld [vmem:[%s17 + $0x190] sm:$0xff]
  %v4934 = vld [vmem:[%s17 + $0x198] sm:$0xff]
  %v4935 = vld [vmem:[%s17 + $0x1a0] sm:$0xff]
  %v4936 = vld [vmem:[%s17 + $0x1a8] sm:$0xff]
  %v4937 = vld [vmem:[%s17 + $0x1b0] sm:$0xff]
  %v4938 = vld [vmem:[%s17 + $0x1b8] sm:$0xff]
  %v4939 = vld [vmem:[%s17 + $0x1c0] sm:$0xff]
  %v4940 = vld [vmem:[%s17 + $0x1c8] sm:$0xff]
  %v4941 = vld [vmem:[%s17 + $0x1d0] sm:$0xff]
  %v4942 = vld [vmem:[%s17 + $0x1d8] sm:$0xff]
  %v4943 = vld [vmem:[%s17 + $0x1e0] sm:$0xff]
  %v4944 = vld [vmem:[%s17 + $0x1e8] sm:$0xff]
  %v4945 = vld [vmem:[%s17 + $0x1f0] sm:$0xff]
  %v4946 = vld [vmem:[%s17 + $0x1f8] sm:$0xff]
  %v4947 = vld [vmem:[%s17 + $0x200] sm:$0xff]
  %v4948 = vld [vmem:[%s17 + $0x208] sm:$0xff]
  %v4949 = vld [vmem:[%s17 + $0x210] sm:$0xff]
  %v4950 = vld [vmem:[%s17 + $0x218] sm:$0xff]
  %v4951 = vld [vmem:[%s17 + $0x220] sm:$0xff]
  %v4952 = vld [vmem:[%s17 + $0x228] sm:$0xff]
  %v4953 = vld [vmem:[%s17 + $0x230] sm:$0xff]
  %v4954 = vld [vmem:[%s17 + $0x238] sm:$0xff]
  %v4955 = vld [vmem:[%s17 + $0x240] sm:$0xff]
  %v4956 = vld [vmem:[%s17 + $0x248] sm:$0xff]
  %v4957 = vld [vmem:[%s17 + $0x250] sm:$0xff]
  %v4958 = vld [vmem:[%s17 + $0x258] sm:$0xff]
  %v4959 = vld [vmem:[%s17 + $0x260] sm:$0xff]
  %v4960 = vld [vmem:[%s17 + $0x268] sm:$0xff]
  %v4961 = vld [vmem:[%s17 + $0x270] sm:$0xff]
  %v4962 = vld [vmem:[%s17 + $0x278] sm:$0xff]
  %v4963 = vld [vmem:[%s17 + $0x280] sm:$0xff]
  %v4964 = vld [vmem:[%s17 + $0x288] sm:$0xff]
  %v4965 = vld [vmem:[%s17 + $0x290] sm:$0xff]
  %v4966 = vld [vmem:[%s17 + $0x298] sm:$0xff]
  %v4967 = vld [vmem:[%s19] sm:$0xff]
  %v4968 = vld [vmem:[%s19 + $0x8] sm:$0xff]
  %v4969 = vld [vmem:[%s19 + $0x10] sm:$0xff]
  %v4970 = vld [vmem:[%s19 + $0x18] sm:$0xff]
  %v4971 = vld [vmem:[%s19 + $0x20] sm:$0xff]
  %v4972 = vld [vmem:[%s19 + $0x28] sm:$0xff]
  %v4973 = vld [vmem:[%s19 + $0x30] sm:$0xff]
  %v4974 = vld [vmem:[%s19 + $0x38] sm:$0xff]
  %v4975 = vld [vmem:[%s19 + $0x40] sm:$0xff]
  %v4976 = vld [vmem:[%s19 + $0x48] sm:$0xff]
  %v4977 = vld [vmem:[%s19 + $0x50] sm:$0xff]
  %v4978 = vld [vmem:[%s19 + $0x58] sm:$0xff]
  %v4979 = vld [vmem:[%s19 + $0x60] sm:$0xff]
  %v4980 = vld [vmem:[%s19 + $0x68] sm:$0xff]
  %v4981 = vld [vmem:[%s19 + $0x70] sm:$0xff]
  %v4982 = vld [vmem:[%s19 + $0x78] sm:$0xff]
  %v4983 = vld [vmem:[%s19 + $0x80] sm:$0xff]
  %v4984 = vld [vmem:[%s19 + $0x88] sm:$0xff]
  %v4985 = vld [vmem:[%s19 + $0x90] sm:$0xff]
  %v4986 = vld [vmem:[%s19 + $0x98] sm:$0xff]
  %v4987 = vld [vmem:[%s19 + $0xa0] sm:$0xff]
  %v4988 = vld [vmem:[%s19 + $0xa8] sm:$0xff]
  %v4989 = vld [vmem:[%s19 + $0xb0] sm:$0xff]
  %v4990 = vld [vmem:[%s19 + $0xb8] sm:$0xff]
  %v4991 = vld [vmem:[%s19 + $0xc0] sm:$0xff]
  %v4992 = vld [vmem:[%s19 + $0xc8] sm:$0xff]
  %v4993 = vld [vmem:[%s19 + $0xd0] sm:$0xff]
  %v4994 = vld [vmem:[%s19 + $0xd8] sm:$0xff]
  %4996 = vset.pattern.permute.xlu0 0
  %4997 = vperm.xlu0 %4996, %v4967
  %v4998 = vpop.permute.xlu0 %4997
  %5001 = vset.pattern.permute.xlu0 0
  %5002 = vperm.xlu0 %5001, %v4968
  %v5003 = vpop.permute.xlu0 %5002
  %5006 = vset.pattern.permute.xlu0 0
  %5007 = vperm.xlu0 %5006, %v4969
  %v5008 = vpop.permute.xlu0 %5007
  %5011 = vset.pattern.permute.xlu0 0
  %5012 = vperm.xlu0 %5011, %v4970
  %v5013 = vpop.permute.xlu0 %5012
  %5016 = vset.pattern.permute.xlu0 0
  %5017 = vperm.xlu0 %5016, %v4971
  %v5018 = vpop.permute.xlu0 %5017
  %5021 = vset.pattern.permute.xlu0 0
  %5022 = vperm.xlu0 %5021, %v4972
  %v5023 = vpop.permute.xlu0 %5022
  %5026 = vset.pattern.permute.xlu0 0
  %5027 = vperm.xlu0 %5026, %v4973
  %v5028 = vpop.permute.xlu0 %5027
  %5031 = vset.pattern.permute.xlu0 0
  %5032 = vperm.xlu0 %5031, %v4974
  %v5033 = vpop.permute.xlu0 %5032
  %5036 = vset.pattern.permute.xlu0 0
  %5037 = vperm.xlu0 %5036, %v4975
  %v5038 = vpop.permute.xlu0 %5037
  %5041 = vset.pattern.permute.xlu0 0
  %5042 = vperm.xlu0 %5041, %v4976
  %v5043 = vpop.permute.xlu0 %5042
  %5046 = vset.pattern.permute.xlu0 0
  %5047 = vperm.xlu0 %5046, %v4977
  %v5048 = vpop.permute.xlu0 %5047
  %5051 = vset.pattern.permute.xlu0 0
  %5052 = vperm.xlu0 %5051, %v4978
  %v5053 = vpop.permute.xlu0 %5052
  %5056 = vset.pattern.permute.xlu0 0
  %5057 = vperm.xlu0 %5056, %v4979
  %v5058 = vpop.permute.xlu0 %5057
  %5061 = vset.pattern.permute.xlu0 0
  %5062 = vperm.xlu0 %5061, %v4980
  %v5063 = vpop.permute.xlu0 %5062
  %5066 = vset.pattern.permute.xlu0 0
  %5067 = vperm.xlu0 %5066, %v4981
  %v5068 = vpop.permute.xlu0 %5067
  %5071 = vset.pattern.permute.xlu0 0
  %5072 = vperm.xlu0 %5071, %v4982
  %v5073 = vpop.permute.xlu0 %5072
  %5076 = vset.pattern.permute.xlu0 0
  %5077 = vperm.xlu0 %5076, %v4983
  %v5078 = vpop.permute.xlu0 %5077
  %5081 = vset.pattern.permute.xlu0 0
  %5082 = vperm.xlu0 %5081, %v4984
  %v5083 = vpop.permute.xlu0 %5082
  %5086 = vset.pattern.permute.xlu0 0
  %5087 = vperm.xlu0 %5086, %v4985
  %v5088 = vpop.permute.xlu0 %5087
  %5091 = vset.pattern.permute.xlu0 0
  %5092 = vperm.xlu0 %5091, %v4986
  %v5093 = vpop.permute.xlu0 %5092
  %5096 = vset.pattern.permute.xlu0 0
  %5097 = vperm.xlu0 %5096, %v4987
  %v5098 = vpop.permute.xlu0 %5097
  %5101 = vset.pattern.permute.xlu0 0
  %5102 = vperm.xlu0 %5101, %v4988
  %v5103 = vpop.permute.xlu0 %5102
  %5106 = vset.pattern.permute.xlu0 0
  %5107 = vperm.xlu0 %5106, %v4989
  %v5108 = vpop.permute.xlu0 %5107
  %5111 = vset.pattern.permute.xlu0 0
  %5112 = vperm.xlu0 %5111, %v4990
  %v5113 = vpop.permute.xlu0 %5112
  %5116 = vset.pattern.permute.xlu0 0
  %5117 = vperm.xlu0 %5116, %v4991
  %v5118 = vpop.permute.xlu0 %5117
  %5121 = vset.pattern.permute.xlu0 0
  %5122 = vperm.xlu0 %5121, %v4992
  %v5123 = vpop.permute.xlu0 %5122
  %5126 = vset.pattern.permute.xlu0 0
  %5127 = vperm.xlu0 %5126, %v4993
  %v5128 = vpop.permute.xlu0 %5127
  %5131 = vset.pattern.permute.xlu0 0
  %5132 = vperm.xlu0 %5131, %v4994
  %v5133 = vpop.permute.xlu0 %5132
  %v5219 = vunpack.c.l.b16 %v4883
  %v5220 = vunpack.c.h.b16 %v4883
  %v5221 = vunpack.c.l.b16 %v4884
  %v5222 = vunpack.c.h.b16 %v4884
  %v5223 = vunpack.c.l.b16 %v4885
  %v5224 = vunpack.c.h.b16 %v4885
  %v5225 = vunpack.c.l.b16 %v4886
  %v5226 = vunpack.c.h.b16 %v4886
  %v5227 = vunpack.c.l.b16 %v4887
  %v5228 = vunpack.c.h.b16 %v4887
  %v5229 = vunpack.c.l.b16 %v4888
  %v5230 = vunpack.c.h.b16 %v4888
  %v5231 = vunpack.c.l.b16 %v4889
  %v5232 = vunpack.c.h.b16 %v4889
  %v5233 = vunpack.c.l.b16 %v4890
  %v5234 = vunpack.c.h.b16 %v4890
  %v5235 = vunpack.c.l.b16 %v4891
  %v5236 = vunpack.c.h.b16 %v4891
  %v5237 = vunpack.c.l.b16 %v4892
  %v5238 = vunpack.c.h.b16 %v4892
  %v5239 = vunpack.c.l.b16 %v4893
  %v5240 = vunpack.c.h.b16 %v4893
  %v5241 = vunpack.c.l.b16 %v4894
  %v5242 = vunpack.c.h.b16 %v4894
  %v5243 = vunpack.c.l.b16 %v4895
  %v5244 = vunpack.c.h.b16 %v4895
  %v5245 = vunpack.c.l.b16 %v4896
  %v5246 = vunpack.c.h.b16 %v4896
  %v5247 = vunpack.c.l.b16 %v4897
  %v5248 = vunpack.c.h.b16 %v4897
  %v5249 = vunpack.c.l.b16 %v4898
  %v5250 = vunpack.c.h.b16 %v4898
  %v5251 = vunpack.c.l.b16 %v4899
  %v5252 = vunpack.c.h.b16 %v4899
  %v5253 = vunpack.c.l.b16 %v4900
  %v5254 = vunpack.c.h.b16 %v4900
  %v5255 = vunpack.c.l.b16 %v4901
  %v5256 = vunpack.c.h.b16 %v4901
  %v5257 = vunpack.c.l.b16 %v4902
  %v5258 = vunpack.c.h.b16 %v4902
  %v5259 = vunpack.c.l.b16 %v4903
  %v5260 = vunpack.c.h.b16 %v4903
  %v5261 = vunpack.c.l.b16 %v4904
  %v5262 = vunpack.c.h.b16 %v4904
  %v5263 = vunpack.c.l.b16 %v4905
  %v5264 = vunpack.c.h.b16 %v4905
  %v5265 = vunpack.c.l.b16 %v4906
  %v5266 = vunpack.c.h.b16 %v4906
  %v5267 = vunpack.c.l.b16 %v4907
  %v5268 = vunpack.c.h.b16 %v4907
  %v5269 = vunpack.c.l.b16 %v4908
  %v5270 = vunpack.c.h.b16 %v4908
  %v5271 = vunpack.c.l.b16 %v4909
  %v5272 = vunpack.c.h.b16 %v4909
  %v5273 = vunpack.c.l.b16 %v4910
  %v5274 = vunpack.c.h.b16 %v4910
  %v5275 = vunpack.c.l.b16 %v4911
  %v5276 = vunpack.c.h.b16 %v4911
  %v5277 = vunpack.c.l.b16 %v4912
  %v5278 = vunpack.c.h.b16 %v4912
  %v5279 = vunpack.c.l.b16 %v4913
  %v5280 = vunpack.c.h.b16 %v4913
  %v5281 = vunpack.c.l.b16 %v4914
  %v5282 = vunpack.c.h.b16 %v4914
  %v5283 = vunpack.c.l.b16 %v4915
  %v5284 = vunpack.c.h.b16 %v4915
  %v5285 = vunpack.c.l.b16 %v4916
  %v5286 = vunpack.c.h.b16 %v4916
  %v5287 = vunpack.c.l.b16 %v4917
  %v5288 = vunpack.c.h.b16 %v4917
  %v5289 = vunpack.c.l.b16 %v4918
  %v5290 = vunpack.c.h.b16 %v4918
  %v5291 = vunpack.c.l.b16 %v4919
  %v5292 = vunpack.c.h.b16 %v4919
  %v5293 = vunpack.c.l.b16 %v4920
  %v5294 = vunpack.c.h.b16 %v4920
  %v5295 = vunpack.c.l.b16 %v4921
  %v5296 = vunpack.c.h.b16 %v4921
  %v5297 = vunpack.c.l.b16 %v4922
  %v5298 = vunpack.c.h.b16 %v4922
  %v5299 = vunpack.c.l.b16 %v4923
  %v5300 = vunpack.c.h.b16 %v4923
  %v5301 = vunpack.c.l.b16 %v4924
  %v5302 = vunpack.c.h.b16 %v4924
  %v5303 = vunpack.c.l.b16 %v4925
  %v5304 = vunpack.c.h.b16 %v4925
  %v5305 = vunpack.c.l.b16 %v4926
  %v5306 = vunpack.c.h.b16 %v4926
  %v5307 = vunpack.c.l.b16 %v4927
  %v5308 = vunpack.c.h.b16 %v4927
  %v5309 = vunpack.c.l.b16 %v4928
  %v5310 = vunpack.c.h.b16 %v4928
  %v5311 = vunpack.c.l.b16 %v4929
  %v5312 = vunpack.c.h.b16 %v4929
  %v5313 = vunpack.c.l.b16 %v4930
  %v5314 = vunpack.c.h.b16 %v4930
  %v5315 = vunpack.c.l.b16 %v4931
  %v5316 = vunpack.c.h.b16 %v4931
  %v5317 = vunpack.c.l.b16 %v4932
  %v5318 = vunpack.c.h.b16 %v4932
  %v5319 = vunpack.c.l.b16 %v4933
  %v5320 = vunpack.c.h.b16 %v4933
  %v5321 = vunpack.c.l.b16 %v4934
  %v5322 = vunpack.c.h.b16 %v4934
  %v5323 = vunpack.c.l.b16 %v4935
  %v5324 = vunpack.c.h.b16 %v4935
  %v5325 = vunpack.c.l.b16 %v4936
  %v5326 = vunpack.c.h.b16 %v4936
  %v5327 = vunpack.c.l.b16 %v4937
  %v5328 = vunpack.c.h.b16 %v4937
  %v5329 = vunpack.c.l.b16 %v4938
  %v5330 = vunpack.c.h.b16 %v4938
  %v5331 = vunpack.c.l.b16 %v4939
  %v5332 = vunpack.c.h.b16 %v4939
  %v5333 = vunpack.c.l.b16 %v4940
  %v5334 = vunpack.c.h.b16 %v4940
  %v5335 = vunpack.c.l.b16 %v4941
  %v5336 = vunpack.c.h.b16 %v4941
  %v5337 = vunpack.c.l.b16 %v4942
  %v5338 = vunpack.c.h.b16 %v4942
  %v5339 = vunpack.c.l.b16 %v4943
  %v5340 = vunpack.c.h.b16 %v4943
  %v5341 = vunpack.c.l.b16 %v4944
  %v5342 = vunpack.c.h.b16 %v4944
  %v5343 = vunpack.c.l.b16 %v4945
  %v5344 = vunpack.c.h.b16 %v4945
  %v5345 = vunpack.c.l.b16 %v4946
  %v5346 = vunpack.c.h.b16 %v4946
  %v5347 = vunpack.c.l.b16 %v4947
  %v5348 = vunpack.c.h.b16 %v4947
  %v5349 = vunpack.c.l.b16 %v4948
  %v5350 = vunpack.c.h.b16 %v4948
  %v5351 = vunpack.c.l.b16 %v4949
  %v5352 = vunpack.c.h.b16 %v4949
  %v5353 = vunpack.c.l.b16 %v4950
  %v5354 = vunpack.c.h.b16 %v4950
  %v5355 = vunpack.c.l.b16 %v4951
  %v5356 = vunpack.c.h.b16 %v4951
  %v5357 = vunpack.c.l.b16 %v4952
  %v5358 = vunpack.c.h.b16 %v4952
  %v5359 = vunpack.c.l.b16 %v4953
  %v5360 = vunpack.c.h.b16 %v4953
  %v5361 = vunpack.c.l.b16 %v4954
  %v5362 = vunpack.c.h.b16 %v4954
  %v5363 = vunpack.c.l.b16 %v4955
  %v5364 = vunpack.c.h.b16 %v4955
  %v5365 = vunpack.c.l.b16 %v4956
  %v5366 = vunpack.c.h.b16 %v4956
  %v5367 = vunpack.c.l.b16 %v4957
  %v5368 = vunpack.c.h.b16 %v4957
  %v5369 = vunpack.c.l.b16 %v4958
  %v5370 = vunpack.c.h.b16 %v4958
  %v5371 = vunpack.c.l.b16 %v4959
  %v5372 = vunpack.c.h.b16 %v4959
  %v5373 = vunpack.c.l.b16 %v4960
  %v5374 = vunpack.c.h.b16 %v4960
  %v5375 = vunpack.c.l.b16 %v4961
  %v5376 = vunpack.c.h.b16 %v4961
  %v5377 = vunpack.c.l.b16 %v4962
  %v5378 = vunpack.c.h.b16 %v4962
  %v5379 = vunpack.c.l.b16 %v4963
  %v5380 = vunpack.c.h.b16 %v4963
  %v5381 = vunpack.c.l.b16 %v4964
  %v5382 = vunpack.c.h.b16 %v4964
  %v5383 = vunpack.c.l.b16 %v4965
  %v5384 = vunpack.c.h.b16 %v4965
  %v5385 = vunpack.c.l.b16 %v4966
  %v5386 = vunpack.c.h.b16 %v4966
  %v5387 = vpack.c.b16 %v5225, %v5219
  %v5388 = vpack.c.b16 %v5226, %v5220
  %v5389 = vpack.c.b16 %v5227, %v5221
  %v5390 = vpack.c.b16 %v5228, %v5222
  %v5391 = vpack.c.b16 %v5229, %v5223
  %v5392 = vpack.c.b16 %v5230, %v5224
  %v5393 = vpack.c.b16 %v5237, %v5231
  %v5394 = vpack.c.b16 %v5238, %v5232
  %v5395 = vpack.c.b16 %v5239, %v5233
  %v5396 = vpack.c.b16 %v5240, %v5234
  %v5397 = vpack.c.b16 %v5241, %v5235
  %v5398 = vpack.c.b16 %v5242, %v5236
  %v5399 = vpack.c.b16 %v5249, %v5243
  %v5400 = vpack.c.b16 %v5250, %v5244
  %v5401 = vpack.c.b16 %v5251, %v5245
  %v5402 = vpack.c.b16 %v5252, %v5246
  %v5403 = vpack.c.b16 %v5253, %v5247
  %v5404 = vpack.c.b16 %v5254, %v5248
  %v5405 = vpack.c.b16 %v5261, %v5255
  %v5406 = vpack.c.b16 %v5262, %v5256
  %v5407 = vpack.c.b16 %v5263, %v5257
  %v5408 = vpack.c.b16 %v5264, %v5258
  %v5409 = vpack.c.b16 %v5265, %v5259
  %v5410 = vpack.c.b16 %v5266, %v5260
  %v5411 = vpack.c.b16 %v5273, %v5267
  %v5412 = vpack.c.b16 %v5274, %v5268
  %v5413 = vpack.c.b16 %v5275, %v5269
  %v5414 = vpack.c.b16 %v5276, %v5270
  %v5415 = vpack.c.b16 %v5277, %v5271
  %v5416 = vpack.c.b16 %v5278, %v5272
  %v5417 = vpack.c.b16 %v5285, %v5279
  %v5418 = vpack.c.b16 %v5286, %v5280
  %v5419 = vpack.c.b16 %v5287, %v5281
  %v5420 = vpack.c.b16 %v5288, %v5282
  %v5421 = vpack.c.b16 %v5289, %v5283
  %v5422 = vpack.c.b16 %v5290, %v5284
  %v5423 = vpack.c.b16 %v5297, %v5291
  %v5424 = vpack.c.b16 %v5298, %v5292
  %v5425 = vpack.c.b16 %v5299, %v5293
  %v5426 = vpack.c.b16 %v5300, %v5294
  %v5427 = vpack.c.b16 %v5301, %v5295
  %v5428 = vpack.c.b16 %v5302, %v5296
  %v5429 = vpack.c.b16 %v5309, %v5303
  %v5430 = vpack.c.b16 %v5310, %v5304
  %v5431 = vpack.c.b16 %v5311, %v5305
  %v5432 = vpack.c.b16 %v5312, %v5306
  %v5433 = vpack.c.b16 %v5313, %v5307
  %v5434 = vpack.c.b16 %v5314, %v5308
  %v5435 = vpack.c.b16 %v5321, %v5315
  %v5436 = vpack.c.b16 %v5322, %v5316
  %v5437 = vpack.c.b16 %v5323, %v5317
  %v5438 = vpack.c.b16 %v5324, %v5318
  %v5439 = vpack.c.b16 %v5325, %v5319
  %v5440 = vpack.c.b16 %v5326, %v5320
  %v5441 = vpack.c.b16 %v5333, %v5327
  %v5442 = vpack.c.b16 %v5334, %v5328
  %v5443 = vpack.c.b16 %v5335, %v5329
  %v5444 = vpack.c.b16 %v5336, %v5330
  %v5445 = vpack.c.b16 %v5337, %v5331
  %v5446 = vpack.c.b16 %v5338, %v5332
  %v5447 = vpack.c.b16 %v5345, %v5339
  %v5448 = vpack.c.b16 %v5346, %v5340
  %v5449 = vpack.c.b16 %v5347, %v5341
  %v5450 = vpack.c.b16 %v5348, %v5342
  %v5451 = vpack.c.b16 %v5349, %v5343
  %v5452 = vpack.c.b16 %v5350, %v5344
  %v5453 = vpack.c.b16 %v5357, %v5351
  %v5454 = vpack.c.b16 %v5358, %v5352
  %v5455 = vpack.c.b16 %v5359, %v5353
  %v5456 = vpack.c.b16 %v5360, %v5354
  %v5457 = vpack.c.b16 %v5361, %v5355
  %v5458 = vpack.c.b16 %v5362, %v5356
  %v5459 = vpack.c.b16 %v5369, %v5363
  %v5460 = vpack.c.b16 %v5370, %v5364
  %v5461 = vpack.c.b16 %v5371, %v5365
  %v5462 = vpack.c.b16 %v5372, %v5366
  %v5463 = vpack.c.b16 %v5373, %v5367
  %v5464 = vpack.c.b16 %v5374, %v5368
  %v5465 = vpack.c.b16 %v5381, %v5375
  %v5466 = vpack.c.b16 %v5382, %v5376
  %v5467 = vpack.c.b16 %v5383, %v5377
  %v5468 = vpack.c.b16 %v5384, %v5378
  %v5469 = vpack.c.b16 %v5385, %v5379
  %v5470 = vpack.c.b16 %v5386, %v5380
  %vm5541 = vcmask 261120
  %v5543 = vsel %vm5541, %v5392, 0
  %v5546 = vsel %vm5541, %v5398, 0
  %v5549 = vsel %vm5541, %v5404, 0
  %v5552 = vsel %vm5541, %v5410, 0
  %v5555 = vsel %vm5541, %v5416, 0
  %v5558 = vsel %vm5541, %v5422, 0
  %v5561 = vsel %vm5541, %v5428, 0
  %v5564 = vsel %vm5541, %v5434, 0
  %v5567 = vsel %vm5541, %v5440, 0
  %v5570 = vsel %vm5541, %v5446, 0
  %v5573 = vsel %vm5541, %v5452, 0
  %v5576 = vsel %vm5541, %v5458, 0
  %v5579 = vsel %vm5541, %v5464, 0
  %v5582 = vsel %vm5541, %v5470, 0
  %5584 = vmatprep.subr.bf16.mxu0 0
  %5585 = vmatpush1.bf16.msra.mxu0 %v4841
  %5586 = vmatprep.subr.bf16.mxu0 0
  %5587 = vmatpush1.bf16.msra.mxu0 %v4842
  %5588 = vmatprep.subr.bf16.mxu0 0
  %5589 = vmatpush1.bf16.msra.mxu0 %v4843
  %5590 = vmatprep.subr.bf16.mxu0 0
  %5591 = vmatpush1.bf16.msra.mxu0 %v4844
  %5592 = vmatprep.subr.bf16.mxu0 0
  %5593 = vmatpush1.bf16.msra.mxu0 %v4845
  %5594 = vmatprep.subr.bf16.mxu0 0
  %5595 = vmatpush1.bf16.msra.mxu0 %v4846
  %5596 = vmatprep.subr.bf16.mxu0 0
  %5597 = vmatpush1.bf16.msra.mxu0 %v4847
  %5598 = vmatprep.subr.bf16.mxu0 0
  %5599 = vmatpush1.bf16.msra.mxu0 %v4848
  %5600 = vmatprep.subr.bf16.mxu0 0
  %5601 = vmatpush1.bf16.msra.mxu0 %v4849
  %5602 = vmatprep.subr.bf16.mxu0 0
  %5603 = vmatpush1.bf16.msra.mxu0 %v4850
  %5604 = vmatprep.subr.bf16.mxu0 0
  %5605 = vmatpush1.bf16.msra.mxu0 %v4851
  %5606 = vmatprep.subr.bf16.mxu0 0
  %5607 = vmatpush1.bf16.msra.mxu0 %v4852
  %5608 = vmatprep.subr.bf16.mxu0 0
  %5609 = vmatpush1.bf16.msra.mxu0 %v4853
  %5610 = vmatprep.subr.bf16.mxu0 0
  %5611 = vmatpush1.bf16.msra.mxu0 %v4854
  %5612 = vmatprep.subr.bf16.mxu0 0
  %5613 = vmatpush1.bf16.msra.mxu0 %v4855
  %5614 = vmatprep.subr.bf16.mxu0 0
  %5615 = vmatpush1.bf16.msra.mxu0 %v4856
  %5616 = vmatprep.mubr.bf16.mxu0 %v5388
  %5617 = vmatmul.mubr.bf16.gmra.mrb[0].mxu0 %v5387
  %v5618 = vpop.f32.mrb[0].mxu0
  %v5619 = vadd.f32 %v4998, %v5618
  %v5620 = vpop.f32.mrb[0].mxu0
  %v5621 = vpop.f32.mrb[0].mxu0
  %v5622 = vadd.f32 %v5003, %v5621
  %v5623 = vpop.f32.mrb[0].mxu0
  %5624 = vmatprep.mubr.bf16.mxu0 %v5394
  %5625 = vmatmul.mubr.bf16.gmra.mrb[0].mxu0 %v5393
  %v5626 = vpop.f32.mrb[0].mxu0
  %v5627 = vadd.f32 %v5008, %v5626
  %v5628 = vpop.f32.mrb[0].mxu0
  %v5629 = vpop.f32.mrb[0].mxu0
  %v5630 = vadd.f32 %v5013, %v5629
  %v5631 = vpop.f32.mrb[0].mxu0
  %5632 = vmatprep.mubr.bf16.mxu0 %v5400
  %5633 = vmatmul.mubr.bf16.gmra.mrb[0].mxu0 %v5399
  %v5634 = vpop.f32.mrb[0].mxu0
  %v5635 = vadd.f32 %v5018, %v5634
  %v5636 = vpop.f32.mrb[0].mxu0
  %v5637 = vpop.f32.mrb[0].mxu0
  %v5638 = vadd.f32 %v5023, %v5637
  %v5639 = vpop.f32.mrb[0].mxu0
  %5640 = vmatprep.mubr.bf16.mxu0 %v5406
  %5641 = vmatmul.mubr.bf16.gmra.mrb[0].mxu0 %v5405
  %v5642 = vpop.f32.mrb[0].mxu0
  %v5643 = vadd.f32 %v5028, %v5642
  %v5644 = vpop.f32.mrb[0].mxu0
  %v5645 = vpop.f32.mrb[0].mxu0
  %v5646 = vadd.f32 %v5033, %v5645
  %v5647 = vpop.f32.mrb[0].mxu0
  %5648 = vmatprep.mubr.bf16.mxu0 %v5412
  %5649 = vmatmul.mubr.bf16.gmra.mrb[0].mxu0 %v5411
  %v5650 = vpop.f32.mrb[0].mxu0
  %v5651 = vadd.f32 %v5038, %v5650
  %v5652 = vpop.f32.mrb[0].mxu0
  %v5653 = vpop.f32.mrb[0].mxu0
  %v5654 = vadd.f32 %v5043, %v5653
  %v5655 = vpop.f32.mrb[0].mxu0
  %5656 = vmatprep.mubr.bf16.mxu0 %v5418
  %5657 = vmatmul.mubr.bf16.gmra.mrb[0].mxu0 %v5417
  %v5658 = vpop.f32.mrb[0].mxu0
  %v5659 = vadd.f32 %v5048, %v5658
  %v5660 = vpop.f32.mrb[0].mxu0
  %v5661 = vpop.f32.mrb[0].mxu0
  %v5662 = vadd.f32 %v5053, %v5661
  %v5663 = vpop.f32.mrb[0].mxu0
  %5664 = vmatprep.mubr.bf16.mxu0 %v5424
  %5665 = vmatmul.mubr.bf16.gmra.mrb[0].mxu0 %v5423
  %v5666 = vpop.f32.mrb[0].mxu0
  %v5667 = vadd.f32 %v5058, %v5666
  %v5668 = vpop.f32.mrb[0].mxu0
  %v5669 = vpop.f32.mrb[0].mxu0
  %v5670 = vadd.f32 %v5063, %v5669
  %v5671 = vpop.f32.mrb[0].mxu0
  %5672 = vmatprep.mubr.bf16.mxu0 %v5430
  %5673 = vmatmul.mubr.bf16.gmra.mrb[0].mxu0 %v5429
  %v5674 = vpop.f32.mrb[0].mxu0
  %v5675 = vadd.f32 %v5068, %v5674
  %v5676 = vpop.f32.mrb[0].mxu0
  %v5677 = vpop.f32.mrb[0].mxu0
  %v5678 = vadd.f32 %v5073, %v5677
  %v5679 = vpop.f32.mrb[0].mxu0
  %5680 = vmatprep.mubr.bf16.mxu0 %v5436
  %5681 = vmatmul.mubr.bf16.gmra.mrb[0].mxu0 %v5435
  %v5682 = vpop.f32.mrb[0].mxu0
  %v5683 = vadd.f32 %v5078, %v5682
  %v5684 = vpop.f32.mrb[0].mxu0
  %v5685 = vpop.f32.mrb[0].mxu0
  %v5686 = vadd.f32 %v5083, %v5685
  %v5687 = vpop.f32.mrb[0].mxu0
  %5688 = vmatprep.mubr.bf16.mxu0 %v5442
  %5689 = vmatmul.mubr.bf16.gmra.mrb[0].mxu0 %v5441
  %v5690 = vpop.f32.mrb[0].mxu0
  %v5691 = vadd.f32 %v5088, %v5690
  %v5692 = vpop.f32.mrb[0].mxu0
  %v5693 = vpop.f32.mrb[0].mxu0
  %v5694 = vadd.f32 %v5093, %v5693
  %v5695 = vpop.f32.mrb[0].mxu0
  %5696 = vmatprep.mubr.bf16.mxu0 %v5448
  %5697 = vmatmul.mubr.bf16.gmra.mrb[0].mxu0 %v5447
  %v5698 = vpop.f32.mrb[0].mxu0
  %v5699 = vadd.f32 %v5098, %v5698
  %v5700 = vpop.f32.mrb[0].mxu0
  %v5701 = vpop.f32.mrb[0].mxu0
  %v5702 = vadd.f32 %v5103, %v5701
  %v5703 = vpop.f32.mrb[0].mxu0
  %5704 = vmatprep.mubr.bf16.mxu0 %v5454
  %5705 = vmatmul.mubr.bf16.gmra.mrb[0].mxu0 %v5453
  %v5706 = vpop.f32.mrb[0].mxu0
  %v5707 = vadd.f32 %v5108, %v5706
  %v5708 = vpop.f32.mrb[0].mxu0
  %v5709 = vpop.f32.mrb[0].mxu0
  %v5710 = vadd.f32 %v5113, %v5709
  %v5711 = vpop.f32.mrb[0].mxu0
  %5712 = vmatprep.mubr.bf16.mxu0 %v5460
  %5713 = vmatmul.mubr.bf16.gmra.mrb[0].mxu0 %v5459
  %v5714 = vpop.f32.mrb[0].mxu0
  %v5715 = vadd.f32 %v5118, %v5714
  %v5716 = vpop.f32.mrb[0].mxu0
  %v5717 = vpop.f32.mrb[0].mxu0
  %v5718 = vadd.f32 %v5123, %v5717
  %v5719 = vpop.f32.mrb[0].mxu0
  %5720 = vmatprep.mubr.bf16.mxu0 %v5466
  %5721 = vmatmul.mubr.bf16.gmra.mrb[0].mxu0 %v5465
  %v5722 = vpop.f32.mrb[0].mxu0
  %v5723 = vadd.f32 %v5128, %v5722
  %v5724 = vpop.f32.mrb[0].mxu0
  %v5725 = vpop.f32.mrb[0].mxu0
  %v5726 = vadd.f32 %v5133, %v5725
  %v5727 = vpop.f32.mrb[0].mxu0
  %5728 = vdwg.mxu0
  %5729 = vmatprep.subr.bf16.mxu0 0
  %5730 = vmatpush1.bf16.msra.mxu0 %v4857
  %5731 = vmatprep.subr.bf16.mxu0 0
  %5732 = vmatpush1.bf16.msra.mxu0 %v4858
  %5733 = vmatprep.subr.bf16.mxu0 0
  %5734 = vmatpush1.bf16.msra.mxu0 %v4859
  %5735 = vmatprep.subr.bf16.mxu0 0
  %5736 = vmatpush1.bf16.msra.mxu0 %v4860
  %5737 = vmatprep.subr.bf16.mxu0 0
  %5738 = vmatpush1.bf16.msra.mxu0 %v4861
  %5739 = vmatprep.subr.bf16.mxu0 0
  %5740 = vmatpush1.bf16.msra.mxu0 %v4862
  %5741 = vmatprep.subr.bf16.mxu0 0
  %5742 = vmatpush1.bf16.msra.mxu0 %v4863
  %5743 = vmatprep.subr.bf16.mxu0 0
  %5744 = vmatpush1.bf16.msra.mxu0 %v4864
  %5745 = vmatprep.subr.bf16.mxu0 0
  %5746 = vmatpush1.bf16.msra.mxu0 %v4865
  %5747 = vmatprep.subr.bf16.mxu0 0
  %5748 = vmatpush1.bf16.msra.mxu0 %v4866
  %5749 = vmatprep.subr.bf16.mxu0 0
  %5750 = vmatpush1.bf16.msra.mxu0 %v4867
  %5751 = vmatprep.subr.bf16.mxu0 0
  %5752 = vmatpush1.bf16.msra.mxu0 %v4868
  %5753 = vmatprep.subr.bf16.mxu0 0
  %5754 = vmatpush1.bf16.msra.mxu0 %v4869
  %5755 = vmatprep.subr.bf16.mxu0 0
  %5756 = vmatpush1.bf16.msra.mxu0 %v4870
  %5757 = vmatprep.subr.bf16.mxu0 0
  %5758 = vmatpush1.bf16.msra.mxu0 %v4871
  %5759 = vmatprep.subr.bf16.mxu0 0
  %5760 = vmatpush1.bf16.msra.mxu0 %v4872
  %5761 = vmatprep.mubr.bf16.mxu0 %v5390
  %5762 = vmatmul.mubr.bf16.gmra.mrb[0].mxu0 %v5389
  %v5763 = vpop.f32.mrb[0].mxu0
  %v5764 = vadd.f32 %v5619, %v5763
  %v5765 = vpop.f32.mrb[0].mxu0
  %v5766 = vpop.f32.mrb[0].mxu0
  %v5767 = vadd.f32 %v5622, %v5766
  %v5768 = vpop.f32.mrb[0].mxu0
  %5769 = vmatprep.mubr.bf16.mxu0 %v5396
  %5770 = vmatmul.mubr.bf16.gmra.mrb[0].mxu0 %v5395
  %v5771 = vpop.f32.mrb[0].mxu0
  %v5772 = vadd.f32 %v5627, %v5771
  %v5773 = vpop.f32.mrb[0].mxu0
  %v5774 = vpop.f32.mrb[0].mxu0
  %v5775 = vadd.f32 %v5630, %v5774
  %v5776 = vpop.f32.mrb[0].mxu0
  %5777 = vmatprep.mubr.bf16.mxu0 %v5402
  %5778 = vmatmul.mubr.bf16.gmra.mrb[0].mxu0 %v5401
  %v5779 = vpop.f32.mrb[0].mxu0
  %v5780 = vadd.f32 %v5635, %v5779
  %v5781 = vpop.f32.mrb[0].mxu0
  %v5782 = vpop.f32.mrb[0].mxu0
  %v5783 = vadd.f32 %v5638, %v5782
  %v5784 = vpop.f32.mrb[0].mxu0
  %5785 = vmatprep.mubr.bf16.mxu0 %v5408
  %5786 = vmatmul.mubr.bf16.gmra.mrb[0].mxu0 %v5407
  %v5787 = vpop.f32.mrb[0].mxu0
  %v5788 = vadd.f32 %v5643, %v5787
  %v5789 = vpop.f32.mrb[0].mxu0
  %v5790 = vpop.f32.mrb[0].mxu0
  %v5791 = vadd.f32 %v5646, %v5790
  %v5792 = vpop.f32.mrb[0].mxu0
  %5793 = vmatprep.mubr.bf16.mxu0 %v5414
  %5794 = vmatmul.mubr.bf16.gmra.mrb[0].mxu0 %v5413
  %v5795 = vpop.f32.mrb[0].mxu0
  %v5796 = vadd.f32 %v5651, %v5795
  %v5797 = vpop.f32.mrb[0].mxu0
  %v5798 = vpop.f32.mrb[0].mxu0
  %v5799 = vadd.f32 %v5654, %v5798
  %v5800 = vpop.f32.mrb[0].mxu0
  %5801 = vmatprep.mubr.bf16.mxu0 %v5420
  %5802 = vmatmul.mubr.bf16.gmra.mrb[0].mxu0 %v5419
  %v5803 = vpop.f32.mrb[0].mxu0
  %v5804 = vadd.f32 %v5659, %v5803
  %v5805 = vpop.f32.mrb[0].mxu0
  %v5806 = vpop.f32.mrb[0].mxu0
  %v5807 = vadd.f32 %v5662, %v5806
  %v5808 = vpop.f32.mrb[0].mxu0
  %5809 = vmatprep.mubr.bf16.mxu0 %v5426
  %5810 = vmatmul.mubr.bf16.gmra.mrb[0].mxu0 %v5425
  %v5811 = vpop.f32.mrb[0].mxu0
  %v5812 = vadd.f32 %v5667, %v5811
  %v5813 = vpop.f32.mrb[0].mxu0
  %v5814 = vpop.f32.mrb[0].mxu0
  %v5815 = vadd.f32 %v5670, %v5814
  %v5816 = vpop.f32.mrb[0].mxu0
  %5817 = vmatprep.mubr.bf16.mxu0 %v5432
  %5818 = vmatmul.mubr.bf16.gmra.mrb[0].mxu0 %v5431
  %v5819 = vpop.f32.mrb[0].mxu0
  %v5820 = vadd.f32 %v5675, %v5819
  %v5821 = vpop.f32.mrb[0].mxu0
  %v5822 = vpop.f32.mrb[0].mxu0
  %v5823 = vadd.f32 %v5678, %v5822
  %v5824 = vpop.f32.mrb[0].mxu0
  %5825 = vmatprep.mubr.bf16.mxu0 %v5438
  %5826 = vmatmul.mubr.bf16.gmra.mrb[0].mxu0 %v5437
  %v5827 = vpop.f32.mrb[0].mxu0
  %v5828 = vadd.f32 %v5683, %v5827
  %v5829 = vpop.f32.mrb[0].mxu0
  %v5830 = vpop.f32.mrb[0].mxu0
  %v5831 = vadd.f32 %v5686, %v5830
  %v5832 = vpop.f32.mrb[0].mxu0
  %5833 = vmatprep.mubr.bf16.mxu0 %v5444
  %5834 = vmatmul.mubr.bf16.gmra.mrb[0].mxu0 %v5443
  %v5835 = vpop.f32.mrb[0].mxu0
  %v5836 = vadd.f32 %v5691, %v5835
  %v5837 = vpop.f32.mrb[0].mxu0
  %v5838 = vpop.f32.mrb[0].mxu0
  %v5839 = vadd.f32 %v5694, %v5838
  %v5840 = vpop.f32.mrb[0].mxu0
  %5841 = vmatprep.mubr.bf16.mxu0 %v5450
  %5842 = vmatmul.mubr.bf16.gmra.mrb[0].mxu0 %v5449
  %v5843 = vpop.f32.mrb[0].mxu0
  %v5844 = vadd.f32 %v5699, %v5843
  %v5845 = vpop.f32.mrb[0].mxu0
  %v5846 = vpop.f32.mrb[0].mxu0
  %v5847 = vadd.f32 %v5702, %v5846
  %v5848 = vpop.f32.mrb[0].mxu0
  %5849 = vmatprep.mubr.bf16.mxu0 %v5456
  %5850 = vmatmul.mubr.bf16.gmra.mrb[0].mxu0 %v5455
  %v5851 = vpop.f32.mrb[0].mxu0
  %v5852 = vadd.f32 %v5707, %v5851
  %v5853 = vpop.f32.mrb[0].mxu0
  %v5854 = vpop.f32.mrb[0].mxu0
  %v5855 = vadd.f32 %v5710, %v5854
  %v5856 = vpop.f32.mrb[0].mxu0
  %5857 = vmatprep.mubr.bf16.mxu0 %v5462
  %5858 = vmatmul.mubr.bf16.gmra.mrb[0].mxu0 %v5461
  %v5859 = vpop.f32.mrb[0].mxu0
  %v5860 = vadd.f32 %v5715, %v5859
  %v5861 = vpop.f32.mrb[0].mxu0
  %v5862 = vpop.f32.mrb[0].mxu0
  %v5863 = vadd.f32 %v5718, %v5862
  %v5864 = vpop.f32.mrb[0].mxu0
  %5865 = vmatprep.mubr.bf16.mxu0 %v5468
  %5866 = vmatmul.mubr.bf16.gmra.mrb[0].mxu0 %v5467
  %v5867 = vpop.f32.mrb[0].mxu0
  %v5868 = vadd.f32 %v5723, %v5867
  %v5869 = vpop.f32.mrb[0].mxu0
  %v5870 = vpop.f32.mrb[0].mxu0
  %v5871 = vadd.f32 %v5726, %v5870
  %v5872 = vpop.f32.mrb[0].mxu0
  %5873 = vdwg.mxu0
  %5874 = vmatprep.subr.bf16.mxu0 0
  %5875 = vmatpush1.bf16.msra.mxu0 %v4873
  %5876 = vmatprep.subr.bf16.mxu0 0
  %5877 = vmatpush1.bf16.msra.mxu0 %v4874
  %5878 = vmatprep.subr.bf16.mxu0 0
  %5879 = vmatpush1.bf16.msra.mxu0 %v4875
  %5880 = vmatprep.subr.bf16.mxu0 0
  %5881 = vmatpush1.bf16.msra.mxu0 %v4876
  %5882 = vmatprep.subr.bf16.mxu0 0
  %5883 = vmatpush1.bf16.msra.mxu0 %v4877
  %5884 = vmatprep.subr.bf16.mxu0 0
  %5885 = vmatpush1.bf16.msra.mxu0 %v4878
  %5886 = vmatprep.subr.bf16.mxu0 0
  %5887 = vmatpush1.bf16.msra.mxu0 %v4879
  %5888 = vmatprep.subr.bf16.mxu0 0
  %5889 = vmatpush1.bf16.msra.mxu0 %v4880
  %5890 = vmatprep.subr.bf16.mxu0 0
  %5891 = vmatpush1.bf16.msra.mxu0 %v4881
  %5892 = vmatprep.subr.bf16.mxu0 0
  %5893 = vmatpush1.bf16.msra.mxu0 %v4882
  %5894 = vmatprep.subr.bf16.mxu0 0
  %5895 = vmatpush1.bf16.msra.mxu0 0
  %5896 = vmatprep.subr.bf16.mxu0 0
  %5897 = vmatpush1.bf16.msra.mxu0 0
  %5898 = vmatprep.subr.bf16.mxu0 0
  %5899 = vmatpush1.bf16.msra.mxu0 0
  %5900 = vmatprep.subr.bf16.mxu0 0
  %5901 = vmatpush1.bf16.msra.mxu0 0
  %5902 = vmatprep.subr.bf16.mxu0 0
  %5903 = vmatpush1.bf16.msra.mxu0 0
  %5904 = vmatprep.subr.bf16.mxu0 0
  %5905 = vmatpush1.bf16.msra.mxu0 0
  %5906 = vmatprep.mubr.bf16.mxu0 %v5543
  %5907 = vmatmul.mubr.bf16.gmra.mrb[0].mxu0 %v5391
  %v5908 = vpop.f32.mrb[0].mxu0
  %v5909 = vadd.f32 %v5764, %v5908
  %v5910 = vpop.f32.mrb[0].mxu0
  %v5911 = vpop.f32.mrb[0].mxu0
  %v5912 = vadd.f32 %v5767, %v5911
  %v5913 = vpop.f32.mrb[0].mxu0
  %5914 = vmatprep.mubr.bf16.mxu0 %v5546
  %5915 = vmatmul.mubr.bf16.gmra.mrb[0].mxu0 %v5397
  %v5916 = vpop.f32.mrb[0].mxu0
  %v5917 = vadd.f32 %v5772, %v5916
  %v5918 = vpop.f32.mrb[0].mxu0
  %v5919 = vpop.f32.mrb[0].mxu0
  %v5920 = vadd.f32 %v5775, %v5919
  %v5921 = vpop.f32.mrb[0].mxu0
  %5922 = vmatprep.mubr.bf16.mxu0 %v5549
  %5923 = vmatmul.mubr.bf16.gmra.mrb[0].mxu0 %v5403
  %v5924 = vpop.f32.mrb[0].mxu0
  %v5925 = vadd.f32 %v5780, %v5924
  %v5926 = vpop.f32.mrb[0].mxu0
  %v5927 = vpop.f32.mrb[0].mxu0
  %v5928 = vadd.f32 %v5783, %v5927
  %v5929 = vpop.f32.mrb[0].mxu0
  %5930 = vmatprep.mubr.bf16.mxu0 %v5552
  %5931 = vmatmul.mubr.bf16.gmra.mrb[0].mxu0 %v5409
  %v5932 = vpop.f32.mrb[0].mxu0
  %v5933 = vadd.f32 %v5788, %v5932
  %v5934 = vpop.f32.mrb[0].mxu0
  %v5935 = vpop.f32.mrb[0].mxu0
  %v5936 = vadd.f32 %v5791, %v5935
  %v5937 = vpop.f32.mrb[0].mxu0
  %5938 = vmatprep.mubr.bf16.mxu0 %v5555
  %5939 = vmatmul.mubr.bf16.gmra.mrb[0].mxu0 %v5415
  %v5940 = vpop.f32.mrb[0].mxu0
  %v5941 = vadd.f32 %v5796, %v5940
  %v5942 = vpop.f32.mrb[0].mxu0
  %v5943 = vpop.f32.mrb[0].mxu0
  %v5944 = vadd.f32 %v5799, %v5943
  %v5945 = vpop.f32.mrb[0].mxu0
  %5946 = vmatprep.mubr.bf16.mxu0 %v5558
  %5947 = vmatmul.mubr.bf16.gmra.mrb[0].mxu0 %v5421
  %v5948 = vpop.f32.mrb[0].mxu0
  %v5949 = vadd.f32 %v5804, %v5948
  %v5950 = vpop.f32.mrb[0].mxu0
  %v5951 = vpop.f32.mrb[0].mxu0
  %v5952 = vadd.f32 %v5807, %v5951
  %v5953 = vpop.f32.mrb[0].mxu0
  %5954 = vmatprep.mubr.bf16.mxu0 %v5561
  %5955 = vmatmul.mubr.bf16.gmra.mrb[0].mxu0 %v5427
  %v5956 = vpop.f32.mrb[0].mxu0
  %v5957 = vadd.f32 %v5812, %v5956
  %v5958 = vpop.f32.mrb[0].mxu0
  %v5959 = vpop.f32.mrb[0].mxu0
  %v5960 = vadd.f32 %v5815, %v5959
  %v5961 = vpop.f32.mrb[0].mxu0
  %5962 = vmatprep.mubr.bf16.mxu0 %v5564
  %5963 = vmatmul.mubr.bf16.gmra.mrb[0].mxu0 %v5433
  %v5964 = vpop.f32.mrb[0].mxu0
  %v5965 = vadd.f32 %v5820, %v5964
  %v5966 = vpop.f32.mrb[0].mxu0
  %v5967 = vpop.f32.mrb[0].mxu0
  %v5968 = vadd.f32 %v5823, %v5967
  %v5969 = vpop.f32.mrb[0].mxu0
  %5970 = vmatprep.mubr.bf16.mxu0 %v5567
  %5971 = vmatmul.mubr.bf16.gmra.mrb[0].mxu0 %v5439
  %v5972 = vpop.f32.mrb[0].mxu0
  %v5973 = vadd.f32 %v5828, %v5972
  %v5974 = vpop.f32.mrb[0].mxu0
  %v5975 = vpop.f32.mrb[0].mxu0
  %v5976 = vadd.f32 %v5831, %v5975
  %v5977 = vpop.f32.mrb[0].mxu0
  %5978 = vmatprep.mubr.bf16.mxu0 %v5570
  %5979 = vmatmul.mubr.bf16.gmra.mrb[0].mxu0 %v5445
  %v5980 = vpop.f32.mrb[0].mxu0
  %v5981 = vadd.f32 %v5836, %v5980
  %v5982 = vpop.f32.mrb[0].mxu0
  %v5983 = vpop.f32.mrb[0].mxu0
  %v5984 = vadd.f32 %v5839, %v5983
  %v5985 = vpop.f32.mrb[0].mxu0
  %5986 = vmatprep.mubr.bf16.mxu0 %v5573
  %5987 = vmatmul.mubr.bf16.gmra.mrb[0].mxu0 %v5451
  %v5988 = vpop.f32.mrb[0].mxu0
  %v5989 = vadd.f32 %v5844, %v5988
  %v5990 = vpop.f32.mrb[0].mxu0
  %v5991 = vpop.f32.mrb[0].mxu0
  %v5992 = vadd.f32 %v5847, %v5991
  %v5993 = vpop.f32.mrb[0].mxu0
  %5994 = vmatprep.mubr.bf16.mxu0 %v5576
  %5995 = vmatmul.mubr.bf16.gmra.mrb[0].mxu0 %v5457
  %v5996 = vpop.f32.mrb[0].mxu0
  %v5997 = vadd.f32 %v5852, %v5996
  %v5998 = vpop.f32.mrb[0].mxu0
  %v5999 = vpop.f32.mrb[0].mxu0
  %v6000 = vadd.f32 %v5855, %v5999
  %v6001 = vpop.f32.mrb[0].mxu0
  %6002 = vmatprep.mubr.bf16.mxu0 %v5579
  %6003 = vmatmul.mubr.bf16.gmra.mrb[0].mxu0 %v5463
  %v6004 = vpop.f32.mrb[0].mxu0
  %v6005 = vadd.f32 %v5860, %v6004
  %v6006 = vpop.f32.mrb[0].mxu0
  %v6007 = vpop.f32.mrb[0].mxu0
  %v6008 = vadd.f32 %v5863, %v6007
  %v6009 = vpop.f32.mrb[0].mxu0
  %6010 = vmatprep.mubr.bf16.mxu0 %v5582
  %6011 = vmatmul.mubr.bf16.gmra.mrb[0].mxu0 %v5469
  %v6012 = vpop.f32.mrb[0].mxu0
  %v6013 = vadd.f32 %v5868, %v6012
  %v6014 = vpop.f32.mrb[0].mxu0
  %v6015 = vpop.f32.mrb[0].mxu0
  %v6016 = vadd.f32 %v5871, %v6015
  %v6017 = vpop.f32.mrb[0].mxu0
  %6018 = vdwg.mxu0
  %v6019 = vmax.f32 %v5909, 0.0
  %v6020 = vmax.f32 %v5912, 0.0
  %v6021 = vmax.f32 %v5917, 0.0
  %v6022 = vmax.f32 %v5920, 0.0
  %v6023 = vmax.f32 %v5925, 0.0
  %v6024 = vmax.f32 %v5928, 0.0
  %v6025 = vmax.f32 %v5933, 0.0
  %v6026 = vmax.f32 %v5936, 0.0
  %v6027 = vmax.f32 %v5941, 0.0
  %v6028 = vmax.f32 %v5944, 0.0
  %v6029 = vmax.f32 %v5949, 0.0
  %v6030 = vmax.f32 %v5952, 0.0
  %v6031 = vmax.f32 %v5957, 0.0
  %v6032 = vmax.f32 %v5960, 0.0
  %v6033 = vmax.f32 %v5965, 0.0
  %v6034 = vmax.f32 %v5968, 0.0
  %v6035 = vmax.f32 %v5973, 0.0
  %v6036 = vmax.f32 %v5976, 0.0
  %v6037 = vmax.f32 %v5981, 0.0
  %v6038 = vmax.f32 %v5984, 0.0
  %v6039 = vmax.f32 %v5989, 0.0
  %v6040 = vmax.f32 %v5992, 0.0
  %v6041 = vmax.f32 %v5997, 0.0
  %v6042 = vmax.f32 %v6000, 0.0
  %v6043 = vmax.f32 %v6005, 0.0
  %v6044 = vmax.f32 %v6008, 0.0
  %v6045 = vmax.f32 %v6013, 0.0
  %v6046 = vmax.f32 %v6016, 0.0
  %v6047 = vpack.c.bf16 %v6020, %v6019
  %v6048 = vpack.c.bf16 %v6022, %v6021
  %v6049 = vpack.c.bf16 %v6024, %v6023
  %v6050 = vpack.c.bf16 %v6026, %v6025
  %v6051 = vpack.c.bf16 %v6028, %v6027
  %v6052 = vpack.c.bf16 %v6030, %v6029
  %v6053 = vpack.c.bf16 %v6032, %v6031
  %v6054 = vpack.c.bf16 %v6034, %v6033
  %v6055 = vpack.c.bf16 %v6036, %v6035
  %v6056 = vpack.c.bf16 %v6038, %v6037
  %v6057 = vpack.c.bf16 %v6040, %v6039
  %v6058 = vpack.c.bf16 %v6042, %v6041
  %v6059 = vpack.c.bf16 %v6044, %v6043
  %v6060 = vpack.c.bf16 %v6046, %v6045
  %v6061 = vld [vmem:[%s21] sm:$0xf]
  %v6062 = vld [vmem:[%s21 + $0x4] sm:$0xf]
  %v6063 = vld [vmem:[%s21 + $0x8] sm:$0xf]
  %v6064 = vld [vmem:[%s21 + $0xc] sm:$0xf]
  %v6065 = vld [vmem:[%s21 + $0x10] sm:$0xf]
  %v6066 = vld [vmem:[%s21 + $0x14] sm:$0xf]
  %v6067 = vld [vmem:[%s21 + $0x18] sm:$0xf]
  %v6075 = vunpack.c.l.b16 %v6061
  %v6076 = vunpack.c.l.b16 %v6062
  %v6077 = vunpack.c.l.b16 %v6063
  %v6078 = vunpack.c.l.b16 %v6064
  %v6079 = vunpack.c.l.b16 %v6065
  %v6080 = vunpack.c.l.b16 %v6066
  %v6081 = vunpack.c.l.b16 %v6067
  %v6082 = vpack.c.b16 %v6076, %v6075
  %v6083 = vpack.c.b16 %v6078, %v6077
  %v6084 = vpack.c.b16 %v6080, %v6079
  %v6085 = vpack.c.b16 %v6081, %v6081
  %v6090 = vsel %vm112, %v6047, 0
  %v6093 = vsel %vm112, %v6048, 0
  %v6096 = vsel %vm112, %v6049, 0
  %v6099 = vsel %vm112, %v6050, 0
  %v6102 = vsel %vm112, %v6051, 0
  %v6105 = vsel %vm112, %v6052, 0
  %v6108 = vsel %vm112, %v6053, 0
  %v6111 = vsel %vm112, %v6054, 0
  %v6114 = vsel %vm112, %v6055, 0
  %v6117 = vsel %vm112, %v6056, 0
  %v6120 = vsel %vm112, %v6057, 0
  %v6123 = vsel %vm112, %v6058, 0
  %v6126 = vsel %vm112, %v6059, 0
  %v6129 = vsel %vm112, %v6060, 0
  %v6132 = vsel %vm119, %v6085, 0
  %6134 = vmatprep.subr.bf16.mxu0 0
  %6135 = vmatpush1.bf16.msra.mxu0 %v6082
  %6136 = vmatprep.subr.bf16.mxu0 0
  %6137 = vmatpush1.bf16.msra.mxu0 %v6083
  %6138 = vmatprep.subr.bf16.mxu0 0
  %6139 = vmatpush1.bf16.msra.mxu0 %v6084
  %6140 = vmatprep.subr.bf16.mxu0 0
  %6141 = vmatpush1.bf16.msra.mxu0 %v6132
  %6142 = vmatprep.subr.bf16.mxu0 0
  %6143 = vmatpush1.bf16.msra.mxu0 0
  %6144 = vmatprep.subr.bf16.mxu0 0
  %6145 = vmatpush1.bf16.msra.mxu0 0
  %6146 = vmatprep.subr.bf16.mxu0 0
  %6147 = vmatpush1.bf16.msra.mxu0 0
  %6148 = vmatprep.subr.bf16.mxu0 0
  %6149 = vmatpush1.bf16.msra.mxu0 0
  %6150 = vmatprep.subr.bf16.mxu0 0
  %6151 = vmatpush1.bf16.msra.mxu0 0
  %6152 = vmatprep.subr.bf16.mxu0 0
  %6153 = vmatpush1.bf16.msra.mxu0 0
  %6154 = vmatprep.subr.bf16.mxu0 0
  %6155 = vmatpush1.bf16.msra.mxu0 0
  %6156 = vmatprep.subr.bf16.mxu0 0
  %6157 = vmatpush1.bf16.msra.mxu0 0
  %6158 = vmatprep.subr.bf16.mxu0 0
  %6159 = vmatpush1.bf16.msra.mxu0 0
  %6160 = vmatprep.subr.bf16.mxu0 0
  %6161 = vmatpush1.bf16.msra.mxu0 0
  %6162 = vmatprep.subr.bf16.mxu0 0
  %6163 = vmatpush1.bf16.msra.mxu0 0
  %6164 = vmatprep.subr.bf16.mxu0 0
  %6165 = vmatpush1.bf16.msra.mxu0 0
  %6166 = vmatprep.mubr.bf16.mxu0 0
  %6167 = vmatmul.mubr.bf16.gmra.mrb[0].mxu0 %v6090
  %v6168 = vpop.f32.mrb[0].mxu0
  %v6169 = vadd.f32 0.0, %v6168
  %v6170 = vpop.f32.mrb[0].mxu0
  %v6171 = vpop.f32.mrb[0].mxu0
  %v6172 = vadd.f32 0.0, %v6171
  %v6173 = vpop.f32.mrb[0].mxu0
  %6174 = vmatprep.mubr.bf16.mxu0 0
  %6175 = vmatmul.mubr.bf16.gmra.mrb[0].mxu0 %v6093
  %v6176 = vpop.f32.mrb[0].mxu0
  %v6177 = vadd.f32 0.0, %v6176
  %v6178 = vpop.f32.mrb[0].mxu0
  %v6179 = vpop.f32.mrb[0].mxu0
  %v6180 = vadd.f32 0.0, %v6179
  %v6181 = vpop.f32.mrb[0].mxu0
  %6182 = vmatprep.mubr.bf16.mxu0 0
  %6183 = vmatmul.mubr.bf16.gmra.mrb[0].mxu0 %v6096
  %v6184 = vpop.f32.mrb[0].mxu0
  %v6185 = vadd.f32 0.0, %v6184
  %v6186 = vpop.f32.mrb[0].mxu0
  %v6187 = vpop.f32.mrb[0].mxu0
  %v6188 = vadd.f32 0.0, %v6187
  %v6189 = vpop.f32.mrb[0].mxu0
  %6190 = vmatprep.mubr.bf16.mxu0 0
  %6191 = vmatmul.mubr.bf16.gmra.mrb[0].mxu0 %v6099
  %v6192 = vpop.f32.mrb[0].mxu0
  %v6193 = vadd.f32 0.0, %v6192
  %v6194 = vpop.f32.mrb[0].mxu0
  %v6195 = vpop.f32.mrb[0].mxu0
  %v6196 = vadd.f32 0.0, %v6195
  %v6197 = vpop.f32.mrb[0].mxu0
  %6198 = vmatprep.mubr.bf16.mxu0 0
  %6199 = vmatmul.mubr.bf16.gmra.mrb[0].mxu0 %v6102
  %v6200 = vpop.f32.mrb[0].mxu0
  %v6201 = vadd.f32 0.0, %v6200
  %v6202 = vpop.f32.mrb[0].mxu0
  %v6203 = vpop.f32.mrb[0].mxu0
  %v6204 = vadd.f32 0.0, %v6203
  %v6205 = vpop.f32.mrb[0].mxu0
  %6206 = vmatprep.mubr.bf16.mxu0 0
  %6207 = vmatmul.mubr.bf16.gmra.mrb[0].mxu0 %v6105
  %v6208 = vpop.f32.mrb[0].mxu0
  %v6209 = vadd.f32 0.0, %v6208
  %v6210 = vpop.f32.mrb[0].mxu0
  %v6211 = vpop.f32.mrb[0].mxu0
  %v6212 = vadd.f32 0.0, %v6211
  %v6213 = vpop.f32.mrb[0].mxu0
  %6214 = vmatprep.mubr.bf16.mxu0 0
  %6215 = vmatmul.mubr.bf16.gmra.mrb[0].mxu0 %v6108
  %v6216 = vpop.f32.mrb[0].mxu0
  %v6217 = vadd.f32 0.0, %v6216
  %v6218 = vpop.f32.mrb[0].mxu0
  %v6219 = vpop.f32.mrb[0].mxu0
  %v6220 = vadd.f32 0.0, %v6219
  %v6221 = vpop.f32.mrb[0].mxu0
  %6222 = vmatprep.mubr.bf16.mxu0 0
  %6223 = vmatmul.mubr.bf16.gmra.mrb[0].mxu0 %v6111
  %v6224 = vpop.f32.mrb[0].mxu0
  %v6225 = vadd.f32 0.0, %v6224
  %v6226 = vpop.f32.mrb[0].mxu0
  %v6227 = vpop.f32.mrb[0].mxu0
  %v6228 = vadd.f32 0.0, %v6227
  %v6229 = vpop.f32.mrb[0].mxu0
  %6230 = vmatprep.mubr.bf16.mxu0 0
  %6231 = vmatmul.mubr.bf16.gmra.mrb[0].mxu0 %v6114
  %v6232 = vpop.f32.mrb[0].mxu0
  %v6233 = vadd.f32 0.0, %v6232
  %v6234 = vpop.f32.mrb[0].mxu0
  %v6235 = vpop.f32.mrb[0].mxu0
  %v6236 = vadd.f32 0.0, %v6235
  %v6237 = vpop.f32.mrb[0].mxu0
  %6238 = vmatprep.mubr.bf16.mxu0 0
  %6239 = vmatmul.mubr.bf16.gmra.mrb[0].mxu0 %v6117
  %v6240 = vpop.f32.mrb[0].mxu0
  %v6241 = vadd.f32 0.0, %v6240
  %v6242 = vpop.f32.mrb[0].mxu0
  %v6243 = vpop.f32.mrb[0].mxu0
  %v6244 = vadd.f32 0.0, %v6243
  %v6245 = vpop.f32.mrb[0].mxu0
  %6246 = vmatprep.mubr.bf16.mxu0 0
  %6247 = vmatmul.mubr.bf16.gmra.mrb[0].mxu0 %v6120
  %v6248 = vpop.f32.mrb[0].mxu0
  %v6249 = vadd.f32 0.0, %v6248
  %v6250 = vpop.f32.mrb[0].mxu0
  %v6251 = vpop.f32.mrb[0].mxu0
  %v6252 = vadd.f32 0.0, %v6251
  %v6253 = vpop.f32.mrb[0].mxu0
  %6254 = vmatprep.mubr.bf16.mxu0 0
  %6255 = vmatmul.mubr.bf16.gmra.mrb[0].mxu0 %v6123
  %v6256 = vpop.f32.mrb[0].mxu0
  %v6257 = vadd.f32 0.0, %v6256
  %v6258 = vpop.f32.mrb[0].mxu0
  %v6259 = vpop.f32.mrb[0].mxu0
  %v6260 = vadd.f32 0.0, %v6259
  %v6261 = vpop.f32.mrb[0].mxu0
  %6262 = vmatprep.mubr.bf16.mxu0 0
  %6263 = vmatmul.mubr.bf16.gmra.mrb[0].mxu0 %v6126
  %v6264 = vpop.f32.mrb[0].mxu0
  %v6265 = vadd.f32 0.0, %v6264
  %v6266 = vpop.f32.mrb[0].mxu0
  %v6267 = vpop.f32.mrb[0].mxu0
  %v6268 = vadd.f32 0.0, %v6267
  %v6269 = vpop.f32.mrb[0].mxu0
  %6270 = vmatprep.mubr.bf16.mxu0 0
  %6271 = vmatmul.mubr.bf16.gmra.mrb[0].mxu0 %v6129
  %v6272 = vpop.f32.mrb[0].mxu0
  %v6273 = vadd.f32 0.0, %v6272
  %v6274 = vpop.f32.mrb[0].mxu0
  %v6275 = vpop.f32.mrb[0].mxu0
  %v6276 = vadd.f32 0.0, %v6275
  %v6277 = vpop.f32.mrb[0].mxu0
  %6278 = vdwg.mxu0
  %6279 = vst.msk [vmem:[#allocation2] sm:$0xff] %vm112, %v6169
  %6280 = vst.msk [vmem:[#allocation2 + $0x8] sm:$0xff] %vm112, %v6172
  %6281 = vst.msk [vmem:[#allocation2 + $0x10] sm:$0xff] %vm112, %v6177
  %6282 = vst.msk [vmem:[#allocation2 + $0x18] sm:$0xff] %vm112, %v6180
  %6283 = vst.msk [vmem:[#allocation2 + $0x20] sm:$0xff] %vm112, %v6185
  %6284 = vst.msk [vmem:[#allocation2 + $0x28] sm:$0xff] %vm112, %v6188
  %6285 = vst.msk [vmem:[#allocation2 + $0x30] sm:$0xff] %vm112, %v6193
  %6286 = vst.msk [vmem:[#allocation2 + $0x38] sm:$0xff] %vm112, %v6196
  %6287 = vst.msk [vmem:[#allocation2 + $0x40] sm:$0xff] %vm112, %v6201
  %6288 = vst.msk [vmem:[#allocation2 + $0x48] sm:$0xff] %vm112, %v6204
  %6289 = vst.msk [vmem:[#allocation2 + $0x50] sm:$0xff] %vm112, %v6209
  %6290 = vst.msk [vmem:[#allocation2 + $0x58] sm:$0xff] %vm112, %v6212
  %6291 = vst.msk [vmem:[#allocation2 + $0x60] sm:$0xff] %vm112, %v6217
  %6292 = vst.msk [vmem:[#allocation2 + $0x68] sm:$0xff] %vm112, %v6220
  %6293 = vst.msk [vmem:[#allocation2 + $0x70] sm:$0xff] %vm112, %v6225
  %6294 = vst.msk [vmem:[#allocation2 + $0x78] sm:$0xff] %vm112, %v6228
  %6295 = vst.msk [vmem:[#allocation2 + $0x80] sm:$0xff] %vm112, %v6233
  %6296 = vst.msk [vmem:[#allocation2 + $0x88] sm:$0xff] %vm112, %v6236
  %6297 = vst.msk [vmem:[#allocation2 + $0x90] sm:$0xff] %vm112, %v6241
  %6298 = vst.msk [vmem:[#allocation2 + $0x98] sm:$0xff] %vm112, %v6244
  %6299 = vst.msk [vmem:[#allocation2 + $0xa0] sm:$0xff] %vm112, %v6249
  %6300 = vst.msk [vmem:[#allocation2 + $0xa8] sm:$0xff] %vm112, %v6252
  %6301 = vst.msk [vmem:[#allocation2 + $0xb0] sm:$0xff] %vm112, %v6257
  %6302 = vst.msk [vmem:[#allocation2 + $0xb8] sm:$0xff] %vm112, %v6260
  %6303 = vst.msk [vmem:[#allocation2 + $0xc0] sm:$0xff] %vm112, %v6265
  %6304 = vst.msk [vmem:[#allocation2 + $0xc8] sm:$0xff] %vm112, %v6268
  %6305 = vst.msk [vmem:[#allocation2 + $0xd0] sm:$0xff] %vm112, %v6273
  %6306 = vst.msk [vmem:[#allocation2 + $0xd8] sm:$0xff] %vm112, %v6276
  %s6307 = scalar_lea.vmem %s21, 28
  %v6308 = vld [vmem:[%s6307] sm:$0xf]
  %v6309 = vld [vmem:[%s6307 + $0x4] sm:$0xf]
  %v6310 = vld [vmem:[%s6307 + $0x8] sm:$0xf]
  %v6311 = vld [vmem:[%s6307 + $0xc] sm:$0xf]
  %v6312 = vld [vmem:[%s6307 + $0x10] sm:$0xf]
  %v6313 = vld [vmem:[%s6307 + $0x14] sm:$0xf]
  %v6314 = vld [vmem:[%s6307 + $0x18] sm:$0xf]
  %v6322 = vunpack.c.l.b16 %v6308
  %v6323 = vunpack.c.l.b16 %v6309
  %v6324 = vunpack.c.l.b16 %v6310
  %v6325 = vunpack.c.l.b16 %v6311
  %v6326 = vunpack.c.l.b16 %v6312
  %v6327 = vunpack.c.l.b16 %v6313
  %v6328 = vunpack.c.l.b16 %v6314
  %v6329 = vpack.c.b16 %v6323, %v6322
  %v6330 = vpack.c.b16 %v6325, %v6324
  %v6331 = vpack.c.b16 %v6327, %v6326
  %v6332 = vpack.c.b16 %v6328, %v6328
  %v6337 = vsel %vm119, %v6332, 0
  %6339 = vmatprep.subr.bf16.mxu0 0
  %6340 = vmatpush1.bf16.msra.mxu0 %v6329
  %6341 = vmatprep.subr.bf16.mxu0 0
  %6342 = vmatpush1.bf16.msra.mxu0 %v6330
  %6343 = vmatprep.subr.bf16.mxu0 0
  %6344 = vmatpush1.bf16.msra.mxu0 %v6331
  %6345 = vmatprep.subr.bf16.mxu0 0
  %6346 = vmatpush1.bf16.msra.mxu0 %v6337
  %6347 = vmatprep.subr.bf16.mxu0 0
  %6348 = vmatpush1.bf16.msra.mxu0 0
  %6349 = vmatprep.subr.bf16.mxu0 0
  %6350 = vmatpush1.bf16.msra.mxu0 0
  %6351 = vmatprep.subr.bf16.mxu0 0
  %6352 = vmatpush1.bf16.msra.mxu0 0
  %6353 = vmatprep.subr.bf16.mxu0 0
  %6354 = vmatpush1.bf16.msra.mxu0 0
  %6355 = vmatprep.subr.bf16.mxu0 0
  %6356 = vmatpush1.bf16.msra.mxu0 0
  %6357 = vmatprep.subr.bf16.mxu0 0
  %6358 = vmatpush1.bf16.msra.mxu0 0
  %6359 = vmatprep.subr.bf16.mxu0 0
  %6360 = vmatpush1.bf16.msra.mxu0 0
  %6361 = vmatprep.subr.bf16.mxu0 0
  %6362 = vmatpush1.bf16.msra.mxu0 0
  %6363 = vmatprep.subr.bf16.mxu0 0
  %6364 = vmatpush1.bf16.msra.mxu0 0
  %6365 = vmatprep.subr.bf16.mxu0 0
  %6366 = vmatpush1.bf16.msra.mxu0 0
  %6367 = vmatprep.subr.bf16.mxu0 0
  %6368 = vmatpush1.bf16.msra.mxu0 0
  %6369 = vmatprep.subr.bf16.mxu0 0
  %6370 = vmatpush1.bf16.msra.mxu0 0
  %6371 = vmatprep.mubr.bf16.mxu0 0
  %6372 = vmatmul.mubr.bf16.gmra.mrb[0].mxu0 %v6090
  %v6373 = vpop.f32.mrb[0].mxu0
  %v6374 = vadd.f32 0.0, %v6373
  %v6375 = vpop.f32.mrb[0].mxu0
  %v6376 = vpop.f32.mrb[0].mxu0
  %v6377 = vadd.f32 0.0, %v6376
  %v6378 = vpop.f32.mrb[0].mxu0
  %6379 = vmatprep.mubr.bf16.mxu0 0
  %6380 = vmatmul.mubr.bf16.gmra.mrb[0].mxu0 %v6093
  %v6381 = vpop.f32.mrb[0].mxu0
  %v6382 = vadd.f32 0.0, %v6381
  %v6383 = vpop.f32.mrb[0].mxu0
  %v6384 = vpop.f32.mrb[0].mxu0
  %v6385 = vadd.f32 0.0, %v6384
  %v6386 = vpop.f32.mrb[0].mxu0
  %6387 = vmatprep.mubr.bf16.mxu0 0
  %6388 = vmatmul.mubr.bf16.gmra.mrb[0].mxu0 %v6096
  %v6389 = vpop.f32.mrb[0].mxu0
  %v6390 = vadd.f32 0.0, %v6389
  %v6391 = vpop.f32.mrb[0].mxu0
  %v6392 = vpop.f32.mrb[0].mxu0
  %v6393 = vadd.f32 0.0, %v6392
  %v6394 = vpop.f32.mrb[0].mxu0
  %6395 = vmatprep.mubr.bf16.mxu0 0
  %6396 = vmatmul.mubr.bf16.gmra.mrb[0].mxu0 %v6099
  %v6397 = vpop.f32.mrb[0].mxu0
  %v6398 = vadd.f32 0.0, %v6397
  %v6399 = vpop.f32.mrb[0].mxu0
  %v6400 = vpop.f32.mrb[0].mxu0
  %v6401 = vadd.f32 0.0, %v6400
  %v6402 = vpop.f32.mrb[0].mxu0
  %6403 = vmatprep.mubr.bf16.mxu0 0
  %6404 = vmatmul.mubr.bf16.gmra.mrb[0].mxu0 %v6102
  %v6405 = vpop.f32.mrb[0].mxu0
  %v6406 = vadd.f32 0.0, %v6405
  %v6407 = vpop.f32.mrb[0].mxu0
  %v6408 = vpop.f32.mrb[0].mxu0
  %v6409 = vadd.f32 0.0, %v6408
  %v6410 = vpop.f32.mrb[0].mxu0
  %6411 = vmatprep.mubr.bf16.mxu0 0
  %6412 = vmatmul.mubr.bf16.gmra.mrb[0].mxu0 %v6105
  %v6413 = vpop.f32.mrb[0].mxu0
  %v6414 = vadd.f32 0.0, %v6413
  %v6415 = vpop.f32.mrb[0].mxu0
  %v6416 = vpop.f32.mrb[0].mxu0
  %v6417 = vadd.f32 0.0, %v6416
  %v6418 = vpop.f32.mrb[0].mxu0
  %6419 = vmatprep.mubr.bf16.mxu0 0
  %6420 = vmatmul.mubr.bf16.gmra.mrb[0].mxu0 %v6108
  %v6421 = vpop.f32.mrb[0].mxu0
  %v6422 = vadd.f32 0.0, %v6421
  %v6423 = vpop.f32.mrb[0].mxu0
  %v6424 = vpop.f32.mrb[0].mxu0
  %v6425 = vadd.f32 0.0, %v6424
  %v6426 = vpop.f32.mrb[0].mxu0
  %6427 = vmatprep.mubr.bf16.mxu0 0
  %6428 = vmatmul.mubr.bf16.gmra.mrb[0].mxu0 %v6111
  %v6429 = vpop.f32.mrb[0].mxu0
  %v6430 = vadd.f32 0.0, %v6429
  %v6431 = vpop.f32.mrb[0].mxu0
  %v6432 = vpop.f32.mrb[0].mxu0
  %v6433 = vadd.f32 0.0, %v6432
  %v6434 = vpop.f32.mrb[0].mxu0
  %6435 = vmatprep.mubr.bf16.mxu0 0
  %6436 = vmatmul.mubr.bf16.gmra.mrb[0].mxu0 %v6114
  %v6437 = vpop.f32.mrb[0].mxu0
  %v6438 = vadd.f32 0.0, %v6437
  %v6439 = vpop.f32.mrb[0].mxu0
  %v6440 = vpop.f32.mrb[0].mxu0
  %v6441 = vadd.f32 0.0, %v6440
  %v6442 = vpop.f32.mrb[0].mxu0
  %6443 = vmatprep.mubr.bf16.mxu0 0
  %6444 = vmatmul.mubr.bf16.gmra.mrb[0].mxu0 %v6117
  %v6445 = vpop.f32.mrb[0].mxu0
  %v6446 = vadd.f32 0.0, %v6445
  %v6447 = vpop.f32.mrb[0].mxu0
  %v6448 = vpop.f32.mrb[0].mxu0
  %v6449 = vadd.f32 0.0, %v6448
  %v6450 = vpop.f32.mrb[0].mxu0
  %6451 = vmatprep.mubr.bf16.mxu0 0
  %6452 = vmatmul.mubr.bf16.gmra.mrb[0].mxu0 %v6120
  %v6453 = vpop.f32.mrb[0].mxu0
  %v6454 = vadd.f32 0.0, %v6453
  %v6455 = vpop.f32.mrb[0].mxu0
  %v6456 = vpop.f32.mrb[0].mxu0
  %v6457 = vadd.f32 0.0, %v6456
  %v6458 = vpop.f32.mrb[0].mxu0
  %6459 = vmatprep.mubr.bf16.mxu0 0
  %6460 = vmatmul.mubr.bf16.gmra.mrb[0].mxu0 %v6123
  %v6461 = vpop.f32.mrb[0].mxu0
  %v6462 = vadd.f32 0.0, %v6461
  %v6463 = vpop.f32.mrb[0].mxu0
  %v6464 = vpop.f32.mrb[0].mxu0
  %v6465 = vadd.f32 0.0, %v6464
  %v6466 = vpop.f32.mrb[0].mxu0
  %6467 = vmatprep.mubr.bf16.mxu0 0
  %6468 = vmatmul.mubr.bf16.gmra.mrb[0].mxu0 %v6126
  %v6469 = vpop.f32.mrb[0].mxu0
  %v6470 = vadd.f32 0.0, %v6469
  %v6471 = vpop.f32.mrb[0].mxu0
  %v6472 = vpop.f32.mrb[0].mxu0
  %v6473 = vadd.f32 0.0, %v6472
  %v6474 = vpop.f32.mrb[0].mxu0
  %6475 = vmatprep.mubr.bf16.mxu0 0
  %6476 = vmatmul.mubr.bf16.gmra.mrb[0].mxu0 %v6129
  %v6477 = vpop.f32.mrb[0].mxu0
  %v6478 = vadd.f32 0.0, %v6477
  %v6479 = vpop.f32.mrb[0].mxu0
  %v6480 = vpop.f32.mrb[0].mxu0
  %v6481 = vadd.f32 0.0, %v6480
  %v6482 = vpop.f32.mrb[0].mxu0
  %6483 = vdwg.mxu0
  %6484 = vst.msk [vmem:[#allocation2 + $0xe0] sm:$0xff] %vm112, %v6374
  %6485 = vst.msk [vmem:[#allocation2 + $0xe8] sm:$0xff] %vm112, %v6377
  %6486 = vst.msk [vmem:[#allocation2 + $0xf0] sm:$0xff] %vm112, %v6382
  %6487 = vst.msk [vmem:[#allocation2 + $0xf8] sm:$0xff] %vm112, %v6385
  %6488 = vst.msk [vmem:[#allocation2 + $0x100] sm:$0xff] %vm112, %v6390
  %6489 = vst.msk [vmem:[#allocation2 + $0x108] sm:$0xff] %vm112, %v6393
  %6490 = vst.msk [vmem:[#allocation2 + $0x110] sm:$0xff] %vm112, %v6398
  %6491 = vst.msk [vmem:[#allocation2 + $0x118] sm:$0xff] %vm112, %v6401
  %6492 = vst.msk [vmem:[#allocation2 + $0x120] sm:$0xff] %vm112, %v6406
  %6493 = vst.msk [vmem:[#allocation2 + $0x128] sm:$0xff] %vm112, %v6409
  %6494 = vst.msk [vmem:[#allocation2 + $0x130] sm:$0xff] %vm112, %v6414
  %6495 = vst.msk [vmem:[#allocation2 + $0x138] sm:$0xff] %vm112, %v6417
  %6496 = vst.msk [vmem:[#allocation2 + $0x140] sm:$0xff] %vm112, %v6422
  %6497 = vst.msk [vmem:[#allocation2 + $0x148] sm:$0xff] %vm112, %v6425
  %6498 = vst.msk [vmem:[#allocation2 + $0x150] sm:$0xff] %vm112, %v6430
  %6499 = vst.msk [vmem:[#allocation2 + $0x158] sm:$0xff] %vm112, %v6433
  %6500 = vst.msk [vmem:[#allocation2 + $0x160] sm:$0xff] %vm112, %v6438
  %6501 = vst.msk [vmem:[#allocation2 + $0x168] sm:$0xff] %vm112, %v6441
  %6502 = vst.msk [vmem:[#allocation2 + $0x170] sm:$0xff] %vm112, %v6446
  %6503 = vst.msk [vmem:[#allocation2 + $0x178] sm:$0xff] %vm112, %v6449
  %6504 = vst.msk [vmem:[#allocation2 + $0x180] sm:$0xff] %vm112, %v6454
  %6505 = vst.msk [vmem:[#allocation2 + $0x188] sm:$0xff] %vm112, %v6457
  %6506 = vst.msk [vmem:[#allocation2 + $0x190] sm:$0xff] %vm112, %v6462
  %6507 = vst.msk [vmem:[#allocation2 + $0x198] sm:$0xff] %vm112, %v6465
  %6508 = vst.msk [vmem:[#allocation2 + $0x1a0] sm:$0xff] %vm112, %v6470
  %6509 = vst.msk [vmem:[#allocation2 + $0x1a8] sm:$0xff] %vm112, %v6473
  %6510 = vst.msk [vmem:[#allocation2 + $0x1b0] sm:$0xff] %vm112, %v6478
  %6511 = vst.msk [vmem:[#allocation2 + $0x1b8] sm:$0xff] %vm112, %v6481
  %s6512 = scalar_lea.vmem %s21, 56
  %v6513 = vld [vmem:[%s6512] sm:$0xf]
  %v6514 = vld [vmem:[%s6512 + $0x4] sm:$0xf]
  %v6515 = vld [vmem:[%s6512 + $0x8] sm:$0xf]
  %v6516 = vld [vmem:[%s6512 + $0xc] sm:$0xf]
  %v6517 = vld [vmem:[%s6512 + $0x10] sm:$0xf]
  %v6518 = vld [vmem:[%s6512 + $0x14] sm:$0xf]
  %v6519 = vld [vmem:[%s6512 + $0x18] sm:$0xf]
  %v6527 = vunpack.c.l.b16 %v6513
  %v6528 = vunpack.c.l.b16 %v6514
  %v6529 = vunpack.c.l.b16 %v6515
  %v6530 = vunpack.c.l.b16 %v6516
  %v6531 = vunpack.c.l.b16 %v6517
  %v6532 = vunpack.c.l.b16 %v6518
  %v6533 = vunpack.c.l.b16 %v6519
  %v6534 = vpack.c.b16 %v6528, %v6527
  %v6535 = vpack.c.b16 %v6530, %v6529
  %v6536 = vpack.c.b16 %v6532, %v6531
  %v6537 = vpack.c.b16 %v6533, %v6533
  %v6542 = vsel %vm119, %v6537, 0
  %6544 = vmatprep.subr.bf16.mxu0 0
  %6545 = vmatpush1.bf16.msra.mxu0 %v6534
  %6546 = vmatprep.subr.bf16.mxu0 0
  %6547 = vmatpush1.bf16.msra.mxu0 %v6535
  %6548 = vmatprep.subr.bf16.mxu0 0
  %6549 = vmatpush1.bf16.msra.mxu0 %v6536
  %6550 = vmatprep.subr.bf16.mxu0 0
  %6551 = vmatpush1.bf16.msra.mxu0 %v6542
  %6552 = vmatprep.subr.bf16.mxu0 0
  %6553 = vmatpush1.bf16.msra.mxu0 0
  %6554 = vmatprep.subr.bf16.mxu0 0
  %6555 = vmatpush1.bf16.msra.mxu0 0
  %6556 = vmatprep.subr.bf16.mxu0 0
  %6557 = vmatpush1.bf16.msra.mxu0 0
  %6558 = vmatprep.subr.bf16.mxu0 0
  %6559 = vmatpush1.bf16.msra.mxu0 0
  %6560 = vmatprep.subr.bf16.mxu0 0
  %6561 = vmatpush1.bf16.msra.mxu0 0
  %6562 = vmatprep.subr.bf16.mxu0 0
  %6563 = vmatpush1.bf16.msra.mxu0 0
  %6564 = vmatprep.subr.bf16.mxu0 0
  %6565 = vmatpush1.bf16.msra.mxu0 0
  %6566 = vmatprep.subr.bf16.mxu0 0
  %6567 = vmatpush1.bf16.msra.mxu0 0
  %6568 = vmatprep.subr.bf16.mxu0 0
  %6569 = vmatpush1.bf16.msra.mxu0 0
  %6570 = vmatprep.subr.bf16.mxu0 0
  %6571 = vmatpush1.bf16.msra.mxu0 0
  %6572 = vmatprep.subr.bf16.mxu0 0
  %6573 = vmatpush1.bf16.msra.mxu0 0
  %6574 = vmatprep.subr.bf16.mxu0 0
  %6575 = vmatpush1.bf16.msra.mxu0 0
  %6576 = vmatprep.mubr.bf16.mxu0 0
  %6577 = vmatmul.mubr.bf16.gmra.mrb[0].mxu0 %v6090
  %v6578 = vpop.f32.mrb[0].mxu0
  %v6579 = vadd.f32 0.0, %v6578
  %v6580 = vpop.f32.mrb[0].mxu0
  %v6581 = vpop.f32.mrb[0].mxu0
  %v6582 = vadd.f32 0.0, %v6581
  %v6583 = vpop.f32.mrb[0].mxu0
  %6584 = vmatprep.mubr.bf16.mxu0 0
  %6585 = vmatmul.mubr.bf16.gmra.mrb[0].mxu0 %v6093
  %v6586 = vpop.f32.mrb[0].mxu0
  %v6587 = vadd.f32 0.0, %v6586
  %v6588 = vpop.f32.mrb[0].mxu0
  %v6589 = vpop.f32.mrb[0].mxu0
  %v6590 = vadd.f32 0.0, %v6589
  %v6591 = vpop.f32.mrb[0].mxu0
  %6592 = vmatprep.mubr.bf16.mxu0 0
  %6593 = vmatmul.mubr.bf16.gmra.mrb[0].mxu0 %v6096
  %v6594 = vpop.f32.mrb[0].mxu0
  %v6595 = vadd.f32 0.0, %v6594
  %v6596 = vpop.f32.mrb[0].mxu0
  %v6597 = vpop.f32.mrb[0].mxu0
  %v6598 = vadd.f32 0.0, %v6597
  %v6599 = vpop.f32.mrb[0].mxu0
  %6600 = vmatprep.mubr.bf16.mxu0 0
  %6601 = vmatmul.mubr.bf16.gmra.mrb[0].mxu0 %v6099
  %v6602 = vpop.f32.mrb[0].mxu0
  %v6603 = vadd.f32 0.0, %v6602
  %v6604 = vpop.f32.mrb[0].mxu0
  %v6605 = vpop.f32.mrb[0].mxu0
  %v6606 = vadd.f32 0.0, %v6605
  %v6607 = vpop.f32.mrb[0].mxu0
  %6608 = vmatprep.mubr.bf16.mxu0 0
  %6609 = vmatmul.mubr.bf16.gmra.mrb[0].mxu0 %v6102
  %v6610 = vpop.f32.mrb[0].mxu0
  %v6611 = vadd.f32 0.0, %v6610
  %v6612 = vpop.f32.mrb[0].mxu0
  %v6613 = vpop.f32.mrb[0].mxu0
  %v6614 = vadd.f32 0.0, %v6613
  %v6615 = vpop.f32.mrb[0].mxu0
  %6616 = vmatprep.mubr.bf16.mxu0 0
  %6617 = vmatmul.mubr.bf16.gmra.mrb[0].mxu0 %v6105
  %v6618 = vpop.f32.mrb[0].mxu0
  %v6619 = vadd.f32 0.0, %v6618
  %v6620 = vpop.f32.mrb[0].mxu0
  %v6621 = vpop.f32.mrb[0].mxu0
  %v6622 = vadd.f32 0.0, %v6621
  %v6623 = vpop.f32.mrb[0].mxu0
  %6624 = vmatprep.mubr.bf16.mxu0 0
  %6625 = vmatmul.mubr.bf16.gmra.mrb[0].mxu0 %v6108
  %v6626 = vpop.f32.mrb[0].mxu0
  %v6627 = vadd.f32 0.0, %v6626
  %v6628 = vpop.f32.mrb[0].mxu0
  %v6629 = vpop.f32.mrb[0].mxu0
  %v6630 = vadd.f32 0.0, %v6629
  %v6631 = vpop.f32.mrb[0].mxu0
  %6632 = vmatprep.mubr.bf16.mxu0 0
  %6633 = vmatmul.mubr.bf16.gmra.mrb[0].mxu0 %v6111
  %v6634 = vpop.f32.mrb[0].mxu0
  %v6635 = vadd.f32 0.0, %v6634
  %v6636 = vpop.f32.mrb[0].mxu0
  %v6637 = vpop.f32.mrb[0].mxu0
  %v6638 = vadd.f32 0.0, %v6637
  %v6639 = vpop.f32.mrb[0].mxu0
  %6640 = vmatprep.mubr.bf16.mxu0 0
  %6641 = vmatmul.mubr.bf16.gmra.mrb[0].mxu0 %v6114
  %v6642 = vpop.f32.mrb[0].mxu0
  %v6643 = vadd.f32 0.0, %v6642
  %v6644 = vpop.f32.mrb[0].mxu0
  %v6645 = vpop.f32.mrb[0].mxu0
  %v6646 = vadd.f32 0.0, %v6645
  %v6647 = vpop.f32.mrb[0].mxu0
  %6648 = vmatprep.mubr.bf16.mxu0 0
  %6649 = vmatmul.mubr.bf16.gmra.mrb[0].mxu0 %v6117
  %v6650 = vpop.f32.mrb[0].mxu0
  %v6651 = vadd.f32 0.0, %v6650
  %v6652 = vpop.f32.mrb[0].mxu0
  %v6653 = vpop.f32.mrb[0].mxu0
  %v6654 = vadd.f32 0.0, %v6653
  %v6655 = vpop.f32.mrb[0].mxu0
  %6656 = vmatprep.mubr.bf16.mxu0 0
  %6657 = vmatmul.mubr.bf16.gmra.mrb[0].mxu0 %v6120
  %v6658 = vpop.f32.mrb[0].mxu0
  %v6659 = vadd.f32 0.0, %v6658
  %v6660 = vpop.f32.mrb[0].mxu0
  %v6661 = vpop.f32.mrb[0].mxu0
  %v6662 = vadd.f32 0.0, %v6661
  %v6663 = vpop.f32.mrb[0].mxu0
  %6664 = vmatprep.mubr.bf16.mxu0 0
  %6665 = vmatmul.mubr.bf16.gmra.mrb[0].mxu0 %v6123
  %v6666 = vpop.f32.mrb[0].mxu0
  %v6667 = vadd.f32 0.0, %v6666
  %v6668 = vpop.f32.mrb[0].mxu0
  %v6669 = vpop.f32.mrb[0].mxu0
  %v6670 = vadd.f32 0.0, %v6669
  %v6671 = vpop.f32.mrb[0].mxu0
  %6672 = vmatprep.mubr.bf16.mxu0 0
  %6673 = vmatmul.mubr.bf16.gmra.mrb[0].mxu0 %v6126
  %v6674 = vpop.f32.mrb[0].mxu0
  %v6675 = vadd.f32 0.0, %v6674
  %v6676 = vpop.f32.mrb[0].mxu0
  %v6677 = vpop.f32.mrb[0].mxu0
  %v6678 = vadd.f32 0.0, %v6677
  %v6679 = vpop.f32.mrb[0].mxu0
  %6680 = vmatprep.mubr.bf16.mxu0 0
  %6681 = vmatmul.mubr.bf16.gmra.mrb[0].mxu0 %v6129
  %v6682 = vpop.f32.mrb[0].mxu0
  %v6683 = vadd.f32 0.0, %v6682
  %v6684 = vpop.f32.mrb[0].mxu0
  %v6685 = vpop.f32.mrb[0].mxu0
  %v6686 = vadd.f32 0.0, %v6685
  %v6687 = vpop.f32.mrb[0].mxu0
  %6688 = vdwg.mxu0
  %6689 = vst.msk [vmem:[#allocation2 + $0x1c0] sm:$0xff] %vm112, %v6579
  %6690 = vst.msk [vmem:[#allocation2 + $0x1c8] sm:$0xff] %vm112, %v6582
  %6691 = vst.msk [vmem:[#allocation2 + $0x1d0] sm:$0xff] %vm112, %v6587
  %6692 = vst.msk [vmem:[#allocation2 + $0x1d8] sm:$0xff] %vm112, %v6590
  %6693 = vst.msk [vmem:[#allocation2 + $0x1e0] sm:$0xff] %vm112, %v6595
  %6694 = vst.msk [vmem:[#allocation2 + $0x1e8] sm:$0xff] %vm112, %v6598
  %6695 = vst.msk [vmem:[#allocation2 + $0x1f0] sm:$0xff] %vm112, %v6603
  %6696 = vst.msk [vmem:[#allocation2 + $0x1f8] sm:$0xff] %vm112, %v6606
  %6697 = vst.msk [vmem:[#allocation2 + $0x200] sm:$0xff] %vm112, %v6611
  %6698 = vst.msk [vmem:[#allocation2 + $0x208] sm:$0xff] %vm112, %v6614
  %6699 = vst.msk [vmem:[#allocation2 + $0x210] sm:$0xff] %vm112, %v6619
  %6700 = vst.msk [vmem:[#allocation2 + $0x218] sm:$0xff] %vm112, %v6622
  %6701 = vst.msk [vmem:[#allocation2 + $0x220] sm:$0xff] %vm112, %v6627
  %6702 = vst.msk [vmem:[#allocation2 + $0x228] sm:$0xff] %vm112, %v6630
  %6703 = vst.msk [vmem:[#allocation2 + $0x230] sm:$0xff] %vm112, %v6635
  %6704 = vst.msk [vmem:[#allocation2 + $0x238] sm:$0xff] %vm112, %v6638
  %6705 = vst.msk [vmem:[#allocation2 + $0x240] sm:$0xff] %vm112, %v6643
  %6706 = vst.msk [vmem:[#allocation2 + $0x248] sm:$0xff] %vm112, %v6646
  %6707 = vst.msk [vmem:[#allocation2 + $0x250] sm:$0xff] %vm112, %v6651
  %6708 = vst.msk [vmem:[#allocation2 + $0x258] sm:$0xff] %vm112, %v6654
  %6709 = vst.msk [vmem:[#allocation2 + $0x260] sm:$0xff] %vm112, %v6659
  %6710 = vst.msk [vmem:[#allocation2 + $0x268] sm:$0xff] %vm112, %v6662
  %6711 = vst.msk [vmem:[#allocation2 + $0x270] sm:$0xff] %vm112, %v6667
  %6712 = vst.msk [vmem:[#allocation2 + $0x278] sm:$0xff] %vm112, %v6670
  %6713 = vst.msk [vmem:[#allocation2 + $0x280] sm:$0xff] %vm112, %v6675
  %6714 = vst.msk [vmem:[#allocation2 + $0x288] sm:$0xff] %vm112, %v6678
  %6715 = vst.msk [vmem:[#allocation2 + $0x290] sm:$0xff] %vm112, %v6683
  %6716 = vst.msk [vmem:[#allocation2 + $0x298] sm:$0xff] %vm112, %v6686
  %v6717 = vld [vmem:[#allocation2] sm:$0xff]
  %v6718 = vld [vmem:[#allocation2 + $0x8] sm:$0xff]
  %v6719 = vld [vmem:[#allocation2 + $0x10] sm:$0xff]
  %v6720 = vld [vmem:[#allocation2 + $0x18] sm:$0xff]
  %v6721 = vld [vmem:[#allocation2 + $0x20] sm:$0xff]
  %v6722 = vld [vmem:[#allocation2 + $0x28] sm:$0xff]
  %v6723 = vld [vmem:[#allocation2 + $0x30] sm:$0xff]
  %v6724 = vld [vmem:[#allocation2 + $0x38] sm:$0xff]
  %v6725 = vld [vmem:[#allocation2 + $0x40] sm:$0xff]
  %v6726 = vld [vmem:[#allocation2 + $0x48] sm:$0xff]
  %v6727 = vld [vmem:[#allocation2 + $0x50] sm:$0xff]
  %v6728 = vld [vmem:[#allocation2 + $0x58] sm:$0xff]
  %v6729 = vld [vmem:[#allocation2 + $0x60] sm:$0xff]
  %v6730 = vld [vmem:[#allocation2 + $0x68] sm:$0xff]
  %v6731 = vld [vmem:[#allocation2 + $0x70] sm:$0xff]
  %v6732 = vld [vmem:[#allocation2 + $0x78] sm:$0xff]
  %v6733 = vld [vmem:[#allocation2 + $0x80] sm:$0xff]
  %v6734 = vld [vmem:[#allocation2 + $0x88] sm:$0xff]
  %v6735 = vld [vmem:[#allocation2 + $0x90] sm:$0xff]
  %v6736 = vld [vmem:[#allocation2 + $0x98] sm:$0xff]
  %v6737 = vld [vmem:[#allocation2 + $0xa0] sm:$0xff]
  %v6738 = vld [vmem:[#allocation2 + $0xa8] sm:$0xff]
  %v6739 = vld [vmem:[#allocation2 + $0xb0] sm:$0xff]
  %v6740 = vld [vmem:[#allocation2 + $0xb8] sm:$0xff]
  %v6741 = vld [vmem:[#allocation2 + $0xc0] sm:$0xff]
  %v6742 = vld [vmem:[#allocation2 + $0xc8] sm:$0xff]
  %v6743 = vld [vmem:[#allocation2 + $0xd0] sm:$0xff]
  %v6744 = vld [vmem:[#allocation2 + $0xd8] sm:$0xff]
  %v6745 = vld [vmem:[#allocation2 + $0xe0] sm:$0xff]
  %v6746 = vld [vmem:[#allocation2 + $0xe8] sm:$0xff]
  %v6747 = vld [vmem:[#allocation2 + $0xf0] sm:$0xff]
  %v6748 = vld [vmem:[#allocation2 + $0xf8] sm:$0xff]
  %v6749 = vld [vmem:[#allocation2 + $0x100] sm:$0xff]
  %v6750 = vld [vmem:[#allocation2 + $0x108] sm:$0xff]
  %v6751 = vld [vmem:[#allocation2 + $0x110] sm:$0xff]
  %v6752 = vld [vmem:[#allocation2 + $0x118] sm:$0xff]
  %v6753 = vld [vmem:[#allocation2 + $0x120] sm:$0xff]
  %v6754 = vld [vmem:[#allocation2 + $0x128] sm:$0xff]
  %v6755 = vld [vmem:[#allocation2 + $0x130] sm:$0xff]
  %v6756 = vld [vmem:[#allocation2 + $0x138] sm:$0xff]
  %v6757 = vld [vmem:[#allocation2 + $0x140] sm:$0xff]
  %v6758 = vld [vmem:[#allocation2 + $0x148] sm:$0xff]
  %v6759 = vld [vmem:[#allocation2 + $0x150] sm:$0xff]
  %v6760 = vld [vmem:[#allocation2 + $0x158] sm:$0xff]
  %v6761 = vld [vmem:[#allocation2 + $0x160] sm:$0xff]
  %v6762 = vld [vmem:[#allocation2 + $0x168] sm:$0xff]
  %v6763 = vld [vmem:[#allocation2 + $0x170] sm:$0xff]
  %v6764 = vld [vmem:[#allocation2 + $0x178] sm:$0xff]
  %v6765 = vld [vmem:[#allocation2 + $0x180] sm:$0xff]
  %v6766 = vld [vmem:[#allocation2 + $0x188] sm:$0xff]
  %v6767 = vld [vmem:[#allocation2 + $0x190] sm:$0xff]
  %v6768 = vld [vmem:[#allocation2 + $0x198] sm:$0xff]
  %v6769 = vld [vmem:[#allocation2 + $0x1a0] sm:$0xff]
  %v6770 = vld [vmem:[#allocation2 + $0x1a8] sm:$0xff]
  %v6771 = vld [vmem:[#allocation2 + $0x1b0] sm:$0xff]
  %v6772 = vld [vmem:[#allocation2 + $0x1b8] sm:$0xff]
  %v6773 = vld [vmem:[#allocation2 + $0x1c0] sm:$0xff]
  %v6774 = vld [vmem:[#allocation2 + $0x1c8] sm:$0xff]
  %v6775 = vld [vmem:[#allocation2 + $0x1d0] sm:$0xff]
  %v6776 = vld [vmem:[#allocation2 + $0x1d8] sm:$0xff]
  %v6777 = vld [vmem:[#allocation2 + $0x1e0] sm:$0xff]
  %v6778 = vld [vmem:[#allocation2 + $0x1e8] sm:$0xff]
  %v6779 = vld [vmem:[#allocation2 + $0x1f0] sm:$0xff]
  %v6780 = vld [vmem:[#allocation2 + $0x1f8] sm:$0xff]
  %v6781 = vld [vmem:[#allocation2 + $0x200] sm:$0xff]
  %v6782 = vld [vmem:[#allocation2 + $0x208] sm:$0xff]
  %v6783 = vld [vmem:[#allocation2 + $0x210] sm:$0xff]
  %v6784 = vld [vmem:[#allocation2 + $0x218] sm:$0xff]
  %v6785 = vld [vmem:[#allocation2 + $0x220] sm:$0xff]
  %v6786 = vld [vmem:[#allocation2 + $0x228] sm:$0xff]
  %v6787 = vld [vmem:[#allocation2 + $0x230] sm:$0xff]
  %v6788 = vld [vmem:[#allocation2 + $0x238] sm:$0xff]
  %v6789 = vld [vmem:[#allocation2 + $0x240] sm:$0xff]
  %v6790 = vld [vmem:[#allocation2 + $0x248] sm:$0xff]
  %v6791 = vld [vmem:[#allocation2 + $0x250] sm:$0xff]
  %v6792 = vld [vmem:[#allocation2 + $0x258] sm:$0xff]
  %v6793 = vld [vmem:[#allocation2 + $0x260] sm:$0xff]
  %v6794 = vld [vmem:[#allocation2 + $0x268] sm:$0xff]
  %v6795 = vld [vmem:[#allocation2 + $0x270] sm:$0xff]
  %v6796 = vld [vmem:[#allocation2 + $0x278] sm:$0xff]
  %v6797 = vld [vmem:[#allocation2 + $0x280] sm:$0xff]
  %v6798 = vld [vmem:[#allocation2 + $0x288] sm:$0xff]
  %v6799 = vld [vmem:[#allocation2 + $0x290] sm:$0xff]
  %v6800 = vld [vmem:[#allocation2 + $0x298] sm:$0xff]
  %v6801 = vpack.c.bf16 %v6718, %v6717
  %v6802 = vpack.c.bf16 %v6720, %v6719
  %v6803 = vpack.c.bf16 %v6722, %v6721
  %v6804 = vpack.c.bf16 %v6724, %v6723
  %v6805 = vpack.c.bf16 %v6726, %v6725
  %v6806 = vpack.c.bf16 %v6728, %v6727
  %v6807 = vpack.c.bf16 %v6730, %v6729
  %v6808 = vpack.c.bf16 %v6732, %v6731
  %v6809 = vpack.c.bf16 %v6734, %v6733
  %v6810 = vpack.c.bf16 %v6736, %v6735
  %v6811 = vpack.c.bf16 %v6738, %v6737
  %v6812 = vpack.c.bf16 %v6740, %v6739
  %v6813 = vpack.c.bf16 %v6742, %v6741
  %v6814 = vpack.c.bf16 %v6744, %v6743
  %v6815 = vpack.c.bf16 %v6746, %v6745
  %v6816 = vpack.c.bf16 %v6748, %v6747
  %v6817 = vpack.c.bf16 %v6750, %v6749
  %v6818 = vpack.c.bf16 %v6752, %v6751
  %v6819 = vpack.c.bf16 %v6754, %v6753
  %v6820 = vpack.c.bf16 %v6756, %v6755
  %v6821 = vpack.c.bf16 %v6758, %v6757
  %v6822 = vpack.c.bf16 %v6760, %v6759
  %v6823 = vpack.c.bf16 %v6762, %v6761
  %v6824 = vpack.c.bf16 %v6764, %v6763
  %v6825 = vpack.c.bf16 %v6766, %v6765
  %v6826 = vpack.c.bf16 %v6768, %v6767
  %v6827 = vpack.c.bf16 %v6770, %v6769
  %v6828 = vpack.c.bf16 %v6772, %v6771
  %v6829 = vpack.c.bf16 %v6774, %v6773
  %v6830 = vpack.c.bf16 %v6776, %v6775
  %v6831 = vpack.c.bf16 %v6778, %v6777
  %v6832 = vpack.c.bf16 %v6780, %v6779
  %v6833 = vpack.c.bf16 %v6782, %v6781
  %v6834 = vpack.c.bf16 %v6784, %v6783
  %v6835 = vpack.c.bf16 %v6786, %v6785
  %v6836 = vpack.c.bf16 %v6788, %v6787
  %v6837 = vpack.c.bf16 %v6790, %v6789
  %v6838 = vpack.c.bf16 %v6792, %v6791
  %v6839 = vpack.c.bf16 %v6794, %v6793
  %v6840 = vpack.c.bf16 %v6796, %v6795
  %v6841 = vpack.c.bf16 %v6798, %v6797
  %v6842 = vpack.c.bf16 %v6800, %v6799
  %v6843 = vld [vmem:[%s20] sm:$0xff]
  %v6844 = vld [vmem:[%s20 + $0x8] sm:$0xff]
  %v6845 = vld [vmem:[%s20 + $0x10] sm:$0xff]
  %v6846 = vld [vmem:[%s20 + $0x18] sm:$0xff]
  %v6847 = vld [vmem:[%s20 + $0x20] sm:$0xff]
  %v6848 = vld [vmem:[%s20 + $0x28] sm:$0xff]
  %v6849 = vld [vmem:[%s20 + $0x30] sm:$0xff]
  %v6850 = vld [vmem:[%s20 + $0x38] sm:$0xff]
  %v6851 = vld [vmem:[%s20 + $0x40] sm:$0xff]
  %v6852 = vld [vmem:[%s20 + $0x48] sm:$0x33]
  %v6853 = vld [vmem:[%s20 + $0x50] sm:$0x33]
  %v6854 = vld [vmem:[%s20 + $0x58] sm:$0x33]
  %v6855 = vld [vmem:[%s22] sm:$0xff]
  %v6856 = vld [vmem:[%s22 + $0x8] sm:$0xff]
  %v6857 = vld [vmem:[%s22 + $0x10] sm:$0xff]
  %v6858 = vld [vmem:[%s22 + $0x18] sm:$0xf]
  %6860 = vset.pattern.permute.xlu0 0
  %6861 = vperm.xlu0 %6860, %v6855
  %v6862 = vpop.permute.xlu0 %6861
  %6865 = vset.pattern.permute.xlu0 0
  %6866 = vperm.xlu0 %6865, %v6856
  %v6867 = vpop.permute.xlu0 %6866
  %6870 = vset.pattern.permute.xlu0 0
  %6871 = vperm.xlu0 %6870, %v6857
  %v6872 = vpop.permute.xlu0 %6871
  %6875 = vset.pattern.permute.xlu0 0
  %6876 = vperm.xlu0 %6875, %v6858
  %v6877 = vpop.permute.xlu0 %6876
  %v6891 = vunpack.c.l.b16 %v6843
  %v6892 = vunpack.c.h.b16 %v6843
  %v6893 = vunpack.c.l.b16 %v6844
  %v6894 = vunpack.c.h.b16 %v6844
  %v6895 = vunpack.c.l.b16 %v6845
  %v6896 = vunpack.c.h.b16 %v6845
  %v6897 = vunpack.c.l.b16 %v6846
  %v6898 = vunpack.c.h.b16 %v6846
  %v6899 = vunpack.c.l.b16 %v6847
  %v6900 = vunpack.c.h.b16 %v6847
  %v6901 = vunpack.c.l.b16 %v6848
  %v6902 = vunpack.c.h.b16 %v6848
  %v6903 = vunpack.c.l.b16 %v6849
  %v6904 = vunpack.c.h.b16 %v6849
  %v6905 = vunpack.c.l.b16 %v6850
  %v6906 = vunpack.c.h.b16 %v6850
  %v6907 = vunpack.c.l.b16 %v6851
  %v6908 = vunpack.c.h.b16 %v6851
  %v6909 = vunpack.c.l.b16 %v6852
  %v6910 = vunpack.c.h.b16 %v6852
  %v6911 = vunpack.c.l.b16 %v6853
  %v6912 = vunpack.c.h.b16 %v6853
  %v6913 = vunpack.c.l.b16 %v6854
  %v6914 = vunpack.c.h.b16 %v6854
  %v6915 = vpack.c.b16 %v6897, %v6891
  %v6916 = vpack.c.b16 %v6898, %v6892
  %v6917 = vpack.c.b16 %v6899, %v6893
  %v6918 = vpack.c.b16 %v6900, %v6894
  %v6919 = vpack.c.b16 %v6901, %v6895
  %v6920 = vpack.c.b16 %v6902, %v6896
  %v6921 = vpack.c.b16 %v6909, %v6903
  %v6922 = vpack.c.b16 %v6910, %v6904
  %v6923 = vpack.c.b16 %v6911, %v6905
  %v6924 = vpack.c.b16 %v6912, %v6906
  %v6925 = vpack.c.b16 %v6913, %v6907
  %v6926 = vpack.c.b16 %v6914, %v6908
  %v6938 = vsel %vm5541, %v6920, 0
  %v6941 = vsel %vm5541, %v6926, 0
  %6943 = vmatprep.subr.bf16.mxu0 0
  %6944 = vmatpush1.bf16.msra.mxu0 %v6801
  %6945 = vmatprep.subr.bf16.mxu0 0
  %6946 = vmatpush1.bf16.msra.mxu0 %v6802
  %6947 = vmatprep.subr.bf16.mxu0 0
  %6948 = vmatpush1.bf16.msra.mxu0 %v6803
  %6949 = vmatprep.subr.bf16.mxu0 0
  %6950 = vmatpush1.bf16.msra.mxu0 %v6804
  %6951 = vmatprep.subr.bf16.mxu0 0
  %6952 = vmatpush1.bf16.msra.mxu0 %v6805
  %6953 = vmatprep.subr.bf16.mxu0 0
  %6954 = vmatpush1.bf16.msra.mxu0 %v6806
  %6955 = vmatprep.subr.bf16.mxu0 0
  %6956 = vmatpush1.bf16.msra.mxu0 %v6807
  %6957 = vmatprep.subr.bf16.mxu0 0
  %6958 = vmatpush1.bf16.msra.mxu0 %v6808
  %6959 = vmatprep.subr.bf16.mxu0 0
  %6960 = vmatpush1.bf16.msra.mxu0 %v6809
  %6961 = vmatprep.subr.bf16.mxu0 0
  %6962 = vmatpush1.bf16.msra.mxu0 %v6810
  %6963 = vmatprep.subr.bf16.mxu0 0
  %6964 = vmatpush1.bf16.msra.mxu0 %v6811
  %6965 = vmatprep.subr.bf16.mxu0 0
  %6966 = vmatpush1.bf16.msra.mxu0 %v6812
  %6967 = vmatprep.subr.bf16.mxu0 0
  %6968 = vmatpush1.bf16.msra.mxu0 %v6813
  %6969 = vmatprep.subr.bf16.mxu0 0
  %6970 = vmatpush1.bf16.msra.mxu0 %v6814
  %6971 = vmatprep.subr.bf16.mxu0 0
  %6972 = vmatpush1.bf16.msra.mxu0 %v6815
  %6973 = vmatprep.subr.bf16.mxu0 0
  %6974 = vmatpush1.bf16.msra.mxu0 %v6816
  %6975 = vmatprep.mubr.bf16.mxu0 %v6916
  %6976 = vmatmul.mubr.bf16.gmra.mrb[0].mxu0 %v6915
  %v6977 = vpop.f32.mrb[0].mxu0
  %v6978 = vadd.f32 %v6862, %v6977
  %v6979 = vpop.f32.mrb[0].mxu0
  %v6980 = vpop.f32.mrb[0].mxu0
  %v6981 = vadd.f32 %v6867, %v6980
  %v6982 = vpop.f32.mrb[0].mxu0
  %6983 = vmatprep.mubr.bf16.mxu0 %v6922
  %6984 = vmatmul.mubr.bf16.gmra.mrb[0].mxu0 %v6921
  %v6985 = vpop.f32.mrb[0].mxu0
  %v6986 = vadd.f32 %v6872, %v6985
  %v6987 = vpop.f32.mrb[0].mxu0
  %v6988 = vpop.f32.mrb[0].mxu0
  %v6989 = vadd.f32 %v6877, %v6988
  %v6990 = vpop.f32.mrb[0].mxu0
  %6991 = vdwg.mxu0
  %6992 = vmatprep.subr.bf16.mxu0 0
  %6993 = vmatpush1.bf16.msra.mxu0 %v6817
  %6994 = vmatprep.subr.bf16.mxu0 0
  %6995 = vmatpush1.bf16.msra.mxu0 %v6818
  %6996 = vmatprep.subr.bf16.mxu0 0
  %6997 = vmatpush1.bf16.msra.mxu0 %v6819
  %6998 = vmatprep.subr.bf16.mxu0 0
  %6999 = vmatpush1.bf16.msra.mxu0 %v6820
  %7000 = vmatprep.subr.bf16.mxu0 0
  %7001 = vmatpush1.bf16.msra.mxu0 %v6821
  %7002 = vmatprep.subr.bf16.mxu0 0
  %7003 = vmatpush1.bf16.msra.mxu0 %v6822
  %7004 = vmatprep.subr.bf16.mxu0 0
  %7005 = vmatpush1.bf16.msra.mxu0 %v6823
  %7006 = vmatprep.subr.bf16.mxu0 0
  %7007 = vmatpush1.bf16.msra.mxu0 %v6824
  %7008 = vmatprep.subr.bf16.mxu0 0
  %7009 = vmatpush1.bf16.msra.mxu0 %v6825
  %7010 = vmatprep.subr.bf16.mxu0 0
  %7011 = vmatpush1.bf16.msra.mxu0 %v6826
  %7012 = vmatprep.subr.bf16.mxu0 0
  %7013 = vmatpush1.bf16.msra.mxu0 %v6827
  %7014 = vmatprep.subr.bf16.mxu0 0
  %7015 = vmatpush1.bf16.msra.mxu0 %v6828
  %7016 = vmatprep.subr.bf16.mxu0 0
  %7017 = vmatpush1.bf16.msra.mxu0 %v6829
  %7018 = vmatprep.subr.bf16.mxu0 0
  %7019 = vmatpush1.bf16.msra.mxu0 %v6830
  %7020 = vmatprep.subr.bf16.mxu0 0
  %7021 = vmatpush1.bf16.msra.mxu0 %v6831
  %7022 = vmatprep.subr.bf16.mxu0 0
  %7023 = vmatpush1.bf16.msra.mxu0 %v6832
  %7024 = vmatprep.mubr.bf16.mxu0 %v6918
  %7025 = vmatmul.mubr.bf16.gmra.mrb[0].mxu0 %v6917
  %v7026 = vpop.f32.mrb[0].mxu0
  %v7027 = vadd.f32 %v6978, %v7026
  %v7028 = vpop.f32.mrb[0].mxu0
  %v7029 = vpop.f32.mrb[0].mxu0
  %v7030 = vadd.f32 %v6981, %v7029
  %v7031 = vpop.f32.mrb[0].mxu0
  %7032 = vmatprep.mubr.bf16.mxu0 %v6924
  %7033 = vmatmul.mubr.bf16.gmra.mrb[0].mxu0 %v6923
  %v7034 = vpop.f32.mrb[0].mxu0
  %v7035 = vadd.f32 %v6986, %v7034
  %v7036 = vpop.f32.mrb[0].mxu0
  %v7037 = vpop.f32.mrb[0].mxu0
  %v7038 = vadd.f32 %v6989, %v7037
  %v7039 = vpop.f32.mrb[0].mxu0
  %7040 = vdwg.mxu0
  %7041 = vmatprep.subr.bf16.mxu0 0
  %7042 = vmatpush1.bf16.msra.mxu0 %v6833
  %7043 = vmatprep.subr.bf16.mxu0 0
  %7044 = vmatpush1.bf16.msra.mxu0 %v6834
  %7045 = vmatprep.subr.bf16.mxu0 0
  %7046 = vmatpush1.bf16.msra.mxu0 %v6835
  %7047 = vmatprep.subr.bf16.mxu0 0
  %7048 = vmatpush1.bf16.msra.mxu0 %v6836
  %7049 = vmatprep.subr.bf16.mxu0 0
  %7050 = vmatpush1.bf16.msra.mxu0 %v6837
  %7051 = vmatprep.subr.bf16.mxu0 0
  %7052 = vmatpush1.bf16.msra.mxu0 %v6838
  %7053 = vmatprep.subr.bf16.mxu0 0
  %7054 = vmatpush1.bf16.msra.mxu0 %v6839
  %7055 = vmatprep.subr.bf16.mxu0 0
  %7056 = vmatpush1.bf16.msra.mxu0 %v6840
  %7057 = vmatprep.subr.bf16.mxu0 0
  %7058 = vmatpush1.bf16.msra.mxu0 %v6841
  %7059 = vmatprep.subr.bf16.mxu0 0
  %7060 = vmatpush1.bf16.msra.mxu0 %v6842
  %7061 = vmatprep.subr.bf16.mxu0 0
  %7062 = vmatpush1.bf16.msra.mxu0 0
  %7063 = vmatprep.subr.bf16.mxu0 0
  %7064 = vmatpush1.bf16.msra.mxu0 0
  %7065 = vmatprep.subr.bf16.mxu0 0
  %7066 = vmatpush1.bf16.msra.mxu0 0
  %7067 = vmatprep.subr.bf16.mxu0 0
  %7068 = vmatpush1.bf16.msra.mxu0 0
  %7069 = vmatprep.subr.bf16.mxu0 0
  %7070 = vmatpush1.bf16.msra.mxu0 0
  %7071 = vmatprep.subr.bf16.mxu0 0
  %7072 = vmatpush1.bf16.msra.mxu0 0
  %7073 = vmatprep.mubr.bf16.mxu0 %v6938
  %7074 = vmatmul.mubr.bf16.gmra.mrb[0].mxu0 %v6919
  %v7075 = vpop.f32.mrb[0].mxu0
  %v7076 = vadd.f32 %v7027, %v7075
  %v7077 = vpop.f32.mrb[0].mxu0
  %v7078 = vpop.f32.mrb[0].mxu0
  %v7079 = vadd.f32 %v7030, %v7078
  %v7080 = vpop.f32.mrb[0].mxu0
  %7081 = vmatprep.mubr.bf16.mxu0 %v6941
  %7082 = vmatmul.mubr.bf16.gmra.mrb[0].mxu0 %v6925
  %v7083 = vpop.f32.mrb[0].mxu0
  %v7084 = vadd.f32 %v7035, %v7083
  %v7085 = vpop.f32.mrb[0].mxu0
  %v7086 = vpop.f32.mrb[0].mxu0
  %v7087 = vadd.f32 %v7038, %v7086
  %v7088 = vpop.f32.mrb[0].mxu0
  %7089 = vdwg.mxu0
  %v7090 = vsub.f32 0.0, %v7076
  %v7091 = vsub.f32 0.0, %v7079
  %v7092 = vsub.f32 0.0, %v7084
  %v7093 = vsub.f32 0.0, %v7087
  %v7094 = vmul.f32 %v7090, 1.442695
  %v7095 = vpow.pop %v7094
  %v7096 = vmul.f32 %v7091, 1.442695
  %v7097 = vpow.pop %v7096
  %v7098 = vmul.f32 %v7092, 1.442695
  %v7099 = vpow.pop %v7098
  %v7100 = vmul.f32 %v7093, 1.442695
  %v7101 = vpow.pop %v7100
  %v7102 = vadd.f32 %v7095, 1.0
  %v7103 = vadd.f32 %v7097, 1.0
  %v7104 = vadd.f32 %v7099, 1.0
  %v7105 = vadd.f32 %v7101, 1.0
  %v7106 = vrcp.pop %v7102
  %v7107 = vrcp.pop %v7103
  %v7108 = vrcp.pop %v7104
  %v7109 = vrcp.pop %v7105
  %7110 = vst.msk [vmem:[%s23] sm:$0xff] %vm112, %v7106
  %7111 = vst.msk [vmem:[%s23 + $0x8] sm:$0xff] %vm112, %v7107
  %7112 = vst.msk [vmem:[%s23 + $0x10] sm:$0xff] %vm112, %v7108
  %vm7113 = vcmask 453632
  %7114 = vst.msk [vmem:[%s23 + $0x18] sm:$0xf] %vm7113, %v7109
  %7115 = vst.msk [vmem:[%s24] sm:$0xff] %vm1640, %v2785
  %7116 = vst.msk [vmem:[%s24 + $0x8] sm:$0xff] %vm1640, %v2788
  %7117 = vst.msk [vmem:[%s25] sm:$0xff] %vm1640, %v2801
  %7118 = vst.msk [vmem:[%s25 + $0x8] sm:$0xff] %vm1640, %v2802
  // Predicated region
  $region94: #{vae_forward.1} parent=0 // pred_check
    _
  $region95: #{vae_forward.1} parent=0 // pred_check_branch
    %7120 = sbr.rel (0) target = $region97
  $region96: #{vae_forward.1} parent=0 // pred_region
    _
  $region97: #{vae_forward.1} parent=0 // pred_fallthru
    _
  // Predicated region
  $region98: #{vae_forward.1} parent=0 // pred_check
    _
  $region99: #{vae_forward.1} parent=0 // pred_check_branch
    %7122 = sbr.rel (0) target = $region101
  $region100: #{vae_forward.1} parent=0 // pred_region
    _
  $region101: #{vae_forward.1} parent=0 // pred_fallthru
    _
  // Predicated region
  $region102: #{vae_forward.1} parent=0 // pred_check
    _
  $region103: #{vae_forward.1} parent=0 // pred_check_branch
    %7124 = sbr.rel (0) target = $region105
  $region104: #{vae_forward.1} parent=0 // pred_region
    _
  $region105: #{vae_forward.1} parent=0 // pred_fallthru
    _
  // Predicated region
  $region106: #{vae_forward.1} parent=0 // pred_check
    _
  $region107: #{vae_forward.1} parent=0 // pred_check_branch
    %7126 = sbr.rel (0) target = $region109
  $region108: #{vae_forward.1} parent=0 // pred_region
    _
  $region109: #{vae_forward.1} parent=0 // pred_fallthru
    _
  // Predicated region
  $region110: #{vae_forward.1} parent=0 // pred_check
    _
  $region111: #{vae_forward.1} parent=0 // pred_check_branch
    %7128 = sbr.rel (0) target = $region113
  $region112: #{vae_forward.1} parent=0 // pred_region
    _
  $region113: #{vae_forward.1} parent=0 // pred_fallthru
    _
  // Predicated region
  $region114: #{vae_forward.1} parent=0 // pred_check
    _
  $region115: #{vae_forward.1} parent=0 // pred_check_branch
    %7130 = sbr.rel (0) target = $region117
  $region116: #{vae_forward.1} parent=0 // pred_region
    _
  $region117: #{vae_forward.1} parent=0 // pred_fallthru
    _

</llo_original>
